<compile_context>
chip_gen: v7x
topology: tpu7x:2x2x1
jax: 0.10.0
libtpu: 0.0.40
codegen_flags: <defaults>
</compile_context>

<pallas_src>
import jax
import jax.numpy as jnp
from jax.experimental import pallas as pl
from jax.experimental.pallas import tpu as pltpu

# ---------------- configuration (small, consistent with the module) -------------
B         = 2        # batch
N_CH      = 4        # global_params['n_channels']  (== 'spatial' out channels)
TEMPORAL  = 8        # encoder_params['temporal_size']
EMB       = 16       # global_params['embedding_size']
N_HEADS   = 2        # encoder_params['n_encoder_heads']
N_LAYERS  = 2        # encoder_params['n_encoder_layers']
FFN       = 2048     # nn.TransformerEncoderLayer default dim_feedforward
LATENT    = 16       # encoder_params['latent_space_size']

KTEMP     = 25                        # temporal conv kernel width
T_IN      = 114                       # input time samples
T_CONV    = T_IN - (KTEMP - 1)        # 90, width after temporal conv
POOL_W    = 75
POOL_S    = 15
W_OUT     = (T_CONV - POOL_W) // POOL_S + 1   # 2 patches
MAGIC     = W_OUT                     # global_params['magic_constant_pre_train']
EPS       = 1e-5

HD        = EMB // N_HEADS            # head dim
SN        = B * W_OUT                 # total tokens seen by the transformer
_ATTN_SCALE = 1.0 / float(HD) ** 0.5

_LAYER_KEYS = ('wqkv', 'bqkv', 'wo', 'bo', 'ln1g', 'ln1b',
               'w1', 'b1', 'w2', 'b2', 'ln2g', 'ln2b')


# ============================ Pallas kernel =====================================

def _layer_norm(x, g, b):
    mu = jnp.mean(x, axis=-1, keepdims=True)
    var = jnp.mean((x - mu) ** 2, axis=-1, keepdims=True)
    return (x - mu) * jax.lax.rsqrt(var + EPS) * g + b


def deccatnet_kernel(*refs):
    """Fused forward pass.  Token rows inside the kernel are ordered (patch, sample):
    row = w*B + b, so attention within a patch is a block-diagonal mask and the
    projector flatten is a lane-axis concatenation (no lane-changing reshapes)."""
    (x_ref, conv_mat_ref, conv_shift_ref, pool_proj_ref,
     emb_bias_ref, mask_ref) = refs[0:6]
    layer_refs = refs[6:6 + 12 * N_LAYERS]
    pw1_ref, pb1_ref, pw2_ref, pb2_ref, o_ref = refs[6 + 12 * N_LAYERS:]

    # ---- Convolution block: temporal conv -> spatial conv -> BN(eval) folded into one
    # Toeplitz matmul; ELU; AvgPool + 1x1 projection folded into a second matmul.
    x = x_ref[...]                                                    # (B, N_CH*T_IN)
    a = jnp.dot(x, conv_mat_ref[...],
                preferred_element_type=jnp.float32) + conv_shift_ref[...]
    a = jnp.where(a > 0, a, jnp.exp(jnp.minimum(a, 0.0)) - 1.0)       # ELU(alpha=1)
    h0 = jnp.dot(a, pool_proj_ref[...],
                 preferred_element_type=jnp.float32) + emb_bias_ref[...]  # (B, W_OUT*EMB)

    # tokens: row = w*B + b  (built from static lane slices; no reshape of the lane dim)
    h = jnp.concatenate([h0[:, w * EMB:(w + 1) * EMB] for w in range(W_OUT)],
                        axis=0)                                       # (SN, EMB)

    mask_bias = mask_ref[...]                                         # (SN, SN) additive

    # ---- TransformerEncoder (post-norm, ReLU FFN), eval mode -----------------------
    for li in range(N_LAYERS):
        (wqkv, bqkv, wo, bo, ln1g, ln1b,
         w1, b1, w2, b2, ln2g, ln2b) = layer_refs[12 * li: 12 * (li + 1)]

        qkv = jnp.dot(h, wqkv[...], preferred_element_type=jnp.float32) + bqkv[...]
        wo_full = wo[...]                                             # (EMB, EMB), pre-T
        attn = jnp.zeros((SN, EMB), jnp.float32)
        for hi in range(N_HEADS):                                     # H=2, unrolled
            q = qkv[:, hi * HD:(hi + 1) * HD]
            k = qkv[:, EMB + hi * HD: EMB + (hi + 1) * HD]
            v = qkv[:, 2 * EMB + hi * HD: 2 * EMB + (hi + 1) * HD]
            s = jnp.dot(q, k.T, preferred_element_type=jnp.float32) * _ATTN_SCALE
            s = s + mask_bias                                         # patch block-diag
            s = s - jnp.max(s, axis=-1, keepdims=True)
            e = jnp.exp(s)
            p = e / jnp.sum(e, axis=-1, keepdims=True)
            ctx = jnp.dot(p, v, preferred_element_type=jnp.float32)   # (SN, HD)
            attn = attn + jnp.dot(ctx, wo_full[hi * HD:(hi + 1) * HD, :],
                                  preferred_element_type=jnp.float32)
        attn = attn + bo[...]

        h1 = _layer_norm(h + attn, ln1g[...], ln1b[...])
        f = jnp.dot(h1, w1[...], preferred_element_type=jnp.float32) + b1[...]
        f = jnp.maximum(f, 0.0)
        f = jnp.dot(f, w2[...], preferred_element_type=jnp.float32) + b2[...]
        h = _layer_norm(h1 + f, ln2g[...], ln2b[...])

    # ---- Projector: x.view(B,-1) -> Linear -> BN1d -> ReLU -> Linear -> BN1d (folded)
    z = jnp.concatenate([h[w * B:(w + 1) * B, :] for w in range(W_OUT)],
                        axis=1)                                       # (B, W_OUT*EMB)
    z = jnp.dot(z, pw1_ref[...], preferred_element_type=jnp.float32) + pb1_ref[...]
    z = jnp.maximum(z, 0.0)
    z = jnp.dot(z, pw2_ref[...], preferred_element_type=jnp.float32) + pb2_ref[...]
    o_ref[...] = z


# ============================ wrapper ===========================================

def deccatnet_forward(x_nchw, params):
    x2 = x_nchw[:, 0, :, :].reshape(B, N_CH * T_IN)

    inputs = [x2, params['conv_mat'], params['conv_shift'],
              params['pool_proj'], params['emb_bias'], params['attn_mask']]
    for layer in params['layers']:
        inputs += [layer[k] for k in _LAYER_KEYS]
    inputs += [params['pw1'], params['pb1'], params['pw2'], params['pb2']]

    in_specs = [pl.BlockSpec(a.shape, (lambda i, nd=a.ndim: (0,) * nd)) for a in inputs]
    return pl.pallas_call(
        deccatnet_kernel,
        out_shape=jax.ShapeDtypeStruct((B, LATENT), jnp.float32),
        grid=(1,),
        in_specs=in_specs,
        out_specs=pl.BlockSpec((B, LATENT), lambda i: (0, 0)),
        compiler_params=pltpu.CompilerParams(dimension_semantics=("arbitrary",)),
    )(*inputs)


# ============================ parameters ========================================

def init_params(key):
    keys = iter(jax.random.split(key, 64))

    def nrm(shape, s=0.1):
        return (s * jax.random.normal(next(keys), shape)).astype(jnp.float32)

    # ---- raw (PyTorch-layout) Convolution-block parameters --------------------
    wt  = nrm((TEMPORAL, KTEMP))            # Conv2d(1, temporal, (1,25)).weight[:,0,0,:]
    bt  = nrm((TEMPORAL,), 0.01)
    wsp = nrm((N_CH, TEMPORAL, N_CH))       # Conv2d(temporal, spatial, (n_ch,1)).weight[:,:,:,0]
    bsp = nrm((N_CH,), 0.01)
    bn_g = 1.0 + nrm((N_CH,), 0.05); bn_b = nrm((N_CH,), 0.05)
    bn_m = nrm((N_CH,), 0.05);       bn_v = 1.0 + jnp.abs(nrm((N_CH,), 0.05))
    wp  = nrm((EMB, N_CH))                  # Conv2d(spatial, emb, (1,1)).weight[:,:,0,0]
    bp  = nrm((EMB,), 0.01)

    bn_scale = bn_g / jnp.sqrt(bn_v + EPS)  # BatchNorm2d eval-mode fold
    bn_shift = bn_b - bn_m * bn_scale

    # combined temporal∘spatial conv: Wcomb[s,c,k] = sum_f wsp[s,f,c]*wt[f,k]
    Wcomb = jnp.einsum('sfc,fk->sck', wsp, wt)
    bsp_eff = bsp + jnp.einsum('sfc,f->s', wsp, bt)

    # Toeplitz / im2col matrix (BN scale folded): conv_mat[(c,ti),(s,t)] = scale[s]*Wcomb[s,c,ti-t]
    ti = jnp.arange(T_IN)[:, None]
    tt = jnp.arange(T_CONV)[None, :]
    kk = ti - tt
    valid = ((kk >= 0) & (kk < KTEMP)).astype(jnp.float32)
    kk_c = jnp.clip(kk, 0, KTEMP - 1)
    toep = Wcomb[:, :, kk_c] * valid[None, None]            # (s, c, T_IN, T_CONV)
    toep = toep * bn_scale[:, None, None, None]

    p = {}
    p['conv_mat'] = jnp.transpose(toep, (1, 2, 0, 3)).reshape(N_CH * T_IN, N_CH * T_CONV)
    p['conv_shift'] = jnp.repeat(bsp_eff * bn_scale + bn_shift, T_CONV)[None, :]

    # AvgPool2d((1,75),(1,15)) + 1x1 projection fused: pool_proj[(s,t),(w,e)] = m(t,w)/75 * wp[e,s]
    t_idx = jnp.arange(T_CONV)[:, None]
    w_idx = jnp.arange(W_OUT)[None, :]
    pmask = ((t_idx >= w_idx * POOL_S) &
             (t_idx < w_idx * POOL_S + POOL_W)).astype(jnp.float32) / POOL_W
    PW = pmask[None, :, :, None] * wp.T[:, None, None, :]   # (s, T_CONV, W_OUT, EMB)
    p['pool_proj'] = PW.reshape(N_CH * T_CONV, W_OUT * EMB)
    p['emb_bias'] = jnp.tile(bp, (W_OUT,))[None, :]

    # Additive attention mask: token rows are (patch, sample) = w*B + b; attention mixes
    # over samples within a patch (batch_first=False semantics of the PyTorch model).
    ridx = jnp.arange(SN)
    same_patch = (ridx[:, None] // B) == (ridx[None, :] // B)
    p['attn_mask'] = jnp.where(same_patch, 0.0, -1e30).astype(jnp.float32)

    # ---- Transformer encoder layers (weights stored pre-transposed: x @ W) ----
    layers = []
    for _ in range(N_LAYERS):
        layers.append(dict(
            wqkv=nrm((EMB, 3 * EMB)), bqkv=nrm((1, 3 * EMB), 0.01),
            wo=nrm((EMB, EMB)),       bo=nrm((1, EMB), 0.01),
            ln1g=1.0 + nrm((1, EMB), 0.05), ln1b=nrm((1, EMB), 0.05),
            w1=nrm((EMB, FFN)),       b1=nrm((1, FFN), 0.01),
            w2=nrm((FFN, EMB)),       b2=nrm((1, EMB), 0.01),
            ln2g=1.0 + nrm((1, EMB), 0.05), ln2b=nrm((1, EMB), 0.05),
        ))
    p['layers'] = layers

    # ---- Projector: Linear -> BN1d -> ReLU -> Linear -> BN1d, BN(eval) folded --
    D = EMB * MAGIC
    w1 = nrm((D, D));      b1 = nrm((D,), 0.01)
    g1 = 1.0 + nrm((D,), 0.05); be1 = nrm((D,), 0.05)
    m1 = nrm((D,), 0.05);       v1 = 1.0 + jnp.abs(nrm((D,), 0.05))
    s1 = g1 / jnp.sqrt(v1 + EPS); sh1 = be1 - m1 * s1
    p['pw1'] = (w1.T * s1[None, :]).astype(jnp.float32)
    p['pb1'] = ((b1 * s1 + sh1)[None, :]).astype(jnp.float32)

    w2 = nrm((LATENT, D)); b2 = nrm((LATENT,), 0.01)
    g2 = 1.0 + nrm((LATENT,), 0.05); be2 = nrm((LATENT,), 0.05)
    m2 = nrm((LATENT,), 0.05);       v2 = 1.0 + jnp.abs(nrm((LATENT,), 0.05))
    s2 = g2 / jnp.sqrt(v2 + EPS); sh2 = be2 - m2 * s2
    p['pw2'] = (w2.T * s2[None, :]).astype(jnp.float32)
    p['pb2'] = ((b2 * s2 + sh2)[None, :]).astype(jnp.float32)
    return p


# ============================ main ==============================================

if __name__ == "__main__":
    assert MAGIC == W_OUT
    key = jax.random.PRNGKey(0)
    pkey, xkey = jax.random.split(key)
    params = init_params(pkey)

    # PyTorch NCHW input: (batch, 1, n_channels, time)
    x = jax.random.normal(xkey, (B, 1, N_CH, T_IN), dtype=jnp.float32)

    fwd = jax.jit(deccatnet_forward)
    out = fwd(x, params)
    out = jax.block_until_ready(out)
    assert out.shape == (B, LATENT), out.shape
    assert bool(jnp.all(jnp.isfinite(out)))
    print("KERNEL_OK")
</pallas_src>

<mosaic_0001>
module attributes {stable_mosaic.version = 11 : i64} {
  func.func @deccatnet_kernel(%arg0: i32, %arg1: memref<2x456xf32, #tpu.memory_space<vmem>>, %arg2: memref<456x360xf32, #tpu.memory_space<vmem>>, %arg3: memref<1x360xf32, #tpu.memory_space<vmem>>, %arg4: memref<360x32xf32, #tpu.memory_space<vmem>>, %arg5: memref<1x32xf32, #tpu.memory_space<vmem>>, %arg6: memref<4x4xf32, #tpu.memory_space<vmem>>, %arg7: memref<16x48xf32, #tpu.memory_space<vmem>>, %arg8: memref<1x48xf32, #tpu.memory_space<vmem>>, %arg9: memref<16x16xf32, #tpu.memory_space<vmem>>, %arg10: memref<1x16xf32, #tpu.memory_space<vmem>>, %arg11: memref<1x16xf32, #tpu.memory_space<vmem>>, %arg12: memref<1x16xf32, #tpu.memory_space<vmem>>, %arg13: memref<16x2048xf32, #tpu.memory_space<vmem>>, %arg14: memref<1x2048xf32, #tpu.memory_space<vmem>>, %arg15: memref<2048x16xf32, #tpu.memory_space<vmem>>, %arg16: memref<1x16xf32, #tpu.memory_space<vmem>>, %arg17: memref<1x16xf32, #tpu.memory_space<vmem>>, %arg18: memref<1x16xf32, #tpu.memory_space<vmem>>, %arg19: memref<16x48xf32, #tpu.memory_space<vmem>>, %arg20: memref<1x48xf32, #tpu.memory_space<vmem>>, %arg21: memref<16x16xf32, #tpu.memory_space<vmem>>, %arg22: memref<1x16xf32, #tpu.memory_space<vmem>>, %arg23: memref<1x16xf32, #tpu.memory_space<vmem>>, %arg24: memref<1x16xf32, #tpu.memory_space<vmem>>, %arg25: memref<16x2048xf32, #tpu.memory_space<vmem>>, %arg26: memref<1x2048xf32, #tpu.memory_space<vmem>>, %arg27: memref<2048x16xf32, #tpu.memory_space<vmem>>, %arg28: memref<1x16xf32, #tpu.memory_space<vmem>>, %arg29: memref<1x16xf32, #tpu.memory_space<vmem>>, %arg30: memref<1x16xf32, #tpu.memory_space<vmem>>, %arg31: memref<32x32xf32, #tpu.memory_space<vmem>>, %arg32: memref<1x32xf32, #tpu.memory_space<vmem>>, %arg33: memref<32x16xf32, #tpu.memory_space<vmem>>, %arg34: memref<1x16xf32, #tpu.memory_space<vmem>>, %arg35: memref<2x16xf32, #tpu.memory_space<vmem>>) attributes {dimension_semantics = [#tpu.dimension_semantics<arbitrary>], iteration_bounds = array<i64: 1>, scalar_prefetch = 0 : i64, scratch_operands = 0 : i64, tpu.core_type = #tpu.core_type<tc>, window_params = [{pipeline_mode = #tpu.pipeline_mode<synchronous>, transform_indices = @transform_0, window_bounds = array<i64: 2, 456>}, {pipeline_mode = #tpu.pipeline_mode<synchronous>, transform_indices = @transform_1, window_bounds = array<i64: 456, 360>}, {pipeline_mode = #tpu.pipeline_mode<synchronous>, transform_indices = @transform_2, window_bounds = array<i64: 1, 360>}, {pipeline_mode = #tpu.pipeline_mode<synchronous>, transform_indices = @transform_3, window_bounds = array<i64: 360, 32>}, {pipeline_mode = #tpu.pipeline_mode<synchronous>, transform_indices = @transform_4, window_bounds = array<i64: 1, 32>}, {pipeline_mode = #tpu.pipeline_mode<synchronous>, transform_indices = @transform_5, window_bounds = array<i64: 4, 4>}, {pipeline_mode = #tpu.pipeline_mode<synchronous>, transform_indices = @transform_6, window_bounds = array<i64: 16, 48>}, {pipeline_mode = #tpu.pipeline_mode<synchronous>, transform_indices = @transform_7, window_bounds = array<i64: 1, 48>}, {pipeline_mode = #tpu.pipeline_mode<synchronous>, transform_indices = @transform_8, window_bounds = array<i64: 16, 16>}, {pipeline_mode = #tpu.pipeline_mode<synchronous>, transform_indices = @transform_9, window_bounds = array<i64: 1, 16>}, {pipeline_mode = #tpu.pipeline_mode<synchronous>, transform_indices = @transform_10, window_bounds = array<i64: 1, 16>}, {pipeline_mode = #tpu.pipeline_mode<synchronous>, transform_indices = @transform_11, window_bounds = array<i64: 1, 16>}, {pipeline_mode = #tpu.pipeline_mode<synchronous>, transform_indices = @transform_12, window_bounds = array<i64: 16, 2048>}, {pipeline_mode = #tpu.pipeline_mode<synchronous>, transform_indices = @transform_13, window_bounds = array<i64: 1, 2048>}, {pipeline_mode = #tpu.pipeline_mode<synchronous>, transform_indices = @transform_14, window_bounds = array<i64: 2048, 16>}, {pipeline_mode = #tpu.pipeline_mode<synchronous>, transform_indices = @transform_15, window_bounds = array<i64: 1, 16>}, {pipeline_mode = #tpu.pipeline_mode<synchronous>, transform_indices = @transform_16, window_bounds = array<i64: 1, 16>}, {pipeline_mode = #tpu.pipeline_mode<synchronous>, transform_indices = @transform_17, window_bounds = array<i64: 1, 16>}, {pipeline_mode = #tpu.pipeline_mode<synchronous>, transform_indices = @transform_18, window_bounds = array<i64: 16, 48>}, {pipeline_mode = #tpu.pipeline_mode<synchronous>, transform_indices = @transform_19, window_bounds = array<i64: 1, 48>}, {pipeline_mode = #tpu.pipeline_mode<synchronous>, transform_indices = @transform_20, window_bounds = array<i64: 16, 16>}, {pipeline_mode = #tpu.pipeline_mode<synchronous>, transform_indices = @transform_21, window_bounds = array<i64: 1, 16>}, {pipeline_mode = #tpu.pipeline_mode<synchronous>, transform_indices = @transform_22, window_bounds = array<i64: 1, 16>}, {pipeline_mode = #tpu.pipeline_mode<synchronous>, transform_indices = @transform_23, window_bounds = array<i64: 1, 16>}, {pipeline_mode = #tpu.pipeline_mode<synchronous>, transform_indices = @transform_24, window_bounds = array<i64: 16, 2048>}, {pipeline_mode = #tpu.pipeline_mode<synchronous>, transform_indices = @transform_25, window_bounds = array<i64: 1, 2048>}, {pipeline_mode = #tpu.pipeline_mode<synchronous>, transform_indices = @transform_26, window_bounds = array<i64: 2048, 16>}, {pipeline_mode = #tpu.pipeline_mode<synchronous>, transform_indices = @transform_27, window_bounds = array<i64: 1, 16>}, {pipeline_mode = #tpu.pipeline_mode<synchronous>, transform_indices = @transform_28, window_bounds = array<i64: 1, 16>}, {pipeline_mode = #tpu.pipeline_mode<synchronous>, transform_indices = @transform_29, window_bounds = array<i64: 1, 16>}, {pipeline_mode = #tpu.pipeline_mode<synchronous>, transform_indices = @transform_30, window_bounds = array<i64: 32, 32>}, {pipeline_mode = #tpu.pipeline_mode<synchronous>, transform_indices = @transform_31, window_bounds = array<i64: 1, 32>}, {pipeline_mode = #tpu.pipeline_mode<synchronous>, transform_indices = @transform_32, window_bounds = array<i64: 32, 16>}, {pipeline_mode = #tpu.pipeline_mode<synchronous>, transform_indices = @transform_33, window_bounds = array<i64: 1, 16>}, {pipeline_mode = #tpu.pipeline_mode<synchronous>, transform_indices = @transform_34, window_bounds = array<i64: 2, 16>}]} {
    %c0 = arith.constant 0 : index
    %c0_0 = arith.constant 0 : index
    %0 = vector.load %arg1[%c0, %c0_0] : memref<2x456xf32, #tpu.memory_space<vmem>>, vector<2x456xf32>
    %c0_1 = arith.constant 0 : index
    %c0_2 = arith.constant 0 : index
    %1 = vector.load %arg2[%c0_1, %c0_2] : memref<456x360xf32, #tpu.memory_space<vmem>>, vector<456x360xf32>
    %cst = arith.constant dense<0.000000e+00> : vector<2x360xf32>
    %2 = tpu.matmul %0, %1, %cst {dimension_numbers = #tpu.dot_dimension_numbers<[1], [0], [0], [1], [0, 0, 1, 1], [], []>} : vector<2x456xf32>, vector<456x360xf32>, vector<2x360xf32> -> vector<2x360xf32>
    %c0_3 = arith.constant 0 : index
    %c0_4 = arith.constant 0 : index
    %3 = vector.load %arg3[%c0_3, %c0_4] : memref<1x360xf32, #tpu.memory_space<vmem>>, vector<1x360xf32>
    %4 = vector.broadcast %3 : vector<1x360xf32> to vector<2x360xf32>
    %5 = arith.addf %2, %4 : vector<2x360xf32>
    %cst_5 = arith.constant 0.000000e+00 : f32
    %6 = vector.broadcast %cst_5 : f32 to vector<2x360xf32>
    %7 = arith.cmpf ogt, %5, %6 : vector<2x360xf32>
    %cst_6 = arith.constant 0.000000e+00 : f32
    %8 = vector.broadcast %cst_6 : f32 to vector<2x360xf32>
    %9 = arith.minimumf %5, %8 : vector<2x360xf32>
    %10 = math.exp %9 : vector<2x360xf32>
    %cst_7 = arith.constant 1.000000e+00 : f32
    %11 = vector.broadcast %cst_7 : f32 to vector<2x360xf32>
    %12 = arith.subf %10, %11 : vector<2x360xf32>
    %13 = arith.select %7, %5, %12 : vector<2x360xi1>, vector<2x360xf32>
    %c0_8 = arith.constant 0 : index
    %c0_9 = arith.constant 0 : index
    %14 = vector.load %arg4[%c0_8, %c0_9] : memref<360x32xf32, #tpu.memory_space<vmem>>, vector<360x32xf32>
    %cst_10 = arith.constant dense<0.000000e+00> : vector<2x32xf32>
    %15 = tpu.matmul %13, %14, %cst_10 {dimension_numbers = #tpu.dot_dimension_numbers<[1], [0], [0], [1], [0, 0, 1, 1], [], []>} : vector<2x360xf32>, vector<360x32xf32>, vector<2x32xf32> -> vector<2x32xf32>
    %c0_11 = arith.constant 0 : index
    %c0_12 = arith.constant 0 : index
    %16 = vector.load %arg5[%c0_11, %c0_12] : memref<1x32xf32, #tpu.memory_space<vmem>>, vector<1x32xf32>
    %17 = vector.broadcast %16 : vector<1x32xf32> to vector<2x32xf32>
    %18 = arith.addf %15, %17 : vector<2x32xf32>
    %19 = vector.extract_strided_slice %18 {offsets = [0, 0], sizes = [2, 16], strides = [1, 1]} : vector<2x32xf32> to vector<2x16xf32>
    %20 = vector.extract_strided_slice %18 {offsets = [0, 16], sizes = [2, 16], strides = [1, 1]} : vector<2x32xf32> to vector<2x16xf32>
    %21 = tpu.concatenate %19, %20 in 0 : vector<2x16xf32>, vector<2x16xf32> -> vector<4x16xf32>
    %c0_13 = arith.constant 0 : index
    %c0_14 = arith.constant 0 : index
    %22 = vector.load %arg6[%c0_13, %c0_14] : memref<4x4xf32, #tpu.memory_space<vmem>>, vector<4x4xf32>
    %c0_15 = arith.constant 0 : index
    %c0_16 = arith.constant 0 : index
    %23 = vector.load %arg7[%c0_15, %c0_16] : memref<16x48xf32, #tpu.memory_space<vmem>>, vector<16x48xf32>
    %cst_17 = arith.constant dense<0.000000e+00> : vector<4x48xf32>
    %24 = tpu.matmul %21, %23, %cst_17 {dimension_numbers = #tpu.dot_dimension_numbers<[1], [0], [0], [1], [0, 0, 1, 1], [], []>} : vector<4x16xf32>, vector<16x48xf32>, vector<4x48xf32> -> vector<4x48xf32>
    %c0_18 = arith.constant 0 : index
    %c0_19 = arith.constant 0 : index
    %25 = vector.load %arg8[%c0_18, %c0_19] : memref<1x48xf32, #tpu.memory_space<vmem>>, vector<1x48xf32>
    %26 = vector.broadcast %25 : vector<1x48xf32> to vector<4x48xf32>
    %27 = arith.addf %24, %26 : vector<4x48xf32>
    %c0_20 = arith.constant 0 : index
    %c0_21 = arith.constant 0 : index
    %28 = vector.load %arg9[%c0_20, %c0_21] : memref<16x16xf32, #tpu.memory_space<vmem>>, vector<16x16xf32>
    %cst_22 = arith.constant 0.000000e+00 : f32
    %29 = vector.broadcast %cst_22 : f32 to vector<4x16xf32>
    %30 = vector.extract_strided_slice %27 {offsets = [0, 0], sizes = [4, 8], strides = [1, 1]} : vector<4x48xf32> to vector<4x8xf32>
    %31 = vector.extract_strided_slice %27 {offsets = [0, 16], sizes = [4, 8], strides = [1, 1]} : vector<4x48xf32> to vector<4x8xf32>
    %32 = vector.extract_strided_slice %27 {offsets = [0, 32], sizes = [4, 8], strides = [1, 1]} : vector<4x48xf32> to vector<4x8xf32>
    %33 = tpu.transpose %31, [1, 0] : vector<4x8xf32> -> vector<8x4xf32>
    %cst_23 = arith.constant dense<0.000000e+00> : vector<4x4xf32>
    %34 = tpu.matmul %30, %33, %cst_23 {dimension_numbers = #tpu.dot_dimension_numbers<[1], [0], [0], [1], [0, 0, 1, 1], [], []>} : vector<4x8xf32>, vector<8x4xf32>, vector<4x4xf32> -> vector<4x4xf32>
    %cst_24 = arith.constant 0.353553385 : f32
    %35 = vector.broadcast %cst_24 : f32 to vector<4x4xf32>
    %36 = arith.mulf %34, %35 : vector<4x4xf32>
    %37 = arith.addf %36, %22 : vector<4x4xf32>
    %cst_25 = arith.constant dense<0xFF800000> : vector<4xf32>
    %38 = vector.multi_reduction <maximumf>, %37, %cst_25 [1] : vector<4x4xf32> to vector<4xf32>
    %39 = vector.shape_cast %38 : vector<4xf32> to vector<4x1xf32>
    %40 = vector.broadcast %39 : vector<4x1xf32> to vector<4x4xf32>
    %41 = arith.subf %37, %40 : vector<4x4xf32>
    %42 = math.exp %41 : vector<4x4xf32>
    %cst_26 = arith.constant dense<0.000000e+00> : vector<4xf32>
    %43 = vector.multi_reduction <add>, %42, %cst_26 [1] : vector<4x4xf32> to vector<4xf32>
    %44 = vector.shape_cast %43 : vector<4xf32> to vector<4x1xf32>
    %45 = vector.broadcast %44 : vector<4x1xf32> to vector<4x4xf32>
    %46 = arith.divf %42, %45 : vector<4x4xf32>
    %cst_27 = arith.constant dense<0.000000e+00> : vector<4x8xf32>
    %47 = tpu.matmul %46, %32, %cst_27 {dimension_numbers = #tpu.dot_dimension_numbers<[1], [0], [0], [1], [0, 0, 1, 1], [], []>} : vector<4x4xf32>, vector<4x8xf32>, vector<4x8xf32> -> vector<4x8xf32>
    %48 = vector.extract_strided_slice %28 {offsets = [0, 0], sizes = [8, 16], strides = [1, 1]} : vector<16x16xf32> to vector<8x16xf32>
    %cst_28 = arith.constant dense<0.000000e+00> : vector<4x16xf32>
    %49 = tpu.matmul %47, %48, %cst_28 {dimension_numbers = #tpu.dot_dimension_numbers<[1], [0], [0], [1], [0, 0, 1, 1], [], []>} : vector<4x8xf32>, vector<8x16xf32>, vector<4x16xf32> -> vector<4x16xf32>
    %50 = arith.addf %29, %49 : vector<4x16xf32>
    %51 = vector.extract_strided_slice %27 {offsets = [0, 8], sizes = [4, 8], strides = [1, 1]} : vector<4x48xf32> to vector<4x8xf32>
    %52 = vector.extract_strided_slice %27 {offsets = [0, 24], sizes = [4, 8], strides = [1, 1]} : vector<4x48xf32> to vector<4x8xf32>
    %53 = vector.extract_strided_slice %27 {offsets = [0, 40], sizes = [4, 8], strides = [1, 1]} : vector<4x48xf32> to vector<4x8xf32>
    %54 = tpu.transpose %52, [1, 0] : vector<4x8xf32> -> vector<8x4xf32>
    %cst_29 = arith.constant dense<0.000000e+00> : vector<4x4xf32>
    %55 = tpu.matmul %51, %54, %cst_29 {dimension_numbers = #tpu.dot_dimension_numbers<[1], [0], [0], [1], [0, 0, 1, 1], [], []>} : vector<4x8xf32>, vector<8x4xf32>, vector<4x4xf32> -> vector<4x4xf32>
    %cst_30 = arith.constant 0.353553385 : f32
    %56 = vector.broadcast %cst_30 : f32 to vector<4x4xf32>
    %57 = arith.mulf %55, %56 : vector<4x4xf32>
    %58 = arith.addf %57, %22 : vector<4x4xf32>
    %cst_31 = arith.constant dense<0xFF800000> : vector<4xf32>
    %59 = vector.multi_reduction <maximumf>, %58, %cst_31 [1] : vector<4x4xf32> to vector<4xf32>
    %60 = vector.shape_cast %59 : vector<4xf32> to vector<4x1xf32>
    %61 = vector.broadcast %60 : vector<4x1xf32> to vector<4x4xf32>
    %62 = arith.subf %58, %61 : vector<4x4xf32>
    %63 = math.exp %62 : vector<4x4xf32>
    %cst_32 = arith.constant dense<0.000000e+00> : vector<4xf32>
    %64 = vector.multi_reduction <add>, %63, %cst_32 [1] : vector<4x4xf32> to vector<4xf32>
    %65 = vector.shape_cast %64 : vector<4xf32> to vector<4x1xf32>
    %66 = vector.broadcast %65 : vector<4x1xf32> to vector<4x4xf32>
    %67 = arith.divf %63, %66 : vector<4x4xf32>
    %cst_33 = arith.constant dense<0.000000e+00> : vector<4x8xf32>
    %68 = tpu.matmul %67, %53, %cst_33 {dimension_numbers = #tpu.dot_dimension_numbers<[1], [0], [0], [1], [0, 0, 1, 1], [], []>} : vector<4x4xf32>, vector<4x8xf32>, vector<4x8xf32> -> vector<4x8xf32>
    %69 = vector.extract_strided_slice %28 {offsets = [8, 0], sizes = [8, 16], strides = [1, 1]} : vector<16x16xf32> to vector<8x16xf32>
    %cst_34 = arith.constant dense<0.000000e+00> : vector<4x16xf32>
    %70 = tpu.matmul %68, %69, %cst_34 {dimension_numbers = #tpu.dot_dimension_numbers<[1], [0], [0], [1], [0, 0, 1, 1], [], []>} : vector<4x8xf32>, vector<8x16xf32>, vector<4x16xf32> -> vector<4x16xf32>
    %71 = arith.addf %50, %70 : vector<4x16xf32>
    %c0_35 = arith.constant 0 : index
    %c0_36 = arith.constant 0 : index
    %72 = vector.load %arg10[%c0_35, %c0_36] : memref<1x16xf32, #tpu.memory_space<vmem>>, vector<1x16xf32>
    %73 = vector.broadcast %72 : vector<1x16xf32> to vector<4x16xf32>
    %74 = arith.addf %71, %73 : vector<4x16xf32>
    %75 = arith.addf %21, %74 : vector<4x16xf32>
    %c0_37 = arith.constant 0 : index
    %c0_38 = arith.constant 0 : index
    %76 = vector.load %arg11[%c0_37, %c0_38] : memref<1x16xf32, #tpu.memory_space<vmem>>, vector<1x16xf32>
    %c0_39 = arith.constant 0 : index
    %c0_40 = arith.constant 0 : index
    %77 = vector.load %arg12[%c0_39, %c0_40] : memref<1x16xf32, #tpu.memory_space<vmem>>, vector<1x16xf32>
    %cst_41 = arith.constant dense<0.000000e+00> : vector<4xf32>
    %78 = vector.multi_reduction <add>, %75, %cst_41 [1] : vector<4x16xf32> to vector<4xf32>
    %79 = vector.shape_cast %78 : vector<4xf32> to vector<4x1xf32>
    %cst_42 = arith.constant 1.600000e+01 : f32
    %80 = vector.broadcast %cst_42 : f32 to vector<4x1xf32>
    %81 = arith.divf %79, %80 : vector<4x1xf32>
    %82 = vector.broadcast %81 : vector<4x1xf32> to vector<4x16xf32>
    %83 = arith.subf %75, %82 : vector<4x16xf32>
    %84 = arith.mulf %83, %83 : vector<4x16xf32>
    %cst_43 = arith.constant dense<0.000000e+00> : vector<4xf32>
    %85 = vector.multi_reduction <add>, %84, %cst_43 [1] : vector<4x16xf32> to vector<4xf32>
    %86 = vector.shape_cast %85 : vector<4xf32> to vector<4x1xf32>
    %cst_44 = arith.constant 1.600000e+01 : f32
    %87 = vector.broadcast %cst_44 : f32 to vector<4x1xf32>
    %88 = arith.divf %86, %87 : vector<4x1xf32>
    %89 = vector.broadcast %81 : vector<4x1xf32> to vector<4x16xf32>
    %90 = arith.subf %75, %89 : vector<4x16xf32>
    %cst_45 = arith.constant 9.99999974E-6 : f32
    %91 = vector.broadcast %cst_45 : f32 to vector<4x1xf32>
    %92 = arith.addf %88, %91 : vector<4x1xf32>
    %93 = math.rsqrt %92 : vector<4x1xf32>
    %94 = vector.broadcast %93 : vector<4x1xf32> to vector<4x16xf32>
    %95 = arith.mulf %90, %94 : vector<4x16xf32>
    %96 = vector.broadcast %76 : vector<1x16xf32> to vector<4x16xf32>
    %97 = arith.mulf %95, %96 : vector<4x16xf32>
    %98 = vector.broadcast %77 : vector<1x16xf32> to vector<4x16xf32>
    %99 = arith.addf %97, %98 : vector<4x16xf32>
    %c0_46 = arith.constant 0 : index
    %c0_47 = arith.constant 0 : index
    %100 = vector.load %arg13[%c0_46, %c0_47] : memref<16x2048xf32, #tpu.memory_space<vmem>>, vector<16x2048xf32>
    %cst_48 = arith.constant dense<0.000000e+00> : vector<4x2048xf32>
    %101 = tpu.matmul %99, %100, %cst_48 {dimension_numbers = #tpu.dot_dimension_numbers<[1], [0], [0], [1], [0, 0, 1, 1], [], []>} : vector<4x16xf32>, vector<16x2048xf32>, vector<4x2048xf32> -> vector<4x2048xf32>
    %c0_49 = arith.constant 0 : index
    %c0_50 = arith.constant 0 : index
    %102 = vector.load %arg14[%c0_49, %c0_50] : memref<1x2048xf32, #tpu.memory_space<vmem>>, vector<1x2048xf32>
    %103 = vector.broadcast %102 : vector<1x2048xf32> to vector<4x2048xf32>
    %104 = arith.addf %101, %103 : vector<4x2048xf32>
    %cst_51 = arith.constant 0.000000e+00 : f32
    %105 = vector.broadcast %cst_51 : f32 to vector<4x2048xf32>
    %106 = arith.maximumf %104, %105 : vector<4x2048xf32>
    %c0_52 = arith.constant 0 : index
    %c0_53 = arith.constant 0 : index
    %107 = vector.load %arg15[%c0_52, %c0_53] : memref<2048x16xf32, #tpu.memory_space<vmem>>, vector<2048x16xf32>
    %cst_54 = arith.constant dense<0.000000e+00> : vector<4x16xf32>
    %108 = tpu.matmul %106, %107, %cst_54 {dimension_numbers = #tpu.dot_dimension_numbers<[1], [0], [0], [1], [0, 0, 1, 1], [], []>} : vector<4x2048xf32>, vector<2048x16xf32>, vector<4x16xf32> -> vector<4x16xf32>
    %c0_55 = arith.constant 0 : index
    %c0_56 = arith.constant 0 : index
    %109 = vector.load %arg16[%c0_55, %c0_56] : memref<1x16xf32, #tpu.memory_space<vmem>>, vector<1x16xf32>
    %110 = vector.broadcast %109 : vector<1x16xf32> to vector<4x16xf32>
    %111 = arith.addf %108, %110 : vector<4x16xf32>
    %112 = arith.addf %99, %111 : vector<4x16xf32>
    %c0_57 = arith.constant 0 : index
    %c0_58 = arith.constant 0 : index
    %113 = vector.load %arg17[%c0_57, %c0_58] : memref<1x16xf32, #tpu.memory_space<vmem>>, vector<1x16xf32>
    %c0_59 = arith.constant 0 : index
    %c0_60 = arith.constant 0 : index
    %114 = vector.load %arg18[%c0_59, %c0_60] : memref<1x16xf32, #tpu.memory_space<vmem>>, vector<1x16xf32>
    %cst_61 = arith.constant dense<0.000000e+00> : vector<4xf32>
    %115 = vector.multi_reduction <add>, %112, %cst_61 [1] : vector<4x16xf32> to vector<4xf32>
    %116 = vector.shape_cast %115 : vector<4xf32> to vector<4x1xf32>
    %cst_62 = arith.constant 1.600000e+01 : f32
    %117 = vector.broadcast %cst_62 : f32 to vector<4x1xf32>
    %118 = arith.divf %116, %117 : vector<4x1xf32>
    %119 = vector.broadcast %118 : vector<4x1xf32> to vector<4x16xf32>
    %120 = arith.subf %112, %119 : vector<4x16xf32>
    %121 = arith.mulf %120, %120 : vector<4x16xf32>
    %cst_63 = arith.constant dense<0.000000e+00> : vector<4xf32>
    %122 = vector.multi_reduction <add>, %121, %cst_63 [1] : vector<4x16xf32> to vector<4xf32>
    %123 = vector.shape_cast %122 : vector<4xf32> to vector<4x1xf32>
    %cst_64 = arith.constant 1.600000e+01 : f32
    %124 = vector.broadcast %cst_64 : f32 to vector<4x1xf32>
    %125 = arith.divf %123, %124 : vector<4x1xf32>
    %126 = vector.broadcast %118 : vector<4x1xf32> to vector<4x16xf32>
    %127 = arith.subf %112, %126 : vector<4x16xf32>
    %cst_65 = arith.constant 9.99999974E-6 : f32
    %128 = vector.broadcast %cst_65 : f32 to vector<4x1xf32>
    %129 = arith.addf %125, %128 : vector<4x1xf32>
    %130 = math.rsqrt %129 : vector<4x1xf32>
    %131 = vector.broadcast %130 : vector<4x1xf32> to vector<4x16xf32>
    %132 = arith.mulf %127, %131 : vector<4x16xf32>
    %133 = vector.broadcast %113 : vector<1x16xf32> to vector<4x16xf32>
    %134 = arith.mulf %132, %133 : vector<4x16xf32>
    %135 = vector.broadcast %114 : vector<1x16xf32> to vector<4x16xf32>
    %136 = arith.addf %134, %135 : vector<4x16xf32>
    %c0_66 = arith.constant 0 : index
    %c0_67 = arith.constant 0 : index
    %137 = vector.load %arg19[%c0_66, %c0_67] : memref<16x48xf32, #tpu.memory_space<vmem>>, vector<16x48xf32>
    %cst_68 = arith.constant dense<0.000000e+00> : vector<4x48xf32>
    %138 = tpu.matmul %136, %137, %cst_68 {dimension_numbers = #tpu.dot_dimension_numbers<[1], [0], [0], [1], [0, 0, 1, 1], [], []>} : vector<4x16xf32>, vector<16x48xf32>, vector<4x48xf32> -> vector<4x48xf32>
    %c0_69 = arith.constant 0 : index
    %c0_70 = arith.constant 0 : index
    %139 = vector.load %arg20[%c0_69, %c0_70] : memref<1x48xf32, #tpu.memory_space<vmem>>, vector<1x48xf32>
    %140 = vector.broadcast %139 : vector<1x48xf32> to vector<4x48xf32>
    %141 = arith.addf %138, %140 : vector<4x48xf32>
    %c0_71 = arith.constant 0 : index
    %c0_72 = arith.constant 0 : index
    %142 = vector.load %arg21[%c0_71, %c0_72] : memref<16x16xf32, #tpu.memory_space<vmem>>, vector<16x16xf32>
    %cst_73 = arith.constant 0.000000e+00 : f32
    %143 = vector.broadcast %cst_73 : f32 to vector<4x16xf32>
    %144 = vector.extract_strided_slice %141 {offsets = [0, 0], sizes = [4, 8], strides = [1, 1]} : vector<4x48xf32> to vector<4x8xf32>
    %145 = vector.extract_strided_slice %141 {offsets = [0, 16], sizes = [4, 8], strides = [1, 1]} : vector<4x48xf32> to vector<4x8xf32>
    %146 = vector.extract_strided_slice %141 {offsets = [0, 32], sizes = [4, 8], strides = [1, 1]} : vector<4x48xf32> to vector<4x8xf32>
    %147 = tpu.transpose %145, [1, 0] : vector<4x8xf32> -> vector<8x4xf32>
    %cst_74 = arith.constant dense<0.000000e+00> : vector<4x4xf32>
    %148 = tpu.matmul %144, %147, %cst_74 {dimension_numbers = #tpu.dot_dimension_numbers<[1], [0], [0], [1], [0, 0, 1, 1], [], []>} : vector<4x8xf32>, vector<8x4xf32>, vector<4x4xf32> -> vector<4x4xf32>
    %cst_75 = arith.constant 0.353553385 : f32
    %149 = vector.broadcast %cst_75 : f32 to vector<4x4xf32>
    %150 = arith.mulf %148, %149 : vector<4x4xf32>
    %151 = arith.addf %150, %22 : vector<4x4xf32>
    %cst_76 = arith.constant dense<0xFF800000> : vector<4xf32>
    %152 = vector.multi_reduction <maximumf>, %151, %cst_76 [1] : vector<4x4xf32> to vector<4xf32>
    %153 = vector.shape_cast %152 : vector<4xf32> to vector<4x1xf32>
    %154 = vector.broadcast %153 : vector<4x1xf32> to vector<4x4xf32>
    %155 = arith.subf %151, %154 : vector<4x4xf32>
    %156 = math.exp %155 : vector<4x4xf32>
    %cst_77 = arith.constant dense<0.000000e+00> : vector<4xf32>
    %157 = vector.multi_reduction <add>, %156, %cst_77 [1] : vector<4x4xf32> to vector<4xf32>
    %158 = vector.shape_cast %157 : vector<4xf32> to vector<4x1xf32>
    %159 = vector.broadcast %158 : vector<4x1xf32> to vector<4x4xf32>
    %160 = arith.divf %156, %159 : vector<4x4xf32>
    %cst_78 = arith.constant dense<0.000000e+00> : vector<4x8xf32>
    %161 = tpu.matmul %160, %146, %cst_78 {dimension_numbers = #tpu.dot_dimension_numbers<[1], [0], [0], [1], [0, 0, 1, 1], [], []>} : vector<4x4xf32>, vector<4x8xf32>, vector<4x8xf32> -> vector<4x8xf32>
    %162 = vector.extract_strided_slice %142 {offsets = [0, 0], sizes = [8, 16], strides = [1, 1]} : vector<16x16xf32> to vector<8x16xf32>
    %cst_79 = arith.constant dense<0.000000e+00> : vector<4x16xf32>
    %163 = tpu.matmul %161, %162, %cst_79 {dimension_numbers = #tpu.dot_dimension_numbers<[1], [0], [0], [1], [0, 0, 1, 1], [], []>} : vector<4x8xf32>, vector<8x16xf32>, vector<4x16xf32> -> vector<4x16xf32>
    %164 = arith.addf %143, %163 : vector<4x16xf32>
    %165 = vector.extract_strided_slice %141 {offsets = [0, 8], sizes = [4, 8], strides = [1, 1]} : vector<4x48xf32> to vector<4x8xf32>
    %166 = vector.extract_strided_slice %141 {offsets = [0, 24], sizes = [4, 8], strides = [1, 1]} : vector<4x48xf32> to vector<4x8xf32>
    %167 = vector.extract_strided_slice %141 {offsets = [0, 40], sizes = [4, 8], strides = [1, 1]} : vector<4x48xf32> to vector<4x8xf32>
    %168 = tpu.transpose %166, [1, 0] : vector<4x8xf32> -> vector<8x4xf32>
    %cst_80 = arith.constant dense<0.000000e+00> : vector<4x4xf32>
    %169 = tpu.matmul %165, %168, %cst_80 {dimension_numbers = #tpu.dot_dimension_numbers<[1], [0], [0], [1], [0, 0, 1, 1], [], []>} : vector<4x8xf32>, vector<8x4xf32>, vector<4x4xf32> -> vector<4x4xf32>
    %cst_81 = arith.constant 0.353553385 : f32
    %170 = vector.broadcast %cst_81 : f32 to vector<4x4xf32>
    %171 = arith.mulf %169, %170 : vector<4x4xf32>
    %172 = arith.addf %171, %22 : vector<4x4xf32>
    %cst_82 = arith.constant dense<0xFF800000> : vector<4xf32>
    %173 = vector.multi_reduction <maximumf>, %172, %cst_82 [1] : vector<4x4xf32> to vector<4xf32>
    %174 = vector.shape_cast %173 : vector<4xf32> to vector<4x1xf32>
    %175 = vector.broadcast %174 : vector<4x1xf32> to vector<4x4xf32>
    %176 = arith.subf %172, %175 : vector<4x4xf32>
    %177 = math.exp %176 : vector<4x4xf32>
    %cst_83 = arith.constant dense<0.000000e+00> : vector<4xf32>
    %178 = vector.multi_reduction <add>, %177, %cst_83 [1] : vector<4x4xf32> to vector<4xf32>
    %179 = vector.shape_cast %178 : vector<4xf32> to vector<4x1xf32>
    %180 = vector.broadcast %179 : vector<4x1xf32> to vector<4x4xf32>
    %181 = arith.divf %177, %180 : vector<4x4xf32>
    %cst_84 = arith.constant dense<0.000000e+00> : vector<4x8xf32>
    %182 = tpu.matmul %181, %167, %cst_84 {dimension_numbers = #tpu.dot_dimension_numbers<[1], [0], [0], [1], [0, 0, 1, 1], [], []>} : vector<4x4xf32>, vector<4x8xf32>, vector<4x8xf32> -> vector<4x8xf32>
    %183 = vector.extract_strided_slice %142 {offsets = [8, 0], sizes = [8, 16], strides = [1, 1]} : vector<16x16xf32> to vector<8x16xf32>
    %cst_85 = arith.constant dense<0.000000e+00> : vector<4x16xf32>
    %184 = tpu.matmul %182, %183, %cst_85 {dimension_numbers = #tpu.dot_dimension_numbers<[1], [0], [0], [1], [0, 0, 1, 1], [], []>} : vector<4x8xf32>, vector<8x16xf32>, vector<4x16xf32> -> vector<4x16xf32>
    %185 = arith.addf %164, %184 : vector<4x16xf32>
    %c0_86 = arith.constant 0 : index
    %c0_87 = arith.constant 0 : index
    %186 = vector.load %arg22[%c0_86, %c0_87] : memref<1x16xf32, #tpu.memory_space<vmem>>, vector<1x16xf32>
    %187 = vector.broadcast %186 : vector<1x16xf32> to vector<4x16xf32>
    %188 = arith.addf %185, %187 : vector<4x16xf32>
    %189 = arith.addf %136, %188 : vector<4x16xf32>
    %c0_88 = arith.constant 0 : index
    %c0_89 = arith.constant 0 : index
    %190 = vector.load %arg23[%c0_88, %c0_89] : memref<1x16xf32, #tpu.memory_space<vmem>>, vector<1x16xf32>
    %c0_90 = arith.constant 0 : index
    %c0_91 = arith.constant 0 : index
    %191 = vector.load %arg24[%c0_90, %c0_91] : memref<1x16xf32, #tpu.memory_space<vmem>>, vector<1x16xf32>
    %cst_92 = arith.constant dense<0.000000e+00> : vector<4xf32>
    %192 = vector.multi_reduction <add>, %189, %cst_92 [1] : vector<4x16xf32> to vector<4xf32>
    %193 = vector.shape_cast %192 : vector<4xf32> to vector<4x1xf32>
    %cst_93 = arith.constant 1.600000e+01 : f32
    %194 = vector.broadcast %cst_93 : f32 to vector<4x1xf32>
    %195 = arith.divf %193, %194 : vector<4x1xf32>
    %196 = vector.broadcast %195 : vector<4x1xf32> to vector<4x16xf32>
    %197 = arith.subf %189, %196 : vector<4x16xf32>
    %198 = arith.mulf %197, %197 : vector<4x16xf32>
    %cst_94 = arith.constant dense<0.000000e+00> : vector<4xf32>
    %199 = vector.multi_reduction <add>, %198, %cst_94 [1] : vector<4x16xf32> to vector<4xf32>
    %200 = vector.shape_cast %199 : vector<4xf32> to vector<4x1xf32>
    %cst_95 = arith.constant 1.600000e+01 : f32
    %201 = vector.broadcast %cst_95 : f32 to vector<4x1xf32>
    %202 = arith.divf %200, %201 : vector<4x1xf32>
    %203 = vector.broadcast %195 : vector<4x1xf32> to vector<4x16xf32>
    %204 = arith.subf %189, %203 : vector<4x16xf32>
    %cst_96 = arith.constant 9.99999974E-6 : f32
    %205 = vector.broadcast %cst_96 : f32 to vector<4x1xf32>
    %206 = arith.addf %202, %205 : vector<4x1xf32>
    %207 = math.rsqrt %206 : vector<4x1xf32>
    %208 = vector.broadcast %207 : vector<4x1xf32> to vector<4x16xf32>
    %209 = arith.mulf %204, %208 : vector<4x16xf32>
    %210 = vector.broadcast %190 : vector<1x16xf32> to vector<4x16xf32>
    %211 = arith.mulf %209, %210 : vector<4x16xf32>
    %212 = vector.broadcast %191 : vector<1x16xf32> to vector<4x16xf32>
    %213 = arith.addf %211, %212 : vector<4x16xf32>
    %c0_97 = arith.constant 0 : index
    %c0_98 = arith.constant 0 : index
    %214 = vector.load %arg25[%c0_97, %c0_98] : memref<16x2048xf32, #tpu.memory_space<vmem>>, vector<16x2048xf32>
    %cst_99 = arith.constant dense<0.000000e+00> : vector<4x2048xf32>
    %215 = tpu.matmul %213, %214, %cst_99 {dimension_numbers = #tpu.dot_dimension_numbers<[1], [0], [0], [1], [0, 0, 1, 1], [], []>} : vector<4x16xf32>, vector<16x2048xf32>, vector<4x2048xf32> -> vector<4x2048xf32>
    %c0_100 = arith.constant 0 : index
    %c0_101 = arith.constant 0 : index
    %216 = vector.load %arg26[%c0_100, %c0_101] : memref<1x2048xf32, #tpu.memory_space<vmem>>, vector<1x2048xf32>
    %217 = vector.broadcast %216 : vector<1x2048xf32> to vector<4x2048xf32>
    %218 = arith.addf %215, %217 : vector<4x2048xf32>
    %cst_102 = arith.constant 0.000000e+00 : f32
    %219 = vector.broadcast %cst_102 : f32 to vector<4x2048xf32>
    %220 = arith.maximumf %218, %219 : vector<4x2048xf32>
    %c0_103 = arith.constant 0 : index
    %c0_104 = arith.constant 0 : index
    %221 = vector.load %arg27[%c0_103, %c0_104] : memref<2048x16xf32, #tpu.memory_space<vmem>>, vector<2048x16xf32>
    %cst_105 = arith.constant dense<0.000000e+00> : vector<4x16xf32>
    %222 = tpu.matmul %220, %221, %cst_105 {dimension_numbers = #tpu.dot_dimension_numbers<[1], [0], [0], [1], [0, 0, 1, 1], [], []>} : vector<4x2048xf32>, vector<2048x16xf32>, vector<4x16xf32> -> vector<4x16xf32>
    %c0_106 = arith.constant 0 : index
    %c0_107 = arith.constant 0 : index
    %223 = vector.load %arg28[%c0_106, %c0_107] : memref<1x16xf32, #tpu.memory_space<vmem>>, vector<1x16xf32>
    %224 = vector.broadcast %223 : vector<1x16xf32> to vector<4x16xf32>
    %225 = arith.addf %222, %224 : vector<4x16xf32>
    %226 = arith.addf %213, %225 : vector<4x16xf32>
    %c0_108 = arith.constant 0 : index
    %c0_109 = arith.constant 0 : index
    %227 = vector.load %arg29[%c0_108, %c0_109] : memref<1x16xf32, #tpu.memory_space<vmem>>, vector<1x16xf32>
    %c0_110 = arith.constant 0 : index
    %c0_111 = arith.constant 0 : index
    %228 = vector.load %arg30[%c0_110, %c0_111] : memref<1x16xf32, #tpu.memory_space<vmem>>, vector<1x16xf32>
    %cst_112 = arith.constant dense<0.000000e+00> : vector<4xf32>
    %229 = vector.multi_reduction <add>, %226, %cst_112 [1] : vector<4x16xf32> to vector<4xf32>
    %230 = vector.shape_cast %229 : vector<4xf32> to vector<4x1xf32>
    %cst_113 = arith.constant 1.600000e+01 : f32
    %231 = vector.broadcast %cst_113 : f32 to vector<4x1xf32>
    %232 = arith.divf %230, %231 : vector<4x1xf32>
    %233 = vector.broadcast %232 : vector<4x1xf32> to vector<4x16xf32>
    %234 = arith.subf %226, %233 : vector<4x16xf32>
    %235 = arith.mulf %234, %234 : vector<4x16xf32>
    %cst_114 = arith.constant dense<0.000000e+00> : vector<4xf32>
    %236 = vector.multi_reduction <add>, %235, %cst_114 [1] : vector<4x16xf32> to vector<4xf32>
    %237 = vector.shape_cast %236 : vector<4xf32> to vector<4x1xf32>
    %cst_115 = arith.constant 1.600000e+01 : f32
    %238 = vector.broadcast %cst_115 : f32 to vector<4x1xf32>
    %239 = arith.divf %237, %238 : vector<4x1xf32>
    %240 = vector.broadcast %232 : vector<4x1xf32> to vector<4x16xf32>
    %241 = arith.subf %226, %240 : vector<4x16xf32>
    %cst_116 = arith.constant 9.99999974E-6 : f32
    %242 = vector.broadcast %cst_116 : f32 to vector<4x1xf32>
    %243 = arith.addf %239, %242 : vector<4x1xf32>
    %244 = math.rsqrt %243 : vector<4x1xf32>
    %245 = vector.broadcast %244 : vector<4x1xf32> to vector<4x16xf32>
    %246 = arith.mulf %241, %245 : vector<4x16xf32>
    %247 = vector.broadcast %227 : vector<1x16xf32> to vector<4x16xf32>
    %248 = arith.mulf %246, %247 : vector<4x16xf32>
    %249 = vector.broadcast %228 : vector<1x16xf32> to vector<4x16xf32>
    %250 = arith.addf %248, %249 : vector<4x16xf32>
    %251 = vector.extract_strided_slice %250 {offsets = [0, 0], sizes = [2, 16], strides = [1, 1]} : vector<4x16xf32> to vector<2x16xf32>
    %252 = vector.extract_strided_slice %250 {offsets = [2, 0], sizes = [2, 16], strides = [1, 1]} : vector<4x16xf32> to vector<2x16xf32>
    %253 = tpu.concatenate %251, %252 in 1 : vector<2x16xf32>, vector<2x16xf32> -> vector<2x32xf32>
    %c0_117 = arith.constant 0 : index
    %c0_118 = arith.constant 0 : index
    %254 = vector.load %arg31[%c0_117, %c0_118] : memref<32x32xf32, #tpu.memory_space<vmem>>, vector<32x32xf32>
    %cst_119 = arith.constant dense<0.000000e+00> : vector<2x32xf32>
    %255 = tpu.matmul %253, %254, %cst_119 {dimension_numbers = #tpu.dot_dimension_numbers<[1], [0], [0], [1], [0, 0, 1, 1], [], []>} : vector<2x32xf32>, vector<32x32xf32>, vector<2x32xf32> -> vector<2x32xf32>
    %c0_120 = arith.constant 0 : index
    %c0_121 = arith.constant 0 : index
    %256 = vector.load %arg32[%c0_120, %c0_121] : memref<1x32xf32, #tpu.memory_space<vmem>>, vector<1x32xf32>
    %257 = vector.broadcast %256 : vector<1x32xf32> to vector<2x32xf32>
    %258 = arith.addf %255, %257 : vector<2x32xf32>
    %cst_122 = arith.constant 0.000000e+00 : f32
    %259 = vector.broadcast %cst_122 : f32 to vector<2x32xf32>
    %260 = arith.maximumf %258, %259 : vector<2x32xf32>
    %c0_123 = arith.constant 0 : index
    %c0_124 = arith.constant 0 : index
    %261 = vector.load %arg33[%c0_123, %c0_124] : memref<32x16xf32, #tpu.memory_space<vmem>>, vector<32x16xf32>
    %cst_125 = arith.constant dense<0.000000e+00> : vector<2x16xf32>
    %262 = tpu.matmul %260, %261, %cst_125 {dimension_numbers = #tpu.dot_dimension_numbers<[1], [0], [0], [1], [0, 0, 1, 1], [], []>} : vector<2x32xf32>, vector<32x16xf32>, vector<2x16xf32> -> vector<2x16xf32>
    %c0_126 = arith.constant 0 : index
    %c0_127 = arith.constant 0 : index
    %263 = vector.load %arg34[%c0_126, %c0_127] : memref<1x16xf32, #tpu.memory_space<vmem>>, vector<1x16xf32>
    %264 = vector.broadcast %263 : vector<1x16xf32> to vector<2x16xf32>
    %265 = arith.addf %262, %264 : vector<2x16xf32>
    %c0_128 = arith.constant 0 : index
    %c0_129 = arith.constant 0 : index
    %266 = vector.load %arg35[%c0_128, %c0_129] : memref<2x16xf32, #tpu.memory_space<vmem>>, vector<2x16xf32>
    tpu.vector_store %arg35[%c0_128, %c0_129], %265 {strides = array<i32>} : memref<2x16xf32, #tpu.memory_space<vmem>>, vector<2x16xf32>,
    return
  }
  func.func @transform_0(%arg0: i32) -> (i32, i32) {
    %c0_i32 = arith.constant 0 : i32
    %c0_i32_0 = arith.constant 0 : i32
    %c0_i32_1 = arith.constant 0 : i32
    return %c0_i32, %c0_i32_0 : i32, i32
  }
  func.func @transform_1(%arg0: i32) -> (i32, i32) {
    %c0_i32 = arith.constant 0 : i32
    %c0_i32_0 = arith.constant 0 : i32
    %c0_i32_1 = arith.constant 0 : i32
    return %c0_i32, %c0_i32_0 : i32, i32
  }
  func.func @transform_2(%arg0: i32) -> (i32, i32) {
    %c0_i32 = arith.constant 0 : i32
    %c0_i32_0 = arith.constant 0 : i32
    %c0_i32_1 = arith.constant 0 : i32
    return %c0_i32, %c0_i32_0 : i32, i32
  }
  func.func @transform_3(%arg0: i32) -> (i32, i32) {
    %c0_i32 = arith.constant 0 : i32
    %c0_i32_0 = arith.constant 0 : i32
    %c0_i32_1 = arith.constant 0 : i32
    return %c0_i32, %c0_i32_0 : i32, i32
  }
  func.func @transform_4(%arg0: i32) -> (i32, i32) {
    %c0_i32 = arith.constant 0 : i32
    %c0_i32_0 = arith.constant 0 : i32
    %c0_i32_1 = arith.constant 0 : i32
    return %c0_i32, %c0_i32_0 : i32, i32
  }
  func.func @transform_5(%arg0: i32) -> (i32, i32) {
    %c0_i32 = arith.constant 0 : i32
    %c0_i32_0 = arith.constant 0 : i32
    %c0_i32_1 = arith.constant 0 : i32
    return %c0_i32, %c0_i32_0 : i32, i32
  }
  func.func @transform_6(%arg0: i32) -> (i32, i32) {
    %c0_i32 = arith.constant 0 : i32
    %c0_i32_0 = arith.constant 0 : i32
    %c0_i32_1 = arith.constant 0 : i32
    return %c0_i32, %c0_i32_0 : i32, i32
  }
  func.func @transform_7(%arg0: i32) -> (i32, i32) {
    %c0_i32 = arith.constant 0 : i32
    %c0_i32_0 = arith.constant 0 : i32
    %c0_i32_1 = arith.constant 0 : i32
    return %c0_i32, %c0_i32_0 : i32, i32
  }
  func.func @transform_8(%arg0: i32) -> (i32, i32) {
    %c0_i32 = arith.constant 0 : i32
    %c0_i32_0 = arith.constant 0 : i32
    %c0_i32_1 = arith.constant 0 : i32
    return %c0_i32, %c0_i32_0 : i32, i32
  }
  func.func @transform_9(%arg0: i32) -> (i32, i32) {
    %c0_i32 = arith.constant 0 : i32
    %c0_i32_0 = arith.constant 0 : i32
    %c0_i32_1 = arith.constant 0 : i32
    return %c0_i32, %c0_i32_0 : i32, i32
  }
  func.func @transform_10(%arg0: i32) -> (i32, i32) {
    %c0_i32 = arith.constant 0 : i32
    %c0_i32_0 = arith.constant 0 : i32
    %c0_i32_1 = arith.constant 0 : i32
    return %c0_i32, %c0_i32_0 : i32, i32
  }
  func.func @transform_11(%arg0: i32) -> (i32, i32) {
    %c0_i32 = arith.constant 0 : i32
    %c0_i32_0 = arith.constant 0 : i32
    %c0_i32_1 = arith.constant 0 : i32
    return %c0_i32, %c0_i32_0 : i32, i32
  }
  func.func @transform_12(%arg0: i32) -> (i32, i32) {
    %c0_i32 = arith.constant 0 : i32
    %c0_i32_0 = arith.constant 0 : i32
    %c0_i32_1 = arith.constant 0 : i32
    return %c0_i32, %c0_i32_0 : i32, i32
  }
  func.func @transform_13(%arg0: i32) -> (i32, i32) {
    %c0_i32 = arith.constant 0 : i32
    %c0_i32_0 = arith.constant 0 : i32
    %c0_i32_1 = arith.constant 0 : i32
    return %c0_i32, %c0_i32_0 : i32, i32
  }
  func.func @transform_14(%arg0: i32) -> (i32, i32) {
    %c0_i32 = arith.constant 0 : i32
    %c0_i32_0 = arith.constant 0 : i32
    %c0_i32_1 = arith.constant 0 : i32
    return %c0_i32, %c0_i32_0 : i32, i32
  }
  func.func @transform_15(%arg0: i32) -> (i32, i32) {
    %c0_i32 = arith.constant 0 : i32
    %c0_i32_0 = arith.constant 0 : i32
    %c0_i32_1 = arith.constant 0 : i32
    return %c0_i32, %c0_i32_0 : i32, i32
  }
  func.func @transform_16(%arg0: i32) -> (i32, i32) {
    %c0_i32 = arith.constant 0 : i32
    %c0_i32_0 = arith.constant 0 : i32
    %c0_i32_1 = arith.constant 0 : i32
    return %c0_i32, %c0_i32_0 : i32, i32
  }
  func.func @transform_17(%arg0: i32) -> (i32, i32) {
    %c0_i32 = arith.constant 0 : i32
    %c0_i32_0 = arith.constant 0 : i32
    %c0_i32_1 = arith.constant 0 : i32
    return %c0_i32, %c0_i32_0 : i32, i32
  }
  func.func @transform_18(%arg0: i32) -> (i32, i32) {
    %c0_i32 = arith.constant 0 : i32
    %c0_i32_0 = arith.constant 0 : i32
    %c0_i32_1 = arith.constant 0 : i32
    return %c0_i32, %c0_i32_0 : i32, i32
  }
  func.func @transform_19(%arg0: i32) -> (i32, i32) {
    %c0_i32 = arith.constant 0 : i32
    %c0_i32_0 = arith.constant 0 : i32
    %c0_i32_1 = arith.constant 0 : i32
    return %c0_i32, %c0_i32_0 : i32, i32
  }
  func.func @transform_20(%arg0: i32) -> (i32, i32) {
    %c0_i32 = arith.constant 0 : i32
    %c0_i32_0 = arith.constant 0 : i32
    %c0_i32_1 = arith.constant 0 : i32
    return %c0_i32, %c0_i32_0 : i32, i32
  }
  func.func @transform_21(%arg0: i32) -> (i32, i32) {
    %c0_i32 = arith.constant 0 : i32
    %c0_i32_0 = arith.constant 0 : i32
    %c0_i32_1 = arith.constant 0 : i32
    return %c0_i32, %c0_i32_0 : i32, i32
  }
  func.func @transform_22(%arg0: i32) -> (i32, i32) {
    %c0_i32 = arith.constant 0 : i32
    %c0_i32_0 = arith.constant 0 : i32
    %c0_i32_1 = arith.constant 0 : i32
    return %c0_i32, %c0_i32_0 : i32, i32
  }
  func.func @transform_23(%arg0: i32) -> (i32, i32) {
    %c0_i32 = arith.constant 0 : i32
    %c0_i32_0 = arith.constant 0 : i32
    %c0_i32_1 = arith.constant 0 : i32
    return %c0_i32, %c0_i32_0 : i32, i32
  }
  func.func @transform_24(%arg0: i32) -> (i32, i32) {
    %c0_i32 = arith.constant 0 : i32
    %c0_i32_0 = arith.constant 0 : i32
    %c0_i32_1 = arith.constant 0 : i32
    return %c0_i32, %c0_i32_0 : i32, i32
  }
  func.func @transform_25(%arg0: i32) -> (i32, i32) {
    %c0_i32 = arith.constant 0 : i32
    %c0_i32_0 = arith.constant 0 : i32
    %c0_i32_1 = arith.constant 0 : i32
    return %c0_i32, %c0_i32_0 : i32, i32
  }
  func.func @transform_26(%arg0: i32) -> (i32, i32) {
    %c0_i32 = arith.constant 0 : i32
    %c0_i32_0 = arith.constant 0 : i32
    %c0_i32_1 = arith.constant 0 : i32
    return %c0_i32, %c0_i32_0 : i32, i32
  }
  func.func @transform_27(%arg0: i32) -> (i32, i32) {
    %c0_i32 = arith.constant 0 : i32
    %c0_i32_0 = arith.constant 0 : i32
    %c0_i32_1 = arith.constant 0 : i32
    return %c0_i32, %c0_i32_0 : i32, i32
  }
  func.func @transform_28(%arg0: i32) -> (i32, i32) {
    %c0_i32 = arith.constant 0 : i32
    %c0_i32_0 = arith.constant 0 : i32
    %c0_i32_1 = arith.constant 0 : i32
    return %c0_i32, %c0_i32_0 : i32, i32
  }
  func.func @transform_29(%arg0: i32) -> (i32, i32) {
    %c0_i32 = arith.constant 0 : i32
    %c0_i32_0 = arith.constant 0 : i32
    %c0_i32_1 = arith.constant 0 : i32
    return %c0_i32, %c0_i32_0 : i32, i32
  }
  func.func @transform_30(%arg0: i32) -> (i32, i32) {
    %c0_i32 = arith.constant 0 : i32
    %c0_i32_0 = arith.constant 0 : i32
    %c0_i32_1 = arith.constant 0 : i32
    return %c0_i32, %c0_i32_0 : i32, i32
  }
  func.func @transform_31(%arg0: i32) -> (i32, i32) {
    %c0_i32 = arith.constant 0 : i32
    %c0_i32_0 = arith.constant 0 : i32
    %c0_i32_1 = arith.constant 0 : i32
    return %c0_i32, %c0_i32_0 : i32, i32
  }
  func.func @transform_32(%arg0: i32) -> (i32, i32) {
    %c0_i32 = arith.constant 0 : i32
    %c0_i32_0 = arith.constant 0 : i32
    %c0_i32_1 = arith.constant 0 : i32
    return %c0_i32, %c0_i32_0 : i32, i32
  }
  func.func @transform_33(%arg0: i32) -> (i32, i32) {
    %c0_i32 = arith.constant 0 : i32
    %c0_i32_0 = arith.constant 0 : i32
    %c0_i32_1 = arith.constant 0 : i32
    return %c0_i32, %c0_i32_0 : i32, i32
  }
  func.func @transform_34(%arg0: i32) -> (i32, i32) {
    %c0_i32 = arith.constant 0 : i32
    %c0_i32_0 = arith.constant 0 : i32
    %c0_i32_1 = arith.constant 0 : i32
    return %c0_i32, %c0_i32_0 : i32, i32
  }
}

</mosaic_0001>

<llo_original>
// kernel: squeeze.1
$region0: #{squeeze.1}
  %s0 = inlined_call_operand.hbm [shape: f32[2,1,4,114], index: 0, kind: input, shape index: {}]
  %s1 = inlined_call_operand.vmem [shape: f32[2,456], index: 1, kind: output, shape index: {}]
  $region1: #{squeeze.1} parent=0
    #allocation0 [shape = 'u8[4096]{0}', space=vmem, size = 0x1000, scoped, tag = 'operand span for operand 0']
    #allocation1 [shape = 's32[1]{0}', space=sflag, size = 0x4, scoped, tag = 'scoped memory for squeeze.1']
    #allocation2 [shape = 'u8[16384]{0}', space=vmem, size = 0x4000, scoped, tag = 'scoped mem for output reshape']
    #allocation3 [shape = 'u8[8192]{0}', space=vmem, size = 0x2000, scoped, tag = 'scoped mem for input reshape']
    %2 = vsyncpa [#allocation1], 0
    %s4 = ssub.s32 128, 128
    %5 = vsyncadd [#allocation1], %s4
    %s7 = sshll.u32 [#allocation0], 4
    %s8 = int_to_ptr.vmem [resolvable:$true] %s7
    %10 = dma.hbm_to_vmem [thread:$0]  %s0, 128, %s8, [#allocation1]
    %11 = dma.done [#allocation1], 128
    %s13 = sshllo.u32 0, 4
    %s14 = scalar_lea.vmem [#allocation0], 4
    %v15 = vld [vmem:[%s14] sm:%s13]
    %s16 = scalar_lea.vmem [#allocation3], 8
    %17 = vst [vmem:[%s16] sm:%s13] %v15
    %v18 = vld [vmem:[#allocation0] sm:%s13]
    %19 = vst [vmem:[#allocation3] sm:%s13] %v18
    %s20 = smov 3
    %v21 = vld [vmem:[#allocation3] ss:$8 sm:%s20]
    %vm22 = vcmask 932864
    %23 = vst.msk [vmem:[#allocation2] sm:$0x3] %vm22, %v21
    %s24 = scalar_lea.vmem [#allocation3], 1
    %s25 = smov 3
    %v26 = vld [vmem:[%s24] ss:$8 sm:%s25]
    %s27 = scalar_lea.vmem [#allocation3], 1
    %s28 = smov 3
    %v29 = vld [vmem:[%s27] ss:$8 sm:%s28]
    %vm30 = vcmask 113664
    %v31 = vsel %vm30, %v29, %v26
    %32 = vrot.lane.b32.xlu0 %v31, 114
    %v33 = vpop.permute.xlu0 %32
    %vm34 = vcmask 818176
    %s35 = scalar_lea.vmem [#allocation2], 8
    %36 = vst.msk [vmem:[%s35] sm:$0x3] %vm34, %v33
    %vm37 = vcmask 1048464
    %38 = vst.msk [vmem:[#allocation2] sm:$0x3] %vm37, %v33
    %s39 = scalar_lea.vmem [#allocation3], 2
    %s40 = smov 3
    %v41 = vld [vmem:[%s39] ss:$8 sm:%s40]
    %s42 = scalar_lea.vmem [#allocation3], 2
    %s43 = smov 3
    %v44 = vld [vmem:[%s42] ss:$8 sm:%s43]
    %vm45 = vcmask 228352
    %v46 = vsel %vm45, %v44, %v41
    %47 = vrot.lane.b32.xlu0 %v46, 100
    %v48 = vpop.permute.xlu0 %47
    %vm49 = vcmask 703488
    %s50 = scalar_lea.vmem [#allocation2], 16
    %51 = vst.msk [vmem:[%s50] sm:$0x3] %vm49, %v48
    %vm52 = vcmask 1048352
    %s53 = scalar_lea.vmem [#allocation2], 8
    %54 = vst.msk [vmem:[%s53] sm:$0x3] %vm52, %v48
    %s55 = scalar_lea.vmem [#allocation3], 3
    %s56 = smov 3
    %v57 = vld [vmem:[%s55] ss:$8 sm:%s56]
    %s58 = scalar_lea.vmem [#allocation3], 3
    %s59 = smov 3
    %v60 = vld [vmem:[%s58] ss:$8 sm:%s59]
    %vm61 = vcmask 343040
    %v62 = vsel %vm61, %v60, %v57
    %63 = vrot.lane.b32.xlu0 %v62, 86
    %v64 = vpop.permute.xlu0 %63
    %vm65 = vcmask 588800
    %s66 = scalar_lea.vmem [#allocation2], 24
    %67 = vst.msk [vmem:[%s66] sm:$0x3] %vm65, %v64
    %vm68 = vcmask 1048240
    %s69 = scalar_lea.vmem [#allocation2], 16
    %70 = vst.msk [vmem:[%s69] sm:$0x3] %vm68, %v64
    %s72 = sshllo.u32 0, 2
    %v74 = vld [vmem:[#allocation2] sm:%s72]
    %s75 = sshllo.u32 0, 2
    %76 = vst [vmem:[%s1] sm:%s75] %v74
    %s77 = scalar_lea.vmem [#allocation2], 8
    %v78 = vld [vmem:[%s77] sm:%s72]
    %s79 = sshllo.u32 0, 2
    %s80 = scalar_lea.vmem %s1, 2
    %81 = vst [vmem:[%s80] sm:%s79] %v78
    %s82 = scalar_lea.vmem [#allocation2], 16
    %v83 = vld [vmem:[%s82] sm:%s72]
    %s84 = sshllo.u32 0, 2
    %s85 = smul.addr 2, 2
    %s86 = scalar_lea.vmem %s1, %s85
    %87 = vst [vmem:[%s86] sm:%s84] %v83
    %s88 = scalar_lea.vmem [#allocation2], 24
    %v89 = vld [vmem:[%s88] sm:%s72]
    %s90 = sshllo.u32 0, 2
    %s91 = smul.addr 2, 3
    %s92 = scalar_lea.vmem %s1, %s91
    %93 = vst [vmem:[%s92] sm:%s90] %v89
    %94 = vsyncpa [#allocation1], 1

// kernel: deccatnet_forward.1
$region0: #{deccatnet_forward.1}
  #allocation0 [shape = 'u32[]', space=smem, size = 0x4, offset = 0x4, fixed_abs, tag = 'smem constant byte address 0x4 - core index']
  #allocation1 [shape = 'u32[144,128]{1,0:T(1,128)}', space=vmem, size = 0x12000, scoped, tag = 'internal scratch']
  %s0 = inlined_call_operand.smem [shape: u32[35], index: -1, kind: input, shape index: {}]
  %s1 = sld [smem:[%s0]]
  %s2 = scalar_lea.smem %s0, 1
  %s3 = sld [smem:[%s2]]
  %s4 = scalar_lea.smem %s0, 2
  %s5 = sld [smem:[%s4]]
  %s6 = scalar_lea.smem %s0, 3
  %s7 = sld [smem:[%s6]]
  %s8 = scalar_lea.smem %s0, 4
  %s9 = sld [smem:[%s8]]
  %s10 = scalar_lea.smem %s0, 5
  %s11 = sld [smem:[%s10]]
  %s12 = scalar_lea.smem %s0, 6
  %s13 = sld [smem:[%s12]]
  %s14 = scalar_lea.smem %s0, 7
  %s15 = sld [smem:[%s14]]
  %s16 = scalar_lea.smem %s0, 8
  %s17 = sld [smem:[%s16]]
  %s18 = scalar_lea.smem %s0, 9
  %s19 = sld [smem:[%s18]]
  %s20 = scalar_lea.smem %s0, 10
  %s21 = sld [smem:[%s20]]
  %s22 = scalar_lea.smem %s0, 11
  %s23 = sld [smem:[%s22]]
  %s24 = scalar_lea.smem %s0, 12
  %s25 = sld [smem:[%s24]]
  %s26 = scalar_lea.smem %s0, 13
  %s27 = sld [smem:[%s26]]
  %s28 = scalar_lea.smem %s0, 14
  %s29 = sld [smem:[%s28]]
  %s30 = scalar_lea.smem %s0, 15
  %s31 = sld [smem:[%s30]]
  %s32 = scalar_lea.smem %s0, 16
  %s33 = sld [smem:[%s32]]
  %s34 = scalar_lea.smem %s0, 17
  %s35 = sld [smem:[%s34]]
  %s36 = scalar_lea.smem %s0, 18
  %s37 = sld [smem:[%s36]]
  %s38 = scalar_lea.smem %s0, 19
  %s39 = sld [smem:[%s38]]
  %s40 = scalar_lea.smem %s0, 20
  %s41 = sld [smem:[%s40]]
  %s42 = scalar_lea.smem %s0, 21
  %s43 = sld [smem:[%s42]]
  %s44 = scalar_lea.smem %s0, 22
  %s45 = sld [smem:[%s44]]
  %s46 = scalar_lea.smem %s0, 23
  %s47 = sld [smem:[%s46]]
  %s48 = scalar_lea.smem %s0, 24
  %s49 = sld [smem:[%s48]]
  %s50 = scalar_lea.smem %s0, 25
  %s51 = sld [smem:[%s50]]
  %s52 = scalar_lea.smem %s0, 26
  %s53 = sld [smem:[%s52]]
  %s54 = scalar_lea.smem %s0, 27
  %s55 = sld [smem:[%s54]]
  %s56 = scalar_lea.smem %s0, 28
  %s57 = sld [smem:[%s56]]
  %s58 = scalar_lea.smem %s0, 29
  %s59 = sld [smem:[%s58]]
  %s60 = scalar_lea.smem %s0, 30
  %s61 = sld [smem:[%s60]]
  %s62 = scalar_lea.smem %s0, 31
  %s63 = sld [smem:[%s62]]
  %s64 = scalar_lea.smem %s0, 32
  %s65 = sld [smem:[%s64]]
  %s66 = scalar_lea.smem %s0, 33
  %s67 = sld [smem:[%s66]]
  %s68 = scalar_lea.smem %s0, 34
  %s69 = sld [smem:[%s68]]
  %s70 = sld [smem:[#allocation0]]
  $region146: #{deccatnet_forward.1} parent=0
    _
  %s72 = ssub.s32 1, %s70
  %s73 = scalar_select 0, %s72, %s70
  $region1: #{deccatnet_forward.1} parent=0
    #allocation2 [shape = 'u8[1024]{0}', space=vmem, size = 0x400, scoped, tag = 'output window, operand 0, single buffered']
    #allocation3 [shape = 's32[1]{0}', space=sflag, size = 0x4, scoped, tag = 'scoped memory for deccatnet_forward.1']
    %74 = vsyncpa [#allocation3], 0
    // Predicated region
    $region2: #{deccatnet_forward.1} parent=1 // pred_check
      _
    $region3: #{deccatnet_forward.1} parent=1 // pred_check_branch
      %76 = sbr.rel (0) target = $region5
    $region4: #{deccatnet_forward.1} parent=1 // pred_region
      _
    $region5: #{deccatnet_forward.1} parent=1 // pred_fallthru
      _
    // Predicated region
    $region6: #{deccatnet_forward.1} parent=1 // pred_check
      _
    $region7: #{deccatnet_forward.1} parent=1 // pred_check_branch
      %78 = sbr.rel (0) target = $region9
    $region8: #{deccatnet_forward.1} parent=1 // pred_region
      _
    $region9: #{deccatnet_forward.1} parent=1 // pred_fallthru
      _
    // Predicated region
    $region10: #{deccatnet_forward.1} parent=1 // pred_check
      _
    $region11: #{deccatnet_forward.1} parent=1 // pred_check_branch
      %80 = sbr.rel (0) target = $region13
    $region12: #{deccatnet_forward.1} parent=1 // pred_region
      _
    $region13: #{deccatnet_forward.1} parent=1 // pred_fallthru
      _
    // Predicated region
    $region14: #{deccatnet_forward.1} parent=1 // pred_check
      _
    $region15: #{deccatnet_forward.1} parent=1 // pred_check_branch
      %82 = sbr.rel (0) target = $region17
    $region16: #{deccatnet_forward.1} parent=1 // pred_region
      _
    $region17: #{deccatnet_forward.1} parent=1 // pred_fallthru
      _
    // Predicated region
    $region18: #{deccatnet_forward.1} parent=1 // pred_check
      _
    $region19: #{deccatnet_forward.1} parent=1 // pred_check_branch
      %84 = sbr.rel (0) target = $region21
    $region20: #{deccatnet_forward.1} parent=1 // pred_region
      _
    $region21: #{deccatnet_forward.1} parent=1 // pred_fallthru
      _
    // Predicated region
    $region22: #{deccatnet_forward.1} parent=1 // pred_check
      _
    $region23: #{deccatnet_forward.1} parent=1 // pred_check_branch
      %86 = sbr.rel (0) target = $region25
    $region24: #{deccatnet_forward.1} parent=1 // pred_region
      _
    $region25: #{deccatnet_forward.1} parent=1 // pred_fallthru
      _
    // Predicated region
    $region26: #{deccatnet_forward.1} parent=1 // pred_check
      _
    $region27: #{deccatnet_forward.1} parent=1 // pred_check_branch
      %88 = sbr.rel (0) target = $region29
    $region28: #{deccatnet_forward.1} parent=1 // pred_region
      _
    $region29: #{deccatnet_forward.1} parent=1 // pred_fallthru
      _
    // Predicated region
    $region30: #{deccatnet_forward.1} parent=1 // pred_check
      _
    $region31: #{deccatnet_forward.1} parent=1 // pred_check_branch
      %90 = sbr.rel (0) target = $region33
    $region32: #{deccatnet_forward.1} parent=1 // pred_region
      _
    $region33: #{deccatnet_forward.1} parent=1 // pred_fallthru
      _
    // Predicated region
    $region34: #{deccatnet_forward.1} parent=1 // pred_check
      _
    $region35: #{deccatnet_forward.1} parent=1 // pred_check_branch
      %92 = sbr.rel (0) target = $region37
    $region36: #{deccatnet_forward.1} parent=1 // pred_region
      _
    $region37: #{deccatnet_forward.1} parent=1 // pred_fallthru
      _
    // Predicated region
    $region38: #{deccatnet_forward.1} parent=1 // pred_check
      _
    $region39: #{deccatnet_forward.1} parent=1 // pred_check_branch
      %94 = sbr.rel (0) target = $region41
    $region40: #{deccatnet_forward.1} parent=1 // pred_region
      _
    $region41: #{deccatnet_forward.1} parent=1 // pred_fallthru
      _
    // Predicated region
    $region42: #{deccatnet_forward.1} parent=1 // pred_check
      _
    $region43: #{deccatnet_forward.1} parent=1 // pred_check_branch
      %96 = sbr.rel (0) target = $region45
    $region44: #{deccatnet_forward.1} parent=1 // pred_region
      _
    $region45: #{deccatnet_forward.1} parent=1 // pred_fallthru
      _
    // Predicated region
    $region46: #{deccatnet_forward.1} parent=1 // pred_check
      _
    $region47: #{deccatnet_forward.1} parent=1 // pred_check_branch
      %98 = sbr.rel (0) target = $region49
    $region48: #{deccatnet_forward.1} parent=1 // pred_region
      _
    $region49: #{deccatnet_forward.1} parent=1 // pred_fallthru
      _
    // Predicated region
    $region50: #{deccatnet_forward.1} parent=1 // pred_check
      _
    $region51: #{deccatnet_forward.1} parent=1 // pred_check_branch
      %100 = sbr.rel (0) target = $region53
    $region52: #{deccatnet_forward.1} parent=1 // pred_region
      _
    $region53: #{deccatnet_forward.1} parent=1 // pred_fallthru
      _
    // Predicated region
    $region54: #{deccatnet_forward.1} parent=1 // pred_check
      _
    $region55: #{deccatnet_forward.1} parent=1 // pred_check_branch
      %102 = sbr.rel (0) target = $region57
    $region56: #{deccatnet_forward.1} parent=1 // pred_region
      _
    $region57: #{deccatnet_forward.1} parent=1 // pred_fallthru
      _
    // Predicated region
    $region58: #{deccatnet_forward.1} parent=1 // pred_check
      _
    $region59: #{deccatnet_forward.1} parent=1 // pred_check_branch
      %104 = sbr.rel (0) target = $region61
    $region60: #{deccatnet_forward.1} parent=1 // pred_region
      _
    $region61: #{deccatnet_forward.1} parent=1 // pred_fallthru
      _
    // Predicated region
    $region62: #{deccatnet_forward.1} parent=1 // pred_check
      _
    $region63: #{deccatnet_forward.1} parent=1 // pred_check_branch
      %106 = sbr.rel (0) target = $region65
    $region64: #{deccatnet_forward.1} parent=1 // pred_region
      _
    $region65: #{deccatnet_forward.1} parent=1 // pred_fallthru
      _
    // Predicated region
    $region66: #{deccatnet_forward.1} parent=1 // pred_check
      _
    $region67: #{deccatnet_forward.1} parent=1 // pred_check_branch
      %108 = sbr.rel (0) target = $region69
    $region68: #{deccatnet_forward.1} parent=1 // pred_region
      _
    $region69: #{deccatnet_forward.1} parent=1 // pred_fallthru
      _
    // Predicated region
    $region70: #{deccatnet_forward.1} parent=1 // pred_check
      _
    $region71: #{deccatnet_forward.1} parent=1 // pred_check_branch
      %110 = sbr.rel (0) target = $region73
    $region72: #{deccatnet_forward.1} parent=1 // pred_region
      _
    $region73: #{deccatnet_forward.1} parent=1 // pred_fallthru
      _
    // Predicated region
    $region74: #{deccatnet_forward.1} parent=1 // pred_check
      _
    $region75: #{deccatnet_forward.1} parent=1 // pred_check_branch
      %112 = sbr.rel (0) target = $region77
    $region76: #{deccatnet_forward.1} parent=1 // pred_region
      _
    $region77: #{deccatnet_forward.1} parent=1 // pred_fallthru
      _
    // Predicated region
    $region78: #{deccatnet_forward.1} parent=1 // pred_check
      _
    $region79: #{deccatnet_forward.1} parent=1 // pred_check_branch
      %114 = sbr.rel (0) target = $region81
    $region80: #{deccatnet_forward.1} parent=1 // pred_region
      _
    $region81: #{deccatnet_forward.1} parent=1 // pred_fallthru
      _
    // Predicated region
    $region82: #{deccatnet_forward.1} parent=1 // pred_check
      _
    $region83: #{deccatnet_forward.1} parent=1 // pred_check_branch
      %116 = sbr.rel (0) target = $region85
    $region84: #{deccatnet_forward.1} parent=1 // pred_region
      _
    $region85: #{deccatnet_forward.1} parent=1 // pred_fallthru
      _
    // Predicated region
    $region86: #{deccatnet_forward.1} parent=1 // pred_check
      _
    $region87: #{deccatnet_forward.1} parent=1 // pred_check_branch
      %118 = sbr.rel (0) target = $region89
    $region88: #{deccatnet_forward.1} parent=1 // pred_region
      _
    $region89: #{deccatnet_forward.1} parent=1 // pred_fallthru
      _
    // Predicated region
    $region90: #{deccatnet_forward.1} parent=1 // pred_check
      _
    $region91: #{deccatnet_forward.1} parent=1 // pred_check_branch
      %120 = sbr.rel (0) target = $region93
    $region92: #{deccatnet_forward.1} parent=1 // pred_region
      _
    $region93: #{deccatnet_forward.1} parent=1 // pred_fallthru
      _
    // Predicated region
    $region94: #{deccatnet_forward.1} parent=1 // pred_check
      _
    $region95: #{deccatnet_forward.1} parent=1 // pred_check_branch
      %122 = sbr.rel (0) target = $region97
    $region96: #{deccatnet_forward.1} parent=1 // pred_region
      _
    $region97: #{deccatnet_forward.1} parent=1 // pred_fallthru
      _
    // Predicated region
    $region98: #{deccatnet_forward.1} parent=1 // pred_check
      _
    $region99: #{deccatnet_forward.1} parent=1 // pred_check_branch
      %124 = sbr.rel (0) target = $region101
    $region100: #{deccatnet_forward.1} parent=1 // pred_region
      _
    $region101: #{deccatnet_forward.1} parent=1 // pred_fallthru
      _
    // Predicated region
    $region102: #{deccatnet_forward.1} parent=1 // pred_check
      _
    $region103: #{deccatnet_forward.1} parent=1 // pred_check_branch
      %126 = sbr.rel (0) target = $region105
    $region104: #{deccatnet_forward.1} parent=1 // pred_region
      _
    $region105: #{deccatnet_forward.1} parent=1 // pred_fallthru
      _
    // Predicated region
    $region106: #{deccatnet_forward.1} parent=1 // pred_check
      _
    $region107: #{deccatnet_forward.1} parent=1 // pred_check_branch
      %128 = sbr.rel (0) target = $region109
    $region108: #{deccatnet_forward.1} parent=1 // pred_region
      _
    $region109: #{deccatnet_forward.1} parent=1 // pred_fallthru
      _
    // Predicated region
    $region110: #{deccatnet_forward.1} parent=1 // pred_check
      _
    $region111: #{deccatnet_forward.1} parent=1 // pred_check_branch
      %130 = sbr.rel (0) target = $region113
    $region112: #{deccatnet_forward.1} parent=1 // pred_region
      _
    $region113: #{deccatnet_forward.1} parent=1 // pred_fallthru
      _
    // Predicated region
    $region114: #{deccatnet_forward.1} parent=1 // pred_check
      _
    $region115: #{deccatnet_forward.1} parent=1 // pred_check_branch
      %132 = sbr.rel (0) target = $region117
    $region116: #{deccatnet_forward.1} parent=1 // pred_region
      _
    $region117: #{deccatnet_forward.1} parent=1 // pred_fallthru
      _
    // Predicated region
    $region118: #{deccatnet_forward.1} parent=1 // pred_check
      _
    $region119: #{deccatnet_forward.1} parent=1 // pred_check_branch
      %134 = sbr.rel (0) target = $region121
    $region120: #{deccatnet_forward.1} parent=1 // pred_region
      _
    $region121: #{deccatnet_forward.1} parent=1 // pred_fallthru
      _
    // Predicated region
    $region122: #{deccatnet_forward.1} parent=1 // pred_check
      _
    $region123: #{deccatnet_forward.1} parent=1 // pred_check_branch
      %136 = sbr.rel (0) target = $region125
    $region124: #{deccatnet_forward.1} parent=1 // pred_region
      _
    $region125: #{deccatnet_forward.1} parent=1 // pred_fallthru
      _
    // Predicated region
    $region126: #{deccatnet_forward.1} parent=1 // pred_check
      _
    $region127: #{deccatnet_forward.1} parent=1 // pred_check_branch
      %138 = sbr.rel (0) target = $region129
    $region128: #{deccatnet_forward.1} parent=1 // pred_region
      _
    $region129: #{deccatnet_forward.1} parent=1 // pred_fallthru
      _
    // Predicated region
    $region130: #{deccatnet_forward.1} parent=1 // pred_check
      _
    $region131: #{deccatnet_forward.1} parent=1 // pred_check_branch
      %140 = sbr.rel (0) target = $region133
    $region132: #{deccatnet_forward.1} parent=1 // pred_region
      _
    $region133: #{deccatnet_forward.1} parent=1 // pred_fallthru
      _
    // Predicated region
    $region134: #{deccatnet_forward.1} parent=1 // pred_check
      _
    $region135: #{deccatnet_forward.1} parent=1 // pred_check_branch
      %142 = sbr.rel (0) target = $region137
    $region136: #{deccatnet_forward.1} parent=1 // pred_region
      _
    $region137: #{deccatnet_forward.1} parent=1 // pred_fallthru
      _
    %v143 = vld [vmem:[%s1] sm:$0xff]
    %v144 = vld [vmem:[%s3] sm:$0xff]
    %v145 = vld [vmem:[%s3 + $0x8] sm:$0xff]
    %v146 = vld [vmem:[%s3 + $0x10] sm:$0xff]
    %v147 = vld [vmem:[%s3 + $0x18] sm:$0xff]
    %v148 = vld [vmem:[%s3 + $0x20] sm:$0xff]
    %v149 = vld [vmem:[%s3 + $0x28] sm:$0xff]
    %v150 = vld [vmem:[%s3 + $0x30] sm:$0xff]
    %v151 = vld [vmem:[%s3 + $0x38] sm:$0xff]
    %v152 = vld [vmem:[%s3 + $0x40] sm:$0xff]
    %v153 = vld [vmem:[%s3 + $0x48] sm:$0xff]
    %v154 = vld [vmem:[%s3 + $0x50] sm:$0xff]
    %v155 = vld [vmem:[%s3 + $0x58] sm:$0xff]
    %v156 = vld [vmem:[%s3 + $0x60] sm:$0xff]
    %v157 = vld [vmem:[%s3 + $0x68] sm:$0xff]
    %v158 = vld [vmem:[%s3 + $0x70] sm:$0xff]
    %v159 = vld [vmem:[%s3 + $0x78] sm:$0xff]
    %v160 = vld [vmem:[%s3 + $0x80] sm:$0xff]
    %v161 = vld [vmem:[%s3 + $0x88] sm:$0xff]
    %v162 = vld [vmem:[%s3 + $0x90] sm:$0xff]
    %v163 = vld [vmem:[%s3 + $0x98] sm:$0xff]
    %v164 = vld [vmem:[%s3 + $0xa0] sm:$0xff]
    %v165 = vld [vmem:[%s3 + $0xa8] sm:$0xff]
    %v166 = vld [vmem:[%s3 + $0xb0] sm:$0xff]
    %v167 = vld [vmem:[%s3 + $0xb8] sm:$0xff]
    %v168 = vld [vmem:[%s3 + $0xc0] sm:$0xff]
    %v169 = vld [vmem:[%s3 + $0xc8] sm:$0xff]
    %v170 = vld [vmem:[%s3 + $0xd0] sm:$0xff]
    %v171 = vld [vmem:[%s3 + $0xd8] sm:$0xff]
    %v172 = vld [vmem:[%s3 + $0xe0] sm:$0xff]
    %v173 = vld [vmem:[%s3 + $0xe8] sm:$0xff]
    %v174 = vld [vmem:[%s3 + $0xf0] sm:$0xff]
    %v175 = vld [vmem:[%s3 + $0xf8] sm:$0xff]
    %v176 = vld [vmem:[%s3 + $0x100] sm:$0xff]
    %v177 = vld [vmem:[%s3 + $0x108] sm:$0xff]
    %v178 = vld [vmem:[%s3 + $0x110] sm:$0xff]
    %v179 = vld [vmem:[%s3 + $0x118] sm:$0xff]
    %v180 = vld [vmem:[%s3 + $0x120] sm:$0xff]
    %v181 = vld [vmem:[%s3 + $0x128] sm:$0xff]
    %v182 = vld [vmem:[%s3 + $0x130] sm:$0xff]
    %v183 = vld [vmem:[%s3 + $0x138] sm:$0xff]
    %v184 = vld [vmem:[%s3 + $0x140] sm:$0xff]
    %v185 = vld [vmem:[%s3 + $0x148] sm:$0xff]
    %v186 = vld [vmem:[%s3 + $0x150] sm:$0xff]
    %v187 = vld [vmem:[%s3 + $0x158] sm:$0xff]
    %v188 = vld [vmem:[%s3 + $0x160] sm:$0xff]
    %v189 = vld [vmem:[%s3 + $0x168] sm:$0xff]
    %v190 = vld [vmem:[%s3 + $0x170] sm:$0xff]
    %v191 = vld [vmem:[%s3 + $0x178] sm:$0xff]
    %v192 = vld [vmem:[%s3 + $0x180] sm:$0xff]
    %v193 = vld [vmem:[%s3 + $0x188] sm:$0xff]
    %v194 = vld [vmem:[%s3 + $0x190] sm:$0xff]
    %v195 = vld [vmem:[%s3 + $0x198] sm:$0xff]
    %v196 = vld [vmem:[%s3 + $0x1a0] sm:$0xff]
    %v197 = vld [vmem:[%s3 + $0x1a8] sm:$0xff]
    %v198 = vld [vmem:[%s3 + $0x1b0] sm:$0xff]
    %v199 = vld [vmem:[%s3 + $0x1b8] sm:$0xff]
    %v200 = vld [vmem:[%s3 + $0x1c0] sm:$0xff]
    %v201 = vld [vmem:[%s3 + $0x1c8] sm:$0xff]
    %v202 = vld [vmem:[%s3 + $0x1d0] sm:$0xff]
    %v203 = vld [vmem:[%s3 + $0x1d8] sm:$0xff]
    %v204 = vld [vmem:[%s3 + $0x1e0] sm:$0xff]
    %v205 = vld [vmem:[%s3 + $0x1e8] sm:$0xff]
    %v206 = vld [vmem:[%s3 + $0x1f0] sm:$0xff]
    %v207 = vld [vmem:[%s3 + $0x1f8] sm:$0xff]
    %v208 = vld [vmem:[%s3 + $0x200] sm:$0xff]
    %v209 = vld [vmem:[%s3 + $0x208] sm:$0xff]
    %v210 = vld [vmem:[%s3 + $0x210] sm:$0xff]
    %v211 = vld [vmem:[%s3 + $0x218] sm:$0xff]
    %v212 = vld [vmem:[%s3 + $0x220] sm:$0xff]
    %v213 = vld [vmem:[%s3 + $0x228] sm:$0xff]
    %v214 = vld [vmem:[%s3 + $0x230] sm:$0xff]
    %v215 = vld [vmem:[%s3 + $0x238] sm:$0xff]
    %v216 = vld [vmem:[%s3 + $0x240] sm:$0xff]
    %v217 = vld [vmem:[%s3 + $0x248] sm:$0xff]
    %v218 = vld [vmem:[%s3 + $0x250] sm:$0xff]
    %v219 = vld [vmem:[%s3 + $0x258] sm:$0xff]
    %v220 = vld [vmem:[%s3 + $0x260] sm:$0xff]
    %v221 = vld [vmem:[%s3 + $0x268] sm:$0xff]
    %v222 = vld [vmem:[%s3 + $0x270] sm:$0xff]
    %v223 = vld [vmem:[%s3 + $0x278] sm:$0xff]
    %v224 = vld [vmem:[%s3 + $0x280] sm:$0xff]
    %v225 = vld [vmem:[%s3 + $0x288] sm:$0xff]
    %v226 = vld [vmem:[%s3 + $0x290] sm:$0xff]
    %v227 = vld [vmem:[%s3 + $0x298] sm:$0xff]
    %v228 = vld [vmem:[%s3 + $0x2a0] sm:$0xff]
    %v229 = vld [vmem:[%s3 + $0x2a8] sm:$0xff]
    %v230 = vld [vmem:[%s3 + $0x2b0] sm:$0xff]
    %v231 = vld [vmem:[%s3 + $0x2b8] sm:$0xff]
    %v232 = vld [vmem:[%s3 + $0x2c0] sm:$0xff]
    %v233 = vld [vmem:[%s3 + $0x2c8] sm:$0xff]
    %v234 = vld [vmem:[%s3 + $0x2d0] sm:$0xff]
    %v235 = vld [vmem:[%s3 + $0x2d8] sm:$0xff]
    %v236 = vld [vmem:[%s3 + $0x2e0] sm:$0xff]
    %v237 = vld [vmem:[%s3 + $0x2e8] sm:$0xff]
    %v238 = vld [vmem:[%s3 + $0x2f0] sm:$0xff]
    %v239 = vld [vmem:[%s3 + $0x2f8] sm:$0xff]
    %v240 = vld [vmem:[%s3 + $0x300] sm:$0xff]
    %v241 = vld [vmem:[%s3 + $0x308] sm:$0xff]
    %v242 = vld [vmem:[%s3 + $0x310] sm:$0xff]
    %v243 = vld [vmem:[%s3 + $0x318] sm:$0xff]
    %v244 = vld [vmem:[%s3 + $0x320] sm:$0xff]
    %v245 = vld [vmem:[%s3 + $0x328] sm:$0xff]
    %v246 = vld [vmem:[%s3 + $0x330] sm:$0xff]
    %v247 = vld [vmem:[%s3 + $0x338] sm:$0xff]
    %v248 = vld [vmem:[%s3 + $0x340] sm:$0xff]
    %v249 = vld [vmem:[%s3 + $0x348] sm:$0xff]
    %v250 = vld [vmem:[%s3 + $0x350] sm:$0xff]
    %v251 = vld [vmem:[%s3 + $0x358] sm:$0xff]
    %v252 = vld [vmem:[%s3 + $0x360] sm:$0xff]
    %v253 = vld [vmem:[%s3 + $0x368] sm:$0xff]
    %v254 = vld [vmem:[%s3 + $0x370] sm:$0xff]
    %v255 = vld [vmem:[%s3 + $0x378] sm:$0xff]
    %v256 = vld [vmem:[%s3 + $0x380] sm:$0xff]
    %v257 = vld [vmem:[%s3 + $0x388] sm:$0xff]
    %v258 = vld [vmem:[%s3 + $0x390] sm:$0xff]
    %v259 = vld [vmem:[%s3 + $0x398] sm:$0xff]
    %v260 = vld [vmem:[%s3 + $0x3a0] sm:$0xff]
    %v261 = vld [vmem:[%s3 + $0x3a8] sm:$0xff]
    %v262 = vld [vmem:[%s3 + $0x3b0] sm:$0xff]
    %v263 = vld [vmem:[%s3 + $0x3b8] sm:$0xff]
    %v264 = vld [vmem:[%s3 + $0x3c0] sm:$0xff]
    %v265 = vld [vmem:[%s3 + $0x3c8] sm:$0xff]
    %v266 = vld [vmem:[%s3 + $0x3d0] sm:$0xff]
    %v267 = vld [vmem:[%s3 + $0x3d8] sm:$0xff]
    %v268 = vld [vmem:[%s3 + $0x3e0] sm:$0xff]
    %v269 = vld [vmem:[%s3 + $0x3e8] sm:$0xff]
    %v270 = vld [vmem:[%s3 + $0x3f0] sm:$0xff]
    %v271 = vld [vmem:[%s3 + $0x3f8] sm:$0xff]
    %v272 = vld [vmem:[%s3 + $0x400] sm:$0xff]
    %v273 = vld [vmem:[%s3 + $0x408] sm:$0xff]
    %v274 = vld [vmem:[%s3 + $0x410] sm:$0xff]
    %v275 = vld [vmem:[%s3 + $0x418] sm:$0xff]
    %v276 = vld [vmem:[%s3 + $0x420] sm:$0xff]
    %v277 = vld [vmem:[%s3 + $0x428] sm:$0xff]
    %v278 = vld [vmem:[%s3 + $0x430] sm:$0xff]
    %v279 = vld [vmem:[%s3 + $0x438] sm:$0xff]
    %v280 = vld [vmem:[%s3 + $0x440] sm:$0xff]
    %v281 = vld [vmem:[%s3 + $0x448] sm:$0xff]
    %v282 = vld [vmem:[%s3 + $0x450] sm:$0xff]
    %v283 = vld [vmem:[%s3 + $0x458] sm:$0xff]
    %v284 = vld [vmem:[%s3 + $0x460] sm:$0xff]
    %v285 = vld [vmem:[%s3 + $0x468] sm:$0xff]
    %v286 = vld [vmem:[%s3 + $0x470] sm:$0xff]
    %v287 = vld [vmem:[%s3 + $0x478] sm:$0xff]
    %v288 = vld [vmem:[%s3 + $0x480] sm:$0xff]
    %v289 = vld [vmem:[%s3 + $0x488] sm:$0xff]
    %v290 = vld [vmem:[%s3 + $0x490] sm:$0xff]
    %v291 = vld [vmem:[%s3 + $0x498] sm:$0xff]
    %v292 = vld [vmem:[%s3 + $0x4a0] sm:$0xff]
    %v293 = vld [vmem:[%s3 + $0x4a8] sm:$0xff]
    %v294 = vld [vmem:[%s3 + $0x4b0] sm:$0xff]
    %v295 = vld [vmem:[%s3 + $0x4b8] sm:$0xff]
    %v296 = vld [vmem:[%s3 + $0x4c0] sm:$0xff]
    %v297 = vld [vmem:[%s3 + $0x4c8] sm:$0xff]
    %v298 = vld [vmem:[%s3 + $0x4d0] sm:$0xff]
    %v299 = vld [vmem:[%s3 + $0x4d8] sm:$0xff]
    %v300 = vld [vmem:[%s3 + $0x4e0] sm:$0xff]
    %v301 = vld [vmem:[%s3 + $0x4e8] sm:$0xff]
    %v302 = vld [vmem:[%s3 + $0x4f0] sm:$0xff]
    %v303 = vld [vmem:[%s3 + $0x4f8] sm:$0xff]
    %v304 = vld [vmem:[%s3 + $0x500] sm:$0xff]
    %v305 = vld [vmem:[%s3 + $0x508] sm:$0xff]
    %v306 = vld [vmem:[%s3 + $0x510] sm:$0xff]
    %v307 = vld [vmem:[%s3 + $0x518] sm:$0xff]
    %v308 = vld [vmem:[%s3 + $0x520] sm:$0xff]
    %v309 = vld [vmem:[%s3 + $0x528] sm:$0xff]
    %v310 = vld [vmem:[%s3 + $0x530] sm:$0xff]
    %v311 = vld [vmem:[%s3 + $0x538] sm:$0xff]
    %v312 = vld [vmem:[%s3 + $0x540] sm:$0xff]
    %v313 = vld [vmem:[%s3 + $0x548] sm:$0xff]
    %v314 = vld [vmem:[%s3 + $0x550] sm:$0xff]
    %v315 = vld [vmem:[%s5] sm:$0x7]
    %v317 = vlaneseq
    %v318 = vshrl.u32 %v317, 7
    %v319 = vsub.s32 0, %v318
    %v320 = vrot.slane %v315, %v319
    %v321 = vlaneseq
    %v322 = vshrl.u32 %v321, 7
    %v323 = vsub.s32 1, %v322
    %v324 = vrot.slane %v315, %v323
    %v325 = vlaneseq
    %v326 = vshrl.u32 %v325, 7
    %v327 = vsub.s32 2, %v326
    %v328 = vrot.slane %v315, %v327
    %v333 = vcombine.high %v143, %v143
    %v335 = vunpack.c.l.s4 1983009808
    %v336 = vunpack.c.0.s8 %v335
    %v337 = vlaneseq
    %v338 = vshrl.u32 %v337, 7
    %v339 = vsub.s32 %v336, %v338
    %v340 = vrot.slane %v143, %v339
    %v342 = vunpack.c.l.s4 1983009808
    %v343 = vunpack.c.0.s8 %v342
    %v344 = vlaneseq
    %v345 = vshrl.u32 %v344, 7
    %v346 = vsub.s32 %v343, %v345
    %v347 = vrot.slane %v333, %v346
    %v348 = vcombine.high %v340, %v340
    %v349 = vcombine.high %v347, %v347
    %vm353 = vcmask 588800
    %v354 = vsel %vm353, %v349, 0
    %356 = vmatprep.subr.mxu0 %v145
    %357 = vmatpush1.msra.mxu0 %v144
    %358 = vmatprep.subr.mxu0 %v148
    %359 = vmatpush1.msra.mxu0 %v147
    %360 = vmatprep.subr.mxu0 %v151
    %361 = vmatpush1.msra.mxu0 %v150
    %362 = vmatprep.subr.mxu0 %v154
    %363 = vmatpush1.msra.mxu0 %v153
    %364 = vmatprep.subr.mxu0 %v157
    %365 = vmatpush1.msra.mxu0 %v156
    %366 = vmatprep.subr.mxu0 %v160
    %367 = vmatpush1.msra.mxu0 %v159
    %368 = vmatprep.subr.mxu0 %v163
    %369 = vmatpush1.msra.mxu0 %v162
    %370 = vmatprep.subr.mxu0 %v166
    %371 = vmatpush1.msra.mxu0 %v165
    %372 = vmatprep.subr.mxu0 %v169
    %373 = vmatpush1.msra.mxu0 %v168
    %374 = vmatprep.subr.mxu0 %v172
    %375 = vmatpush1.msra.mxu0 %v171
    %376 = vmatprep.subr.mxu0 %v175
    %377 = vmatpush1.msra.mxu0 %v174
    %378 = vmatprep.subr.mxu0 %v178
    %379 = vmatpush1.msra.mxu0 %v177
    %380 = vmatprep.subr.mxu0 %v181
    %381 = vmatpush1.msra.mxu0 %v180
    %382 = vmatprep.subr.mxu0 %v184
    %383 = vmatpush1.msra.mxu0 %v183
    %384 = vmatprep.subr.mxu0 %v187
    %385 = vmatpush1.msra.mxu0 %v186
    %386 = vmatprep.subr.mxu0 %v190
    %387 = vmatpush1.msra.mxu0 %v189
    %388 = vmatprep.subr.mxu0 %v193
    %389 = vmatpush1.msra.mxu0 %v192
    %390 = vmatprep.subr.mxu0 %v196
    %391 = vmatpush1.msra.mxu0 %v195
    %392 = vmatprep.subr.mxu0 %v199
    %393 = vmatpush1.msra.mxu0 %v198
    %394 = vmatprep.subr.mxu0 %v202
    %395 = vmatpush1.msra.mxu0 %v201
    %396 = vmatprep.subr.mxu0 %v205
    %397 = vmatpush1.msra.mxu0 %v204
    %398 = vmatprep.subr.mxu0 %v208
    %399 = vmatpush1.msra.mxu0 %v207
    %400 = vmatprep.subr.mxu0 %v211
    %401 = vmatpush1.msra.mxu0 %v210
    %402 = vmatprep.subr.mxu0 %v214
    %403 = vmatpush1.msra.mxu0 %v213
    %404 = vmatprep.subr.mxu0 %v217
    %405 = vmatpush1.msra.mxu0 %v216
    %406 = vmatprep.subr.mxu0 %v220
    %407 = vmatpush1.msra.mxu0 %v219
    %408 = vmatprep.subr.mxu0 %v223
    %409 = vmatpush1.msra.mxu0 %v222
    %410 = vmatprep.subr.mxu0 %v226
    %411 = vmatpush1.msra.mxu0 %v225
    %412 = vmatprep.subr.mxu0 %v229
    %413 = vmatpush1.msra.mxu0 %v228
    %414 = vmatprep.subr.mxu0 %v232
    %415 = vmatpush1.msra.mxu0 %v231
    %416 = vmatprep.subr.mxu0 %v235
    %417 = vmatpush1.msra.mxu0 %v234
    %418 = vmatprep.subr.mxu0 %v238
    %419 = vmatpush1.msra.mxu0 %v237
    %420 = vmatprep.mubr.f32.mxu0 %v348
    %421 = vmatmul.mubr.f32.gmra.mrb[0].mxu0 %v340
    %v422 = vpop.f32.mrb[0].mxu0
    %v423 = vadd.f32 %v320, %v422
    %v424 = vpop.f32.mrb[0].mxu0
    %v425 = vadd.f32 %v324, %v424
    %426 = vdwg.mxu0
    %427 = vmatprep.subr.mxu0 %v241
    %428 = vmatpush1.msra.mxu0 %v240
    %429 = vmatprep.subr.mxu0 %v244
    %430 = vmatpush1.msra.mxu0 %v243
    %431 = vmatprep.subr.mxu0 %v247
    %432 = vmatpush1.msra.mxu0 %v246
    %433 = vmatprep.subr.mxu0 %v250
    %434 = vmatpush1.msra.mxu0 %v249
    %435 = vmatprep.subr.mxu0 %v253
    %436 = vmatpush1.msra.mxu0 %v252
    %437 = vmatprep.subr.mxu0 %v256
    %438 = vmatpush1.msra.mxu0 %v255
    %439 = vmatprep.subr.mxu0 %v259
    %440 = vmatpush1.msra.mxu0 %v258
    %441 = vmatprep.subr.mxu0 %v262
    %442 = vmatpush1.msra.mxu0 %v261
    %443 = vmatprep.subr.mxu0 %v265
    %444 = vmatpush1.msra.mxu0 %v264
    %445 = vmatprep.subr.mxu0 %v268
    %446 = vmatpush1.msra.mxu0 %v267
    %447 = vmatprep.subr.mxu0 %v271
    %448 = vmatpush1.msra.mxu0 %v270
    %449 = vmatprep.subr.mxu0 %v274
    %450 = vmatpush1.msra.mxu0 %v273
    %451 = vmatprep.subr.mxu0 %v277
    %452 = vmatpush1.msra.mxu0 %v276
    %453 = vmatprep.subr.mxu0 %v280
    %454 = vmatpush1.msra.mxu0 %v279
    %455 = vmatprep.subr.mxu0 %v283
    %456 = vmatpush1.msra.mxu0 %v282
    %457 = vmatprep.subr.mxu0 %v286
    %458 = vmatpush1.msra.mxu0 %v285
    %459 = vmatprep.subr.mxu0 %v289
    %460 = vmatpush1.msra.mxu0 %v288
    %461 = vmatprep.subr.mxu0 %v292
    %462 = vmatpush1.msra.mxu0 %v291
    %463 = vmatprep.subr.mxu0 %v295
    %464 = vmatpush1.msra.mxu0 %v294
    %465 = vmatprep.subr.mxu0 %v298
    %466 = vmatpush1.msra.mxu0 %v297
    %467 = vmatprep.subr.mxu0 %v301
    %468 = vmatpush1.msra.mxu0 %v300
    %469 = vmatprep.subr.mxu0 %v304
    %470 = vmatpush1.msra.mxu0 %v303
    %471 = vmatprep.subr.mxu0 %v307
    %472 = vmatpush1.msra.mxu0 %v306
    %473 = vmatprep.subr.mxu0 %v310
    %474 = vmatpush1.msra.mxu0 %v309
    %475 = vmatprep.subr.mxu0 %v313
    %476 = vmatpush1.msra.mxu0 %v312
    %477 = vmatprep.subr.mxu0 0.0
    %478 = vmatpush1.msra.mxu0 0.0
    %479 = vmatprep.subr.mxu0 0.0
    %480 = vmatpush1.msra.mxu0 0.0
    %481 = vmatprep.subr.mxu0 0.0
    %482 = vmatpush1.msra.mxu0 0.0
    %483 = vmatprep.subr.mxu0 0.0
    %484 = vmatpush1.msra.mxu0 0.0
    %485 = vmatprep.subr.mxu0 0.0
    %486 = vmatpush1.msra.mxu0 0.0
    %487 = vmatprep.subr.mxu0 0.0
    %488 = vmatpush1.msra.mxu0 0.0
    %489 = vmatprep.subr.mxu0 0.0
    %490 = vmatpush1.msra.mxu0 0.0
    %491 = vmatprep.mubr.f32.mxu0 %v354
    %492 = vmatmul.mubr.f32.gmra.mrb[0].mxu0 %v347
    %v493 = vpop.f32.mrb[0].mxu0
    %v494 = vadd.f32 %v423, %v493
    %v495 = vpop.f32.mrb[0].mxu0
    %v496 = vadd.f32 %v425, %v495
    %497 = vdwg.mxu0
    %498 = vmatprep.subr.mxu0 0.0
    %499 = vmatpush1.msra.mxu0 %v146
    %500 = vmatprep.subr.mxu0 0.0
    %501 = vmatpush1.msra.mxu0 %v149
    %502 = vmatprep.subr.mxu0 0.0
    %503 = vmatpush1.msra.mxu0 %v152
    %504 = vmatprep.subr.mxu0 0.0
    %505 = vmatpush1.msra.mxu0 %v155
    %506 = vmatprep.subr.mxu0 0.0
    %507 = vmatpush1.msra.mxu0 %v158
    %508 = vmatprep.subr.mxu0 0.0
    %509 = vmatpush1.msra.mxu0 %v161
    %510 = vmatprep.subr.mxu0 0.0
    %511 = vmatpush1.msra.mxu0 %v164
    %512 = vmatprep.subr.mxu0 0.0
    %513 = vmatpush1.msra.mxu0 %v167
    %514 = vmatprep.subr.mxu0 0.0
    %515 = vmatpush1.msra.mxu0 %v170
    %516 = vmatprep.subr.mxu0 0.0
    %517 = vmatpush1.msra.mxu0 %v173
    %518 = vmatprep.subr.mxu0 0.0
    %519 = vmatpush1.msra.mxu0 %v176
    %520 = vmatprep.subr.mxu0 0.0
    %521 = vmatpush1.msra.mxu0 %v179
    %522 = vmatprep.subr.mxu0 0.0
    %523 = vmatpush1.msra.mxu0 %v182
    %524 = vmatprep.subr.mxu0 0.0
    %525 = vmatpush1.msra.mxu0 %v185
    %526 = vmatprep.subr.mxu0 0.0
    %527 = vmatpush1.msra.mxu0 %v188
    %528 = vmatprep.subr.mxu0 0.0
    %529 = vmatpush1.msra.mxu0 %v191
    %530 = vmatprep.subr.mxu0 0.0
    %531 = vmatpush1.msra.mxu0 %v194
    %532 = vmatprep.subr.mxu0 0.0
    %533 = vmatpush1.msra.mxu0 %v197
    %534 = vmatprep.subr.mxu0 0.0
    %535 = vmatpush1.msra.mxu0 %v200
    %536 = vmatprep.subr.mxu0 0.0
    %537 = vmatpush1.msra.mxu0 %v203
    %538 = vmatprep.subr.mxu0 0.0
    %539 = vmatpush1.msra.mxu0 %v206
    %540 = vmatprep.subr.mxu0 0.0
    %541 = vmatpush1.msra.mxu0 %v209
    %542 = vmatprep.subr.mxu0 0.0
    %543 = vmatpush1.msra.mxu0 %v212
    %544 = vmatprep.subr.mxu0 0.0
    %545 = vmatpush1.msra.mxu0 %v215
    %546 = vmatprep.subr.mxu0 0.0
    %547 = vmatpush1.msra.mxu0 %v218
    %548 = vmatprep.subr.mxu0 0.0
    %549 = vmatpush1.msra.mxu0 %v221
    %550 = vmatprep.subr.mxu0 0.0
    %551 = vmatpush1.msra.mxu0 %v224
    %552 = vmatprep.subr.mxu0 0.0
    %553 = vmatpush1.msra.mxu0 %v227
    %554 = vmatprep.subr.mxu0 0.0
    %555 = vmatpush1.msra.mxu0 %v230
    %556 = vmatprep.subr.mxu0 0.0
    %557 = vmatpush1.msra.mxu0 %v233
    %558 = vmatprep.subr.mxu0 0.0
    %559 = vmatpush1.msra.mxu0 %v236
    %560 = vmatprep.subr.mxu0 0.0
    %561 = vmatpush1.msra.mxu0 %v239
    %562 = vmatprep.mubr.f32.mxu0 %v348
    %563 = vmatmul.mubr.f32.gmra.mrb[0].mxu0 %v340
    %v564 = vpop.f32.mrb[0].mxu0
    %v565 = vadd.f32 %v328, %v564
    %v566 = vpop.f32.mrb[0].mxu0
    %567 = vdwg.mxu0
    %568 = vmatprep.subr.mxu0 0.0
    %569 = vmatpush1.msra.mxu0 %v242
    %570 = vmatprep.subr.mxu0 0.0
    %571 = vmatpush1.msra.mxu0 %v245
    %572 = vmatprep.subr.mxu0 0.0
    %573 = vmatpush1.msra.mxu0 %v248
    %574 = vmatprep.subr.mxu0 0.0
    %575 = vmatpush1.msra.mxu0 %v251
    %576 = vmatprep.subr.mxu0 0.0
    %577 = vmatpush1.msra.mxu0 %v254
    %578 = vmatprep.subr.mxu0 0.0
    %579 = vmatpush1.msra.mxu0 %v257
    %580 = vmatprep.subr.mxu0 0.0
    %581 = vmatpush1.msra.mxu0 %v260
    %582 = vmatprep.subr.mxu0 0.0
    %583 = vmatpush1.msra.mxu0 %v263
    %584 = vmatprep.subr.mxu0 0.0
    %585 = vmatpush1.msra.mxu0 %v266
    %586 = vmatprep.subr.mxu0 0.0
    %587 = vmatpush1.msra.mxu0 %v269
    %588 = vmatprep.subr.mxu0 0.0
    %589 = vmatpush1.msra.mxu0 %v272
    %590 = vmatprep.subr.mxu0 0.0
    %591 = vmatpush1.msra.mxu0 %v275
    %592 = vmatprep.subr.mxu0 0.0
    %593 = vmatpush1.msra.mxu0 %v278
    %594 = vmatprep.subr.mxu0 0.0
    %595 = vmatpush1.msra.mxu0 %v281
    %596 = vmatprep.subr.mxu0 0.0
    %597 = vmatpush1.msra.mxu0 %v284
    %598 = vmatprep.subr.mxu0 0.0
    %599 = vmatpush1.msra.mxu0 %v287
    %600 = vmatprep.subr.mxu0 0.0
    %601 = vmatpush1.msra.mxu0 %v290
    %602 = vmatprep.subr.mxu0 0.0
    %603 = vmatpush1.msra.mxu0 %v293
    %604 = vmatprep.subr.mxu0 0.0
    %605 = vmatpush1.msra.mxu0 %v296
    %606 = vmatprep.subr.mxu0 0.0
    %607 = vmatpush1.msra.mxu0 %v299
    %608 = vmatprep.subr.mxu0 0.0
    %609 = vmatpush1.msra.mxu0 %v302
    %610 = vmatprep.subr.mxu0 0.0
    %611 = vmatpush1.msra.mxu0 %v305
    %612 = vmatprep.subr.mxu0 0.0
    %613 = vmatpush1.msra.mxu0 %v308
    %614 = vmatprep.subr.mxu0 0.0
    %615 = vmatpush1.msra.mxu0 %v311
    %616 = vmatprep.subr.mxu0 0.0
    %617 = vmatpush1.msra.mxu0 %v314
    %618 = vmatprep.subr.mxu0 0.0
    %619 = vmatpush1.msra.mxu0 0.0
    %620 = vmatprep.subr.mxu0 0.0
    %621 = vmatpush1.msra.mxu0 0.0
    %622 = vmatprep.subr.mxu0 0.0
    %623 = vmatpush1.msra.mxu0 0.0
    %624 = vmatprep.subr.mxu0 0.0
    %625 = vmatpush1.msra.mxu0 0.0
    %626 = vmatprep.subr.mxu0 0.0
    %627 = vmatpush1.msra.mxu0 0.0
    %628 = vmatprep.subr.mxu0 0.0
    %629 = vmatpush1.msra.mxu0 0.0
    %630 = vmatprep.subr.mxu0 0.0
    %631 = vmatpush1.msra.mxu0 0.0
    %632 = vmatprep.mubr.f32.mxu0 %v354
    %633 = vmatmul.mubr.f32.gmra.mrb[0].mxu0 %v347
    %v634 = vpop.f32.mrb[0].mxu0
    %v635 = vadd.f32 %v565, %v634
    %v636 = vpop.f32.mrb[0].mxu0
    %637 = vdwg.mxu0
    %vm638 = vcmp.gt.f32.partialorder %v494, 0.0
    %vm639 = vcmp.gt.f32.partialorder %v496, 0.0
    %vm640 = vcmp.gt.f32.partialorder %v635, 0.0
    %v641 = vmin.f32 %v494, 0.0
    %v642 = vmin.f32 %v496, 0.0
    %v643 = vmin.f32 %v635, 0.0
    %v644 = vmul.f32 %v641, 1.442695
    %v645 = vpow.pop %v644
    %v646 = vmul.f32 %v642, 1.442695
    %v647 = vpow.pop %v646
    %v648 = vmul.f32 %v643, 1.442695
    %v649 = vpow.pop %v648
    %v650 = vsub.f32 %v645, 1.0
    %v651 = vsub.f32 %v647, 1.0
    %v652 = vsub.f32 %v649, 1.0
    %v653 = vsel %vm638, %v494, %v650
    %v654 = vsel %vm639, %v496, %v651
    %v655 = vsel %vm640, %v635, %v652
    %v656 = vld [vmem:[%s7] sm:$0xff]
    %v657 = vld [vmem:[%s7 + $0x8] sm:$0xff]
    %v658 = vld [vmem:[%s7 + $0x10] sm:$0xff]
    %v659 = vld [vmem:[%s7 + $0x18] sm:$0xff]
    %v660 = vld [vmem:[%s7 + $0x20] sm:$0xff]
    %v661 = vld [vmem:[%s7 + $0x28] sm:$0xff]
    %v662 = vld [vmem:[%s7 + $0x30] sm:$0xff]
    %v663 = vld [vmem:[%s7 + $0x38] sm:$0xff]
    %v664 = vld [vmem:[%s7 + $0x40] sm:$0xff]
    %v665 = vld [vmem:[%s7 + $0x48] sm:$0xff]
    %v666 = vld [vmem:[%s7 + $0x50] sm:$0xff]
    %v667 = vld [vmem:[%s7 + $0x58] sm:$0xff]
    %v668 = vld [vmem:[%s7 + $0x60] sm:$0xff]
    %v669 = vld [vmem:[%s7 + $0x68] sm:$0xff]
    %v670 = vld [vmem:[%s7 + $0x70] sm:$0xff]
    %v671 = vld [vmem:[%s7 + $0x78] sm:$0xff]
    %v672 = vld [vmem:[%s7 + $0x80] sm:$0xff]
    %v673 = vld [vmem:[%s7 + $0x88] sm:$0xff]
    %v674 = vld [vmem:[%s7 + $0x90] sm:$0xff]
    %v675 = vld [vmem:[%s7 + $0x98] sm:$0xff]
    %v676 = vld [vmem:[%s7 + $0xa0] sm:$0xff]
    %v677 = vld [vmem:[%s7 + $0xa8] sm:$0xff]
    %v678 = vld [vmem:[%s7 + $0xb0] sm:$0xff]
    %v679 = vld [vmem:[%s7 + $0xb8] sm:$0xff]
    %v680 = vld [vmem:[%s7 + $0xc0] sm:$0xff]
    %v681 = vld [vmem:[%s7 + $0xc8] sm:$0xff]
    %v682 = vld [vmem:[%s7 + $0xd0] sm:$0xff]
    %v683 = vld [vmem:[%s7 + $0xd8] sm:$0xff]
    %v684 = vld [vmem:[%s7 + $0xe0] sm:$0xff]
    %v685 = vld [vmem:[%s7 + $0xe8] sm:$0xff]
    %v686 = vld [vmem:[%s7 + $0xf0] sm:$0xff]
    %v687 = vld [vmem:[%s7 + $0xf8] sm:$0xff]
    %v688 = vld [vmem:[%s7 + $0x100] sm:$0xff]
    %v689 = vld [vmem:[%s7 + $0x108] sm:$0xff]
    %v690 = vld [vmem:[%s7 + $0x110] sm:$0xff]
    %v691 = vld [vmem:[%s7 + $0x118] sm:$0xff]
    %v692 = vld [vmem:[%s7 + $0x120] sm:$0xff]
    %v693 = vld [vmem:[%s7 + $0x128] sm:$0xff]
    %v694 = vld [vmem:[%s7 + $0x130] sm:$0xff]
    %v695 = vld [vmem:[%s7 + $0x138] sm:$0xff]
    %v696 = vld [vmem:[%s7 + $0x140] sm:$0xff]
    %v697 = vld [vmem:[%s7 + $0x148] sm:$0xff]
    %v698 = vld [vmem:[%s7 + $0x150] sm:$0xff]
    %v699 = vld [vmem:[%s7 + $0x158] sm:$0xff]
    %v700 = vld [vmem:[%s7 + $0x160] sm:$0xff]
    %v701 = vld [vmem:[%s9] sm:$0x1]
    %v703 = vlaneseq
    %v704 = vshrl.u32 %v703, 7
    %v705 = vsub.s32 0, %v704
    %v706 = vrot.slane %v701, %v705
    %vm708 = vcmask 850944
    %v710 = vsel %vm708, %v655, 0
    %712 = vmatprep.subr.mxu0 0.0
    %713 = vmatpush1.msra.mxu0 %v656
    %714 = vmatprep.subr.mxu0 0.0
    %715 = vmatpush1.msra.mxu0 %v657
    %716 = vmatprep.subr.mxu0 0.0
    %717 = vmatpush1.msra.mxu0 %v658
    %718 = vmatprep.subr.mxu0 0.0
    %719 = vmatpush1.msra.mxu0 %v659
    %720 = vmatprep.subr.mxu0 0.0
    %721 = vmatpush1.msra.mxu0 %v660
    %722 = vmatprep.subr.mxu0 0.0
    %723 = vmatpush1.msra.mxu0 %v661
    %724 = vmatprep.subr.mxu0 0.0
    %725 = vmatpush1.msra.mxu0 %v662
    %726 = vmatprep.subr.mxu0 0.0
    %727 = vmatpush1.msra.mxu0 %v663
    %728 = vmatprep.subr.mxu0 0.0
    %729 = vmatpush1.msra.mxu0 %v664
    %730 = vmatprep.subr.mxu0 0.0
    %731 = vmatpush1.msra.mxu0 %v665
    %732 = vmatprep.subr.mxu0 0.0
    %733 = vmatpush1.msra.mxu0 %v666
    %734 = vmatprep.subr.mxu0 0.0
    %735 = vmatpush1.msra.mxu0 %v667
    %736 = vmatprep.subr.mxu0 0.0
    %737 = vmatpush1.msra.mxu0 %v668
    %738 = vmatprep.subr.mxu0 0.0
    %739 = vmatpush1.msra.mxu0 %v669
    %740 = vmatprep.subr.mxu0 0.0
    %741 = vmatpush1.msra.mxu0 %v670
    %742 = vmatprep.subr.mxu0 0.0
    %743 = vmatpush1.msra.mxu0 %v671
    %744 = vmatprep.subr.mxu0 0.0
    %745 = vmatpush1.msra.mxu0 %v672
    %746 = vmatprep.subr.mxu0 0.0
    %747 = vmatpush1.msra.mxu0 %v673
    %748 = vmatprep.subr.mxu0 0.0
    %749 = vmatpush1.msra.mxu0 %v674
    %750 = vmatprep.subr.mxu0 0.0
    %751 = vmatpush1.msra.mxu0 %v675
    %752 = vmatprep.subr.mxu0 0.0
    %753 = vmatpush1.msra.mxu0 %v676
    %754 = vmatprep.subr.mxu0 0.0
    %755 = vmatpush1.msra.mxu0 %v677
    %756 = vmatprep.subr.mxu0 0.0
    %757 = vmatpush1.msra.mxu0 %v678
    %758 = vmatprep.subr.mxu0 0.0
    %759 = vmatpush1.msra.mxu0 %v679
    %760 = vmatprep.subr.mxu0 0.0
    %761 = vmatpush1.msra.mxu0 %v680
    %762 = vmatprep.subr.mxu0 0.0
    %763 = vmatpush1.msra.mxu0 %v681
    %764 = vmatprep.subr.mxu0 0.0
    %765 = vmatpush1.msra.mxu0 %v682
    %766 = vmatprep.subr.mxu0 0.0
    %767 = vmatpush1.msra.mxu0 %v683
    %768 = vmatprep.subr.mxu0 0.0
    %769 = vmatpush1.msra.mxu0 %v684
    %770 = vmatprep.subr.mxu0 0.0
    %771 = vmatpush1.msra.mxu0 %v685
    %772 = vmatprep.subr.mxu0 0.0
    %773 = vmatpush1.msra.mxu0 %v686
    %774 = vmatprep.subr.mxu0 0.0
    %775 = vmatpush1.msra.mxu0 %v687
    %776 = vmatprep.mubr.f32.mxu0 %v654
    %777 = vmatmul.mubr.f32.gmra.mrb[0].mxu0 %v653
    %v778 = vpop.f32.mrb[0].mxu0
    %v779 = vadd.f32 %v706, %v778
    %v780 = vpop.f32.mrb[0].mxu0
    %781 = vdwg.mxu0
    %782 = vmatprep.subr.mxu0 0.0
    %783 = vmatpush1.msra.mxu0 %v688
    %784 = vmatprep.subr.mxu0 0.0
    %785 = vmatpush1.msra.mxu0 %v689
    %786 = vmatprep.subr.mxu0 0.0
    %787 = vmatpush1.msra.mxu0 %v690
    %788 = vmatprep.subr.mxu0 0.0
    %789 = vmatpush1.msra.mxu0 %v691
    %790 = vmatprep.subr.mxu0 0.0
    %791 = vmatpush1.msra.mxu0 %v692
    %792 = vmatprep.subr.mxu0 0.0
    %793 = vmatpush1.msra.mxu0 %v693
    %794 = vmatprep.subr.mxu0 0.0
    %795 = vmatpush1.msra.mxu0 %v694
    %796 = vmatprep.subr.mxu0 0.0
    %797 = vmatpush1.msra.mxu0 %v695
    %798 = vmatprep.subr.mxu0 0.0
    %799 = vmatpush1.msra.mxu0 %v696
    %800 = vmatprep.subr.mxu0 0.0
    %801 = vmatpush1.msra.mxu0 %v697
    %802 = vmatprep.subr.mxu0 0.0
    %803 = vmatpush1.msra.mxu0 %v698
    %804 = vmatprep.subr.mxu0 0.0
    %805 = vmatpush1.msra.mxu0 %v699
    %806 = vmatprep.subr.mxu0 0.0
    %807 = vmatpush1.msra.mxu0 %v700
    %808 = vmatprep.subr.mxu0 0.0
    %809 = vmatpush1.msra.mxu0 0.0
    %810 = vmatprep.subr.mxu0 0.0
    %811 = vmatpush1.msra.mxu0 0.0
    %812 = vmatprep.subr.mxu0 0.0
    %813 = vmatpush1.msra.mxu0 0.0
    %814 = vmatprep.subr.mxu0 0.0
    %815 = vmatpush1.msra.mxu0 0.0
    %816 = vmatprep.subr.mxu0 0.0
    %817 = vmatpush1.msra.mxu0 0.0
    %818 = vmatprep.subr.mxu0 0.0
    %819 = vmatpush1.msra.mxu0 0.0
    %820 = vmatprep.subr.mxu0 0.0
    %821 = vmatpush1.msra.mxu0 0.0
    %822 = vmatprep.subr.mxu0 0.0
    %823 = vmatpush1.msra.mxu0 0.0
    %824 = vmatprep.subr.mxu0 0.0
    %825 = vmatpush1.msra.mxu0 0.0
    %826 = vmatprep.subr.mxu0 0.0
    %827 = vmatpush1.msra.mxu0 0.0
    %828 = vmatprep.subr.mxu0 0.0
    %829 = vmatpush1.msra.mxu0 0.0
    %830 = vmatprep.subr.mxu0 0.0
    %831 = vmatpush1.msra.mxu0 0.0
    %832 = vmatprep.subr.mxu0 0.0
    %833 = vmatpush1.msra.mxu0 0.0
    %834 = vmatprep.subr.mxu0 0.0
    %835 = vmatpush1.msra.mxu0 0.0
    %836 = vmatprep.subr.mxu0 0.0
    %837 = vmatpush1.msra.mxu0 0.0
    %838 = vmatprep.subr.mxu0 0.0
    %839 = vmatpush1.msra.mxu0 0.0
    %840 = vmatprep.subr.mxu0 0.0
    %841 = vmatpush1.msra.mxu0 0.0
    %842 = vmatprep.subr.mxu0 0.0
    %843 = vmatpush1.msra.mxu0 0.0
    %844 = vmatprep.subr.mxu0 0.0
    %845 = vmatpush1.msra.mxu0 0.0
    %846 = vmatprep.mubr.f32.mxu0 0.0
    %847 = vmatmul.mubr.f32.gmra.mrb[0].mxu0 %v710
    %v848 = vpop.f32.mrb[0].mxu0
    %v849 = vadd.f32 %v779, %v848
    %v850 = vpop.f32.mrb[0].mxu0
    %851 = vdwg.mxu0
    %v853 = vrot.slane %v849, 6
    %854 = vrot.lane.b32.xlu0 %v853, 112
    %v855 = vpop.permute.xlu0 %854
    %vm857 = vcmask 1041408
    %v858 = vsel %vm857, %v849, %v855
    %v859 = vld [vmem:[%s11] sm:$0xf]
    %v860 = vld [vmem:[%s13] sm:$0xff]
    %v861 = vld [vmem:[%s13 + $0x8] sm:$0xff]
    %v862 = vld [vmem:[%s15] sm:$0x1]
    %v864 = vlaneseq
    %v865 = vshrl.u32 %v864, 7
    %v866 = vsub.s32 0, %v865
    %v867 = vrot.slane %v862, %v866
    %vm869 = vcmask 130048
    %v871 = vsel %vm869, %v858, 0
    %873 = vmatprep.subr.mxu0 0.0
    %874 = vmatpush1.msra.mxu0 %v860
    %875 = vmatprep.subr.mxu0 0.0
    %876 = vmatpush1.msra.mxu0 %v861
    %877 = vmatprep.subr.mxu0 0.0
    %878 = vmatpush1.msra.mxu0 0.0
    %879 = vmatprep.subr.mxu0 0.0
    %880 = vmatpush1.msra.mxu0 0.0
    %881 = vmatprep.subr.mxu0 0.0
    %882 = vmatpush1.msra.mxu0 0.0
    %883 = vmatprep.subr.mxu0 0.0
    %884 = vmatpush1.msra.mxu0 0.0
    %885 = vmatprep.subr.mxu0 0.0
    %886 = vmatpush1.msra.mxu0 0.0
    %887 = vmatprep.subr.mxu0 0.0
    %888 = vmatpush1.msra.mxu0 0.0
    %889 = vmatprep.subr.mxu0 0.0
    %890 = vmatpush1.msra.mxu0 0.0
    %891 = vmatprep.subr.mxu0 0.0
    %892 = vmatpush1.msra.mxu0 0.0
    %893 = vmatprep.subr.mxu0 0.0
    %894 = vmatpush1.msra.mxu0 0.0
    %895 = vmatprep.subr.mxu0 0.0
    %896 = vmatpush1.msra.mxu0 0.0
    %897 = vmatprep.subr.mxu0 0.0
    %898 = vmatpush1.msra.mxu0 0.0
    %899 = vmatprep.subr.mxu0 0.0
    %900 = vmatpush1.msra.mxu0 0.0
    %901 = vmatprep.subr.mxu0 0.0
    %902 = vmatpush1.msra.mxu0 0.0
    %903 = vmatprep.subr.mxu0 0.0
    %904 = vmatpush1.msra.mxu0 0.0
    %905 = vmatprep.subr.mxu0 0.0
    %906 = vmatpush1.msra.mxu0 0.0
    %907 = vmatprep.subr.mxu0 0.0
    %908 = vmatpush1.msra.mxu0 0.0
    %909 = vmatprep.subr.mxu0 0.0
    %910 = vmatpush1.msra.mxu0 0.0
    %911 = vmatprep.subr.mxu0 0.0
    %912 = vmatpush1.msra.mxu0 0.0
    %913 = vmatprep.subr.mxu0 0.0
    %914 = vmatpush1.msra.mxu0 0.0
    %915 = vmatprep.subr.mxu0 0.0
    %916 = vmatpush1.msra.mxu0 0.0
    %917 = vmatprep.subr.mxu0 0.0
    %918 = vmatpush1.msra.mxu0 0.0
    %919 = vmatprep.subr.mxu0 0.0
    %920 = vmatpush1.msra.mxu0 0.0
    %921 = vmatprep.subr.mxu0 0.0
    %922 = vmatpush1.msra.mxu0 0.0
    %923 = vmatprep.subr.mxu0 0.0
    %924 = vmatpush1.msra.mxu0 0.0
    %925 = vmatprep.subr.mxu0 0.0
    %926 = vmatpush1.msra.mxu0 0.0
    %927 = vmatprep.subr.mxu0 0.0
    %928 = vmatpush1.msra.mxu0 0.0
    %929 = vmatprep.subr.mxu0 0.0
    %930 = vmatpush1.msra.mxu0 0.0
    %931 = vmatprep.subr.mxu0 0.0
    %932 = vmatpush1.msra.mxu0 0.0
    %933 = vmatprep.subr.mxu0 0.0
    %934 = vmatpush1.msra.mxu0 0.0
    %935 = vmatprep.subr.mxu0 0.0
    %936 = vmatpush1.msra.mxu0 0.0
    %937 = vmatprep.mubr.f32.mxu0 0.0
    %938 = vmatmul.mubr.f32.gmra.mrb[0].mxu0 %v871
    %v939 = vpop.f32.mrb[0].mxu0
    %v940 = vadd.f32 %v867, %v939
    %v941 = vpop.f32.mrb[0].mxu0
    %942 = vdwg.mxu0
    %v943 = vld [vmem:[%s17] sm:$0xff]
    %v944 = vld [vmem:[%s17 + $0x8] sm:$0xff]
    %946 = vrot.lane.b32.xlu0 %v940, 112
    %v947 = vpop.permute.xlu0 %946
    %vm948 = vcmask 64512
    %v949 = vsel %vm948, %v940, 0
    %v951 = vsel %vm948, %v947, 0
    %953 = vmatprep.subr.mxu0 0.0
    %954 = vmatpush1.xpose.msra.mxu0 %v951
    %955 = vmatprep.subr.mxu0 0.0
    %956 = vmatpush1.xpose.msra.mxu0 0.0
    %957 = vmatprep.subr.mxu0 0.0
    %958 = vmatpush1.xpose.msra.mxu0 0.0
    %959 = vmatprep.subr.mxu0 0.0
    %960 = vmatpush1.xpose.msra.mxu0 0.0
    %961 = vmatprep.subr.mxu0 0.0
    %962 = vmatpush1.xpose.msra.mxu0 0.0
    %963 = vmatprep.subr.mxu0 0.0
    %964 = vmatpush1.xpose.msra.mxu0 0.0
    %965 = vmatprep.subr.mxu0 0.0
    %966 = vmatpush1.xpose.msra.mxu0 0.0
    %967 = vmatprep.subr.mxu0 0.0
    %968 = vmatpush1.xpose.msra.mxu0 0.0
    %969 = vmatprep.subr.mxu0 0.0
    %970 = vmatpush1.xpose.msra.mxu0 0.0
    %971 = vmatprep.subr.mxu0 0.0
    %972 = vmatpush1.xpose.msra.mxu0 0.0
    %973 = vmatprep.subr.mxu0 0.0
    %974 = vmatpush1.xpose.msra.mxu0 0.0
    %975 = vmatprep.subr.mxu0 0.0
    %976 = vmatpush1.xpose.msra.mxu0 0.0
    %977 = vmatprep.subr.mxu0 0.0
    %978 = vmatpush1.xpose.msra.mxu0 0.0
    %979 = vmatprep.subr.mxu0 0.0
    %980 = vmatpush1.xpose.msra.mxu0 0.0
    %981 = vmatprep.subr.mxu0 0.0
    %982 = vmatpush1.xpose.msra.mxu0 0.0
    %983 = vmatprep.subr.mxu0 0.0
    %984 = vmatpush1.xpose.msra.mxu0 0.0
    %985 = vmatprep.subr.mxu0 0.0
    %986 = vmatpush1.xpose.msra.mxu0 0.0
    %987 = vmatprep.subr.mxu0 0.0
    %988 = vmatpush1.xpose.msra.mxu0 0.0
    %989 = vmatprep.subr.mxu0 0.0
    %990 = vmatpush1.xpose.msra.mxu0 0.0
    %991 = vmatprep.subr.mxu0 0.0
    %992 = vmatpush1.xpose.msra.mxu0 0.0
    %993 = vmatprep.subr.mxu0 0.0
    %994 = vmatpush1.xpose.msra.mxu0 0.0
    %995 = vmatprep.subr.mxu0 0.0
    %996 = vmatpush1.xpose.msra.mxu0 0.0
    %997 = vmatprep.subr.mxu0 0.0
    %998 = vmatpush1.xpose.msra.mxu0 0.0
    %999 = vmatprep.subr.mxu0 0.0
    %1000 = vmatpush1.xpose.msra.mxu0 0.0
    %1001 = vmatprep.subr.mxu0 0.0
    %1002 = vmatpush1.xpose.msra.mxu0 0.0
    %1003 = vmatprep.subr.mxu0 0.0
    %1004 = vmatpush1.xpose.msra.mxu0 0.0
    %1005 = vmatprep.subr.mxu0 0.0
    %1006 = vmatpush1.xpose.msra.mxu0 0.0
    %1007 = vmatprep.subr.mxu0 0.0
    %1008 = vmatpush1.xpose.msra.mxu0 0.0
    %1009 = vmatprep.subr.mxu0 0.0
    %1010 = vmatpush1.xpose.msra.mxu0 0.0
    %1011 = vmatprep.subr.mxu0 0.0
    %1012 = vmatpush1.xpose.msra.mxu0 0.0
    %1013 = vmatprep.subr.mxu0 0.0
    %1014 = vmatpush1.xpose.msra.mxu0 0.0
    %1015 = vmatprep.subr.mxu0 0.0
    %1016 = vmatpush1.xpose.msra.mxu0 0.0
    %1017 = vmatprep.mubr.f32.mxu0 0.0
    %1018 = vmatmul.mubr.f32.gmra.mrb[0].mxu0 %v949
    %v1019 = vpop.f32.mrb[0].mxu0
    %v1020 = vadd.f32 0.0, %v1019
    %v1021 = vpop.f32.mrb[0].mxu0
    %1022 = vdwg.mxu0
    %v1023 = vmul.f32 %v1020, 0.35355338
    %v1024 = vadd.f32 %v1023, %v859
    %vm1025 = vcmask 27648
    %v1026 = vsel %vm1025, %v1024, -inf
    %1027 = vmax.xlane.f32.xlu0 %v1026
    %v1028 = vpop.xlane.xlu0 %1027
    %v1029 = vsub.f32 %v1024, %v1028
    %v1030 = vmul.f32 %v1029, 1.442695
    %v1031 = vpow.pop %v1030
    %v1032 = vsel %vm1025, %v1031, 0.0
    %1033 = vadd.xlane.f32.xlu0 %v1032
    %v1034 = vpop.xlane.xlu0 %1033
    %v1035 = vrcp.pop %v1034
    %v1036 = vmul.f32 %v1031, %v1035
    %1037 = vrot.lane.b32.xlu0 %v940, 96
    %v1038 = vpop.permute.xlu0 %1037
    %vm1039 = vcmask 31744
    %v1041 = vsel %vm1039, %v1036, 0
    %vm1043 = vcmask 1043456
    %v1044 = vsel %vm1043, %v1038, 0
    %1046 = vmatprep.subr.mxu0 0.0
    %1047 = vmatpush1.msra.mxu0 %v1044
    %1048 = vmatprep.subr.mxu0 0.0
    %1049 = vmatpush1.msra.mxu0 0.0
    %1050 = vmatprep.subr.mxu0 0.0
    %1051 = vmatpush1.msra.mxu0 0.0
    %1052 = vmatprep.subr.mxu0 0.0
    %1053 = vmatpush1.msra.mxu0 0.0
    %1054 = vmatprep.subr.mxu0 0.0
    %1055 = vmatpush1.msra.mxu0 0.0
    %1056 = vmatprep.subr.mxu0 0.0
    %1057 = vmatpush1.msra.mxu0 0.0
    %1058 = vmatprep.subr.mxu0 0.0
    %1059 = vmatpush1.msra.mxu0 0.0
    %1060 = vmatprep.subr.mxu0 0.0
    %1061 = vmatpush1.msra.mxu0 0.0
    %1062 = vmatprep.subr.mxu0 0.0
    %1063 = vmatpush1.msra.mxu0 0.0
    %1064 = vmatprep.subr.mxu0 0.0
    %1065 = vmatpush1.msra.mxu0 0.0
    %1066 = vmatprep.subr.mxu0 0.0
    %1067 = vmatpush1.msra.mxu0 0.0
    %1068 = vmatprep.subr.mxu0 0.0
    %1069 = vmatpush1.msra.mxu0 0.0
    %1070 = vmatprep.subr.mxu0 0.0
    %1071 = vmatpush1.msra.mxu0 0.0
    %1072 = vmatprep.subr.mxu0 0.0
    %1073 = vmatpush1.msra.mxu0 0.0
    %1074 = vmatprep.subr.mxu0 0.0
    %1075 = vmatpush1.msra.mxu0 0.0
    %1076 = vmatprep.subr.mxu0 0.0
    %1077 = vmatpush1.msra.mxu0 0.0
    %1078 = vmatprep.subr.mxu0 0.0
    %1079 = vmatpush1.msra.mxu0 0.0
    %1080 = vmatprep.subr.mxu0 0.0
    %1081 = vmatpush1.msra.mxu0 0.0
    %1082 = vmatprep.subr.mxu0 0.0
    %1083 = vmatpush1.msra.mxu0 0.0
    %1084 = vmatprep.subr.mxu0 0.0
    %1085 = vmatpush1.msra.mxu0 0.0
    %1086 = vmatprep.subr.mxu0 0.0
    %1087 = vmatpush1.msra.mxu0 0.0
    %1088 = vmatprep.subr.mxu0 0.0
    %1089 = vmatpush1.msra.mxu0 0.0
    %1090 = vmatprep.subr.mxu0 0.0
    %1091 = vmatpush1.msra.mxu0 0.0
    %1092 = vmatprep.subr.mxu0 0.0
    %1093 = vmatpush1.msra.mxu0 0.0
    %1094 = vmatprep.subr.mxu0 0.0
    %1095 = vmatpush1.msra.mxu0 0.0
    %1096 = vmatprep.subr.mxu0 0.0
    %1097 = vmatpush1.msra.mxu0 0.0
    %1098 = vmatprep.subr.mxu0 0.0
    %1099 = vmatpush1.msra.mxu0 0.0
    %1100 = vmatprep.subr.mxu0 0.0
    %1101 = vmatpush1.msra.mxu0 0.0
    %1102 = vmatprep.subr.mxu0 0.0
    %1103 = vmatpush1.msra.mxu0 0.0
    %1104 = vmatprep.subr.mxu0 0.0
    %1105 = vmatpush1.msra.mxu0 0.0
    %1106 = vmatprep.subr.mxu0 0.0
    %1107 = vmatpush1.msra.mxu0 0.0
    %1108 = vmatprep.subr.mxu0 0.0
    %1109 = vmatpush1.msra.mxu0 0.0
    %1110 = vmatprep.mubr.f32.mxu0 0.0
    %1111 = vmatmul.mubr.f32.gmra.mrb[0].mxu0 %v1041
    %v1112 = vpop.f32.mrb[0].mxu0
    %v1113 = vadd.f32 0.0, %v1112
    %v1114 = vpop.f32.mrb[0].mxu0
    %1115 = vdwg.mxu0
    %1116 = vrot.lane.b32.xlu0 %v940, 120
    %v1117 = vpop.permute.xlu0 %1116
    %1118 = vrot.lane.b32.xlu0 %v940, 104
    %v1119 = vpop.permute.xlu0 %1118
    %v1120 = vsel %vm948, %v1117, 0
    %v1122 = vsel %vm948, %v1119, 0
    %1124 = vmatprep.subr.mxu0 0.0
    %1125 = vmatpush1.xpose.msra.mxu0 %v1122
    %1126 = vmatprep.subr.mxu0 0.0
    %1127 = vmatpush1.xpose.msra.mxu0 0.0
    %1128 = vmatprep.subr.mxu0 0.0
    %1129 = vmatpush1.xpose.msra.mxu0 0.0
    %1130 = vmatprep.subr.mxu0 0.0
    %1131 = vmatpush1.xpose.msra.mxu0 0.0
    %1132 = vmatprep.subr.mxu0 0.0
    %1133 = vmatpush1.xpose.msra.mxu0 0.0
    %1134 = vmatprep.subr.mxu0 0.0
    %1135 = vmatpush1.xpose.msra.mxu0 0.0
    %1136 = vmatprep.subr.mxu0 0.0
    %1137 = vmatpush1.xpose.msra.mxu0 0.0
    %1138 = vmatprep.subr.mxu0 0.0
    %1139 = vmatpush1.xpose.msra.mxu0 0.0
    %1140 = vmatprep.subr.mxu0 0.0
    %1141 = vmatpush1.xpose.msra.mxu0 0.0
    %1142 = vmatprep.subr.mxu0 0.0
    %1143 = vmatpush1.xpose.msra.mxu0 0.0
    %1144 = vmatprep.subr.mxu0 0.0
    %1145 = vmatpush1.xpose.msra.mxu0 0.0
    %1146 = vmatprep.subr.mxu0 0.0
    %1147 = vmatpush1.xpose.msra.mxu0 0.0
    %1148 = vmatprep.subr.mxu0 0.0
    %1149 = vmatpush1.xpose.msra.mxu0 0.0
    %1150 = vmatprep.subr.mxu0 0.0
    %1151 = vmatpush1.xpose.msra.mxu0 0.0
    %1152 = vmatprep.subr.mxu0 0.0
    %1153 = vmatpush1.xpose.msra.mxu0 0.0
    %1154 = vmatprep.subr.mxu0 0.0
    %1155 = vmatpush1.xpose.msra.mxu0 0.0
    %1156 = vmatprep.subr.mxu0 0.0
    %1157 = vmatpush1.xpose.msra.mxu0 0.0
    %1158 = vmatprep.subr.mxu0 0.0
    %1159 = vmatpush1.xpose.msra.mxu0 0.0
    %1160 = vmatprep.subr.mxu0 0.0
    %1161 = vmatpush1.xpose.msra.mxu0 0.0
    %1162 = vmatprep.subr.mxu0 0.0
    %1163 = vmatpush1.xpose.msra.mxu0 0.0
    %1164 = vmatprep.subr.mxu0 0.0
    %1165 = vmatpush1.xpose.msra.mxu0 0.0
    %1166 = vmatprep.subr.mxu0 0.0
    %1167 = vmatpush1.xpose.msra.mxu0 0.0
    %1168 = vmatprep.subr.mxu0 0.0
    %1169 = vmatpush1.xpose.msra.mxu0 0.0
    %1170 = vmatprep.subr.mxu0 0.0
    %1171 = vmatpush1.xpose.msra.mxu0 0.0
    %1172 = vmatprep.subr.mxu0 0.0
    %1173 = vmatpush1.xpose.msra.mxu0 0.0
    %1174 = vmatprep.subr.mxu0 0.0
    %1175 = vmatpush1.xpose.msra.mxu0 0.0
    %1176 = vmatprep.subr.mxu0 0.0
    %1177 = vmatpush1.xpose.msra.mxu0 0.0
    %1178 = vmatprep.subr.mxu0 0.0
    %1179 = vmatpush1.xpose.msra.mxu0 0.0
    %1180 = vmatprep.subr.mxu0 0.0
    %1181 = vmatpush1.xpose.msra.mxu0 0.0
    %1182 = vmatprep.subr.mxu0 0.0
    %1183 = vmatpush1.xpose.msra.mxu0 0.0
    %1184 = vmatprep.subr.mxu0 0.0
    %1185 = vmatpush1.xpose.msra.mxu0 0.0
    %1186 = vmatprep.subr.mxu0 0.0
    %1187 = vmatpush1.xpose.msra.mxu0 0.0
    %1188 = vmatprep.mubr.f32.mxu0 0.0
    %1189 = vmatmul.mubr.f32.gmra.mrb[0].mxu0 %v1120
    %v1190 = vpop.f32.mrb[0].mxu0
    %v1191 = vadd.f32 0.0, %v1190
    %v1192 = vpop.f32.mrb[0].mxu0
    %1193 = vdwg.mxu0
    %v1194 = vmul.f32 %v1191, 0.35355338
    %v1195 = vadd.f32 %v1194, %v859
    %v1196 = vsel %vm1025, %v1195, -inf
    %1197 = vmax.xlane.f32.xlu0 %v1196
    %v1198 = vpop.xlane.xlu0 %1197
    %v1199 = vsub.f32 %v1195, %v1198
    %v1200 = vmul.f32 %v1199, 1.442695
    %v1201 = vpow.pop %v1200
    %v1202 = vsel %vm1025, %v1201, 0.0
    %1203 = vadd.xlane.f32.xlu0 %v1202
    %v1204 = vpop.xlane.xlu0 %1203
    %v1205 = vrcp.pop %v1204
    %v1206 = vmul.f32 %v1201, %v1205
    %1207 = vrot.lane.b32.xlu0 %v940, 88
    %v1208 = vpop.permute.xlu0 %1207
    %v1210 = vsel %vm1039, %v1206, 0
    %v1212 = vsel %vm1043, %v1208, 0
    %1214 = vmatprep.subr.mxu0 0.0
    %1215 = vmatpush1.msra.mxu0 %v1212
    %1216 = vmatprep.subr.mxu0 0.0
    %1217 = vmatpush1.msra.mxu0 0.0
    %1218 = vmatprep.subr.mxu0 0.0
    %1219 = vmatpush1.msra.mxu0 0.0
    %1220 = vmatprep.subr.mxu0 0.0
    %1221 = vmatpush1.msra.mxu0 0.0
    %1222 = vmatprep.subr.mxu0 0.0
    %1223 = vmatpush1.msra.mxu0 0.0
    %1224 = vmatprep.subr.mxu0 0.0
    %1225 = vmatpush1.msra.mxu0 0.0
    %1226 = vmatprep.subr.mxu0 0.0
    %1227 = vmatpush1.msra.mxu0 0.0
    %1228 = vmatprep.subr.mxu0 0.0
    %1229 = vmatpush1.msra.mxu0 0.0
    %1230 = vmatprep.subr.mxu0 0.0
    %1231 = vmatpush1.msra.mxu0 0.0
    %1232 = vmatprep.subr.mxu0 0.0
    %1233 = vmatpush1.msra.mxu0 0.0
    %1234 = vmatprep.subr.mxu0 0.0
    %1235 = vmatpush1.msra.mxu0 0.0
    %1236 = vmatprep.subr.mxu0 0.0
    %1237 = vmatpush1.msra.mxu0 0.0
    %1238 = vmatprep.subr.mxu0 0.0
    %1239 = vmatpush1.msra.mxu0 0.0
    %1240 = vmatprep.subr.mxu0 0.0
    %1241 = vmatpush1.msra.mxu0 0.0
    %1242 = vmatprep.subr.mxu0 0.0
    %1243 = vmatpush1.msra.mxu0 0.0
    %1244 = vmatprep.subr.mxu0 0.0
    %1245 = vmatpush1.msra.mxu0 0.0
    %1246 = vmatprep.subr.mxu0 0.0
    %1247 = vmatpush1.msra.mxu0 0.0
    %1248 = vmatprep.subr.mxu0 0.0
    %1249 = vmatpush1.msra.mxu0 0.0
    %1250 = vmatprep.subr.mxu0 0.0
    %1251 = vmatpush1.msra.mxu0 0.0
    %1252 = vmatprep.subr.mxu0 0.0
    %1253 = vmatpush1.msra.mxu0 0.0
    %1254 = vmatprep.subr.mxu0 0.0
    %1255 = vmatpush1.msra.mxu0 0.0
    %1256 = vmatprep.subr.mxu0 0.0
    %1257 = vmatpush1.msra.mxu0 0.0
    %1258 = vmatprep.subr.mxu0 0.0
    %1259 = vmatpush1.msra.mxu0 0.0
    %1260 = vmatprep.subr.mxu0 0.0
    %1261 = vmatpush1.msra.mxu0 0.0
    %1262 = vmatprep.subr.mxu0 0.0
    %1263 = vmatpush1.msra.mxu0 0.0
    %1264 = vmatprep.subr.mxu0 0.0
    %1265 = vmatpush1.msra.mxu0 0.0
    %1266 = vmatprep.subr.mxu0 0.0
    %1267 = vmatpush1.msra.mxu0 0.0
    %1268 = vmatprep.subr.mxu0 0.0
    %1269 = vmatpush1.msra.mxu0 0.0
    %1270 = vmatprep.subr.mxu0 0.0
    %1271 = vmatpush1.msra.mxu0 0.0
    %1272 = vmatprep.subr.mxu0 0.0
    %1273 = vmatpush1.msra.mxu0 0.0
    %1274 = vmatprep.subr.mxu0 0.0
    %1275 = vmatpush1.msra.mxu0 0.0
    %1276 = vmatprep.subr.mxu0 0.0
    %1277 = vmatpush1.msra.mxu0 0.0
    %1278 = vmatprep.mubr.f32.mxu0 0.0
    %1279 = vmatmul.mubr.f32.gmra.mrb[0].mxu0 %v1210
    %v1280 = vpop.f32.mrb[0].mxu0
    %v1281 = vadd.f32 0.0, %v1280
    %v1282 = vpop.f32.mrb[0].mxu0
    %1283 = vdwg.mxu0
    %v1285 = vsel %vm948, %v1281, 0
    %1287 = vmatprep.subr.mxu0 0.0
    %1288 = vmatpush1.msra.mxu0 %v944
    %1289 = vmatprep.subr.mxu0 0.0
    %1290 = vmatpush1.msra.mxu0 0.0
    %1291 = vmatprep.subr.mxu0 0.0
    %1292 = vmatpush1.msra.mxu0 0.0
    %1293 = vmatprep.subr.mxu0 0.0
    %1294 = vmatpush1.msra.mxu0 0.0
    %1295 = vmatprep.subr.mxu0 0.0
    %1296 = vmatpush1.msra.mxu0 0.0
    %1297 = vmatprep.subr.mxu0 0.0
    %1298 = vmatpush1.msra.mxu0 0.0
    %1299 = vmatprep.subr.mxu0 0.0
    %1300 = vmatpush1.msra.mxu0 0.0
    %1301 = vmatprep.subr.mxu0 0.0
    %1302 = vmatpush1.msra.mxu0 0.0
    %1303 = vmatprep.subr.mxu0 0.0
    %1304 = vmatpush1.msra.mxu0 0.0
    %1305 = vmatprep.subr.mxu0 0.0
    %1306 = vmatpush1.msra.mxu0 0.0
    %1307 = vmatprep.subr.mxu0 0.0
    %1308 = vmatpush1.msra.mxu0 0.0
    %1309 = vmatprep.subr.mxu0 0.0
    %1310 = vmatpush1.msra.mxu0 0.0
    %1311 = vmatprep.subr.mxu0 0.0
    %1312 = vmatpush1.msra.mxu0 0.0
    %1313 = vmatprep.subr.mxu0 0.0
    %1314 = vmatpush1.msra.mxu0 0.0
    %1315 = vmatprep.subr.mxu0 0.0
    %1316 = vmatpush1.msra.mxu0 0.0
    %1317 = vmatprep.subr.mxu0 0.0
    %1318 = vmatpush1.msra.mxu0 0.0
    %1319 = vmatprep.subr.mxu0 0.0
    %1320 = vmatpush1.msra.mxu0 0.0
    %1321 = vmatprep.subr.mxu0 0.0
    %1322 = vmatpush1.msra.mxu0 0.0
    %1323 = vmatprep.subr.mxu0 0.0
    %1324 = vmatpush1.msra.mxu0 0.0
    %1325 = vmatprep.subr.mxu0 0.0
    %1326 = vmatpush1.msra.mxu0 0.0
    %1327 = vmatprep.subr.mxu0 0.0
    %1328 = vmatpush1.msra.mxu0 0.0
    %1329 = vmatprep.subr.mxu0 0.0
    %1330 = vmatpush1.msra.mxu0 0.0
    %1331 = vmatprep.subr.mxu0 0.0
    %1332 = vmatpush1.msra.mxu0 0.0
    %1333 = vmatprep.subr.mxu0 0.0
    %1334 = vmatpush1.msra.mxu0 0.0
    %1335 = vmatprep.subr.mxu0 0.0
    %1336 = vmatpush1.msra.mxu0 0.0
    %1337 = vmatprep.subr.mxu0 0.0
    %1338 = vmatpush1.msra.mxu0 0.0
    %1339 = vmatprep.subr.mxu0 0.0
    %1340 = vmatpush1.msra.mxu0 0.0
    %1341 = vmatprep.subr.mxu0 0.0
    %1342 = vmatpush1.msra.mxu0 0.0
    %1343 = vmatprep.subr.mxu0 0.0
    %1344 = vmatpush1.msra.mxu0 0.0
    %1345 = vmatprep.subr.mxu0 0.0
    %1346 = vmatpush1.msra.mxu0 0.0
    %1347 = vmatprep.subr.mxu0 0.0
    %1348 = vmatpush1.msra.mxu0 0.0
    %1349 = vmatprep.subr.mxu0 0.0
    %1350 = vmatpush1.msra.mxu0 0.0
    %1351 = vmatprep.mubr.f32.mxu0 0.0
    %1352 = vmatmul.mubr.f32.gmra.mrb[0].mxu0 %v1285
    %v1353 = vpop.f32.mrb[0].mxu0
    %v1354 = vadd.f32 0.0, %v1353
    %v1355 = vpop.f32.mrb[0].mxu0
    %1356 = vdwg.mxu0
    %v1358 = vsel %vm948, %v1113, 0
    %1360 = vmatprep.subr.mxu0 0.0
    %1361 = vmatpush1.msra.mxu0 %v943
    %1362 = vmatprep.subr.mxu0 0.0
    %1363 = vmatpush1.msra.mxu0 0.0
    %1364 = vmatprep.subr.mxu0 0.0
    %1365 = vmatpush1.msra.mxu0 0.0
    %1366 = vmatprep.subr.mxu0 0.0
    %1367 = vmatpush1.msra.mxu0 0.0
    %1368 = vmatprep.subr.mxu0 0.0
    %1369 = vmatpush1.msra.mxu0 0.0
    %1370 = vmatprep.subr.mxu0 0.0
    %1371 = vmatpush1.msra.mxu0 0.0
    %1372 = vmatprep.subr.mxu0 0.0
    %1373 = vmatpush1.msra.mxu0 0.0
    %1374 = vmatprep.subr.mxu0 0.0
    %1375 = vmatpush1.msra.mxu0 0.0
    %1376 = vmatprep.subr.mxu0 0.0
    %1377 = vmatpush1.msra.mxu0 0.0
    %1378 = vmatprep.subr.mxu0 0.0
    %1379 = vmatpush1.msra.mxu0 0.0
    %1380 = vmatprep.subr.mxu0 0.0
    %1381 = vmatpush1.msra.mxu0 0.0
    %1382 = vmatprep.subr.mxu0 0.0
    %1383 = vmatpush1.msra.mxu0 0.0
    %1384 = vmatprep.subr.mxu0 0.0
    %1385 = vmatpush1.msra.mxu0 0.0
    %1386 = vmatprep.subr.mxu0 0.0
    %1387 = vmatpush1.msra.mxu0 0.0
    %1388 = vmatprep.subr.mxu0 0.0
    %1389 = vmatpush1.msra.mxu0 0.0
    %1390 = vmatprep.subr.mxu0 0.0
    %1391 = vmatpush1.msra.mxu0 0.0
    %1392 = vmatprep.subr.mxu0 0.0
    %1393 = vmatpush1.msra.mxu0 0.0
    %1394 = vmatprep.subr.mxu0 0.0
    %1395 = vmatpush1.msra.mxu0 0.0
    %1396 = vmatprep.subr.mxu0 0.0
    %1397 = vmatpush1.msra.mxu0 0.0
    %1398 = vmatprep.subr.mxu0 0.0
    %1399 = vmatpush1.msra.mxu0 0.0
    %1400 = vmatprep.subr.mxu0 0.0
    %1401 = vmatpush1.msra.mxu0 0.0
    %1402 = vmatprep.subr.mxu0 0.0
    %1403 = vmatpush1.msra.mxu0 0.0
    %1404 = vmatprep.subr.mxu0 0.0
    %1405 = vmatpush1.msra.mxu0 0.0
    %1406 = vmatprep.subr.mxu0 0.0
    %1407 = vmatpush1.msra.mxu0 0.0
    %1408 = vmatprep.subr.mxu0 0.0
    %1409 = vmatpush1.msra.mxu0 0.0
    %1410 = vmatprep.subr.mxu0 0.0
    %1411 = vmatpush1.msra.mxu0 0.0
    %1412 = vmatprep.subr.mxu0 0.0
    %1413 = vmatpush1.msra.mxu0 0.0
    %1414 = vmatprep.subr.mxu0 0.0
    %1415 = vmatpush1.msra.mxu0 0.0
    %1416 = vmatprep.subr.mxu0 0.0
    %1417 = vmatpush1.msra.mxu0 0.0
    %1418 = vmatprep.subr.mxu0 0.0
    %1419 = vmatpush1.msra.mxu0 0.0
    %1420 = vmatprep.subr.mxu0 0.0
    %1421 = vmatpush1.msra.mxu0 0.0
    %1422 = vmatprep.subr.mxu0 0.0
    %1423 = vmatpush1.msra.mxu0 0.0
    %1424 = vmatprep.mubr.f32.mxu0 0.0
    %1425 = vmatmul.mubr.f32.gmra.mrb[0].mxu0 %v1358
    %v1426 = vpop.f32.mrb[0].mxu0
    %v1427 = vadd.f32 %v1354, %v1426
    %v1428 = vpop.f32.mrb[0].mxu0
    %1429 = vdwg.mxu0
    %v1430 = vld [vmem:[%s19] sm:$0x1]
    %v1432 = vlaneseq
    %v1433 = vshrl.u32 %v1432, 7
    %v1434 = vsub.s32 0, %v1433
    %v1435 = vrot.slane %v1430, %v1434
    %v1437 = vadd.f32 %v1427, %v1435
    %v1438 = vadd.f32 %v858, %v1437
    %v1439 = vld [vmem:[%s21] sm:$0x1]
    %v1440 = vld [vmem:[%s23] sm:$0x1]
    %vm1441 = vcmask 125952
    %v1442 = vsel %vm1441, %v1438, 0.0
    %1443 = vadd.xlane.f32.xlu0 %v1442
    %v1444 = vpop.xlane.xlu0 %1443
    %v1445 = vrcp.pop 16.0
    %v1446 = vmul.f32 %v1444, %v1445
    %v1447 = vsub.f32 %v1438, %v1446
    %v1448 = vmul.f32 %v1447, %v1447
    %v1449 = vsel %vm1441, %v1448, 0.0
    %1450 = vadd.xlane.f32.xlu0 %v1449
    %v1451 = vpop.xlane.xlu0 %1450
    %v1452 = vmul.f32 %v1451, %v1445
    %v1453 = vadd.f32 %v1452, 1e-05
    %v1454 = vrsqrt.pop %v1453
    %v1455 = vmul.f32 %v1447, %v1454
    %v1457 = vlaneseq
    %v1458 = vshrl.u32 %v1457, 7
    %v1459 = vsub.s32 0, %v1458
    %v1460 = vrot.slane %v1439, %v1459
    %v1462 = vmul.f32 %v1455, %v1460
    %v1464 = vlaneseq
    %v1465 = vshrl.u32 %v1464, 7
    %v1466 = vsub.s32 0, %v1465
    %v1467 = vrot.slane %v1440, %v1466
    %v1469 = vadd.f32 %v1462, %v1467
    %v1470 = vld [vmem:[%s25] sm:$0xff]
    %v1471 = vld [vmem:[%s25 + $0x8] sm:$0xff]
    %v1472 = vld [vmem:[%s25 + $0x10] sm:$0xff]
    %v1473 = vld [vmem:[%s25 + $0x18] sm:$0xff]
    %v1474 = vld [vmem:[%s25 + $0x20] sm:$0xff]
    %v1475 = vld [vmem:[%s25 + $0x28] sm:$0xff]
    %v1476 = vld [vmem:[%s25 + $0x30] sm:$0xff]
    %v1477 = vld [vmem:[%s25 + $0x38] sm:$0xff]
    %v1478 = vld [vmem:[%s25 + $0x40] sm:$0xff]
    %v1479 = vld [vmem:[%s25 + $0x48] sm:$0xff]
    %v1480 = vld [vmem:[%s25 + $0x50] sm:$0xff]
    %v1481 = vld [vmem:[%s25 + $0x58] sm:$0xff]
    %v1482 = vld [vmem:[%s25 + $0x60] sm:$0xff]
    %v1483 = vld [vmem:[%s25 + $0x68] sm:$0xff]
    %v1484 = vld [vmem:[%s25 + $0x70] sm:$0xff]
    %v1485 = vld [vmem:[%s25 + $0x78] sm:$0xff]
    %v1486 = vld [vmem:[%s25 + $0x80] sm:$0xff]
    %v1487 = vld [vmem:[%s25 + $0x88] sm:$0xff]
    %v1488 = vld [vmem:[%s25 + $0x90] sm:$0xff]
    %v1489 = vld [vmem:[%s25 + $0x98] sm:$0xff]
    %v1490 = vld [vmem:[%s25 + $0xa0] sm:$0xff]
    %v1491 = vld [vmem:[%s25 + $0xa8] sm:$0xff]
    %v1492 = vld [vmem:[%s25 + $0xb0] sm:$0xff]
    %v1493 = vld [vmem:[%s25 + $0xb8] sm:$0xff]
    %v1494 = vld [vmem:[%s25 + $0xc0] sm:$0xff]
    %v1495 = vld [vmem:[%s25 + $0xc8] sm:$0xff]
    %v1496 = vld [vmem:[%s25 + $0xd0] sm:$0xff]
    %v1497 = vld [vmem:[%s25 + $0xd8] sm:$0xff]
    %v1498 = vld [vmem:[%s25 + $0xe0] sm:$0xff]
    %v1499 = vld [vmem:[%s25 + $0xe8] sm:$0xff]
    %v1500 = vld [vmem:[%s25 + $0xf0] sm:$0xff]
    %v1501 = vld [vmem:[%s25 + $0xf8] sm:$0xff]
    %v1502 = vld [vmem:[%s27] sm:$0xff]
    %v1503 = vld [vmem:[%s27 + $0x8] sm:$0xff]
    %v1506 = vlaneseq
    %v1507 = vshrl.u32 %v1506, 7
    %v1508 = vsub.s32 0, %v1507
    %v1509 = vrot.slane %v1502, %v1508
    %v1510 = vlaneseq
    %v1511 = vshrl.u32 %v1510, 7
    %v1512 = vsub.s32 1, %v1511
    %v1513 = vrot.slane %v1502, %v1512
    %v1514 = vlaneseq
    %v1515 = vshrl.u32 %v1514, 7
    %v1516 = vsub.s32 2, %v1515
    %v1517 = vrot.slane %v1502, %v1516
    %v1518 = vlaneseq
    %v1519 = vshrl.u32 %v1518, 7
    %v1520 = vsub.s32 3, %v1519
    %v1521 = vrot.slane %v1502, %v1520
    %v1522 = vlaneseq
    %v1523 = vshrl.u32 %v1522, 7
    %v1524 = vsub.s32 4, %v1523
    %v1525 = vrot.slane %v1502, %v1524
    %v1526 = vlaneseq
    %v1527 = vshrl.u32 %v1526, 7
    %v1528 = vsub.s32 5, %v1527
    %v1529 = vrot.slane %v1502, %v1528
    %v1530 = vlaneseq
    %v1531 = vshrl.u32 %v1530, 7
    %v1532 = vsub.s32 6, %v1531
    %v1533 = vrot.slane %v1502, %v1532
    %v1534 = vlaneseq
    %v1535 = vshrl.u32 %v1534, 7
    %v1536 = vsub.s32 7, %v1535
    %v1537 = vrot.slane %v1502, %v1536
    %v1538 = vlaneseq
    %v1539 = vshrl.u32 %v1538, 7
    %v1540 = vsub.s32 0, %v1539
    %v1541 = vrot.slane %v1503, %v1540
    %v1542 = vlaneseq
    %v1543 = vshrl.u32 %v1542, 7
    %v1544 = vsub.s32 1, %v1543
    %v1545 = vrot.slane %v1503, %v1544
    %v1546 = vlaneseq
    %v1547 = vshrl.u32 %v1546, 7
    %v1548 = vsub.s32 2, %v1547
    %v1549 = vrot.slane %v1503, %v1548
    %v1550 = vlaneseq
    %v1551 = vshrl.u32 %v1550, 7
    %v1552 = vsub.s32 3, %v1551
    %v1553 = vrot.slane %v1503, %v1552
    %v1554 = vlaneseq
    %v1555 = vshrl.u32 %v1554, 7
    %v1556 = vsub.s32 4, %v1555
    %v1557 = vrot.slane %v1503, %v1556
    %v1558 = vlaneseq
    %v1559 = vshrl.u32 %v1558, 7
    %v1560 = vsub.s32 5, %v1559
    %v1561 = vrot.slane %v1503, %v1560
    %v1562 = vlaneseq
    %v1563 = vshrl.u32 %v1562, 7
    %v1564 = vsub.s32 6, %v1563
    %v1565 = vrot.slane %v1503, %v1564
    %v1566 = vlaneseq
    %v1567 = vshrl.u32 %v1566, 7
    %v1568 = vsub.s32 7, %v1567
    %v1569 = vrot.slane %v1503, %v1568
    %v1587 = vsel %vm869, %v1469, 0
    %1589 = vmatprep.subr.mxu0 %v1471
    %1590 = vmatpush1.msra.mxu0 %v1470
    %1591 = vmatprep.subr.mxu0 %v1487
    %1592 = vmatpush1.msra.mxu0 %v1486
    %1593 = vmatprep.subr.mxu0 0.0
    %1594 = vmatpush1.msra.mxu0 0.0
    %1595 = vmatprep.subr.mxu0 0.0
    %1596 = vmatpush1.msra.mxu0 0.0
    %1597 = vmatprep.subr.mxu0 0.0
    %1598 = vmatpush1.msra.mxu0 0.0
    %1599 = vmatprep.subr.mxu0 0.0
    %1600 = vmatpush1.msra.mxu0 0.0
    %1601 = vmatprep.subr.mxu0 0.0
    %1602 = vmatpush1.msra.mxu0 0.0
    %1603 = vmatprep.subr.mxu0 0.0
    %1604 = vmatpush1.msra.mxu0 0.0
    %1605 = vmatprep.subr.mxu0 0.0
    %1606 = vmatpush1.msra.mxu0 0.0
    %1607 = vmatprep.subr.mxu0 0.0
    %1608 = vmatpush1.msra.mxu0 0.0
    %1609 = vmatprep.subr.mxu0 0.0
    %1610 = vmatpush1.msra.mxu0 0.0
    %1611 = vmatprep.subr.mxu0 0.0
    %1612 = vmatpush1.msra.mxu0 0.0
    %1613 = vmatprep.subr.mxu0 0.0
    %1614 = vmatpush1.msra.mxu0 0.0
    %1615 = vmatprep.subr.mxu0 0.0
    %1616 = vmatpush1.msra.mxu0 0.0
    %1617 = vmatprep.subr.mxu0 0.0
    %1618 = vmatpush1.msra.mxu0 0.0
    %1619 = vmatprep.subr.mxu0 0.0
    %1620 = vmatpush1.msra.mxu0 0.0
    %1621 = vmatprep.subr.mxu0 0.0
    %1622 = vmatpush1.msra.mxu0 0.0
    %1623 = vmatprep.subr.mxu0 0.0
    %1624 = vmatpush1.msra.mxu0 0.0
    %1625 = vmatprep.subr.mxu0 0.0
    %1626 = vmatpush1.msra.mxu0 0.0
    %1627 = vmatprep.subr.mxu0 0.0
    %1628 = vmatpush1.msra.mxu0 0.0
    %1629 = vmatprep.subr.mxu0 0.0
    %1630 = vmatpush1.msra.mxu0 0.0
    %1631 = vmatprep.subr.mxu0 0.0
    %1632 = vmatpush1.msra.mxu0 0.0
    %1633 = vmatprep.subr.mxu0 0.0
    %1634 = vmatpush1.msra.mxu0 0.0
    %1635 = vmatprep.subr.mxu0 0.0
    %1636 = vmatpush1.msra.mxu0 0.0
    %1637 = vmatprep.subr.mxu0 0.0
    %1638 = vmatpush1.msra.mxu0 0.0
    %1639 = vmatprep.subr.mxu0 0.0
    %1640 = vmatpush1.msra.mxu0 0.0
    %1641 = vmatprep.subr.mxu0 0.0
    %1642 = vmatpush1.msra.mxu0 0.0
    %1643 = vmatprep.subr.mxu0 0.0
    %1644 = vmatpush1.msra.mxu0 0.0
    %1645 = vmatprep.subr.mxu0 0.0
    %1646 = vmatpush1.msra.mxu0 0.0
    %1647 = vmatprep.subr.mxu0 0.0
    %1648 = vmatpush1.msra.mxu0 0.0
    %1649 = vmatprep.subr.mxu0 0.0
    %1650 = vmatpush1.msra.mxu0 0.0
    %1651 = vmatprep.subr.mxu0 0.0
    %1652 = vmatpush1.msra.mxu0 0.0
    %1653 = vmatprep.mubr.f32.mxu0 0.0
    %1654 = vmatmul.mubr.f32.gmra.mrb[0].mxu0 %v1587
    %v1655 = vpop.f32.mrb[0].mxu0
    %v1656 = vadd.f32 %v1509, %v1655
    %v1657 = vpop.f32.mrb[0].mxu0
    %v1658 = vadd.f32 %v1513, %v1657
    %1659 = vdwg.mxu0
    %1660 = vmatprep.subr.mxu0 %v1473
    %1661 = vmatpush1.msra.mxu0 %v1472
    %1662 = vmatprep.subr.mxu0 %v1489
    %1663 = vmatpush1.msra.mxu0 %v1488
    %1664 = vmatprep.subr.mxu0 0.0
    %1665 = vmatpush1.msra.mxu0 0.0
    %1666 = vmatprep.subr.mxu0 0.0
    %1667 = vmatpush1.msra.mxu0 0.0
    %1668 = vmatprep.subr.mxu0 0.0
    %1669 = vmatpush1.msra.mxu0 0.0
    %1670 = vmatprep.subr.mxu0 0.0
    %1671 = vmatpush1.msra.mxu0 0.0
    %1672 = vmatprep.subr.mxu0 0.0
    %1673 = vmatpush1.msra.mxu0 0.0
    %1674 = vmatprep.subr.mxu0 0.0
    %1675 = vmatpush1.msra.mxu0 0.0
    %1676 = vmatprep.subr.mxu0 0.0
    %1677 = vmatpush1.msra.mxu0 0.0
    %1678 = vmatprep.subr.mxu0 0.0
    %1679 = vmatpush1.msra.mxu0 0.0
    %1680 = vmatprep.subr.mxu0 0.0
    %1681 = vmatpush1.msra.mxu0 0.0
    %1682 = vmatprep.subr.mxu0 0.0
    %1683 = vmatpush1.msra.mxu0 0.0
    %1684 = vmatprep.subr.mxu0 0.0
    %1685 = vmatpush1.msra.mxu0 0.0
    %1686 = vmatprep.subr.mxu0 0.0
    %1687 = vmatpush1.msra.mxu0 0.0
    %1688 = vmatprep.subr.mxu0 0.0
    %1689 = vmatpush1.msra.mxu0 0.0
    %1690 = vmatprep.subr.mxu0 0.0
    %1691 = vmatpush1.msra.mxu0 0.0
    %1692 = vmatprep.subr.mxu0 0.0
    %1693 = vmatpush1.msra.mxu0 0.0
    %1694 = vmatprep.subr.mxu0 0.0
    %1695 = vmatpush1.msra.mxu0 0.0
    %1696 = vmatprep.subr.mxu0 0.0
    %1697 = vmatpush1.msra.mxu0 0.0
    %1698 = vmatprep.subr.mxu0 0.0
    %1699 = vmatpush1.msra.mxu0 0.0
    %1700 = vmatprep.subr.mxu0 0.0
    %1701 = vmatpush1.msra.mxu0 0.0
    %1702 = vmatprep.subr.mxu0 0.0
    %1703 = vmatpush1.msra.mxu0 0.0
    %1704 = vmatprep.subr.mxu0 0.0
    %1705 = vmatpush1.msra.mxu0 0.0
    %1706 = vmatprep.subr.mxu0 0.0
    %1707 = vmatpush1.msra.mxu0 0.0
    %1708 = vmatprep.subr.mxu0 0.0
    %1709 = vmatpush1.msra.mxu0 0.0
    %1710 = vmatprep.subr.mxu0 0.0
    %1711 = vmatpush1.msra.mxu0 0.0
    %1712 = vmatprep.subr.mxu0 0.0
    %1713 = vmatpush1.msra.mxu0 0.0
    %1714 = vmatprep.subr.mxu0 0.0
    %1715 = vmatpush1.msra.mxu0 0.0
    %1716 = vmatprep.subr.mxu0 0.0
    %1717 = vmatpush1.msra.mxu0 0.0
    %1718 = vmatprep.subr.mxu0 0.0
    %1719 = vmatpush1.msra.mxu0 0.0
    %1720 = vmatprep.subr.mxu0 0.0
    %1721 = vmatpush1.msra.mxu0 0.0
    %1722 = vmatprep.subr.mxu0 0.0
    %1723 = vmatpush1.msra.mxu0 0.0
    %1724 = vmatprep.mubr.f32.mxu0 0.0
    %1725 = vmatmul.mubr.f32.gmra.mrb[0].mxu0 %v1587
    %v1726 = vpop.f32.mrb[0].mxu0
    %v1727 = vadd.f32 %v1517, %v1726
    %v1728 = vpop.f32.mrb[0].mxu0
    %v1729 = vadd.f32 %v1521, %v1728
    %1730 = vdwg.mxu0
    %1731 = vmatprep.subr.mxu0 %v1475
    %1732 = vmatpush1.msra.mxu0 %v1474
    %1733 = vmatprep.subr.mxu0 %v1491
    %1734 = vmatpush1.msra.mxu0 %v1490
    %1735 = vmatprep.subr.mxu0 0.0
    %1736 = vmatpush1.msra.mxu0 0.0
    %1737 = vmatprep.subr.mxu0 0.0
    %1738 = vmatpush1.msra.mxu0 0.0
    %1739 = vmatprep.subr.mxu0 0.0
    %1740 = vmatpush1.msra.mxu0 0.0
    %1741 = vmatprep.subr.mxu0 0.0
    %1742 = vmatpush1.msra.mxu0 0.0
    %1743 = vmatprep.subr.mxu0 0.0
    %1744 = vmatpush1.msra.mxu0 0.0
    %1745 = vmatprep.subr.mxu0 0.0
    %1746 = vmatpush1.msra.mxu0 0.0
    %1747 = vmatprep.subr.mxu0 0.0
    %1748 = vmatpush1.msra.mxu0 0.0
    %1749 = vmatprep.subr.mxu0 0.0
    %1750 = vmatpush1.msra.mxu0 0.0
    %1751 = vmatprep.subr.mxu0 0.0
    %1752 = vmatpush1.msra.mxu0 0.0
    %1753 = vmatprep.subr.mxu0 0.0
    %1754 = vmatpush1.msra.mxu0 0.0
    %1755 = vmatprep.subr.mxu0 0.0
    %1756 = vmatpush1.msra.mxu0 0.0
    %1757 = vmatprep.subr.mxu0 0.0
    %1758 = vmatpush1.msra.mxu0 0.0
    %1759 = vmatprep.subr.mxu0 0.0
    %1760 = vmatpush1.msra.mxu0 0.0
    %1761 = vmatprep.subr.mxu0 0.0
    %1762 = vmatpush1.msra.mxu0 0.0
    %1763 = vmatprep.subr.mxu0 0.0
    %1764 = vmatpush1.msra.mxu0 0.0
    %1765 = vmatprep.subr.mxu0 0.0
    %1766 = vmatpush1.msra.mxu0 0.0
    %1767 = vmatprep.subr.mxu0 0.0
    %1768 = vmatpush1.msra.mxu0 0.0
    %1769 = vmatprep.subr.mxu0 0.0
    %1770 = vmatpush1.msra.mxu0 0.0
    %1771 = vmatprep.subr.mxu0 0.0
    %1772 = vmatpush1.msra.mxu0 0.0
    %1773 = vmatprep.subr.mxu0 0.0
    %1774 = vmatpush1.msra.mxu0 0.0
    %1775 = vmatprep.subr.mxu0 0.0
    %1776 = vmatpush1.msra.mxu0 0.0
    %1777 = vmatprep.subr.mxu0 0.0
    %1778 = vmatpush1.msra.mxu0 0.0
    %1779 = vmatprep.subr.mxu0 0.0
    %1780 = vmatpush1.msra.mxu0 0.0
    %1781 = vmatprep.subr.mxu0 0.0
    %1782 = vmatpush1.msra.mxu0 0.0
    %1783 = vmatprep.subr.mxu0 0.0
    %1784 = vmatpush1.msra.mxu0 0.0
    %1785 = vmatprep.subr.mxu0 0.0
    %1786 = vmatpush1.msra.mxu0 0.0
    %1787 = vmatprep.subr.mxu0 0.0
    %1788 = vmatpush1.msra.mxu0 0.0
    %1789 = vmatprep.subr.mxu0 0.0
    %1790 = vmatpush1.msra.mxu0 0.0
    %1791 = vmatprep.subr.mxu0 0.0
    %1792 = vmatpush1.msra.mxu0 0.0
    %1793 = vmatprep.subr.mxu0 0.0
    %1794 = vmatpush1.msra.mxu0 0.0
    %1795 = vmatprep.mubr.f32.mxu0 0.0
    %1796 = vmatmul.mubr.f32.gmra.mrb[0].mxu0 %v1587
    %v1797 = vpop.f32.mrb[0].mxu0
    %v1798 = vadd.f32 %v1525, %v1797
    %v1799 = vpop.f32.mrb[0].mxu0
    %v1800 = vadd.f32 %v1529, %v1799
    %1801 = vdwg.mxu0
    %1802 = vmatprep.subr.mxu0 %v1477
    %1803 = vmatpush1.msra.mxu0 %v1476
    %1804 = vmatprep.subr.mxu0 %v1493
    %1805 = vmatpush1.msra.mxu0 %v1492
    %1806 = vmatprep.subr.mxu0 0.0
    %1807 = vmatpush1.msra.mxu0 0.0
    %1808 = vmatprep.subr.mxu0 0.0
    %1809 = vmatpush1.msra.mxu0 0.0
    %1810 = vmatprep.subr.mxu0 0.0
    %1811 = vmatpush1.msra.mxu0 0.0
    %1812 = vmatprep.subr.mxu0 0.0
    %1813 = vmatpush1.msra.mxu0 0.0
    %1814 = vmatprep.subr.mxu0 0.0
    %1815 = vmatpush1.msra.mxu0 0.0
    %1816 = vmatprep.subr.mxu0 0.0
    %1817 = vmatpush1.msra.mxu0 0.0
    %1818 = vmatprep.subr.mxu0 0.0
    %1819 = vmatpush1.msra.mxu0 0.0
    %1820 = vmatprep.subr.mxu0 0.0
    %1821 = vmatpush1.msra.mxu0 0.0
    %1822 = vmatprep.subr.mxu0 0.0
    %1823 = vmatpush1.msra.mxu0 0.0
    %1824 = vmatprep.subr.mxu0 0.0
    %1825 = vmatpush1.msra.mxu0 0.0
    %1826 = vmatprep.subr.mxu0 0.0
    %1827 = vmatpush1.msra.mxu0 0.0
    %1828 = vmatprep.subr.mxu0 0.0
    %1829 = vmatpush1.msra.mxu0 0.0
    %1830 = vmatprep.subr.mxu0 0.0
    %1831 = vmatpush1.msra.mxu0 0.0
    %1832 = vmatprep.subr.mxu0 0.0
    %1833 = vmatpush1.msra.mxu0 0.0
    %1834 = vmatprep.subr.mxu0 0.0
    %1835 = vmatpush1.msra.mxu0 0.0
    %1836 = vmatprep.subr.mxu0 0.0
    %1837 = vmatpush1.msra.mxu0 0.0
    %1838 = vmatprep.subr.mxu0 0.0
    %1839 = vmatpush1.msra.mxu0 0.0
    %1840 = vmatprep.subr.mxu0 0.0
    %1841 = vmatpush1.msra.mxu0 0.0
    %1842 = vmatprep.subr.mxu0 0.0
    %1843 = vmatpush1.msra.mxu0 0.0
    %1844 = vmatprep.subr.mxu0 0.0
    %1845 = vmatpush1.msra.mxu0 0.0
    %1846 = vmatprep.subr.mxu0 0.0
    %1847 = vmatpush1.msra.mxu0 0.0
    %1848 = vmatprep.subr.mxu0 0.0
    %1849 = vmatpush1.msra.mxu0 0.0
    %1850 = vmatprep.subr.mxu0 0.0
    %1851 = vmatpush1.msra.mxu0 0.0
    %1852 = vmatprep.subr.mxu0 0.0
    %1853 = vmatpush1.msra.mxu0 0.0
    %1854 = vmatprep.subr.mxu0 0.0
    %1855 = vmatpush1.msra.mxu0 0.0
    %1856 = vmatprep.subr.mxu0 0.0
    %1857 = vmatpush1.msra.mxu0 0.0
    %1858 = vmatprep.subr.mxu0 0.0
    %1859 = vmatpush1.msra.mxu0 0.0
    %1860 = vmatprep.subr.mxu0 0.0
    %1861 = vmatpush1.msra.mxu0 0.0
    %1862 = vmatprep.subr.mxu0 0.0
    %1863 = vmatpush1.msra.mxu0 0.0
    %1864 = vmatprep.subr.mxu0 0.0
    %1865 = vmatpush1.msra.mxu0 0.0
    %1866 = vmatprep.mubr.f32.mxu0 0.0
    %1867 = vmatmul.mubr.f32.gmra.mrb[0].mxu0 %v1587
    %v1868 = vpop.f32.mrb[0].mxu0
    %v1869 = vadd.f32 %v1533, %v1868
    %v1870 = vpop.f32.mrb[0].mxu0
    %v1871 = vadd.f32 %v1537, %v1870
    %1872 = vdwg.mxu0
    %1873 = vmatprep.subr.mxu0 %v1479
    %1874 = vmatpush1.msra.mxu0 %v1478
    %1875 = vmatprep.subr.mxu0 %v1495
    %1876 = vmatpush1.msra.mxu0 %v1494
    %1877 = vmatprep.subr.mxu0 0.0
    %1878 = vmatpush1.msra.mxu0 0.0
    %1879 = vmatprep.subr.mxu0 0.0
    %1880 = vmatpush1.msra.mxu0 0.0
    %1881 = vmatprep.subr.mxu0 0.0
    %1882 = vmatpush1.msra.mxu0 0.0
    %1883 = vmatprep.subr.mxu0 0.0
    %1884 = vmatpush1.msra.mxu0 0.0
    %1885 = vmatprep.subr.mxu0 0.0
    %1886 = vmatpush1.msra.mxu0 0.0
    %1887 = vmatprep.subr.mxu0 0.0
    %1888 = vmatpush1.msra.mxu0 0.0
    %1889 = vmatprep.subr.mxu0 0.0
    %1890 = vmatpush1.msra.mxu0 0.0
    %1891 = vmatprep.subr.mxu0 0.0
    %1892 = vmatpush1.msra.mxu0 0.0
    %1893 = vmatprep.subr.mxu0 0.0
    %1894 = vmatpush1.msra.mxu0 0.0
    %1895 = vmatprep.subr.mxu0 0.0
    %1896 = vmatpush1.msra.mxu0 0.0
    %1897 = vmatprep.subr.mxu0 0.0
    %1898 = vmatpush1.msra.mxu0 0.0
    %1899 = vmatprep.subr.mxu0 0.0
    %1900 = vmatpush1.msra.mxu0 0.0
    %1901 = vmatprep.subr.mxu0 0.0
    %1902 = vmatpush1.msra.mxu0 0.0
    %1903 = vmatprep.subr.mxu0 0.0
    %1904 = vmatpush1.msra.mxu0 0.0
    %1905 = vmatprep.subr.mxu0 0.0
    %1906 = vmatpush1.msra.mxu0 0.0
    %1907 = vmatprep.subr.mxu0 0.0
    %1908 = vmatpush1.msra.mxu0 0.0
    %1909 = vmatprep.subr.mxu0 0.0
    %1910 = vmatpush1.msra.mxu0 0.0
    %1911 = vmatprep.subr.mxu0 0.0
    %1912 = vmatpush1.msra.mxu0 0.0
    %1913 = vmatprep.subr.mxu0 0.0
    %1914 = vmatpush1.msra.mxu0 0.0
    %1915 = vmatprep.subr.mxu0 0.0
    %1916 = vmatpush1.msra.mxu0 0.0
    %1917 = vmatprep.subr.mxu0 0.0
    %1918 = vmatpush1.msra.mxu0 0.0
    %1919 = vmatprep.subr.mxu0 0.0
    %1920 = vmatpush1.msra.mxu0 0.0
    %1921 = vmatprep.subr.mxu0 0.0
    %1922 = vmatpush1.msra.mxu0 0.0
    %1923 = vmatprep.subr.mxu0 0.0
    %1924 = vmatpush1.msra.mxu0 0.0
    %1925 = vmatprep.subr.mxu0 0.0
    %1926 = vmatpush1.msra.mxu0 0.0
    %1927 = vmatprep.subr.mxu0 0.0
    %1928 = vmatpush1.msra.mxu0 0.0
    %1929 = vmatprep.subr.mxu0 0.0
    %1930 = vmatpush1.msra.mxu0 0.0
    %1931 = vmatprep.subr.mxu0 0.0
    %1932 = vmatpush1.msra.mxu0 0.0
    %1933 = vmatprep.subr.mxu0 0.0
    %1934 = vmatpush1.msra.mxu0 0.0
    %1935 = vmatprep.subr.mxu0 0.0
    %1936 = vmatpush1.msra.mxu0 0.0
    %1937 = vmatprep.mubr.f32.mxu0 0.0
    %1938 = vmatmul.mubr.f32.gmra.mrb[0].mxu0 %v1587
    %v1939 = vpop.f32.mrb[0].mxu0
    %v1940 = vadd.f32 %v1541, %v1939
    %v1941 = vpop.f32.mrb[0].mxu0
    %v1942 = vadd.f32 %v1545, %v1941
    %1943 = vdwg.mxu0
    %1944 = vmatprep.subr.mxu0 %v1481
    %1945 = vmatpush1.msra.mxu0 %v1480
    %1946 = vmatprep.subr.mxu0 %v1497
    %1947 = vmatpush1.msra.mxu0 %v1496
    %1948 = vmatprep.subr.mxu0 0.0
    %1949 = vmatpush1.msra.mxu0 0.0
    %1950 = vmatprep.subr.mxu0 0.0
    %1951 = vmatpush1.msra.mxu0 0.0
    %1952 = vmatprep.subr.mxu0 0.0
    %1953 = vmatpush1.msra.mxu0 0.0
    %1954 = vmatprep.subr.mxu0 0.0
    %1955 = vmatpush1.msra.mxu0 0.0
    %1956 = vmatprep.subr.mxu0 0.0
    %1957 = vmatpush1.msra.mxu0 0.0
    %1958 = vmatprep.subr.mxu0 0.0
    %1959 = vmatpush1.msra.mxu0 0.0
    %1960 = vmatprep.subr.mxu0 0.0
    %1961 = vmatpush1.msra.mxu0 0.0
    %1962 = vmatprep.subr.mxu0 0.0
    %1963 = vmatpush1.msra.mxu0 0.0
    %1964 = vmatprep.subr.mxu0 0.0
    %1965 = vmatpush1.msra.mxu0 0.0
    %1966 = vmatprep.subr.mxu0 0.0
    %1967 = vmatpush1.msra.mxu0 0.0
    %1968 = vmatprep.subr.mxu0 0.0
    %1969 = vmatpush1.msra.mxu0 0.0
    %1970 = vmatprep.subr.mxu0 0.0
    %1971 = vmatpush1.msra.mxu0 0.0
    %1972 = vmatprep.subr.mxu0 0.0
    %1973 = vmatpush1.msra.mxu0 0.0
    %1974 = vmatprep.subr.mxu0 0.0
    %1975 = vmatpush1.msra.mxu0 0.0
    %1976 = vmatprep.subr.mxu0 0.0
    %1977 = vmatpush1.msra.mxu0 0.0
    %1978 = vmatprep.subr.mxu0 0.0
    %1979 = vmatpush1.msra.mxu0 0.0
    %1980 = vmatprep.subr.mxu0 0.0
    %1981 = vmatpush1.msra.mxu0 0.0
    %1982 = vmatprep.subr.mxu0 0.0
    %1983 = vmatpush1.msra.mxu0 0.0
    %1984 = vmatprep.subr.mxu0 0.0
    %1985 = vmatpush1.msra.mxu0 0.0
    %1986 = vmatprep.subr.mxu0 0.0
    %1987 = vmatpush1.msra.mxu0 0.0
    %1988 = vmatprep.subr.mxu0 0.0
    %1989 = vmatpush1.msra.mxu0 0.0
    %1990 = vmatprep.subr.mxu0 0.0
    %1991 = vmatpush1.msra.mxu0 0.0
    %1992 = vmatprep.subr.mxu0 0.0
    %1993 = vmatpush1.msra.mxu0 0.0
    %1994 = vmatprep.subr.mxu0 0.0
    %1995 = vmatpush1.msra.mxu0 0.0
    %1996 = vmatprep.subr.mxu0 0.0
    %1997 = vmatpush1.msra.mxu0 0.0
    %1998 = vmatprep.subr.mxu0 0.0
    %1999 = vmatpush1.msra.mxu0 0.0
    %2000 = vmatprep.subr.mxu0 0.0
    %2001 = vmatpush1.msra.mxu0 0.0
    %2002 = vmatprep.subr.mxu0 0.0
    %2003 = vmatpush1.msra.mxu0 0.0
    %2004 = vmatprep.subr.mxu0 0.0
    %2005 = vmatpush1.msra.mxu0 0.0
    %2006 = vmatprep.subr.mxu0 0.0
    %2007 = vmatpush1.msra.mxu0 0.0
    %2008 = vmatprep.mubr.f32.mxu0 0.0
    %2009 = vmatmul.mubr.f32.gmra.mrb[0].mxu0 %v1587
    %v2010 = vpop.f32.mrb[0].mxu0
    %v2011 = vadd.f32 %v1549, %v2010
    %v2012 = vpop.f32.mrb[0].mxu0
    %v2013 = vadd.f32 %v1553, %v2012
    %2014 = vdwg.mxu0
    %2015 = vmatprep.subr.mxu0 %v1483
    %2016 = vmatpush1.msra.mxu0 %v1482
    %2017 = vmatprep.subr.mxu0 %v1499
    %2018 = vmatpush1.msra.mxu0 %v1498
    %2019 = vmatprep.subr.mxu0 0.0
    %2020 = vmatpush1.msra.mxu0 0.0
    %2021 = vmatprep.subr.mxu0 0.0
    %2022 = vmatpush1.msra.mxu0 0.0
    %2023 = vmatprep.subr.mxu0 0.0
    %2024 = vmatpush1.msra.mxu0 0.0
    %2025 = vmatprep.subr.mxu0 0.0
    %2026 = vmatpush1.msra.mxu0 0.0
    %2027 = vmatprep.subr.mxu0 0.0
    %2028 = vmatpush1.msra.mxu0 0.0
    %2029 = vmatprep.subr.mxu0 0.0
    %2030 = vmatpush1.msra.mxu0 0.0
    %2031 = vmatprep.subr.mxu0 0.0
    %2032 = vmatpush1.msra.mxu0 0.0
    %2033 = vmatprep.subr.mxu0 0.0
    %2034 = vmatpush1.msra.mxu0 0.0
    %2035 = vmatprep.subr.mxu0 0.0
    %2036 = vmatpush1.msra.mxu0 0.0
    %2037 = vmatprep.subr.mxu0 0.0
    %2038 = vmatpush1.msra.mxu0 0.0
    %2039 = vmatprep.subr.mxu0 0.0
    %2040 = vmatpush1.msra.mxu0 0.0
    %2041 = vmatprep.subr.mxu0 0.0
    %2042 = vmatpush1.msra.mxu0 0.0
    %2043 = vmatprep.subr.mxu0 0.0
    %2044 = vmatpush1.msra.mxu0 0.0
    %2045 = vmatprep.subr.mxu0 0.0
    %2046 = vmatpush1.msra.mxu0 0.0
    %2047 = vmatprep.subr.mxu0 0.0
    %2048 = vmatpush1.msra.mxu0 0.0
    %2049 = vmatprep.subr.mxu0 0.0
    %2050 = vmatpush1.msra.mxu0 0.0
    %2051 = vmatprep.subr.mxu0 0.0
    %2052 = vmatpush1.msra.mxu0 0.0
    %2053 = vmatprep.subr.mxu0 0.0
    %2054 = vmatpush1.msra.mxu0 0.0
    %2055 = vmatprep.subr.mxu0 0.0
    %2056 = vmatpush1.msra.mxu0 0.0
    %2057 = vmatprep.subr.mxu0 0.0
    %2058 = vmatpush1.msra.mxu0 0.0
    %2059 = vmatprep.subr.mxu0 0.0
    %2060 = vmatpush1.msra.mxu0 0.0
    %2061 = vmatprep.subr.mxu0 0.0
    %2062 = vmatpush1.msra.mxu0 0.0
    %2063 = vmatprep.subr.mxu0 0.0
    %2064 = vmatpush1.msra.mxu0 0.0
    %2065 = vmatprep.subr.mxu0 0.0
    %2066 = vmatpush1.msra.mxu0 0.0
    %2067 = vmatprep.subr.mxu0 0.0
    %2068 = vmatpush1.msra.mxu0 0.0
    %2069 = vmatprep.subr.mxu0 0.0
    %2070 = vmatpush1.msra.mxu0 0.0
    %2071 = vmatprep.subr.mxu0 0.0
    %2072 = vmatpush1.msra.mxu0 0.0
    %2073 = vmatprep.subr.mxu0 0.0
    %2074 = vmatpush1.msra.mxu0 0.0
    %2075 = vmatprep.subr.mxu0 0.0
    %2076 = vmatpush1.msra.mxu0 0.0
    %2077 = vmatprep.subr.mxu0 0.0
    %2078 = vmatpush1.msra.mxu0 0.0
    %2079 = vmatprep.mubr.f32.mxu0 0.0
    %2080 = vmatmul.mubr.f32.gmra.mrb[0].mxu0 %v1587
    %v2081 = vpop.f32.mrb[0].mxu0
    %v2082 = vadd.f32 %v1557, %v2081
    %v2083 = vpop.f32.mrb[0].mxu0
    %v2084 = vadd.f32 %v1561, %v2083
    %2085 = vdwg.mxu0
    %2086 = vmatprep.subr.mxu0 %v1485
    %2087 = vmatpush1.msra.mxu0 %v1484
    %2088 = vmatprep.subr.mxu0 %v1501
    %2089 = vmatpush1.msra.mxu0 %v1500
    %2090 = vmatprep.subr.mxu0 0.0
    %2091 = vmatpush1.msra.mxu0 0.0
    %2092 = vmatprep.subr.mxu0 0.0
    %2093 = vmatpush1.msra.mxu0 0.0
    %2094 = vmatprep.subr.mxu0 0.0
    %2095 = vmatpush1.msra.mxu0 0.0
    %2096 = vmatprep.subr.mxu0 0.0
    %2097 = vmatpush1.msra.mxu0 0.0
    %2098 = vmatprep.subr.mxu0 0.0
    %2099 = vmatpush1.msra.mxu0 0.0
    %2100 = vmatprep.subr.mxu0 0.0
    %2101 = vmatpush1.msra.mxu0 0.0
    %2102 = vmatprep.subr.mxu0 0.0
    %2103 = vmatpush1.msra.mxu0 0.0
    %2104 = vmatprep.subr.mxu0 0.0
    %2105 = vmatpush1.msra.mxu0 0.0
    %2106 = vmatprep.subr.mxu0 0.0
    %2107 = vmatpush1.msra.mxu0 0.0
    %2108 = vmatprep.subr.mxu0 0.0
    %2109 = vmatpush1.msra.mxu0 0.0
    %2110 = vmatprep.subr.mxu0 0.0
    %2111 = vmatpush1.msra.mxu0 0.0
    %2112 = vmatprep.subr.mxu0 0.0
    %2113 = vmatpush1.msra.mxu0 0.0
    %2114 = vmatprep.subr.mxu0 0.0
    %2115 = vmatpush1.msra.mxu0 0.0
    %2116 = vmatprep.subr.mxu0 0.0
    %2117 = vmatpush1.msra.mxu0 0.0
    %2118 = vmatprep.subr.mxu0 0.0
    %2119 = vmatpush1.msra.mxu0 0.0
    %2120 = vmatprep.subr.mxu0 0.0
    %2121 = vmatpush1.msra.mxu0 0.0
    %2122 = vmatprep.subr.mxu0 0.0
    %2123 = vmatpush1.msra.mxu0 0.0
    %2124 = vmatprep.subr.mxu0 0.0
    %2125 = vmatpush1.msra.mxu0 0.0
    %2126 = vmatprep.subr.mxu0 0.0
    %2127 = vmatpush1.msra.mxu0 0.0
    %2128 = vmatprep.subr.mxu0 0.0
    %2129 = vmatpush1.msra.mxu0 0.0
    %2130 = vmatprep.subr.mxu0 0.0
    %2131 = vmatpush1.msra.mxu0 0.0
    %2132 = vmatprep.subr.mxu0 0.0
    %2133 = vmatpush1.msra.mxu0 0.0
    %2134 = vmatprep.subr.mxu0 0.0
    %2135 = vmatpush1.msra.mxu0 0.0
    %2136 = vmatprep.subr.mxu0 0.0
    %2137 = vmatpush1.msra.mxu0 0.0
    %2138 = vmatprep.subr.mxu0 0.0
    %2139 = vmatpush1.msra.mxu0 0.0
    %2140 = vmatprep.subr.mxu0 0.0
    %2141 = vmatpush1.msra.mxu0 0.0
    %2142 = vmatprep.subr.mxu0 0.0
    %2143 = vmatpush1.msra.mxu0 0.0
    %2144 = vmatprep.subr.mxu0 0.0
    %2145 = vmatpush1.msra.mxu0 0.0
    %2146 = vmatprep.subr.mxu0 0.0
    %2147 = vmatpush1.msra.mxu0 0.0
    %2148 = vmatprep.subr.mxu0 0.0
    %2149 = vmatpush1.msra.mxu0 0.0
    %2150 = vmatprep.mubr.f32.mxu0 0.0
    %2151 = vmatmul.mubr.f32.gmra.mrb[0].mxu0 %v1587
    %v2152 = vpop.f32.mrb[0].mxu0
    %v2153 = vadd.f32 %v1565, %v2152
    %v2154 = vpop.f32.mrb[0].mxu0
    %v2155 = vadd.f32 %v1569, %v2154
    %2156 = vdwg.mxu0
    %v2157 = vmax.f32 %v1656, 0.0
    %v2158 = vmax.f32 %v1658, 0.0
    %v2159 = vmax.f32 %v1727, 0.0
    %v2160 = vmax.f32 %v1729, 0.0
    %v2161 = vmax.f32 %v1798, 0.0
    %v2162 = vmax.f32 %v1800, 0.0
    %v2163 = vmax.f32 %v1869, 0.0
    %v2164 = vmax.f32 %v1871, 0.0
    %v2165 = vmax.f32 %v1940, 0.0
    %v2166 = vmax.f32 %v1942, 0.0
    %v2167 = vmax.f32 %v2011, 0.0
    %v2168 = vmax.f32 %v2013, 0.0
    %v2169 = vmax.f32 %v2082, 0.0
    %v2170 = vmax.f32 %v2084, 0.0
    %v2171 = vmax.f32 %v2153, 0.0
    %v2172 = vmax.f32 %v2155, 0.0
    %v2173 = vld [vmem:[%s29] sm:$0xff]
    %v2174 = vld [vmem:[%s29 + $0x8] sm:$0xff]
    %v2175 = vld [vmem:[%s29 + $0x10] sm:$0xff]
    %v2176 = vld [vmem:[%s29 + $0x18] sm:$0xff]
    %v2177 = vld [vmem:[%s29 + $0x20] sm:$0xff]
    %v2178 = vld [vmem:[%s29 + $0x28] sm:$0xff]
    %v2179 = vld [vmem:[%s29 + $0x30] sm:$0xff]
    %v2180 = vld [vmem:[%s29 + $0x38] sm:$0xff]
    %v2181 = vld [vmem:[%s29 + $0x40] sm:$0xff]
    %v2182 = vld [vmem:[%s29 + $0x48] sm:$0xff]
    %v2183 = vld [vmem:[%s29 + $0x50] sm:$0xff]
    %v2184 = vld [vmem:[%s29 + $0x58] sm:$0xff]
    %v2185 = vld [vmem:[%s29 + $0x60] sm:$0xff]
    %v2186 = vld [vmem:[%s29 + $0x68] sm:$0xff]
    %v2187 = vld [vmem:[%s29 + $0x70] sm:$0xff]
    %v2188 = vld [vmem:[%s29 + $0x78] sm:$0xff]
    %v2189 = vld [vmem:[%s29 + $0x80] sm:$0xff]
    %v2190 = vld [vmem:[%s29 + $0x88] sm:$0xff]
    %v2191 = vld [vmem:[%s29 + $0x90] sm:$0xff]
    %v2192 = vld [vmem:[%s29 + $0x98] sm:$0xff]
    %v2193 = vld [vmem:[%s29 + $0xa0] sm:$0xff]
    %v2194 = vld [vmem:[%s29 + $0xa8] sm:$0xff]
    %v2195 = vld [vmem:[%s29 + $0xb0] sm:$0xff]
    %v2196 = vld [vmem:[%s29 + $0xb8] sm:$0xff]
    %v2197 = vld [vmem:[%s29 + $0xc0] sm:$0xff]
    %v2198 = vld [vmem:[%s29 + $0xc8] sm:$0xff]
    %v2199 = vld [vmem:[%s29 + $0xd0] sm:$0xff]
    %v2200 = vld [vmem:[%s29 + $0xd8] sm:$0xff]
    %v2201 = vld [vmem:[%s29 + $0xe0] sm:$0xff]
    %v2202 = vld [vmem:[%s29 + $0xe8] sm:$0xff]
    %v2203 = vld [vmem:[%s29 + $0xf0] sm:$0xff]
    %v2204 = vld [vmem:[%s29 + $0xf8] sm:$0xff]
    %v2205 = vld [vmem:[%s29 + $0x100] sm:$0xff]
    %v2206 = vld [vmem:[%s29 + $0x108] sm:$0xff]
    %v2207 = vld [vmem:[%s29 + $0x110] sm:$0xff]
    %v2208 = vld [vmem:[%s29 + $0x118] sm:$0xff]
    %v2209 = vld [vmem:[%s29 + $0x120] sm:$0xff]
    %v2210 = vld [vmem:[%s29 + $0x128] sm:$0xff]
    %v2211 = vld [vmem:[%s29 + $0x130] sm:$0xff]
    %v2212 = vld [vmem:[%s29 + $0x138] sm:$0xff]
    %v2213 = vld [vmem:[%s29 + $0x140] sm:$0xff]
    %v2214 = vld [vmem:[%s29 + $0x148] sm:$0xff]
    %v2215 = vld [vmem:[%s29 + $0x150] sm:$0xff]
    %v2216 = vld [vmem:[%s29 + $0x158] sm:$0xff]
    %v2217 = vld [vmem:[%s29 + $0x160] sm:$0xff]
    %v2218 = vld [vmem:[%s29 + $0x168] sm:$0xff]
    %v2219 = vld [vmem:[%s29 + $0x170] sm:$0xff]
    %v2220 = vld [vmem:[%s29 + $0x178] sm:$0xff]
    %v2221 = vld [vmem:[%s29 + $0x180] sm:$0xff]
    %v2222 = vld [vmem:[%s29 + $0x188] sm:$0xff]
    %v2223 = vld [vmem:[%s29 + $0x190] sm:$0xff]
    %v2224 = vld [vmem:[%s29 + $0x198] sm:$0xff]
    %v2225 = vld [vmem:[%s29 + $0x1a0] sm:$0xff]
    %v2226 = vld [vmem:[%s29 + $0x1a8] sm:$0xff]
    %v2227 = vld [vmem:[%s29 + $0x1b0] sm:$0xff]
    %v2228 = vld [vmem:[%s29 + $0x1b8] sm:$0xff]
    %v2229 = vld [vmem:[%s29 + $0x1c0] sm:$0xff]
    %v2230 = vld [vmem:[%s29 + $0x1c8] sm:$0xff]
    %v2231 = vld [vmem:[%s29 + $0x1d0] sm:$0xff]
    %v2232 = vld [vmem:[%s29 + $0x1d8] sm:$0xff]
    %v2233 = vld [vmem:[%s29 + $0x1e0] sm:$0xff]
    %v2234 = vld [vmem:[%s29 + $0x1e8] sm:$0xff]
    %v2235 = vld [vmem:[%s29 + $0x1f0] sm:$0xff]
    %v2236 = vld [vmem:[%s29 + $0x1f8] sm:$0xff]
    %v2237 = vld [vmem:[%s29 + $0x200] sm:$0xff]
    %v2238 = vld [vmem:[%s29 + $0x208] sm:$0xff]
    %v2239 = vld [vmem:[%s29 + $0x210] sm:$0xff]
    %v2240 = vld [vmem:[%s29 + $0x218] sm:$0xff]
    %v2241 = vld [vmem:[%s29 + $0x220] sm:$0xff]
    %v2242 = vld [vmem:[%s29 + $0x228] sm:$0xff]
    %v2243 = vld [vmem:[%s29 + $0x230] sm:$0xff]
    %v2244 = vld [vmem:[%s29 + $0x238] sm:$0xff]
    %v2245 = vld [vmem:[%s29 + $0x240] sm:$0xff]
    %v2246 = vld [vmem:[%s29 + $0x248] sm:$0xff]
    %v2247 = vld [vmem:[%s29 + $0x250] sm:$0xff]
    %v2248 = vld [vmem:[%s29 + $0x258] sm:$0xff]
    %v2249 = vld [vmem:[%s29 + $0x260] sm:$0xff]
    %v2250 = vld [vmem:[%s29 + $0x268] sm:$0xff]
    %v2251 = vld [vmem:[%s29 + $0x270] sm:$0xff]
    %v2252 = vld [vmem:[%s29 + $0x278] sm:$0xff]
    %v2253 = vld [vmem:[%s29 + $0x280] sm:$0xff]
    %v2254 = vld [vmem:[%s29 + $0x288] sm:$0xff]
    %v2255 = vld [vmem:[%s29 + $0x290] sm:$0xff]
    %v2256 = vld [vmem:[%s29 + $0x298] sm:$0xff]
    %v2257 = vld [vmem:[%s29 + $0x2a0] sm:$0xff]
    %v2258 = vld [vmem:[%s29 + $0x2a8] sm:$0xff]
    %v2259 = vld [vmem:[%s29 + $0x2b0] sm:$0xff]
    %v2260 = vld [vmem:[%s29 + $0x2b8] sm:$0xff]
    %v2261 = vld [vmem:[%s29 + $0x2c0] sm:$0xff]
    %v2262 = vld [vmem:[%s29 + $0x2c8] sm:$0xff]
    %v2263 = vld [vmem:[%s29 + $0x2d0] sm:$0xff]
    %v2264 = vld [vmem:[%s29 + $0x2d8] sm:$0xff]
    %v2265 = vld [vmem:[%s29 + $0x2e0] sm:$0xff]
    %v2266 = vld [vmem:[%s29 + $0x2e8] sm:$0xff]
    %v2267 = vld [vmem:[%s29 + $0x2f0] sm:$0xff]
    %v2268 = vld [vmem:[%s29 + $0x2f8] sm:$0xff]
    %v2269 = vld [vmem:[%s29 + $0x300] sm:$0xff]
    %v2270 = vld [vmem:[%s29 + $0x308] sm:$0xff]
    %v2271 = vld [vmem:[%s29 + $0x310] sm:$0xff]
    %v2272 = vld [vmem:[%s29 + $0x318] sm:$0xff]
    %v2273 = vld [vmem:[%s29 + $0x320] sm:$0xff]
    %v2274 = vld [vmem:[%s29 + $0x328] sm:$0xff]
    %v2275 = vld [vmem:[%s29 + $0x330] sm:$0xff]
    %v2276 = vld [vmem:[%s29 + $0x338] sm:$0xff]
    %v2277 = vld [vmem:[%s29 + $0x340] sm:$0xff]
    %v2278 = vld [vmem:[%s29 + $0x348] sm:$0xff]
    %v2279 = vld [vmem:[%s29 + $0x350] sm:$0xff]
    %v2280 = vld [vmem:[%s29 + $0x358] sm:$0xff]
    %v2281 = vld [vmem:[%s29 + $0x360] sm:$0xff]
    %v2282 = vld [vmem:[%s29 + $0x368] sm:$0xff]
    %v2283 = vld [vmem:[%s29 + $0x370] sm:$0xff]
    %v2284 = vld [vmem:[%s29 + $0x378] sm:$0xff]
    %v2285 = vld [vmem:[%s29 + $0x380] sm:$0xff]
    %v2286 = vld [vmem:[%s29 + $0x388] sm:$0xff]
    %v2287 = vld [vmem:[%s29 + $0x390] sm:$0xff]
    %v2288 = vld [vmem:[%s29 + $0x398] sm:$0xff]
    %v2289 = vld [vmem:[%s29 + $0x3a0] sm:$0xff]
    %v2290 = vld [vmem:[%s29 + $0x3a8] sm:$0xff]
    %v2291 = vld [vmem:[%s29 + $0x3b0] sm:$0xff]
    %v2292 = vld [vmem:[%s29 + $0x3b8] sm:$0xff]
    %v2293 = vld [vmem:[%s29 + $0x3c0] sm:$0xff]
    %v2294 = vld [vmem:[%s29 + $0x3c8] sm:$0xff]
    %v2295 = vld [vmem:[%s29 + $0x3d0] sm:$0xff]
    %v2296 = vld [vmem:[%s29 + $0x3d8] sm:$0xff]
    %v2297 = vld [vmem:[%s29 + $0x3e0] sm:$0xff]
    %v2298 = vld [vmem:[%s29 + $0x3e8] sm:$0xff]
    %v2299 = vld [vmem:[%s29 + $0x3f0] sm:$0xff]
    %v2300 = vld [vmem:[%s29 + $0x3f8] sm:$0xff]
    %v2301 = vld [vmem:[%s29 + $0x400] sm:$0xff]
    %v2302 = vld [vmem:[%s29 + $0x408] sm:$0xff]
    %v2303 = vld [vmem:[%s29 + $0x410] sm:$0xff]
    %v2304 = vld [vmem:[%s29 + $0x418] sm:$0xff]
    %v2305 = vld [vmem:[%s29 + $0x420] sm:$0xff]
    %v2306 = vld [vmem:[%s29 + $0x428] sm:$0xff]
    %v2307 = vld [vmem:[%s29 + $0x430] sm:$0xff]
    %v2308 = vld [vmem:[%s29 + $0x438] sm:$0xff]
    %v2309 = vld [vmem:[%s29 + $0x440] sm:$0xff]
    %v2310 = vld [vmem:[%s29 + $0x448] sm:$0xff]
    %v2311 = vld [vmem:[%s29 + $0x450] sm:$0xff]
    %v2312 = vld [vmem:[%s29 + $0x458] sm:$0xff]
    %v2313 = vld [vmem:[%s29 + $0x460] sm:$0xff]
    %v2314 = vld [vmem:[%s29 + $0x468] sm:$0xff]
    %v2315 = vld [vmem:[%s29 + $0x470] sm:$0xff]
    %v2316 = vld [vmem:[%s29 + $0x478] sm:$0xff]
    %v2317 = vld [vmem:[%s29 + $0x480] sm:$0xff]
    %v2318 = vld [vmem:[%s29 + $0x488] sm:$0xff]
    %v2319 = vld [vmem:[%s29 + $0x490] sm:$0xff]
    %v2320 = vld [vmem:[%s29 + $0x498] sm:$0xff]
    %v2321 = vld [vmem:[%s29 + $0x4a0] sm:$0xff]
    %v2322 = vld [vmem:[%s29 + $0x4a8] sm:$0xff]
    %v2323 = vld [vmem:[%s29 + $0x4b0] sm:$0xff]
    %v2324 = vld [vmem:[%s29 + $0x4b8] sm:$0xff]
    %v2325 = vld [vmem:[%s29 + $0x4c0] sm:$0xff]
    %v2326 = vld [vmem:[%s29 + $0x4c8] sm:$0xff]
    %v2327 = vld [vmem:[%s29 + $0x4d0] sm:$0xff]
    %v2328 = vld [vmem:[%s29 + $0x4d8] sm:$0xff]
    %v2329 = vld [vmem:[%s29 + $0x4e0] sm:$0xff]
    %v2330 = vld [vmem:[%s29 + $0x4e8] sm:$0xff]
    %v2331 = vld [vmem:[%s29 + $0x4f0] sm:$0xff]
    %v2332 = vld [vmem:[%s29 + $0x4f8] sm:$0xff]
    %v2333 = vld [vmem:[%s29 + $0x500] sm:$0xff]
    %v2334 = vld [vmem:[%s29 + $0x508] sm:$0xff]
    %v2335 = vld [vmem:[%s29 + $0x510] sm:$0xff]
    %v2336 = vld [vmem:[%s29 + $0x518] sm:$0xff]
    %v2337 = vld [vmem:[%s29 + $0x520] sm:$0xff]
    %v2338 = vld [vmem:[%s29 + $0x528] sm:$0xff]
    %v2339 = vld [vmem:[%s29 + $0x530] sm:$0xff]
    %v2340 = vld [vmem:[%s29 + $0x538] sm:$0xff]
    %v2341 = vld [vmem:[%s29 + $0x540] sm:$0xff]
    %v2342 = vld [vmem:[%s29 + $0x548] sm:$0xff]
    %v2343 = vld [vmem:[%s29 + $0x550] sm:$0xff]
    %v2344 = vld [vmem:[%s29 + $0x558] sm:$0xff]
    %v2345 = vld [vmem:[%s29 + $0x560] sm:$0xff]
    %v2346 = vld [vmem:[%s29 + $0x568] sm:$0xff]
    %v2347 = vld [vmem:[%s29 + $0x570] sm:$0xff]
    %v2348 = vld [vmem:[%s29 + $0x578] sm:$0xff]
    %v2349 = vld [vmem:[%s29 + $0x580] sm:$0xff]
    %v2350 = vld [vmem:[%s29 + $0x588] sm:$0xff]
    %v2351 = vld [vmem:[%s29 + $0x590] sm:$0xff]
    %v2352 = vld [vmem:[%s29 + $0x598] sm:$0xff]
    %v2353 = vld [vmem:[%s29 + $0x5a0] sm:$0xff]
    %v2354 = vld [vmem:[%s29 + $0x5a8] sm:$0xff]
    %v2355 = vld [vmem:[%s29 + $0x5b0] sm:$0xff]
    %v2356 = vld [vmem:[%s29 + $0x5b8] sm:$0xff]
    %v2357 = vld [vmem:[%s29 + $0x5c0] sm:$0xff]
    %v2358 = vld [vmem:[%s29 + $0x5c8] sm:$0xff]
    %v2359 = vld [vmem:[%s29 + $0x5d0] sm:$0xff]
    %v2360 = vld [vmem:[%s29 + $0x5d8] sm:$0xff]
    %v2361 = vld [vmem:[%s29 + $0x5e0] sm:$0xff]
    %v2362 = vld [vmem:[%s29 + $0x5e8] sm:$0xff]
    %v2363 = vld [vmem:[%s29 + $0x5f0] sm:$0xff]
    %v2364 = vld [vmem:[%s29 + $0x5f8] sm:$0xff]
    %v2365 = vld [vmem:[%s29 + $0x600] sm:$0xff]
    %v2366 = vld [vmem:[%s29 + $0x608] sm:$0xff]
    %v2367 = vld [vmem:[%s29 + $0x610] sm:$0xff]
    %v2368 = vld [vmem:[%s29 + $0x618] sm:$0xff]
    %v2369 = vld [vmem:[%s29 + $0x620] sm:$0xff]
    %v2370 = vld [vmem:[%s29 + $0x628] sm:$0xff]
    %v2371 = vld [vmem:[%s29 + $0x630] sm:$0xff]
    %v2372 = vld [vmem:[%s29 + $0x638] sm:$0xff]
    %v2373 = vld [vmem:[%s29 + $0x640] sm:$0xff]
    %v2374 = vld [vmem:[%s29 + $0x648] sm:$0xff]
    %v2375 = vld [vmem:[%s29 + $0x650] sm:$0xff]
    %v2376 = vld [vmem:[%s29 + $0x658] sm:$0xff]
    %v2377 = vld [vmem:[%s29 + $0x660] sm:$0xff]
    %v2378 = vld [vmem:[%s29 + $0x668] sm:$0xff]
    %v2379 = vld [vmem:[%s29 + $0x670] sm:$0xff]
    %v2380 = vld [vmem:[%s29 + $0x678] sm:$0xff]
    %v2381 = vld [vmem:[%s29 + $0x680] sm:$0xff]
    %v2382 = vld [vmem:[%s29 + $0x688] sm:$0xff]
    %v2383 = vld [vmem:[%s29 + $0x690] sm:$0xff]
    %v2384 = vld [vmem:[%s29 + $0x698] sm:$0xff]
    %v2385 = vld [vmem:[%s29 + $0x6a0] sm:$0xff]
    %v2386 = vld [vmem:[%s29 + $0x6a8] sm:$0xff]
    %v2387 = vld [vmem:[%s29 + $0x6b0] sm:$0xff]
    %v2388 = vld [vmem:[%s29 + $0x6b8] sm:$0xff]
    %v2389 = vld [vmem:[%s29 + $0x6c0] sm:$0xff]
    %v2390 = vld [vmem:[%s29 + $0x6c8] sm:$0xff]
    %v2391 = vld [vmem:[%s29 + $0x6d0] sm:$0xff]
    %v2392 = vld [vmem:[%s29 + $0x6d8] sm:$0xff]
    %v2393 = vld [vmem:[%s29 + $0x6e0] sm:$0xff]
    %v2394 = vld [vmem:[%s29 + $0x6e8] sm:$0xff]
    %v2395 = vld [vmem:[%s29 + $0x6f0] sm:$0xff]
    %v2396 = vld [vmem:[%s29 + $0x6f8] sm:$0xff]
    %v2397 = vld [vmem:[%s29 + $0x700] sm:$0xff]
    %v2398 = vld [vmem:[%s29 + $0x708] sm:$0xff]
    %v2399 = vld [vmem:[%s29 + $0x710] sm:$0xff]
    %v2400 = vld [vmem:[%s29 + $0x718] sm:$0xff]
    %v2401 = vld [vmem:[%s29 + $0x720] sm:$0xff]
    %v2402 = vld [vmem:[%s29 + $0x728] sm:$0xff]
    %v2403 = vld [vmem:[%s29 + $0x730] sm:$0xff]
    %v2404 = vld [vmem:[%s29 + $0x738] sm:$0xff]
    %v2405 = vld [vmem:[%s29 + $0x740] sm:$0xff]
    %v2406 = vld [vmem:[%s29 + $0x748] sm:$0xff]
    %v2407 = vld [vmem:[%s29 + $0x750] sm:$0xff]
    %v2408 = vld [vmem:[%s29 + $0x758] sm:$0xff]
    %v2409 = vld [vmem:[%s29 + $0x760] sm:$0xff]
    %v2410 = vld [vmem:[%s29 + $0x768] sm:$0xff]
    %v2411 = vld [vmem:[%s29 + $0x770] sm:$0xff]
    %v2412 = vld [vmem:[%s29 + $0x778] sm:$0xff]
    %v2413 = vld [vmem:[%s29 + $0x780] sm:$0xff]
    %v2414 = vld [vmem:[%s29 + $0x788] sm:$0xff]
    %v2415 = vld [vmem:[%s29 + $0x790] sm:$0xff]
    %v2416 = vld [vmem:[%s29 + $0x798] sm:$0xff]
    %v2417 = vld [vmem:[%s29 + $0x7a0] sm:$0xff]
    %v2418 = vld [vmem:[%s29 + $0x7a8] sm:$0xff]
    %v2419 = vld [vmem:[%s29 + $0x7b0] sm:$0xff]
    %v2420 = vld [vmem:[%s29 + $0x7b8] sm:$0xff]
    %v2421 = vld [vmem:[%s29 + $0x7c0] sm:$0xff]
    %v2422 = vld [vmem:[%s29 + $0x7c8] sm:$0xff]
    %v2423 = vld [vmem:[%s29 + $0x7d0] sm:$0xff]
    %v2424 = vld [vmem:[%s29 + $0x7d8] sm:$0xff]
    %v2425 = vld [vmem:[%s29 + $0x7e0] sm:$0xff]
    %v2426 = vld [vmem:[%s29 + $0x7e8] sm:$0xff]
    %v2427 = vld [vmem:[%s29 + $0x7f0] sm:$0xff]
    %v2428 = vld [vmem:[%s29 + $0x7f8] sm:$0xff]
    %v2429 = vld [vmem:[%s31] sm:$0x1]
    %v2431 = vlaneseq
    %v2432 = vshrl.u32 %v2431, 7
    %v2433 = vsub.s32 0, %v2432
    %v2434 = vrot.slane %v2429, %v2433
    %2436 = vmatprep.subr.mxu0 0.0
    %2437 = vmatpush1.msra.mxu0 %v2173
    %2438 = vmatprep.subr.mxu0 0.0
    %2439 = vmatpush1.msra.mxu0 %v2174
    %2440 = vmatprep.subr.mxu0 0.0
    %2441 = vmatpush1.msra.mxu0 %v2175
    %2442 = vmatprep.subr.mxu0 0.0
    %2443 = vmatpush1.msra.mxu0 %v2176
    %2444 = vmatprep.subr.mxu0 0.0
    %2445 = vmatpush1.msra.mxu0 %v2177
    %2446 = vmatprep.subr.mxu0 0.0
    %2447 = vmatpush1.msra.mxu0 %v2178
    %2448 = vmatprep.subr.mxu0 0.0
    %2449 = vmatpush1.msra.mxu0 %v2179
    %2450 = vmatprep.subr.mxu0 0.0
    %2451 = vmatpush1.msra.mxu0 %v2180
    %2452 = vmatprep.subr.mxu0 0.0
    %2453 = vmatpush1.msra.mxu0 %v2181
    %2454 = vmatprep.subr.mxu0 0.0
    %2455 = vmatpush1.msra.mxu0 %v2182
    %2456 = vmatprep.subr.mxu0 0.0
    %2457 = vmatpush1.msra.mxu0 %v2183
    %2458 = vmatprep.subr.mxu0 0.0
    %2459 = vmatpush1.msra.mxu0 %v2184
    %2460 = vmatprep.subr.mxu0 0.0
    %2461 = vmatpush1.msra.mxu0 %v2185
    %2462 = vmatprep.subr.mxu0 0.0
    %2463 = vmatpush1.msra.mxu0 %v2186
    %2464 = vmatprep.subr.mxu0 0.0
    %2465 = vmatpush1.msra.mxu0 %v2187
    %2466 = vmatprep.subr.mxu0 0.0
    %2467 = vmatpush1.msra.mxu0 %v2188
    %2468 = vmatprep.subr.mxu0 0.0
    %2469 = vmatpush1.msra.mxu0 %v2189
    %2470 = vmatprep.subr.mxu0 0.0
    %2471 = vmatpush1.msra.mxu0 %v2190
    %2472 = vmatprep.subr.mxu0 0.0
    %2473 = vmatpush1.msra.mxu0 %v2191
    %2474 = vmatprep.subr.mxu0 0.0
    %2475 = vmatpush1.msra.mxu0 %v2192
    %2476 = vmatprep.subr.mxu0 0.0
    %2477 = vmatpush1.msra.mxu0 %v2193
    %2478 = vmatprep.subr.mxu0 0.0
    %2479 = vmatpush1.msra.mxu0 %v2194
    %2480 = vmatprep.subr.mxu0 0.0
    %2481 = vmatpush1.msra.mxu0 %v2195
    %2482 = vmatprep.subr.mxu0 0.0
    %2483 = vmatpush1.msra.mxu0 %v2196
    %2484 = vmatprep.subr.mxu0 0.0
    %2485 = vmatpush1.msra.mxu0 %v2197
    %2486 = vmatprep.subr.mxu0 0.0
    %2487 = vmatpush1.msra.mxu0 %v2198
    %2488 = vmatprep.subr.mxu0 0.0
    %2489 = vmatpush1.msra.mxu0 %v2199
    %2490 = vmatprep.subr.mxu0 0.0
    %2491 = vmatpush1.msra.mxu0 %v2200
    %2492 = vmatprep.subr.mxu0 0.0
    %2493 = vmatpush1.msra.mxu0 %v2201
    %2494 = vmatprep.subr.mxu0 0.0
    %2495 = vmatpush1.msra.mxu0 %v2202
    %2496 = vmatprep.subr.mxu0 0.0
    %2497 = vmatpush1.msra.mxu0 %v2203
    %2498 = vmatprep.subr.mxu0 0.0
    %2499 = vmatpush1.msra.mxu0 %v2204
    %2500 = vmatprep.mubr.f32.mxu0 %v2158
    %2501 = vmatmul.mubr.f32.gmra.mrb[0].mxu0 %v2157
    %v2502 = vpop.f32.mrb[0].mxu0
    %v2503 = vadd.f32 %v2434, %v2502
    %v2504 = vpop.f32.mrb[0].mxu0
    %2505 = vdwg.mxu0
    %2506 = vmatprep.subr.mxu0 0.0
    %2507 = vmatpush1.msra.mxu0 %v2205
    %2508 = vmatprep.subr.mxu0 0.0
    %2509 = vmatpush1.msra.mxu0 %v2206
    %2510 = vmatprep.subr.mxu0 0.0
    %2511 = vmatpush1.msra.mxu0 %v2207
    %2512 = vmatprep.subr.mxu0 0.0
    %2513 = vmatpush1.msra.mxu0 %v2208
    %2514 = vmatprep.subr.mxu0 0.0
    %2515 = vmatpush1.msra.mxu0 %v2209
    %2516 = vmatprep.subr.mxu0 0.0
    %2517 = vmatpush1.msra.mxu0 %v2210
    %2518 = vmatprep.subr.mxu0 0.0
    %2519 = vmatpush1.msra.mxu0 %v2211
    %2520 = vmatprep.subr.mxu0 0.0
    %2521 = vmatpush1.msra.mxu0 %v2212
    %2522 = vmatprep.subr.mxu0 0.0
    %2523 = vmatpush1.msra.mxu0 %v2213
    %2524 = vmatprep.subr.mxu0 0.0
    %2525 = vmatpush1.msra.mxu0 %v2214
    %2526 = vmatprep.subr.mxu0 0.0
    %2527 = vmatpush1.msra.mxu0 %v2215
    %2528 = vmatprep.subr.mxu0 0.0
    %2529 = vmatpush1.msra.mxu0 %v2216
    %2530 = vmatprep.subr.mxu0 0.0
    %2531 = vmatpush1.msra.mxu0 %v2217
    %2532 = vmatprep.subr.mxu0 0.0
    %2533 = vmatpush1.msra.mxu0 %v2218
    %2534 = vmatprep.subr.mxu0 0.0
    %2535 = vmatpush1.msra.mxu0 %v2219
    %2536 = vmatprep.subr.mxu0 0.0
    %2537 = vmatpush1.msra.mxu0 %v2220
    %2538 = vmatprep.subr.mxu0 0.0
    %2539 = vmatpush1.msra.mxu0 %v2221
    %2540 = vmatprep.subr.mxu0 0.0
    %2541 = vmatpush1.msra.mxu0 %v2222
    %2542 = vmatprep.subr.mxu0 0.0
    %2543 = vmatpush1.msra.mxu0 %v2223
    %2544 = vmatprep.subr.mxu0 0.0
    %2545 = vmatpush1.msra.mxu0 %v2224
    %2546 = vmatprep.subr.mxu0 0.0
    %2547 = vmatpush1.msra.mxu0 %v2225
    %2548 = vmatprep.subr.mxu0 0.0
    %2549 = vmatpush1.msra.mxu0 %v2226
    %2550 = vmatprep.subr.mxu0 0.0
    %2551 = vmatpush1.msra.mxu0 %v2227
    %2552 = vmatprep.subr.mxu0 0.0
    %2553 = vmatpush1.msra.mxu0 %v2228
    %2554 = vmatprep.subr.mxu0 0.0
    %2555 = vmatpush1.msra.mxu0 %v2229
    %2556 = vmatprep.subr.mxu0 0.0
    %2557 = vmatpush1.msra.mxu0 %v2230
    %2558 = vmatprep.subr.mxu0 0.0
    %2559 = vmatpush1.msra.mxu0 %v2231
    %2560 = vmatprep.subr.mxu0 0.0
    %2561 = vmatpush1.msra.mxu0 %v2232
    %2562 = vmatprep.subr.mxu0 0.0
    %2563 = vmatpush1.msra.mxu0 %v2233
    %2564 = vmatprep.subr.mxu0 0.0
    %2565 = vmatpush1.msra.mxu0 %v2234
    %2566 = vmatprep.subr.mxu0 0.0
    %2567 = vmatpush1.msra.mxu0 %v2235
    %2568 = vmatprep.subr.mxu0 0.0
    %2569 = vmatpush1.msra.mxu0 %v2236
    %2570 = vmatprep.mubr.f32.mxu0 %v2160
    %2571 = vmatmul.mubr.f32.gmra.mrb[0].mxu0 %v2159
    %v2572 = vpop.f32.mrb[0].mxu0
    %v2573 = vadd.f32 %v2503, %v2572
    %v2574 = vpop.f32.mrb[0].mxu0
    %2575 = vdwg.mxu0
    %2576 = vmatprep.subr.mxu0 0.0
    %2577 = vmatpush1.msra.mxu0 %v2237
    %2578 = vmatprep.subr.mxu0 0.0
    %2579 = vmatpush1.msra.mxu0 %v2238
    %2580 = vmatprep.subr.mxu0 0.0
    %2581 = vmatpush1.msra.mxu0 %v2239
    %2582 = vmatprep.subr.mxu0 0.0
    %2583 = vmatpush1.msra.mxu0 %v2240
    %2584 = vmatprep.subr.mxu0 0.0
    %2585 = vmatpush1.msra.mxu0 %v2241
    %2586 = vmatprep.subr.mxu0 0.0
    %2587 = vmatpush1.msra.mxu0 %v2242
    %2588 = vmatprep.subr.mxu0 0.0
    %2589 = vmatpush1.msra.mxu0 %v2243
    %2590 = vmatprep.subr.mxu0 0.0
    %2591 = vmatpush1.msra.mxu0 %v2244
    %2592 = vmatprep.subr.mxu0 0.0
    %2593 = vmatpush1.msra.mxu0 %v2245
    %2594 = vmatprep.subr.mxu0 0.0
    %2595 = vmatpush1.msra.mxu0 %v2246
    %2596 = vmatprep.subr.mxu0 0.0
    %2597 = vmatpush1.msra.mxu0 %v2247
    %2598 = vmatprep.subr.mxu0 0.0
    %2599 = vmatpush1.msra.mxu0 %v2248
    %2600 = vmatprep.subr.mxu0 0.0
    %2601 = vmatpush1.msra.mxu0 %v2249
    %2602 = vmatprep.subr.mxu0 0.0
    %2603 = vmatpush1.msra.mxu0 %v2250
    %2604 = vmatprep.subr.mxu0 0.0
    %2605 = vmatpush1.msra.mxu0 %v2251
    %2606 = vmatprep.subr.mxu0 0.0
    %2607 = vmatpush1.msra.mxu0 %v2252
    %2608 = vmatprep.subr.mxu0 0.0
    %2609 = vmatpush1.msra.mxu0 %v2253
    %2610 = vmatprep.subr.mxu0 0.0
    %2611 = vmatpush1.msra.mxu0 %v2254
    %2612 = vmatprep.subr.mxu0 0.0
    %2613 = vmatpush1.msra.mxu0 %v2255
    %2614 = vmatprep.subr.mxu0 0.0
    %2615 = vmatpush1.msra.mxu0 %v2256
    %2616 = vmatprep.subr.mxu0 0.0
    %2617 = vmatpush1.msra.mxu0 %v2257
    %2618 = vmatprep.subr.mxu0 0.0
    %2619 = vmatpush1.msra.mxu0 %v2258
    %2620 = vmatprep.subr.mxu0 0.0
    %2621 = vmatpush1.msra.mxu0 %v2259
    %2622 = vmatprep.subr.mxu0 0.0
    %2623 = vmatpush1.msra.mxu0 %v2260
    %2624 = vmatprep.subr.mxu0 0.0
    %2625 = vmatpush1.msra.mxu0 %v2261
    %2626 = vmatprep.subr.mxu0 0.0
    %2627 = vmatpush1.msra.mxu0 %v2262
    %2628 = vmatprep.subr.mxu0 0.0
    %2629 = vmatpush1.msra.mxu0 %v2263
    %2630 = vmatprep.subr.mxu0 0.0
    %2631 = vmatpush1.msra.mxu0 %v2264
    %2632 = vmatprep.subr.mxu0 0.0
    %2633 = vmatpush1.msra.mxu0 %v2265
    %2634 = vmatprep.subr.mxu0 0.0
    %2635 = vmatpush1.msra.mxu0 %v2266
    %2636 = vmatprep.subr.mxu0 0.0
    %2637 = vmatpush1.msra.mxu0 %v2267
    %2638 = vmatprep.subr.mxu0 0.0
    %2639 = vmatpush1.msra.mxu0 %v2268
    %2640 = vmatprep.mubr.f32.mxu0 %v2162
    %2641 = vmatmul.mubr.f32.gmra.mrb[0].mxu0 %v2161
    %v2642 = vpop.f32.mrb[0].mxu0
    %v2643 = vadd.f32 %v2573, %v2642
    %v2644 = vpop.f32.mrb[0].mxu0
    %2645 = vdwg.mxu0
    %2646 = vmatprep.subr.mxu0 0.0
    %2647 = vmatpush1.msra.mxu0 %v2269
    %2648 = vmatprep.subr.mxu0 0.0
    %2649 = vmatpush1.msra.mxu0 %v2270
    %2650 = vmatprep.subr.mxu0 0.0
    %2651 = vmatpush1.msra.mxu0 %v2271
    %2652 = vmatprep.subr.mxu0 0.0
    %2653 = vmatpush1.msra.mxu0 %v2272
    %2654 = vmatprep.subr.mxu0 0.0
    %2655 = vmatpush1.msra.mxu0 %v2273
    %2656 = vmatprep.subr.mxu0 0.0
    %2657 = vmatpush1.msra.mxu0 %v2274
    %2658 = vmatprep.subr.mxu0 0.0
    %2659 = vmatpush1.msra.mxu0 %v2275
    %2660 = vmatprep.subr.mxu0 0.0
    %2661 = vmatpush1.msra.mxu0 %v2276
    %2662 = vmatprep.subr.mxu0 0.0
    %2663 = vmatpush1.msra.mxu0 %v2277
    %2664 = vmatprep.subr.mxu0 0.0
    %2665 = vmatpush1.msra.mxu0 %v2278
    %2666 = vmatprep.subr.mxu0 0.0
    %2667 = vmatpush1.msra.mxu0 %v2279
    %2668 = vmatprep.subr.mxu0 0.0
    %2669 = vmatpush1.msra.mxu0 %v2280
    %2670 = vmatprep.subr.mxu0 0.0
    %2671 = vmatpush1.msra.mxu0 %v2281
    %2672 = vmatprep.subr.mxu0 0.0
    %2673 = vmatpush1.msra.mxu0 %v2282
    %2674 = vmatprep.subr.mxu0 0.0
    %2675 = vmatpush1.msra.mxu0 %v2283
    %2676 = vmatprep.subr.mxu0 0.0
    %2677 = vmatpush1.msra.mxu0 %v2284
    %2678 = vmatprep.subr.mxu0 0.0
    %2679 = vmatpush1.msra.mxu0 %v2285
    %2680 = vmatprep.subr.mxu0 0.0
    %2681 = vmatpush1.msra.mxu0 %v2286
    %2682 = vmatprep.subr.mxu0 0.0
    %2683 = vmatpush1.msra.mxu0 %v2287
    %2684 = vmatprep.subr.mxu0 0.0
    %2685 = vmatpush1.msra.mxu0 %v2288
    %2686 = vmatprep.subr.mxu0 0.0
    %2687 = vmatpush1.msra.mxu0 %v2289
    %2688 = vmatprep.subr.mxu0 0.0
    %2689 = vmatpush1.msra.mxu0 %v2290
    %2690 = vmatprep.subr.mxu0 0.0
    %2691 = vmatpush1.msra.mxu0 %v2291
    %2692 = vmatprep.subr.mxu0 0.0
    %2693 = vmatpush1.msra.mxu0 %v2292
    %2694 = vmatprep.subr.mxu0 0.0
    %2695 = vmatpush1.msra.mxu0 %v2293
    %2696 = vmatprep.subr.mxu0 0.0
    %2697 = vmatpush1.msra.mxu0 %v2294
    %2698 = vmatprep.subr.mxu0 0.0
    %2699 = vmatpush1.msra.mxu0 %v2295
    %2700 = vmatprep.subr.mxu0 0.0
    %2701 = vmatpush1.msra.mxu0 %v2296
    %2702 = vmatprep.subr.mxu0 0.0
    %2703 = vmatpush1.msra.mxu0 %v2297
    %2704 = vmatprep.subr.mxu0 0.0
    %2705 = vmatpush1.msra.mxu0 %v2298
    %2706 = vmatprep.subr.mxu0 0.0
    %2707 = vmatpush1.msra.mxu0 %v2299
    %2708 = vmatprep.subr.mxu0 0.0
    %2709 = vmatpush1.msra.mxu0 %v2300
    %2710 = vmatprep.mubr.f32.mxu0 %v2164
    %2711 = vmatmul.mubr.f32.gmra.mrb[0].mxu0 %v2163
    %v2712 = vpop.f32.mrb[0].mxu0
    %v2713 = vadd.f32 %v2643, %v2712
    %v2714 = vpop.f32.mrb[0].mxu0
    %2715 = vdwg.mxu0
    %2716 = vmatprep.subr.mxu0 0.0
    %2717 = vmatpush1.msra.mxu0 %v2301
    %2718 = vmatprep.subr.mxu0 0.0
    %2719 = vmatpush1.msra.mxu0 %v2302
    %2720 = vmatprep.subr.mxu0 0.0
    %2721 = vmatpush1.msra.mxu0 %v2303
    %2722 = vmatprep.subr.mxu0 0.0
    %2723 = vmatpush1.msra.mxu0 %v2304
    %2724 = vmatprep.subr.mxu0 0.0
    %2725 = vmatpush1.msra.mxu0 %v2305
    %2726 = vmatprep.subr.mxu0 0.0
    %2727 = vmatpush1.msra.mxu0 %v2306
    %2728 = vmatprep.subr.mxu0 0.0
    %2729 = vmatpush1.msra.mxu0 %v2307
    %2730 = vmatprep.subr.mxu0 0.0
    %2731 = vmatpush1.msra.mxu0 %v2308
    %2732 = vmatprep.subr.mxu0 0.0
    %2733 = vmatpush1.msra.mxu0 %v2309
    %2734 = vmatprep.subr.mxu0 0.0
    %2735 = vmatpush1.msra.mxu0 %v2310
    %2736 = vmatprep.subr.mxu0 0.0
    %2737 = vmatpush1.msra.mxu0 %v2311
    %2738 = vmatprep.subr.mxu0 0.0
    %2739 = vmatpush1.msra.mxu0 %v2312
    %2740 = vmatprep.subr.mxu0 0.0
    %2741 = vmatpush1.msra.mxu0 %v2313
    %2742 = vmatprep.subr.mxu0 0.0
    %2743 = vmatpush1.msra.mxu0 %v2314
    %2744 = vmatprep.subr.mxu0 0.0
    %2745 = vmatpush1.msra.mxu0 %v2315
    %2746 = vmatprep.subr.mxu0 0.0
    %2747 = vmatpush1.msra.mxu0 %v2316
    %2748 = vmatprep.subr.mxu0 0.0
    %2749 = vmatpush1.msra.mxu0 %v2317
    %2750 = vmatprep.subr.mxu0 0.0
    %2751 = vmatpush1.msra.mxu0 %v2318
    %2752 = vmatprep.subr.mxu0 0.0
    %2753 = vmatpush1.msra.mxu0 %v2319
    %2754 = vmatprep.subr.mxu0 0.0
    %2755 = vmatpush1.msra.mxu0 %v2320
    %2756 = vmatprep.subr.mxu0 0.0
    %2757 = vmatpush1.msra.mxu0 %v2321
    %2758 = vmatprep.subr.mxu0 0.0
    %2759 = vmatpush1.msra.mxu0 %v2322
    %2760 = vmatprep.subr.mxu0 0.0
    %2761 = vmatpush1.msra.mxu0 %v2323
    %2762 = vmatprep.subr.mxu0 0.0
    %2763 = vmatpush1.msra.mxu0 %v2324
    %2764 = vmatprep.subr.mxu0 0.0
    %2765 = vmatpush1.msra.mxu0 %v2325
    %2766 = vmatprep.subr.mxu0 0.0
    %2767 = vmatpush1.msra.mxu0 %v2326
    %2768 = vmatprep.subr.mxu0 0.0
    %2769 = vmatpush1.msra.mxu0 %v2327
    %2770 = vmatprep.subr.mxu0 0.0
    %2771 = vmatpush1.msra.mxu0 %v2328
    %2772 = vmatprep.subr.mxu0 0.0
    %2773 = vmatpush1.msra.mxu0 %v2329
    %2774 = vmatprep.subr.mxu0 0.0
    %2775 = vmatpush1.msra.mxu0 %v2330
    %2776 = vmatprep.subr.mxu0 0.0
    %2777 = vmatpush1.msra.mxu0 %v2331
    %2778 = vmatprep.subr.mxu0 0.0
    %2779 = vmatpush1.msra.mxu0 %v2332
    %2780 = vmatprep.mubr.f32.mxu0 %v2166
    %2781 = vmatmul.mubr.f32.gmra.mrb[0].mxu0 %v2165
    %v2782 = vpop.f32.mrb[0].mxu0
    %v2783 = vadd.f32 %v2713, %v2782
    %v2784 = vpop.f32.mrb[0].mxu0
    %2785 = vdwg.mxu0
    %2786 = vmatprep.subr.mxu0 0.0
    %2787 = vmatpush1.msra.mxu0 %v2333
    %2788 = vmatprep.subr.mxu0 0.0
    %2789 = vmatpush1.msra.mxu0 %v2334
    %2790 = vmatprep.subr.mxu0 0.0
    %2791 = vmatpush1.msra.mxu0 %v2335
    %2792 = vmatprep.subr.mxu0 0.0
    %2793 = vmatpush1.msra.mxu0 %v2336
    %2794 = vmatprep.subr.mxu0 0.0
    %2795 = vmatpush1.msra.mxu0 %v2337
    %2796 = vmatprep.subr.mxu0 0.0
    %2797 = vmatpush1.msra.mxu0 %v2338
    %2798 = vmatprep.subr.mxu0 0.0
    %2799 = vmatpush1.msra.mxu0 %v2339
    %2800 = vmatprep.subr.mxu0 0.0
    %2801 = vmatpush1.msra.mxu0 %v2340
    %2802 = vmatprep.subr.mxu0 0.0
    %2803 = vmatpush1.msra.mxu0 %v2341
    %2804 = vmatprep.subr.mxu0 0.0
    %2805 = vmatpush1.msra.mxu0 %v2342
    %2806 = vmatprep.subr.mxu0 0.0
    %2807 = vmatpush1.msra.mxu0 %v2343
    %2808 = vmatprep.subr.mxu0 0.0
    %2809 = vmatpush1.msra.mxu0 %v2344
    %2810 = vmatprep.subr.mxu0 0.0
    %2811 = vmatpush1.msra.mxu0 %v2345
    %2812 = vmatprep.subr.mxu0 0.0
    %2813 = vmatpush1.msra.mxu0 %v2346
    %2814 = vmatprep.subr.mxu0 0.0
    %2815 = vmatpush1.msra.mxu0 %v2347
    %2816 = vmatprep.subr.mxu0 0.0
    %2817 = vmatpush1.msra.mxu0 %v2348
    %2818 = vmatprep.subr.mxu0 0.0
    %2819 = vmatpush1.msra.mxu0 %v2349
    %2820 = vmatprep.subr.mxu0 0.0
    %2821 = vmatpush1.msra.mxu0 %v2350
    %2822 = vmatprep.subr.mxu0 0.0
    %2823 = vmatpush1.msra.mxu0 %v2351
    %2824 = vmatprep.subr.mxu0 0.0
    %2825 = vmatpush1.msra.mxu0 %v2352
    %2826 = vmatprep.subr.mxu0 0.0
    %2827 = vmatpush1.msra.mxu0 %v2353
    %2828 = vmatprep.subr.mxu0 0.0
    %2829 = vmatpush1.msra.mxu0 %v2354
    %2830 = vmatprep.subr.mxu0 0.0
    %2831 = vmatpush1.msra.mxu0 %v2355
    %2832 = vmatprep.subr.mxu0 0.0
    %2833 = vmatpush1.msra.mxu0 %v2356
    %2834 = vmatprep.subr.mxu0 0.0
    %2835 = vmatpush1.msra.mxu0 %v2357
    %2836 = vmatprep.subr.mxu0 0.0
    %2837 = vmatpush1.msra.mxu0 %v2358
    %2838 = vmatprep.subr.mxu0 0.0
    %2839 = vmatpush1.msra.mxu0 %v2359
    %2840 = vmatprep.subr.mxu0 0.0
    %2841 = vmatpush1.msra.mxu0 %v2360
    %2842 = vmatprep.subr.mxu0 0.0
    %2843 = vmatpush1.msra.mxu0 %v2361
    %2844 = vmatprep.subr.mxu0 0.0
    %2845 = vmatpush1.msra.mxu0 %v2362
    %2846 = vmatprep.subr.mxu0 0.0
    %2847 = vmatpush1.msra.mxu0 %v2363
    %2848 = vmatprep.subr.mxu0 0.0
    %2849 = vmatpush1.msra.mxu0 %v2364
    %2850 = vmatprep.mubr.f32.mxu0 %v2168
    %2851 = vmatmul.mubr.f32.gmra.mrb[0].mxu0 %v2167
    %v2852 = vpop.f32.mrb[0].mxu0
    %v2853 = vadd.f32 %v2783, %v2852
    %v2854 = vpop.f32.mrb[0].mxu0
    %2855 = vdwg.mxu0
    %2856 = vmatprep.subr.mxu0 0.0
    %2857 = vmatpush1.msra.mxu0 %v2365
    %2858 = vmatprep.subr.mxu0 0.0
    %2859 = vmatpush1.msra.mxu0 %v2366
    %2860 = vmatprep.subr.mxu0 0.0
    %2861 = vmatpush1.msra.mxu0 %v2367
    %2862 = vmatprep.subr.mxu0 0.0
    %2863 = vmatpush1.msra.mxu0 %v2368
    %2864 = vmatprep.subr.mxu0 0.0
    %2865 = vmatpush1.msra.mxu0 %v2369
    %2866 = vmatprep.subr.mxu0 0.0
    %2867 = vmatpush1.msra.mxu0 %v2370
    %2868 = vmatprep.subr.mxu0 0.0
    %2869 = vmatpush1.msra.mxu0 %v2371
    %2870 = vmatprep.subr.mxu0 0.0
    %2871 = vmatpush1.msra.mxu0 %v2372
    %2872 = vmatprep.subr.mxu0 0.0
    %2873 = vmatpush1.msra.mxu0 %v2373
    %2874 = vmatprep.subr.mxu0 0.0
    %2875 = vmatpush1.msra.mxu0 %v2374
    %2876 = vmatprep.subr.mxu0 0.0
    %2877 = vmatpush1.msra.mxu0 %v2375
    %2878 = vmatprep.subr.mxu0 0.0
    %2879 = vmatpush1.msra.mxu0 %v2376
    %2880 = vmatprep.subr.mxu0 0.0
    %2881 = vmatpush1.msra.mxu0 %v2377
    %2882 = vmatprep.subr.mxu0 0.0
    %2883 = vmatpush1.msra.mxu0 %v2378
    %2884 = vmatprep.subr.mxu0 0.0
    %2885 = vmatpush1.msra.mxu0 %v2379
    %2886 = vmatprep.subr.mxu0 0.0
    %2887 = vmatpush1.msra.mxu0 %v2380
    %2888 = vmatprep.subr.mxu0 0.0
    %2889 = vmatpush1.msra.mxu0 %v2381
    %2890 = vmatprep.subr.mxu0 0.0
    %2891 = vmatpush1.msra.mxu0 %v2382
    %2892 = vmatprep.subr.mxu0 0.0
    %2893 = vmatpush1.msra.mxu0 %v2383
    %2894 = vmatprep.subr.mxu0 0.0
    %2895 = vmatpush1.msra.mxu0 %v2384
    %2896 = vmatprep.subr.mxu0 0.0
    %2897 = vmatpush1.msra.mxu0 %v2385
    %2898 = vmatprep.subr.mxu0 0.0
    %2899 = vmatpush1.msra.mxu0 %v2386
    %2900 = vmatprep.subr.mxu0 0.0
    %2901 = vmatpush1.msra.mxu0 %v2387
    %2902 = vmatprep.subr.mxu0 0.0
    %2903 = vmatpush1.msra.mxu0 %v2388
    %2904 = vmatprep.subr.mxu0 0.0
    %2905 = vmatpush1.msra.mxu0 %v2389
    %2906 = vmatprep.subr.mxu0 0.0
    %2907 = vmatpush1.msra.mxu0 %v2390
    %2908 = vmatprep.subr.mxu0 0.0
    %2909 = vmatpush1.msra.mxu0 %v2391
    %2910 = vmatprep.subr.mxu0 0.0
    %2911 = vmatpush1.msra.mxu0 %v2392
    %2912 = vmatprep.subr.mxu0 0.0
    %2913 = vmatpush1.msra.mxu0 %v2393
    %2914 = vmatprep.subr.mxu0 0.0
    %2915 = vmatpush1.msra.mxu0 %v2394
    %2916 = vmatprep.subr.mxu0 0.0
    %2917 = vmatpush1.msra.mxu0 %v2395
    %2918 = vmatprep.subr.mxu0 0.0
    %2919 = vmatpush1.msra.mxu0 %v2396
    %2920 = vmatprep.mubr.f32.mxu0 %v2170
    %2921 = vmatmul.mubr.f32.gmra.mrb[0].mxu0 %v2169
    %v2922 = vpop.f32.mrb[0].mxu0
    %v2923 = vadd.f32 %v2853, %v2922
    %v2924 = vpop.f32.mrb[0].mxu0
    %2925 = vdwg.mxu0
    %2926 = vmatprep.subr.mxu0 0.0
    %2927 = vmatpush1.msra.mxu0 %v2397
    %2928 = vmatprep.subr.mxu0 0.0
    %2929 = vmatpush1.msra.mxu0 %v2398
    %2930 = vmatprep.subr.mxu0 0.0
    %2931 = vmatpush1.msra.mxu0 %v2399
    %2932 = vmatprep.subr.mxu0 0.0
    %2933 = vmatpush1.msra.mxu0 %v2400
    %2934 = vmatprep.subr.mxu0 0.0
    %2935 = vmatpush1.msra.mxu0 %v2401
    %2936 = vmatprep.subr.mxu0 0.0
    %2937 = vmatpush1.msra.mxu0 %v2402
    %2938 = vmatprep.subr.mxu0 0.0
    %2939 = vmatpush1.msra.mxu0 %v2403
    %2940 = vmatprep.subr.mxu0 0.0
    %2941 = vmatpush1.msra.mxu0 %v2404
    %2942 = vmatprep.subr.mxu0 0.0
    %2943 = vmatpush1.msra.mxu0 %v2405
    %2944 = vmatprep.subr.mxu0 0.0
    %2945 = vmatpush1.msra.mxu0 %v2406
    %2946 = vmatprep.subr.mxu0 0.0
    %2947 = vmatpush1.msra.mxu0 %v2407
    %2948 = vmatprep.subr.mxu0 0.0
    %2949 = vmatpush1.msra.mxu0 %v2408
    %2950 = vmatprep.subr.mxu0 0.0
    %2951 = vmatpush1.msra.mxu0 %v2409
    %2952 = vmatprep.subr.mxu0 0.0
    %2953 = vmatpush1.msra.mxu0 %v2410
    %2954 = vmatprep.subr.mxu0 0.0
    %2955 = vmatpush1.msra.mxu0 %v2411
    %2956 = vmatprep.subr.mxu0 0.0
    %2957 = vmatpush1.msra.mxu0 %v2412
    %2958 = vmatprep.subr.mxu0 0.0
    %2959 = vmatpush1.msra.mxu0 %v2413
    %2960 = vmatprep.subr.mxu0 0.0
    %2961 = vmatpush1.msra.mxu0 %v2414
    %2962 = vmatprep.subr.mxu0 0.0
    %2963 = vmatpush1.msra.mxu0 %v2415
    %2964 = vmatprep.subr.mxu0 0.0
    %2965 = vmatpush1.msra.mxu0 %v2416
    %2966 = vmatprep.subr.mxu0 0.0
    %2967 = vmatpush1.msra.mxu0 %v2417
    %2968 = vmatprep.subr.mxu0 0.0
    %2969 = vmatpush1.msra.mxu0 %v2418
    %2970 = vmatprep.subr.mxu0 0.0
    %2971 = vmatpush1.msra.mxu0 %v2419
    %2972 = vmatprep.subr.mxu0 0.0
    %2973 = vmatpush1.msra.mxu0 %v2420
    %2974 = vmatprep.subr.mxu0 0.0
    %2975 = vmatpush1.msra.mxu0 %v2421
    %2976 = vmatprep.subr.mxu0 0.0
    %2977 = vmatpush1.msra.mxu0 %v2422
    %2978 = vmatprep.subr.mxu0 0.0
    %2979 = vmatpush1.msra.mxu0 %v2423
    %2980 = vmatprep.subr.mxu0 0.0
    %2981 = vmatpush1.msra.mxu0 %v2424
    %2982 = vmatprep.subr.mxu0 0.0
    %2983 = vmatpush1.msra.mxu0 %v2425
    %2984 = vmatprep.subr.mxu0 0.0
    %2985 = vmatpush1.msra.mxu0 %v2426
    %2986 = vmatprep.subr.mxu0 0.0
    %2987 = vmatpush1.msra.mxu0 %v2427
    %2988 = vmatprep.subr.mxu0 0.0
    %2989 = vmatpush1.msra.mxu0 %v2428
    %2990 = vmatprep.mubr.f32.mxu0 %v2172
    %2991 = vmatmul.mubr.f32.gmra.mrb[0].mxu0 %v2171
    %v2992 = vpop.f32.mrb[0].mxu0
    %v2993 = vadd.f32 %v2923, %v2992
    %v2994 = vpop.f32.mrb[0].mxu0
    %2995 = vdwg.mxu0
    %v2996 = vadd.f32 %v1469, %v2993
    %v2997 = vld [vmem:[%s33] sm:$0x1]
    %v2998 = vld [vmem:[%s35] sm:$0x1]
    %v2999 = vsel %vm1441, %v2996, 0.0
    %3000 = vadd.xlane.f32.xlu0 %v2999
    %v3001 = vpop.xlane.xlu0 %3000
    %v3002 = vmul.f32 %v3001, %v1445
    %v3003 = vsub.f32 %v2996, %v3002
    %v3004 = vmul.f32 %v3003, %v3003
    %v3005 = vsel %vm1441, %v3004, 0.0
    %3006 = vadd.xlane.f32.xlu0 %v3005
    %v3007 = vpop.xlane.xlu0 %3006
    %v3008 = vmul.f32 %v3007, %v1445
    %v3009 = vadd.f32 %v3008, 1e-05
    %v3010 = vrsqrt.pop %v3009
    %v3011 = vmul.f32 %v3003, %v3010
    %v3013 = vlaneseq
    %v3014 = vshrl.u32 %v3013, 7
    %v3015 = vsub.s32 0, %v3014
    %v3016 = vrot.slane %v2997, %v3015
    %v3018 = vmul.f32 %v3011, %v3016
    %v3020 = vlaneseq
    %v3021 = vshrl.u32 %v3020, 7
    %v3022 = vsub.s32 0, %v3021
    %v3023 = vrot.slane %v2998, %v3022
    %v3025 = vadd.f32 %v3018, %v3023
    %v3026 = vld [vmem:[%s37] sm:$0xff]
    %v3027 = vld [vmem:[%s37 + $0x8] sm:$0xff]
    %v3028 = vld [vmem:[%s39] sm:$0x1]
    %v3030 = vlaneseq
    %v3031 = vshrl.u32 %v3030, 7
    %v3032 = vsub.s32 0, %v3031
    %v3033 = vrot.slane %v3028, %v3032
    %v3036 = vsel %vm869, %v3025, 0
    %3038 = vmatprep.subr.mxu0 0.0
    %3039 = vmatpush1.msra.mxu0 %v3026
    %3040 = vmatprep.subr.mxu0 0.0
    %3041 = vmatpush1.msra.mxu0 %v3027
    %3042 = vmatprep.subr.mxu0 0.0
    %3043 = vmatpush1.msra.mxu0 0.0
    %3044 = vmatprep.subr.mxu0 0.0
    %3045 = vmatpush1.msra.mxu0 0.0
    %3046 = vmatprep.subr.mxu0 0.0
    %3047 = vmatpush1.msra.mxu0 0.0
    %3048 = vmatprep.subr.mxu0 0.0
    %3049 = vmatpush1.msra.mxu0 0.0
    %3050 = vmatprep.subr.mxu0 0.0
    %3051 = vmatpush1.msra.mxu0 0.0
    %3052 = vmatprep.subr.mxu0 0.0
    %3053 = vmatpush1.msra.mxu0 0.0
    %3054 = vmatprep.subr.mxu0 0.0
    %3055 = vmatpush1.msra.mxu0 0.0
    %3056 = vmatprep.subr.mxu0 0.0
    %3057 = vmatpush1.msra.mxu0 0.0
    %3058 = vmatprep.subr.mxu0 0.0
    %3059 = vmatpush1.msra.mxu0 0.0
    %3060 = vmatprep.subr.mxu0 0.0
    %3061 = vmatpush1.msra.mxu0 0.0
    %3062 = vmatprep.subr.mxu0 0.0
    %3063 = vmatpush1.msra.mxu0 0.0
    %3064 = vmatprep.subr.mxu0 0.0
    %3065 = vmatpush1.msra.mxu0 0.0
    %3066 = vmatprep.subr.mxu0 0.0
    %3067 = vmatpush1.msra.mxu0 0.0
    %3068 = vmatprep.subr.mxu0 0.0
    %3069 = vmatpush1.msra.mxu0 0.0
    %3070 = vmatprep.subr.mxu0 0.0
    %3071 = vmatpush1.msra.mxu0 0.0
    %3072 = vmatprep.subr.mxu0 0.0
    %3073 = vmatpush1.msra.mxu0 0.0
    %3074 = vmatprep.subr.mxu0 0.0
    %3075 = vmatpush1.msra.mxu0 0.0
    %3076 = vmatprep.subr.mxu0 0.0
    %3077 = vmatpush1.msra.mxu0 0.0
    %3078 = vmatprep.subr.mxu0 0.0
    %3079 = vmatpush1.msra.mxu0 0.0
    %3080 = vmatprep.subr.mxu0 0.0
    %3081 = vmatpush1.msra.mxu0 0.0
    %3082 = vmatprep.subr.mxu0 0.0
    %3083 = vmatpush1.msra.mxu0 0.0
    %3084 = vmatprep.subr.mxu0 0.0
    %3085 = vmatpush1.msra.mxu0 0.0
    %3086 = vmatprep.subr.mxu0 0.0
    %3087 = vmatpush1.msra.mxu0 0.0
    %3088 = vmatprep.subr.mxu0 0.0
    %3089 = vmatpush1.msra.mxu0 0.0
    %3090 = vmatprep.subr.mxu0 0.0
    %3091 = vmatpush1.msra.mxu0 0.0
    %3092 = vmatprep.subr.mxu0 0.0
    %3093 = vmatpush1.msra.mxu0 0.0
    %3094 = vmatprep.subr.mxu0 0.0
    %3095 = vmatpush1.msra.mxu0 0.0
    %3096 = vmatprep.subr.mxu0 0.0
    %3097 = vmatpush1.msra.mxu0 0.0
    %3098 = vmatprep.subr.mxu0 0.0
    %3099 = vmatpush1.msra.mxu0 0.0
    %3100 = vmatprep.subr.mxu0 0.0
    %3101 = vmatpush1.msra.mxu0 0.0
    %3102 = vmatprep.mubr.f32.mxu0 0.0
    %3103 = vmatmul.mubr.f32.gmra.mrb[0].mxu0 %v3036
    %v3104 = vpop.f32.mrb[0].mxu0
    %v3105 = vadd.f32 %v3033, %v3104
    %v3106 = vpop.f32.mrb[0].mxu0
    %3107 = vdwg.mxu0
    %v3108 = vld [vmem:[%s41] sm:$0xff]
    %v3109 = vld [vmem:[%s41 + $0x8] sm:$0xff]
    %3111 = vrot.lane.b32.xlu0 %v3105, 112
    %v3112 = vpop.permute.xlu0 %3111
    %v3113 = vsel %vm948, %v3105, 0
    %v3115 = vsel %vm948, %v3112, 0
    %3117 = vmatprep.subr.mxu0 0.0
    %3118 = vmatpush1.xpose.msra.mxu0 %v3115
    %3119 = vmatprep.subr.mxu0 0.0
    %3120 = vmatpush1.xpose.msra.mxu0 0.0
    %3121 = vmatprep.subr.mxu0 0.0
    %3122 = vmatpush1.xpose.msra.mxu0 0.0
    %3123 = vmatprep.subr.mxu0 0.0
    %3124 = vmatpush1.xpose.msra.mxu0 0.0
    %3125 = vmatprep.subr.mxu0 0.0
    %3126 = vmatpush1.xpose.msra.mxu0 0.0
    %3127 = vmatprep.subr.mxu0 0.0
    %3128 = vmatpush1.xpose.msra.mxu0 0.0
    %3129 = vmatprep.subr.mxu0 0.0
    %3130 = vmatpush1.xpose.msra.mxu0 0.0
    %3131 = vmatprep.subr.mxu0 0.0
    %3132 = vmatpush1.xpose.msra.mxu0 0.0
    %3133 = vmatprep.subr.mxu0 0.0
    %3134 = vmatpush1.xpose.msra.mxu0 0.0
    %3135 = vmatprep.subr.mxu0 0.0
    %3136 = vmatpush1.xpose.msra.mxu0 0.0
    %3137 = vmatprep.subr.mxu0 0.0
    %3138 = vmatpush1.xpose.msra.mxu0 0.0
    %3139 = vmatprep.subr.mxu0 0.0
    %3140 = vmatpush1.xpose.msra.mxu0 0.0
    %3141 = vmatprep.subr.mxu0 0.0
    %3142 = vmatpush1.xpose.msra.mxu0 0.0
    %3143 = vmatprep.subr.mxu0 0.0
    %3144 = vmatpush1.xpose.msra.mxu0 0.0
    %3145 = vmatprep.subr.mxu0 0.0
    %3146 = vmatpush1.xpose.msra.mxu0 0.0
    %3147 = vmatprep.subr.mxu0 0.0
    %3148 = vmatpush1.xpose.msra.mxu0 0.0
    %3149 = vmatprep.subr.mxu0 0.0
    %3150 = vmatpush1.xpose.msra.mxu0 0.0
    %3151 = vmatprep.subr.mxu0 0.0
    %3152 = vmatpush1.xpose.msra.mxu0 0.0
    %3153 = vmatprep.subr.mxu0 0.0
    %3154 = vmatpush1.xpose.msra.mxu0 0.0
    %3155 = vmatprep.subr.mxu0 0.0
    %3156 = vmatpush1.xpose.msra.mxu0 0.0
    %3157 = vmatprep.subr.mxu0 0.0
    %3158 = vmatpush1.xpose.msra.mxu0 0.0
    %3159 = vmatprep.subr.mxu0 0.0
    %3160 = vmatpush1.xpose.msra.mxu0 0.0
    %3161 = vmatprep.subr.mxu0 0.0
    %3162 = vmatpush1.xpose.msra.mxu0 0.0
    %3163 = vmatprep.subr.mxu0 0.0
    %3164 = vmatpush1.xpose.msra.mxu0 0.0
    %3165 = vmatprep.subr.mxu0 0.0
    %3166 = vmatpush1.xpose.msra.mxu0 0.0
    %3167 = vmatprep.subr.mxu0 0.0
    %3168 = vmatpush1.xpose.msra.mxu0 0.0
    %3169 = vmatprep.subr.mxu0 0.0
    %3170 = vmatpush1.xpose.msra.mxu0 0.0
    %3171 = vmatprep.subr.mxu0 0.0
    %3172 = vmatpush1.xpose.msra.mxu0 0.0
    %3173 = vmatprep.subr.mxu0 0.0
    %3174 = vmatpush1.xpose.msra.mxu0 0.0
    %3175 = vmatprep.subr.mxu0 0.0
    %3176 = vmatpush1.xpose.msra.mxu0 0.0
    %3177 = vmatprep.subr.mxu0 0.0
    %3178 = vmatpush1.xpose.msra.mxu0 0.0
    %3179 = vmatprep.subr.mxu0 0.0
    %3180 = vmatpush1.xpose.msra.mxu0 0.0
    %3181 = vmatprep.mubr.f32.mxu0 0.0
    %3182 = vmatmul.mubr.f32.gmra.mrb[0].mxu0 %v3113
    %v3183 = vpop.f32.mrb[0].mxu0
    %v3184 = vadd.f32 0.0, %v3183
    %v3185 = vpop.f32.mrb[0].mxu0
    %3186 = vdwg.mxu0
    %v3187 = vmul.f32 %v3184, 0.35355338
    %v3188 = vadd.f32 %v3187, %v859
    %v3189 = vsel %vm1025, %v3188, -inf
    %3190 = vmax.xlane.f32.xlu0 %v3189
    %v3191 = vpop.xlane.xlu0 %3190
    %v3192 = vsub.f32 %v3188, %v3191
    %v3193 = vmul.f32 %v3192, 1.442695
    %v3194 = vpow.pop %v3193
    %v3195 = vsel %vm1025, %v3194, 0.0
    %3196 = vadd.xlane.f32.xlu0 %v3195
    %v3197 = vpop.xlane.xlu0 %3196
    %v3198 = vrcp.pop %v3197
    %v3199 = vmul.f32 %v3194, %v3198
    %3200 = vrot.lane.b32.xlu0 %v3105, 96
    %v3201 = vpop.permute.xlu0 %3200
    %v3203 = vsel %vm1039, %v3199, 0
    %v3205 = vsel %vm1043, %v3201, 0
    %3207 = vmatprep.subr.mxu0 0.0
    %3208 = vmatpush1.msra.mxu0 %v3205
    %3209 = vmatprep.subr.mxu0 0.0
    %3210 = vmatpush1.msra.mxu0 0.0
    %3211 = vmatprep.subr.mxu0 0.0
    %3212 = vmatpush1.msra.mxu0 0.0
    %3213 = vmatprep.subr.mxu0 0.0
    %3214 = vmatpush1.msra.mxu0 0.0
    %3215 = vmatprep.subr.mxu0 0.0
    %3216 = vmatpush1.msra.mxu0 0.0
    %3217 = vmatprep.subr.mxu0 0.0
    %3218 = vmatpush1.msra.mxu0 0.0
    %3219 = vmatprep.subr.mxu0 0.0
    %3220 = vmatpush1.msra.mxu0 0.0
    %3221 = vmatprep.subr.mxu0 0.0
    %3222 = vmatpush1.msra.mxu0 0.0
    %3223 = vmatprep.subr.mxu0 0.0
    %3224 = vmatpush1.msra.mxu0 0.0
    %3225 = vmatprep.subr.mxu0 0.0
    %3226 = vmatpush1.msra.mxu0 0.0
    %3227 = vmatprep.subr.mxu0 0.0
    %3228 = vmatpush1.msra.mxu0 0.0
    %3229 = vmatprep.subr.mxu0 0.0
    %3230 = vmatpush1.msra.mxu0 0.0
    %3231 = vmatprep.subr.mxu0 0.0
    %3232 = vmatpush1.msra.mxu0 0.0
    %3233 = vmatprep.subr.mxu0 0.0
    %3234 = vmatpush1.msra.mxu0 0.0
    %3235 = vmatprep.subr.mxu0 0.0
    %3236 = vmatpush1.msra.mxu0 0.0
    %3237 = vmatprep.subr.mxu0 0.0
    %3238 = vmatpush1.msra.mxu0 0.0
    %3239 = vmatprep.subr.mxu0 0.0
    %3240 = vmatpush1.msra.mxu0 0.0
    %3241 = vmatprep.subr.mxu0 0.0
    %3242 = vmatpush1.msra.mxu0 0.0
    %3243 = vmatprep.subr.mxu0 0.0
    %3244 = vmatpush1.msra.mxu0 0.0
    %3245 = vmatprep.subr.mxu0 0.0
    %3246 = vmatpush1.msra.mxu0 0.0
    %3247 = vmatprep.subr.mxu0 0.0
    %3248 = vmatpush1.msra.mxu0 0.0
    %3249 = vmatprep.subr.mxu0 0.0
    %3250 = vmatpush1.msra.mxu0 0.0
    %3251 = vmatprep.subr.mxu0 0.0
    %3252 = vmatpush1.msra.mxu0 0.0
    %3253 = vmatprep.subr.mxu0 0.0
    %3254 = vmatpush1.msra.mxu0 0.0
    %3255 = vmatprep.subr.mxu0 0.0
    %3256 = vmatpush1.msra.mxu0 0.0
    %3257 = vmatprep.subr.mxu0 0.0
    %3258 = vmatpush1.msra.mxu0 0.0
    %3259 = vmatprep.subr.mxu0 0.0
    %3260 = vmatpush1.msra.mxu0 0.0
    %3261 = vmatprep.subr.mxu0 0.0
    %3262 = vmatpush1.msra.mxu0 0.0
    %3263 = vmatprep.subr.mxu0 0.0
    %3264 = vmatpush1.msra.mxu0 0.0
    %3265 = vmatprep.subr.mxu0 0.0
    %3266 = vmatpush1.msra.mxu0 0.0
    %3267 = vmatprep.subr.mxu0 0.0
    %3268 = vmatpush1.msra.mxu0 0.0
    %3269 = vmatprep.subr.mxu0 0.0
    %3270 = vmatpush1.msra.mxu0 0.0
    %3271 = vmatprep.mubr.f32.mxu0 0.0
    %3272 = vmatmul.mubr.f32.gmra.mrb[0].mxu0 %v3203
    %v3273 = vpop.f32.mrb[0].mxu0
    %v3274 = vadd.f32 0.0, %v3273
    %v3275 = vpop.f32.mrb[0].mxu0
    %3276 = vdwg.mxu0
    %3277 = vrot.lane.b32.xlu0 %v3105, 120
    %v3278 = vpop.permute.xlu0 %3277
    %3279 = vrot.lane.b32.xlu0 %v3105, 104
    %v3280 = vpop.permute.xlu0 %3279
    %v3281 = vsel %vm948, %v3278, 0
    %v3283 = vsel %vm948, %v3280, 0
    %3285 = vmatprep.subr.mxu0 0.0
    %3286 = vmatpush1.xpose.msra.mxu0 %v3283
    %3287 = vmatprep.subr.mxu0 0.0
    %3288 = vmatpush1.xpose.msra.mxu0 0.0
    %3289 = vmatprep.subr.mxu0 0.0
    %3290 = vmatpush1.xpose.msra.mxu0 0.0
    %3291 = vmatprep.subr.mxu0 0.0
    %3292 = vmatpush1.xpose.msra.mxu0 0.0
    %3293 = vmatprep.subr.mxu0 0.0
    %3294 = vmatpush1.xpose.msra.mxu0 0.0
    %3295 = vmatprep.subr.mxu0 0.0
    %3296 = vmatpush1.xpose.msra.mxu0 0.0
    %3297 = vmatprep.subr.mxu0 0.0
    %3298 = vmatpush1.xpose.msra.mxu0 0.0
    %3299 = vmatprep.subr.mxu0 0.0
    %3300 = vmatpush1.xpose.msra.mxu0 0.0
    %3301 = vmatprep.subr.mxu0 0.0
    %3302 = vmatpush1.xpose.msra.mxu0 0.0
    %3303 = vmatprep.subr.mxu0 0.0
    %3304 = vmatpush1.xpose.msra.mxu0 0.0
    %3305 = vmatprep.subr.mxu0 0.0
    %3306 = vmatpush1.xpose.msra.mxu0 0.0
    %3307 = vmatprep.subr.mxu0 0.0
    %3308 = vmatpush1.xpose.msra.mxu0 0.0
    %3309 = vmatprep.subr.mxu0 0.0
    %3310 = vmatpush1.xpose.msra.mxu0 0.0
    %3311 = vmatprep.subr.mxu0 0.0
    %3312 = vmatpush1.xpose.msra.mxu0 0.0
    %3313 = vmatprep.subr.mxu0 0.0
    %3314 = vmatpush1.xpose.msra.mxu0 0.0
    %3315 = vmatprep.subr.mxu0 0.0
    %3316 = vmatpush1.xpose.msra.mxu0 0.0
    %3317 = vmatprep.subr.mxu0 0.0
    %3318 = vmatpush1.xpose.msra.mxu0 0.0
    %3319 = vmatprep.subr.mxu0 0.0
    %3320 = vmatpush1.xpose.msra.mxu0 0.0
    %3321 = vmatprep.subr.mxu0 0.0
    %3322 = vmatpush1.xpose.msra.mxu0 0.0
    %3323 = vmatprep.subr.mxu0 0.0
    %3324 = vmatpush1.xpose.msra.mxu0 0.0
    %3325 = vmatprep.subr.mxu0 0.0
    %3326 = vmatpush1.xpose.msra.mxu0 0.0
    %3327 = vmatprep.subr.mxu0 0.0
    %3328 = vmatpush1.xpose.msra.mxu0 0.0
    %3329 = vmatprep.subr.mxu0 0.0
    %3330 = vmatpush1.xpose.msra.mxu0 0.0
    %3331 = vmatprep.subr.mxu0 0.0
    %3332 = vmatpush1.xpose.msra.mxu0 0.0
    %3333 = vmatprep.subr.mxu0 0.0
    %3334 = vmatpush1.xpose.msra.mxu0 0.0
    %3335 = vmatprep.subr.mxu0 0.0
    %3336 = vmatpush1.xpose.msra.mxu0 0.0
    %3337 = vmatprep.subr.mxu0 0.0
    %3338 = vmatpush1.xpose.msra.mxu0 0.0
    %3339 = vmatprep.subr.mxu0 0.0
    %3340 = vmatpush1.xpose.msra.mxu0 0.0
    %3341 = vmatprep.subr.mxu0 0.0
    %3342 = vmatpush1.xpose.msra.mxu0 0.0
    %3343 = vmatprep.subr.mxu0 0.0
    %3344 = vmatpush1.xpose.msra.mxu0 0.0
    %3345 = vmatprep.subr.mxu0 0.0
    %3346 = vmatpush1.xpose.msra.mxu0 0.0
    %3347 = vmatprep.subr.mxu0 0.0
    %3348 = vmatpush1.xpose.msra.mxu0 0.0
    %3349 = vmatprep.mubr.f32.mxu0 0.0
    %3350 = vmatmul.mubr.f32.gmra.mrb[0].mxu0 %v3281
    %v3351 = vpop.f32.mrb[0].mxu0
    %v3352 = vadd.f32 0.0, %v3351
    %v3353 = vpop.f32.mrb[0].mxu0
    %3354 = vdwg.mxu0
    %v3355 = vmul.f32 %v3352, 0.35355338
    %v3356 = vadd.f32 %v3355, %v859
    %v3357 = vsel %vm1025, %v3356, -inf
    %3358 = vmax.xlane.f32.xlu0 %v3357
    %v3359 = vpop.xlane.xlu0 %3358
    %v3360 = vsub.f32 %v3356, %v3359
    %v3361 = vmul.f32 %v3360, 1.442695
    %v3362 = vpow.pop %v3361
    %v3363 = vsel %vm1025, %v3362, 0.0
    %3364 = vadd.xlane.f32.xlu0 %v3363
    %v3365 = vpop.xlane.xlu0 %3364
    %v3366 = vrcp.pop %v3365
    %v3367 = vmul.f32 %v3362, %v3366
    %3368 = vrot.lane.b32.xlu0 %v3105, 88
    %v3369 = vpop.permute.xlu0 %3368
    %v3371 = vsel %vm1039, %v3367, 0
    %v3373 = vsel %vm1043, %v3369, 0
    %3375 = vmatprep.subr.mxu0 0.0
    %3376 = vmatpush1.msra.mxu0 %v3373
    %3377 = vmatprep.subr.mxu0 0.0
    %3378 = vmatpush1.msra.mxu0 0.0
    %3379 = vmatprep.subr.mxu0 0.0
    %3380 = vmatpush1.msra.mxu0 0.0
    %3381 = vmatprep.subr.mxu0 0.0
    %3382 = vmatpush1.msra.mxu0 0.0
    %3383 = vmatprep.subr.mxu0 0.0
    %3384 = vmatpush1.msra.mxu0 0.0
    %3385 = vmatprep.subr.mxu0 0.0
    %3386 = vmatpush1.msra.mxu0 0.0
    %3387 = vmatprep.subr.mxu0 0.0
    %3388 = vmatpush1.msra.mxu0 0.0
    %3389 = vmatprep.subr.mxu0 0.0
    %3390 = vmatpush1.msra.mxu0 0.0
    %3391 = vmatprep.subr.mxu0 0.0
    %3392 = vmatpush1.msra.mxu0 0.0
    %3393 = vmatprep.subr.mxu0 0.0
    %3394 = vmatpush1.msra.mxu0 0.0
    %3395 = vmatprep.subr.mxu0 0.0
    %3396 = vmatpush1.msra.mxu0 0.0
    %3397 = vmatprep.subr.mxu0 0.0
    %3398 = vmatpush1.msra.mxu0 0.0
    %3399 = vmatprep.subr.mxu0 0.0
    %3400 = vmatpush1.msra.mxu0 0.0
    %3401 = vmatprep.subr.mxu0 0.0
    %3402 = vmatpush1.msra.mxu0 0.0
    %3403 = vmatprep.subr.mxu0 0.0
    %3404 = vmatpush1.msra.mxu0 0.0
    %3405 = vmatprep.subr.mxu0 0.0
    %3406 = vmatpush1.msra.mxu0 0.0
    %3407 = vmatprep.subr.mxu0 0.0
    %3408 = vmatpush1.msra.mxu0 0.0
    %3409 = vmatprep.subr.mxu0 0.0
    %3410 = vmatpush1.msra.mxu0 0.0
    %3411 = vmatprep.subr.mxu0 0.0
    %3412 = vmatpush1.msra.mxu0 0.0
    %3413 = vmatprep.subr.mxu0 0.0
    %3414 = vmatpush1.msra.mxu0 0.0
    %3415 = vmatprep.subr.mxu0 0.0
    %3416 = vmatpush1.msra.mxu0 0.0
    %3417 = vmatprep.subr.mxu0 0.0
    %3418 = vmatpush1.msra.mxu0 0.0
    %3419 = vmatprep.subr.mxu0 0.0
    %3420 = vmatpush1.msra.mxu0 0.0
    %3421 = vmatprep.subr.mxu0 0.0
    %3422 = vmatpush1.msra.mxu0 0.0
    %3423 = vmatprep.subr.mxu0 0.0
    %3424 = vmatpush1.msra.mxu0 0.0
    %3425 = vmatprep.subr.mxu0 0.0
    %3426 = vmatpush1.msra.mxu0 0.0
    %3427 = vmatprep.subr.mxu0 0.0
    %3428 = vmatpush1.msra.mxu0 0.0
    %3429 = vmatprep.subr.mxu0 0.0
    %3430 = vmatpush1.msra.mxu0 0.0
    %3431 = vmatprep.subr.mxu0 0.0
    %3432 = vmatpush1.msra.mxu0 0.0
    %3433 = vmatprep.subr.mxu0 0.0
    %3434 = vmatpush1.msra.mxu0 0.0
    %3435 = vmatprep.subr.mxu0 0.0
    %3436 = vmatpush1.msra.mxu0 0.0
    %3437 = vmatprep.subr.mxu0 0.0
    %3438 = vmatpush1.msra.mxu0 0.0
    %3439 = vmatprep.mubr.f32.mxu0 0.0
    %3440 = vmatmul.mubr.f32.gmra.mrb[0].mxu0 %v3371
    %v3441 = vpop.f32.mrb[0].mxu0
    %v3442 = vadd.f32 0.0, %v3441
    %v3443 = vpop.f32.mrb[0].mxu0
    %3444 = vdwg.mxu0
    %v3446 = vsel %vm948, %v3442, 0
    %3448 = vmatprep.subr.mxu0 0.0
    %3449 = vmatpush1.msra.mxu0 %v3109
    %3450 = vmatprep.subr.mxu0 0.0
    %3451 = vmatpush1.msra.mxu0 0.0
    %3452 = vmatprep.subr.mxu0 0.0
    %3453 = vmatpush1.msra.mxu0 0.0
    %3454 = vmatprep.subr.mxu0 0.0
    %3455 = vmatpush1.msra.mxu0 0.0
    %3456 = vmatprep.subr.mxu0 0.0
    %3457 = vmatpush1.msra.mxu0 0.0
    %3458 = vmatprep.subr.mxu0 0.0
    %3459 = vmatpush1.msra.mxu0 0.0
    %3460 = vmatprep.subr.mxu0 0.0
    %3461 = vmatpush1.msra.mxu0 0.0
    %3462 = vmatprep.subr.mxu0 0.0
    %3463 = vmatpush1.msra.mxu0 0.0
    %3464 = vmatprep.subr.mxu0 0.0
    %3465 = vmatpush1.msra.mxu0 0.0
    %3466 = vmatprep.subr.mxu0 0.0
    %3467 = vmatpush1.msra.mxu0 0.0
    %3468 = vmatprep.subr.mxu0 0.0
    %3469 = vmatpush1.msra.mxu0 0.0
    %3470 = vmatprep.subr.mxu0 0.0
    %3471 = vmatpush1.msra.mxu0 0.0
    %3472 = vmatprep.subr.mxu0 0.0
    %3473 = vmatpush1.msra.mxu0 0.0
    %3474 = vmatprep.subr.mxu0 0.0
    %3475 = vmatpush1.msra.mxu0 0.0
    %3476 = vmatprep.subr.mxu0 0.0
    %3477 = vmatpush1.msra.mxu0 0.0
    %3478 = vmatprep.subr.mxu0 0.0
    %3479 = vmatpush1.msra.mxu0 0.0
    %3480 = vmatprep.subr.mxu0 0.0
    %3481 = vmatpush1.msra.mxu0 0.0
    %3482 = vmatprep.subr.mxu0 0.0
    %3483 = vmatpush1.msra.mxu0 0.0
    %3484 = vmatprep.subr.mxu0 0.0
    %3485 = vmatpush1.msra.mxu0 0.0
    %3486 = vmatprep.subr.mxu0 0.0
    %3487 = vmatpush1.msra.mxu0 0.0
    %3488 = vmatprep.subr.mxu0 0.0
    %3489 = vmatpush1.msra.mxu0 0.0
    %3490 = vmatprep.subr.mxu0 0.0
    %3491 = vmatpush1.msra.mxu0 0.0
    %3492 = vmatprep.subr.mxu0 0.0
    %3493 = vmatpush1.msra.mxu0 0.0
    %3494 = vmatprep.subr.mxu0 0.0
    %3495 = vmatpush1.msra.mxu0 0.0
    %3496 = vmatprep.subr.mxu0 0.0
    %3497 = vmatpush1.msra.mxu0 0.0
    %3498 = vmatprep.subr.mxu0 0.0
    %3499 = vmatpush1.msra.mxu0 0.0
    %3500 = vmatprep.subr.mxu0 0.0
    %3501 = vmatpush1.msra.mxu0 0.0
    %3502 = vmatprep.subr.mxu0 0.0
    %3503 = vmatpush1.msra.mxu0 0.0
    %3504 = vmatprep.subr.mxu0 0.0
    %3505 = vmatpush1.msra.mxu0 0.0
    %3506 = vmatprep.subr.mxu0 0.0
    %3507 = vmatpush1.msra.mxu0 0.0
    %3508 = vmatprep.subr.mxu0 0.0
    %3509 = vmatpush1.msra.mxu0 0.0
    %3510 = vmatprep.subr.mxu0 0.0
    %3511 = vmatpush1.msra.mxu0 0.0
    %3512 = vmatprep.mubr.f32.mxu0 0.0
    %3513 = vmatmul.mubr.f32.gmra.mrb[0].mxu0 %v3446
    %v3514 = vpop.f32.mrb[0].mxu0
    %v3515 = vadd.f32 0.0, %v3514
    %v3516 = vpop.f32.mrb[0].mxu0
    %3517 = vdwg.mxu0
    %v3519 = vsel %vm948, %v3274, 0
    %3521 = vmatprep.subr.mxu0 0.0
    %3522 = vmatpush1.msra.mxu0 %v3108
    %3523 = vmatprep.subr.mxu0 0.0
    %3524 = vmatpush1.msra.mxu0 0.0
    %3525 = vmatprep.subr.mxu0 0.0
    %3526 = vmatpush1.msra.mxu0 0.0
    %3527 = vmatprep.subr.mxu0 0.0
    %3528 = vmatpush1.msra.mxu0 0.0
    %3529 = vmatprep.subr.mxu0 0.0
    %3530 = vmatpush1.msra.mxu0 0.0
    %3531 = vmatprep.subr.mxu0 0.0
    %3532 = vmatpush1.msra.mxu0 0.0
    %3533 = vmatprep.subr.mxu0 0.0
    %3534 = vmatpush1.msra.mxu0 0.0
    %3535 = vmatprep.subr.mxu0 0.0
    %3536 = vmatpush1.msra.mxu0 0.0
    %3537 = vmatprep.subr.mxu0 0.0
    %3538 = vmatpush1.msra.mxu0 0.0
    %3539 = vmatprep.subr.mxu0 0.0
    %3540 = vmatpush1.msra.mxu0 0.0
    %3541 = vmatprep.subr.mxu0 0.0
    %3542 = vmatpush1.msra.mxu0 0.0
    %3543 = vmatprep.subr.mxu0 0.0
    %3544 = vmatpush1.msra.mxu0 0.0
    %3545 = vmatprep.subr.mxu0 0.0
    %3546 = vmatpush1.msra.mxu0 0.0
    %3547 = vmatprep.subr.mxu0 0.0
    %3548 = vmatpush1.msra.mxu0 0.0
    %3549 = vmatprep.subr.mxu0 0.0
    %3550 = vmatpush1.msra.mxu0 0.0
    %3551 = vmatprep.subr.mxu0 0.0
    %3552 = vmatpush1.msra.mxu0 0.0
    %3553 = vmatprep.subr.mxu0 0.0
    %3554 = vmatpush1.msra.mxu0 0.0
    %3555 = vmatprep.subr.mxu0 0.0
    %3556 = vmatpush1.msra.mxu0 0.0
    %3557 = vmatprep.subr.mxu0 0.0
    %3558 = vmatpush1.msra.mxu0 0.0
    %3559 = vmatprep.subr.mxu0 0.0
    %3560 = vmatpush1.msra.mxu0 0.0
    %3561 = vmatprep.subr.mxu0 0.0
    %3562 = vmatpush1.msra.mxu0 0.0
    %3563 = vmatprep.subr.mxu0 0.0
    %3564 = vmatpush1.msra.mxu0 0.0
    %3565 = vmatprep.subr.mxu0 0.0
    %3566 = vmatpush1.msra.mxu0 0.0
    %3567 = vmatprep.subr.mxu0 0.0
    %3568 = vmatpush1.msra.mxu0 0.0
    %3569 = vmatprep.subr.mxu0 0.0
    %3570 = vmatpush1.msra.mxu0 0.0
    %3571 = vmatprep.subr.mxu0 0.0
    %3572 = vmatpush1.msra.mxu0 0.0
    %3573 = vmatprep.subr.mxu0 0.0
    %3574 = vmatpush1.msra.mxu0 0.0
    %3575 = vmatprep.subr.mxu0 0.0
    %3576 = vmatpush1.msra.mxu0 0.0
    %3577 = vmatprep.subr.mxu0 0.0
    %3578 = vmatpush1.msra.mxu0 0.0
    %3579 = vmatprep.subr.mxu0 0.0
    %3580 = vmatpush1.msra.mxu0 0.0
    %3581 = vmatprep.subr.mxu0 0.0
    %3582 = vmatpush1.msra.mxu0 0.0
    %3583 = vmatprep.subr.mxu0 0.0
    %3584 = vmatpush1.msra.mxu0 0.0
    %3585 = vmatprep.mubr.f32.mxu0 0.0
    %3586 = vmatmul.mubr.f32.gmra.mrb[0].mxu0 %v3519
    %v3587 = vpop.f32.mrb[0].mxu0
    %v3588 = vadd.f32 %v3515, %v3587
    %v3589 = vpop.f32.mrb[0].mxu0
    %3590 = vdwg.mxu0
    %v3591 = vld [vmem:[%s43] sm:$0x1]
    %v3593 = vlaneseq
    %v3594 = vshrl.u32 %v3593, 7
    %v3595 = vsub.s32 0, %v3594
    %v3596 = vrot.slane %v3591, %v3595
    %v3598 = vadd.f32 %v3588, %v3596
    %v3599 = vadd.f32 %v3025, %v3598
    %v3600 = vld [vmem:[%s45] sm:$0x1]
    %v3601 = vld [vmem:[%s47] sm:$0x1]
    %v3602 = vsel %vm1441, %v3599, 0.0
    %3603 = vadd.xlane.f32.xlu0 %v3602
    %v3604 = vpop.xlane.xlu0 %3603
    %v3605 = vmul.f32 %v3604, %v1445
    %v3606 = vsub.f32 %v3599, %v3605
    %v3607 = vmul.f32 %v3606, %v3606
    %v3608 = vsel %vm1441, %v3607, 0.0
    %3609 = vadd.xlane.f32.xlu0 %v3608
    %v3610 = vpop.xlane.xlu0 %3609
    %v3611 = vmul.f32 %v3610, %v1445
    %v3612 = vadd.f32 %v3611, 1e-05
    %v3613 = vrsqrt.pop %v3612
    %v3614 = vmul.f32 %v3606, %v3613
    %v3616 = vlaneseq
    %v3617 = vshrl.u32 %v3616, 7
    %v3618 = vsub.s32 0, %v3617
    %v3619 = vrot.slane %v3600, %v3618
    %v3621 = vmul.f32 %v3614, %v3619
    %v3623 = vlaneseq
    %v3624 = vshrl.u32 %v3623, 7
    %v3625 = vsub.s32 0, %v3624
    %v3626 = vrot.slane %v3601, %v3625
    %v3628 = vadd.f32 %v3621, %v3626
    %v3629 = vld [vmem:[%s49] sm:$0xff]
    %v3630 = vld [vmem:[%s49 + $0x8] sm:$0xff]
    %v3631 = vld [vmem:[%s49 + $0x10] sm:$0xff]
    %v3632 = vld [vmem:[%s49 + $0x18] sm:$0xff]
    %v3633 = vld [vmem:[%s49 + $0x20] sm:$0xff]
    %v3634 = vld [vmem:[%s49 + $0x28] sm:$0xff]
    %v3635 = vld [vmem:[%s49 + $0x30] sm:$0xff]
    %v3636 = vld [vmem:[%s49 + $0x38] sm:$0xff]
    %v3637 = vld [vmem:[%s49 + $0x40] sm:$0xff]
    %v3638 = vld [vmem:[%s49 + $0x48] sm:$0xff]
    %v3639 = vld [vmem:[%s49 + $0x50] sm:$0xff]
    %v3640 = vld [vmem:[%s49 + $0x58] sm:$0xff]
    %v3641 = vld [vmem:[%s49 + $0x60] sm:$0xff]
    %v3642 = vld [vmem:[%s49 + $0x68] sm:$0xff]
    %v3643 = vld [vmem:[%s49 + $0x70] sm:$0xff]
    %v3644 = vld [vmem:[%s49 + $0x78] sm:$0xff]
    %v3645 = vld [vmem:[%s49 + $0x80] sm:$0xff]
    %v3646 = vld [vmem:[%s49 + $0x88] sm:$0xff]
    %v3647 = vld [vmem:[%s49 + $0x90] sm:$0xff]
    %v3648 = vld [vmem:[%s49 + $0x98] sm:$0xff]
    %v3649 = vld [vmem:[%s49 + $0xa0] sm:$0xff]
    %v3650 = vld [vmem:[%s49 + $0xa8] sm:$0xff]
    %v3651 = vld [vmem:[%s49 + $0xb0] sm:$0xff]
    %v3652 = vld [vmem:[%s49 + $0xb8] sm:$0xff]
    %v3653 = vld [vmem:[%s49 + $0xc0] sm:$0xff]
    %v3654 = vld [vmem:[%s49 + $0xc8] sm:$0xff]
    %v3655 = vld [vmem:[%s49 + $0xd0] sm:$0xff]
    %v3656 = vld [vmem:[%s49 + $0xd8] sm:$0xff]
    %v3657 = vld [vmem:[%s49 + $0xe0] sm:$0xff]
    %v3658 = vld [vmem:[%s49 + $0xe8] sm:$0xff]
    %v3659 = vld [vmem:[%s49 + $0xf0] sm:$0xff]
    %v3660 = vld [vmem:[%s49 + $0xf8] sm:$0xff]
    %v3661 = vld [vmem:[%s51] sm:$0xff]
    %v3662 = vld [vmem:[%s51 + $0x8] sm:$0xff]
    %v3665 = vlaneseq
    %v3666 = vshrl.u32 %v3665, 7
    %v3667 = vsub.s32 0, %v3666
    %v3668 = vrot.slane %v3661, %v3667
    %v3669 = vlaneseq
    %v3670 = vshrl.u32 %v3669, 7
    %v3671 = vsub.s32 1, %v3670
    %v3672 = vrot.slane %v3661, %v3671
    %v3673 = vlaneseq
    %v3674 = vshrl.u32 %v3673, 7
    %v3675 = vsub.s32 2, %v3674
    %v3676 = vrot.slane %v3661, %v3675
    %v3677 = vlaneseq
    %v3678 = vshrl.u32 %v3677, 7
    %v3679 = vsub.s32 3, %v3678
    %v3680 = vrot.slane %v3661, %v3679
    %v3681 = vlaneseq
    %v3682 = vshrl.u32 %v3681, 7
    %v3683 = vsub.s32 4, %v3682
    %v3684 = vrot.slane %v3661, %v3683
    %v3685 = vlaneseq
    %v3686 = vshrl.u32 %v3685, 7
    %v3687 = vsub.s32 5, %v3686
    %v3688 = vrot.slane %v3661, %v3687
    %v3689 = vlaneseq
    %v3690 = vshrl.u32 %v3689, 7
    %v3691 = vsub.s32 6, %v3690
    %v3692 = vrot.slane %v3661, %v3691
    %v3693 = vlaneseq
    %v3694 = vshrl.u32 %v3693, 7
    %v3695 = vsub.s32 7, %v3694
    %v3696 = vrot.slane %v3661, %v3695
    %v3697 = vlaneseq
    %v3698 = vshrl.u32 %v3697, 7
    %v3699 = vsub.s32 0, %v3698
    %v3700 = vrot.slane %v3662, %v3699
    %v3701 = vlaneseq
    %v3702 = vshrl.u32 %v3701, 7
    %v3703 = vsub.s32 1, %v3702
    %v3704 = vrot.slane %v3662, %v3703
    %v3705 = vlaneseq
    %v3706 = vshrl.u32 %v3705, 7
    %v3707 = vsub.s32 2, %v3706
    %v3708 = vrot.slane %v3662, %v3707
    %v3709 = vlaneseq
    %v3710 = vshrl.u32 %v3709, 7
    %v3711 = vsub.s32 3, %v3710
    %v3712 = vrot.slane %v3662, %v3711
    %v3713 = vlaneseq
    %v3714 = vshrl.u32 %v3713, 7
    %v3715 = vsub.s32 4, %v3714
    %v3716 = vrot.slane %v3662, %v3715
    %v3717 = vlaneseq
    %v3718 = vshrl.u32 %v3717, 7
    %v3719 = vsub.s32 5, %v3718
    %v3720 = vrot.slane %v3662, %v3719
    %v3721 = vlaneseq
    %v3722 = vshrl.u32 %v3721, 7
    %v3723 = vsub.s32 6, %v3722
    %v3724 = vrot.slane %v3662, %v3723
    %v3725 = vlaneseq
    %v3726 = vshrl.u32 %v3725, 7
    %v3727 = vsub.s32 7, %v3726
    %v3728 = vrot.slane %v3662, %v3727
    %v3746 = vsel %vm869, %v3628, 0
    %3748 = vmatprep.subr.mxu0 %v3630
    %3749 = vmatpush1.msra.mxu0 %v3629
    %3750 = vmatprep.subr.mxu0 %v3646
    %3751 = vmatpush1.msra.mxu0 %v3645
    %3752 = vmatprep.subr.mxu0 0.0
    %3753 = vmatpush1.msra.mxu0 0.0
    %3754 = vmatprep.subr.mxu0 0.0
    %3755 = vmatpush1.msra.mxu0 0.0
    %3756 = vmatprep.subr.mxu0 0.0
    %3757 = vmatpush1.msra.mxu0 0.0
    %3758 = vmatprep.subr.mxu0 0.0
    %3759 = vmatpush1.msra.mxu0 0.0
    %3760 = vmatprep.subr.mxu0 0.0
    %3761 = vmatpush1.msra.mxu0 0.0
    %3762 = vmatprep.subr.mxu0 0.0
    %3763 = vmatpush1.msra.mxu0 0.0
    %3764 = vmatprep.subr.mxu0 0.0
    %3765 = vmatpush1.msra.mxu0 0.0
    %3766 = vmatprep.subr.mxu0 0.0
    %3767 = vmatpush1.msra.mxu0 0.0
    %3768 = vmatprep.subr.mxu0 0.0
    %3769 = vmatpush1.msra.mxu0 0.0
    %3770 = vmatprep.subr.mxu0 0.0
    %3771 = vmatpush1.msra.mxu0 0.0
    %3772 = vmatprep.subr.mxu0 0.0
    %3773 = vmatpush1.msra.mxu0 0.0
    %3774 = vmatprep.subr.mxu0 0.0
    %3775 = vmatpush1.msra.mxu0 0.0
    %3776 = vmatprep.subr.mxu0 0.0
    %3777 = vmatpush1.msra.mxu0 0.0
    %3778 = vmatprep.subr.mxu0 0.0
    %3779 = vmatpush1.msra.mxu0 0.0
    %3780 = vmatprep.subr.mxu0 0.0
    %3781 = vmatpush1.msra.mxu0 0.0
    %3782 = vmatprep.subr.mxu0 0.0
    %3783 = vmatpush1.msra.mxu0 0.0
    %3784 = vmatprep.subr.mxu0 0.0
    %3785 = vmatpush1.msra.mxu0 0.0
    %3786 = vmatprep.subr.mxu0 0.0
    %3787 = vmatpush1.msra.mxu0 0.0
    %3788 = vmatprep.subr.mxu0 0.0
    %3789 = vmatpush1.msra.mxu0 0.0
    %3790 = vmatprep.subr.mxu0 0.0
    %3791 = vmatpush1.msra.mxu0 0.0
    %3792 = vmatprep.subr.mxu0 0.0
    %3793 = vmatpush1.msra.mxu0 0.0
    %3794 = vmatprep.subr.mxu0 0.0
    %3795 = vmatpush1.msra.mxu0 0.0
    %3796 = vmatprep.subr.mxu0 0.0
    %3797 = vmatpush1.msra.mxu0 0.0
    %3798 = vmatprep.subr.mxu0 0.0
    %3799 = vmatpush1.msra.mxu0 0.0
    %3800 = vmatprep.subr.mxu0 0.0
    %3801 = vmatpush1.msra.mxu0 0.0
    %3802 = vmatprep.subr.mxu0 0.0
    %3803 = vmatpush1.msra.mxu0 0.0
    %3804 = vmatprep.subr.mxu0 0.0
    %3805 = vmatpush1.msra.mxu0 0.0
    %3806 = vmatprep.subr.mxu0 0.0
    %3807 = vmatpush1.msra.mxu0 0.0
    %3808 = vmatprep.subr.mxu0 0.0
    %3809 = vmatpush1.msra.mxu0 0.0
    %3810 = vmatprep.subr.mxu0 0.0
    %3811 = vmatpush1.msra.mxu0 0.0
    %3812 = vmatprep.mubr.f32.mxu0 0.0
    %3813 = vmatmul.mubr.f32.gmra.mrb[0].mxu0 %v3746
    %v3814 = vpop.f32.mrb[0].mxu0
    %v3815 = vadd.f32 %v3668, %v3814
    %v3816 = vpop.f32.mrb[0].mxu0
    %v3817 = vadd.f32 %v3672, %v3816
    %3818 = vdwg.mxu0
    %3819 = vmatprep.subr.mxu0 %v3632
    %3820 = vmatpush1.msra.mxu0 %v3631
    %3821 = vmatprep.subr.mxu0 %v3648
    %3822 = vmatpush1.msra.mxu0 %v3647
    %3823 = vmatprep.subr.mxu0 0.0
    %3824 = vmatpush1.msra.mxu0 0.0
    %3825 = vmatprep.subr.mxu0 0.0
    %3826 = vmatpush1.msra.mxu0 0.0
    %3827 = vmatprep.subr.mxu0 0.0
    %3828 = vmatpush1.msra.mxu0 0.0
    %3829 = vmatprep.subr.mxu0 0.0
    %3830 = vmatpush1.msra.mxu0 0.0
    %3831 = vmatprep.subr.mxu0 0.0
    %3832 = vmatpush1.msra.mxu0 0.0
    %3833 = vmatprep.subr.mxu0 0.0
    %3834 = vmatpush1.msra.mxu0 0.0
    %3835 = vmatprep.subr.mxu0 0.0
    %3836 = vmatpush1.msra.mxu0 0.0
    %3837 = vmatprep.subr.mxu0 0.0
    %3838 = vmatpush1.msra.mxu0 0.0
    %3839 = vmatprep.subr.mxu0 0.0
    %3840 = vmatpush1.msra.mxu0 0.0
    %3841 = vmatprep.subr.mxu0 0.0
    %3842 = vmatpush1.msra.mxu0 0.0
    %3843 = vmatprep.subr.mxu0 0.0
    %3844 = vmatpush1.msra.mxu0 0.0
    %3845 = vmatprep.subr.mxu0 0.0
    %3846 = vmatpush1.msra.mxu0 0.0
    %3847 = vmatprep.subr.mxu0 0.0
    %3848 = vmatpush1.msra.mxu0 0.0
    %3849 = vmatprep.subr.mxu0 0.0
    %3850 = vmatpush1.msra.mxu0 0.0
    %3851 = vmatprep.subr.mxu0 0.0
    %3852 = vmatpush1.msra.mxu0 0.0
    %3853 = vmatprep.subr.mxu0 0.0
    %3854 = vmatpush1.msra.mxu0 0.0
    %3855 = vmatprep.subr.mxu0 0.0
    %3856 = vmatpush1.msra.mxu0 0.0
    %3857 = vmatprep.subr.mxu0 0.0
    %3858 = vmatpush1.msra.mxu0 0.0
    %3859 = vmatprep.subr.mxu0 0.0
    %3860 = vmatpush1.msra.mxu0 0.0
    %3861 = vmatprep.subr.mxu0 0.0
    %3862 = vmatpush1.msra.mxu0 0.0
    %3863 = vmatprep.subr.mxu0 0.0
    %3864 = vmatpush1.msra.mxu0 0.0
    %3865 = vmatprep.subr.mxu0 0.0
    %3866 = vmatpush1.msra.mxu0 0.0
    %3867 = vmatprep.subr.mxu0 0.0
    %3868 = vmatpush1.msra.mxu0 0.0
    %3869 = vmatprep.subr.mxu0 0.0
    %3870 = vmatpush1.msra.mxu0 0.0
    %3871 = vmatprep.subr.mxu0 0.0
    %3872 = vmatpush1.msra.mxu0 0.0
    %3873 = vmatprep.subr.mxu0 0.0
    %3874 = vmatpush1.msra.mxu0 0.0
    %3875 = vmatprep.subr.mxu0 0.0
    %3876 = vmatpush1.msra.mxu0 0.0
    %3877 = vmatprep.subr.mxu0 0.0
    %3878 = vmatpush1.msra.mxu0 0.0
    %3879 = vmatprep.subr.mxu0 0.0
    %3880 = vmatpush1.msra.mxu0 0.0
    %3881 = vmatprep.subr.mxu0 0.0
    %3882 = vmatpush1.msra.mxu0 0.0
    %3883 = vmatprep.mubr.f32.mxu0 0.0
    %3884 = vmatmul.mubr.f32.gmra.mrb[0].mxu0 %v3746
    %v3885 = vpop.f32.mrb[0].mxu0
    %v3886 = vadd.f32 %v3676, %v3885
    %v3887 = vpop.f32.mrb[0].mxu0
    %v3888 = vadd.f32 %v3680, %v3887
    %3889 = vdwg.mxu0
    %3890 = vmatprep.subr.mxu0 %v3634
    %3891 = vmatpush1.msra.mxu0 %v3633
    %3892 = vmatprep.subr.mxu0 %v3650
    %3893 = vmatpush1.msra.mxu0 %v3649
    %3894 = vmatprep.subr.mxu0 0.0
    %3895 = vmatpush1.msra.mxu0 0.0
    %3896 = vmatprep.subr.mxu0 0.0
    %3897 = vmatpush1.msra.mxu0 0.0
    %3898 = vmatprep.subr.mxu0 0.0
    %3899 = vmatpush1.msra.mxu0 0.0
    %3900 = vmatprep.subr.mxu0 0.0
    %3901 = vmatpush1.msra.mxu0 0.0
    %3902 = vmatprep.subr.mxu0 0.0
    %3903 = vmatpush1.msra.mxu0 0.0
    %3904 = vmatprep.subr.mxu0 0.0
    %3905 = vmatpush1.msra.mxu0 0.0
    %3906 = vmatprep.subr.mxu0 0.0
    %3907 = vmatpush1.msra.mxu0 0.0
    %3908 = vmatprep.subr.mxu0 0.0
    %3909 = vmatpush1.msra.mxu0 0.0
    %3910 = vmatprep.subr.mxu0 0.0
    %3911 = vmatpush1.msra.mxu0 0.0
    %3912 = vmatprep.subr.mxu0 0.0
    %3913 = vmatpush1.msra.mxu0 0.0
    %3914 = vmatprep.subr.mxu0 0.0
    %3915 = vmatpush1.msra.mxu0 0.0
    %3916 = vmatprep.subr.mxu0 0.0
    %3917 = vmatpush1.msra.mxu0 0.0
    %3918 = vmatprep.subr.mxu0 0.0
    %3919 = vmatpush1.msra.mxu0 0.0
    %3920 = vmatprep.subr.mxu0 0.0
    %3921 = vmatpush1.msra.mxu0 0.0
    %3922 = vmatprep.subr.mxu0 0.0
    %3923 = vmatpush1.msra.mxu0 0.0
    %3924 = vmatprep.subr.mxu0 0.0
    %3925 = vmatpush1.msra.mxu0 0.0
    %3926 = vmatprep.subr.mxu0 0.0
    %3927 = vmatpush1.msra.mxu0 0.0
    %3928 = vmatprep.subr.mxu0 0.0
    %3929 = vmatpush1.msra.mxu0 0.0
    %3930 = vmatprep.subr.mxu0 0.0
    %3931 = vmatpush1.msra.mxu0 0.0
    %3932 = vmatprep.subr.mxu0 0.0
    %3933 = vmatpush1.msra.mxu0 0.0
    %3934 = vmatprep.subr.mxu0 0.0
    %3935 = vmatpush1.msra.mxu0 0.0
    %3936 = vmatprep.subr.mxu0 0.0
    %3937 = vmatpush1.msra.mxu0 0.0
    %3938 = vmatprep.subr.mxu0 0.0
    %3939 = vmatpush1.msra.mxu0 0.0
    %3940 = vmatprep.subr.mxu0 0.0
    %3941 = vmatpush1.msra.mxu0 0.0
    %3942 = vmatprep.subr.mxu0 0.0
    %3943 = vmatpush1.msra.mxu0 0.0
    %3944 = vmatprep.subr.mxu0 0.0
    %3945 = vmatpush1.msra.mxu0 0.0
    %3946 = vmatprep.subr.mxu0 0.0
    %3947 = vmatpush1.msra.mxu0 0.0
    %3948 = vmatprep.subr.mxu0 0.0
    %3949 = vmatpush1.msra.mxu0 0.0
    %3950 = vmatprep.subr.mxu0 0.0
    %3951 = vmatpush1.msra.mxu0 0.0
    %3952 = vmatprep.subr.mxu0 0.0
    %3953 = vmatpush1.msra.mxu0 0.0
    %3954 = vmatprep.mubr.f32.mxu0 0.0
    %3955 = vmatmul.mubr.f32.gmra.mrb[0].mxu0 %v3746
    %v3956 = vpop.f32.mrb[0].mxu0
    %v3957 = vadd.f32 %v3684, %v3956
    %v3958 = vpop.f32.mrb[0].mxu0
    %v3959 = vadd.f32 %v3688, %v3958
    %3960 = vdwg.mxu0
    %3961 = vmatprep.subr.mxu0 %v3636
    %3962 = vmatpush1.msra.mxu0 %v3635
    %3963 = vmatprep.subr.mxu0 %v3652
    %3964 = vmatpush1.msra.mxu0 %v3651
    %3965 = vmatprep.subr.mxu0 0.0
    %3966 = vmatpush1.msra.mxu0 0.0
    %3967 = vmatprep.subr.mxu0 0.0
    %3968 = vmatpush1.msra.mxu0 0.0
    %3969 = vmatprep.subr.mxu0 0.0
    %3970 = vmatpush1.msra.mxu0 0.0
    %3971 = vmatprep.subr.mxu0 0.0
    %3972 = vmatpush1.msra.mxu0 0.0
    %3973 = vmatprep.subr.mxu0 0.0
    %3974 = vmatpush1.msra.mxu0 0.0
    %3975 = vmatprep.subr.mxu0 0.0
    %3976 = vmatpush1.msra.mxu0 0.0
    %3977 = vmatprep.subr.mxu0 0.0
    %3978 = vmatpush1.msra.mxu0 0.0
    %3979 = vmatprep.subr.mxu0 0.0
    %3980 = vmatpush1.msra.mxu0 0.0
    %3981 = vmatprep.subr.mxu0 0.0
    %3982 = vmatpush1.msra.mxu0 0.0
    %3983 = vmatprep.subr.mxu0 0.0
    %3984 = vmatpush1.msra.mxu0 0.0
    %3985 = vmatprep.subr.mxu0 0.0
    %3986 = vmatpush1.msra.mxu0 0.0
    %3987 = vmatprep.subr.mxu0 0.0
    %3988 = vmatpush1.msra.mxu0 0.0
    %3989 = vmatprep.subr.mxu0 0.0
    %3990 = vmatpush1.msra.mxu0 0.0
    %3991 = vmatprep.subr.mxu0 0.0
    %3992 = vmatpush1.msra.mxu0 0.0
    %3993 = vmatprep.subr.mxu0 0.0
    %3994 = vmatpush1.msra.mxu0 0.0
    %3995 = vmatprep.subr.mxu0 0.0
    %3996 = vmatpush1.msra.mxu0 0.0
    %3997 = vmatprep.subr.mxu0 0.0
    %3998 = vmatpush1.msra.mxu0 0.0
    %3999 = vmatprep.subr.mxu0 0.0
    %4000 = vmatpush1.msra.mxu0 0.0
    %4001 = vmatprep.subr.mxu0 0.0
    %4002 = vmatpush1.msra.mxu0 0.0
    %4003 = vmatprep.subr.mxu0 0.0
    %4004 = vmatpush1.msra.mxu0 0.0
    %4005 = vmatprep.subr.mxu0 0.0
    %4006 = vmatpush1.msra.mxu0 0.0
    %4007 = vmatprep.subr.mxu0 0.0
    %4008 = vmatpush1.msra.mxu0 0.0
    %4009 = vmatprep.subr.mxu0 0.0
    %4010 = vmatpush1.msra.mxu0 0.0
    %4011 = vmatprep.subr.mxu0 0.0
    %4012 = vmatpush1.msra.mxu0 0.0
    %4013 = vmatprep.subr.mxu0 0.0
    %4014 = vmatpush1.msra.mxu0 0.0
    %4015 = vmatprep.subr.mxu0 0.0
    %4016 = vmatpush1.msra.mxu0 0.0
    %4017 = vmatprep.subr.mxu0 0.0
    %4018 = vmatpush1.msra.mxu0 0.0
    %4019 = vmatprep.subr.mxu0 0.0
    %4020 = vmatpush1.msra.mxu0 0.0
    %4021 = vmatprep.subr.mxu0 0.0
    %4022 = vmatpush1.msra.mxu0 0.0
    %4023 = vmatprep.subr.mxu0 0.0
    %4024 = vmatpush1.msra.mxu0 0.0
    %4025 = vmatprep.mubr.f32.mxu0 0.0
    %4026 = vmatmul.mubr.f32.gmra.mrb[0].mxu0 %v3746
    %v4027 = vpop.f32.mrb[0].mxu0
    %v4028 = vadd.f32 %v3692, %v4027
    %v4029 = vpop.f32.mrb[0].mxu0
    %v4030 = vadd.f32 %v3696, %v4029
    %4031 = vdwg.mxu0
    %4032 = vmatprep.subr.mxu0 %v3638
    %4033 = vmatpush1.msra.mxu0 %v3637
    %4034 = vmatprep.subr.mxu0 %v3654
    %4035 = vmatpush1.msra.mxu0 %v3653
    %4036 = vmatprep.subr.mxu0 0.0
    %4037 = vmatpush1.msra.mxu0 0.0
    %4038 = vmatprep.subr.mxu0 0.0
    %4039 = vmatpush1.msra.mxu0 0.0
    %4040 = vmatprep.subr.mxu0 0.0
    %4041 = vmatpush1.msra.mxu0 0.0
    %4042 = vmatprep.subr.mxu0 0.0
    %4043 = vmatpush1.msra.mxu0 0.0
    %4044 = vmatprep.subr.mxu0 0.0
    %4045 = vmatpush1.msra.mxu0 0.0
    %4046 = vmatprep.subr.mxu0 0.0
    %4047 = vmatpush1.msra.mxu0 0.0
    %4048 = vmatprep.subr.mxu0 0.0
    %4049 = vmatpush1.msra.mxu0 0.0
    %4050 = vmatprep.subr.mxu0 0.0
    %4051 = vmatpush1.msra.mxu0 0.0
    %4052 = vmatprep.subr.mxu0 0.0
    %4053 = vmatpush1.msra.mxu0 0.0
    %4054 = vmatprep.subr.mxu0 0.0
    %4055 = vmatpush1.msra.mxu0 0.0
    %4056 = vmatprep.subr.mxu0 0.0
    %4057 = vmatpush1.msra.mxu0 0.0
    %4058 = vmatprep.subr.mxu0 0.0
    %4059 = vmatpush1.msra.mxu0 0.0
    %4060 = vmatprep.subr.mxu0 0.0
    %4061 = vmatpush1.msra.mxu0 0.0
    %4062 = vmatprep.subr.mxu0 0.0
    %4063 = vmatpush1.msra.mxu0 0.0
    %4064 = vmatprep.subr.mxu0 0.0
    %4065 = vmatpush1.msra.mxu0 0.0
    %4066 = vmatprep.subr.mxu0 0.0
    %4067 = vmatpush1.msra.mxu0 0.0
    %4068 = vmatprep.subr.mxu0 0.0
    %4069 = vmatpush1.msra.mxu0 0.0
    %4070 = vmatprep.subr.mxu0 0.0
    %4071 = vmatpush1.msra.mxu0 0.0
    %4072 = vmatprep.subr.mxu0 0.0
    %4073 = vmatpush1.msra.mxu0 0.0
    %4074 = vmatprep.subr.mxu0 0.0
    %4075 = vmatpush1.msra.mxu0 0.0
    %4076 = vmatprep.subr.mxu0 0.0
    %4077 = vmatpush1.msra.mxu0 0.0
    %4078 = vmatprep.subr.mxu0 0.0
    %4079 = vmatpush1.msra.mxu0 0.0
    %4080 = vmatprep.subr.mxu0 0.0
    %4081 = vmatpush1.msra.mxu0 0.0
    %4082 = vmatprep.subr.mxu0 0.0
    %4083 = vmatpush1.msra.mxu0 0.0
    %4084 = vmatprep.subr.mxu0 0.0
    %4085 = vmatpush1.msra.mxu0 0.0
    %4086 = vmatprep.subr.mxu0 0.0
    %4087 = vmatpush1.msra.mxu0 0.0
    %4088 = vmatprep.subr.mxu0 0.0
    %4089 = vmatpush1.msra.mxu0 0.0
    %4090 = vmatprep.subr.mxu0 0.0
    %4091 = vmatpush1.msra.mxu0 0.0
    %4092 = vmatprep.subr.mxu0 0.0
    %4093 = vmatpush1.msra.mxu0 0.0
    %4094 = vmatprep.subr.mxu0 0.0
    %4095 = vmatpush1.msra.mxu0 0.0
    %4096 = vmatprep.mubr.f32.mxu0 0.0
    %4097 = vmatmul.mubr.f32.gmra.mrb[0].mxu0 %v3746
    %v4098 = vpop.f32.mrb[0].mxu0
    %v4099 = vadd.f32 %v3700, %v4098
    %v4100 = vpop.f32.mrb[0].mxu0
    %v4101 = vadd.f32 %v3704, %v4100
    %4102 = vdwg.mxu0
    %4103 = vmatprep.subr.mxu0 %v3640
    %4104 = vmatpush1.msra.mxu0 %v3639
    %4105 = vmatprep.subr.mxu0 %v3656
    %4106 = vmatpush1.msra.mxu0 %v3655
    %4107 = vmatprep.subr.mxu0 0.0
    %4108 = vmatpush1.msra.mxu0 0.0
    %4109 = vmatprep.subr.mxu0 0.0
    %4110 = vmatpush1.msra.mxu0 0.0
    %4111 = vmatprep.subr.mxu0 0.0
    %4112 = vmatpush1.msra.mxu0 0.0
    %4113 = vmatprep.subr.mxu0 0.0
    %4114 = vmatpush1.msra.mxu0 0.0
    %4115 = vmatprep.subr.mxu0 0.0
    %4116 = vmatpush1.msra.mxu0 0.0
    %4117 = vmatprep.subr.mxu0 0.0
    %4118 = vmatpush1.msra.mxu0 0.0
    %4119 = vmatprep.subr.mxu0 0.0
    %4120 = vmatpush1.msra.mxu0 0.0
    %4121 = vmatprep.subr.mxu0 0.0
    %4122 = vmatpush1.msra.mxu0 0.0
    %4123 = vmatprep.subr.mxu0 0.0
    %4124 = vmatpush1.msra.mxu0 0.0
    %4125 = vmatprep.subr.mxu0 0.0
    %4126 = vmatpush1.msra.mxu0 0.0
    %4127 = vmatprep.subr.mxu0 0.0
    %4128 = vmatpush1.msra.mxu0 0.0
    %4129 = vmatprep.subr.mxu0 0.0
    %4130 = vmatpush1.msra.mxu0 0.0
    %4131 = vmatprep.subr.mxu0 0.0
    %4132 = vmatpush1.msra.mxu0 0.0
    %4133 = vmatprep.subr.mxu0 0.0
    %4134 = vmatpush1.msra.mxu0 0.0
    %4135 = vmatprep.subr.mxu0 0.0
    %4136 = vmatpush1.msra.mxu0 0.0
    %4137 = vmatprep.subr.mxu0 0.0
    %4138 = vmatpush1.msra.mxu0 0.0
    %4139 = vmatprep.subr.mxu0 0.0
    %4140 = vmatpush1.msra.mxu0 0.0
    %4141 = vmatprep.subr.mxu0 0.0
    %4142 = vmatpush1.msra.mxu0 0.0
    %4143 = vmatprep.subr.mxu0 0.0
    %4144 = vmatpush1.msra.mxu0 0.0
    %4145 = vmatprep.subr.mxu0 0.0
    %4146 = vmatpush1.msra.mxu0 0.0
    %4147 = vmatprep.subr.mxu0 0.0
    %4148 = vmatpush1.msra.mxu0 0.0
    %4149 = vmatprep.subr.mxu0 0.0
    %4150 = vmatpush1.msra.mxu0 0.0
    %4151 = vmatprep.subr.mxu0 0.0
    %4152 = vmatpush1.msra.mxu0 0.0
    %4153 = vmatprep.subr.mxu0 0.0
    %4154 = vmatpush1.msra.mxu0 0.0
    %4155 = vmatprep.subr.mxu0 0.0
    %4156 = vmatpush1.msra.mxu0 0.0
    %4157 = vmatprep.subr.mxu0 0.0
    %4158 = vmatpush1.msra.mxu0 0.0
    %4159 = vmatprep.subr.mxu0 0.0
    %4160 = vmatpush1.msra.mxu0 0.0
    %4161 = vmatprep.subr.mxu0 0.0
    %4162 = vmatpush1.msra.mxu0 0.0
    %4163 = vmatprep.subr.mxu0 0.0
    %4164 = vmatpush1.msra.mxu0 0.0
    %4165 = vmatprep.subr.mxu0 0.0
    %4166 = vmatpush1.msra.mxu0 0.0
    %4167 = vmatprep.mubr.f32.mxu0 0.0
    %4168 = vmatmul.mubr.f32.gmra.mrb[0].mxu0 %v3746
    %v4169 = vpop.f32.mrb[0].mxu0
    %v4170 = vadd.f32 %v3708, %v4169
    %v4171 = vpop.f32.mrb[0].mxu0
    %v4172 = vadd.f32 %v3712, %v4171
    %4173 = vdwg.mxu0
    %4174 = vmatprep.subr.mxu0 %v3642
    %4175 = vmatpush1.msra.mxu0 %v3641
    %4176 = vmatprep.subr.mxu0 %v3658
    %4177 = vmatpush1.msra.mxu0 %v3657
    %4178 = vmatprep.subr.mxu0 0.0
    %4179 = vmatpush1.msra.mxu0 0.0
    %4180 = vmatprep.subr.mxu0 0.0
    %4181 = vmatpush1.msra.mxu0 0.0
    %4182 = vmatprep.subr.mxu0 0.0
    %4183 = vmatpush1.msra.mxu0 0.0
    %4184 = vmatprep.subr.mxu0 0.0
    %4185 = vmatpush1.msra.mxu0 0.0
    %4186 = vmatprep.subr.mxu0 0.0
    %4187 = vmatpush1.msra.mxu0 0.0
    %4188 = vmatprep.subr.mxu0 0.0
    %4189 = vmatpush1.msra.mxu0 0.0
    %4190 = vmatprep.subr.mxu0 0.0
    %4191 = vmatpush1.msra.mxu0 0.0
    %4192 = vmatprep.subr.mxu0 0.0
    %4193 = vmatpush1.msra.mxu0 0.0
    %4194 = vmatprep.subr.mxu0 0.0
    %4195 = vmatpush1.msra.mxu0 0.0
    %4196 = vmatprep.subr.mxu0 0.0
    %4197 = vmatpush1.msra.mxu0 0.0
    %4198 = vmatprep.subr.mxu0 0.0
    %4199 = vmatpush1.msra.mxu0 0.0
    %4200 = vmatprep.subr.mxu0 0.0
    %4201 = vmatpush1.msra.mxu0 0.0
    %4202 = vmatprep.subr.mxu0 0.0
    %4203 = vmatpush1.msra.mxu0 0.0
    %4204 = vmatprep.subr.mxu0 0.0
    %4205 = vmatpush1.msra.mxu0 0.0
    %4206 = vmatprep.subr.mxu0 0.0
    %4207 = vmatpush1.msra.mxu0 0.0
    %4208 = vmatprep.subr.mxu0 0.0
    %4209 = vmatpush1.msra.mxu0 0.0
    %4210 = vmatprep.subr.mxu0 0.0
    %4211 = vmatpush1.msra.mxu0 0.0
    %4212 = vmatprep.subr.mxu0 0.0
    %4213 = vmatpush1.msra.mxu0 0.0
    %4214 = vmatprep.subr.mxu0 0.0
    %4215 = vmatpush1.msra.mxu0 0.0
    %4216 = vmatprep.subr.mxu0 0.0
    %4217 = vmatpush1.msra.mxu0 0.0
    %4218 = vmatprep.subr.mxu0 0.0
    %4219 = vmatpush1.msra.mxu0 0.0
    %4220 = vmatprep.subr.mxu0 0.0
    %4221 = vmatpush1.msra.mxu0 0.0
    %4222 = vmatprep.subr.mxu0 0.0
    %4223 = vmatpush1.msra.mxu0 0.0
    %4224 = vmatprep.subr.mxu0 0.0
    %4225 = vmatpush1.msra.mxu0 0.0
    %4226 = vmatprep.subr.mxu0 0.0
    %4227 = vmatpush1.msra.mxu0 0.0
    %4228 = vmatprep.subr.mxu0 0.0
    %4229 = vmatpush1.msra.mxu0 0.0
    %4230 = vmatprep.subr.mxu0 0.0
    %4231 = vmatpush1.msra.mxu0 0.0
    %4232 = vmatprep.subr.mxu0 0.0
    %4233 = vmatpush1.msra.mxu0 0.0
    %4234 = vmatprep.subr.mxu0 0.0
    %4235 = vmatpush1.msra.mxu0 0.0
    %4236 = vmatprep.subr.mxu0 0.0
    %4237 = vmatpush1.msra.mxu0 0.0
    %4238 = vmatprep.mubr.f32.mxu0 0.0
    %4239 = vmatmul.mubr.f32.gmra.mrb[0].mxu0 %v3746
    %v4240 = vpop.f32.mrb[0].mxu0
    %v4241 = vadd.f32 %v3716, %v4240
    %v4242 = vpop.f32.mrb[0].mxu0
    %v4243 = vadd.f32 %v3720, %v4242
    %4244 = vdwg.mxu0
    %4245 = vmatprep.subr.mxu0 %v3644
    %4246 = vmatpush1.msra.mxu0 %v3643
    %4247 = vmatprep.subr.mxu0 %v3660
    %4248 = vmatpush1.msra.mxu0 %v3659
    %4249 = vmatprep.subr.mxu0 0.0
    %4250 = vmatpush1.msra.mxu0 0.0
    %4251 = vmatprep.subr.mxu0 0.0
    %4252 = vmatpush1.msra.mxu0 0.0
    %4253 = vmatprep.subr.mxu0 0.0
    %4254 = vmatpush1.msra.mxu0 0.0
    %4255 = vmatprep.subr.mxu0 0.0
    %4256 = vmatpush1.msra.mxu0 0.0
    %4257 = vmatprep.subr.mxu0 0.0
    %4258 = vmatpush1.msra.mxu0 0.0
    %4259 = vmatprep.subr.mxu0 0.0
    %4260 = vmatpush1.msra.mxu0 0.0
    %4261 = vmatprep.subr.mxu0 0.0
    %4262 = vmatpush1.msra.mxu0 0.0
    %4263 = vmatprep.subr.mxu0 0.0
    %4264 = vmatpush1.msra.mxu0 0.0
    %4265 = vmatprep.subr.mxu0 0.0
    %4266 = vmatpush1.msra.mxu0 0.0
    %4267 = vmatprep.subr.mxu0 0.0
    %4268 = vmatpush1.msra.mxu0 0.0
    %4269 = vmatprep.subr.mxu0 0.0
    %4270 = vmatpush1.msra.mxu0 0.0
    %4271 = vmatprep.subr.mxu0 0.0
    %4272 = vmatpush1.msra.mxu0 0.0
    %4273 = vmatprep.subr.mxu0 0.0
    %4274 = vmatpush1.msra.mxu0 0.0
    %4275 = vmatprep.subr.mxu0 0.0
    %4276 = vmatpush1.msra.mxu0 0.0
    %4277 = vmatprep.subr.mxu0 0.0
    %4278 = vmatpush1.msra.mxu0 0.0
    %4279 = vmatprep.subr.mxu0 0.0
    %4280 = vmatpush1.msra.mxu0 0.0
    %4281 = vmatprep.subr.mxu0 0.0
    %4282 = vmatpush1.msra.mxu0 0.0
    %4283 = vmatprep.subr.mxu0 0.0
    %4284 = vmatpush1.msra.mxu0 0.0
    %4285 = vmatprep.subr.mxu0 0.0
    %4286 = vmatpush1.msra.mxu0 0.0
    %4287 = vmatprep.subr.mxu0 0.0
    %4288 = vmatpush1.msra.mxu0 0.0
    %4289 = vmatprep.subr.mxu0 0.0
    %4290 = vmatpush1.msra.mxu0 0.0
    %4291 = vmatprep.subr.mxu0 0.0
    %4292 = vmatpush1.msra.mxu0 0.0
    %4293 = vmatprep.subr.mxu0 0.0
    %4294 = vmatpush1.msra.mxu0 0.0
    %4295 = vmatprep.subr.mxu0 0.0
    %4296 = vmatpush1.msra.mxu0 0.0
    %4297 = vmatprep.subr.mxu0 0.0
    %4298 = vmatpush1.msra.mxu0 0.0
    %4299 = vmatprep.subr.mxu0 0.0
    %4300 = vmatpush1.msra.mxu0 0.0
    %4301 = vmatprep.subr.mxu0 0.0
    %4302 = vmatpush1.msra.mxu0 0.0
    %4303 = vmatprep.subr.mxu0 0.0
    %4304 = vmatpush1.msra.mxu0 0.0
    %4305 = vmatprep.subr.mxu0 0.0
    %4306 = vmatpush1.msra.mxu0 0.0
    %4307 = vmatprep.subr.mxu0 0.0
    %4308 = vmatpush1.msra.mxu0 0.0
    %4309 = vmatprep.mubr.f32.mxu0 0.0
    %4310 = vmatmul.mubr.f32.gmra.mrb[0].mxu0 %v3746
    %v4311 = vpop.f32.mrb[0].mxu0
    %v4312 = vadd.f32 %v3724, %v4311
    %v4313 = vpop.f32.mrb[0].mxu0
    %v4314 = vadd.f32 %v3728, %v4313
    %4315 = vdwg.mxu0
    %v4316 = vmax.f32 %v3815, 0.0
    %v4317 = vmax.f32 %v3817, 0.0
    %v4318 = vmax.f32 %v3886, 0.0
    %v4319 = vmax.f32 %v3888, 0.0
    %v4320 = vmax.f32 %v3957, 0.0
    %v4321 = vmax.f32 %v3959, 0.0
    %v4322 = vmax.f32 %v4028, 0.0
    %v4323 = vmax.f32 %v4030, 0.0
    %v4324 = vmax.f32 %v4099, 0.0
    %v4325 = vmax.f32 %v4101, 0.0
    %v4326 = vmax.f32 %v4170, 0.0
    %v4327 = vmax.f32 %v4172, 0.0
    %v4328 = vmax.f32 %v4241, 0.0
    %v4329 = vmax.f32 %v4243, 0.0
    %v4330 = vmax.f32 %v4312, 0.0
    %v4331 = vmax.f32 %v4314, 0.0
    %v4332 = vld [vmem:[%s53] sm:$0xff]
    %v4333 = vld [vmem:[%s53 + $0x8] sm:$0xff]
    %v4334 = vld [vmem:[%s53 + $0x10] sm:$0xff]
    %v4335 = vld [vmem:[%s53 + $0x18] sm:$0xff]
    %v4336 = vld [vmem:[%s53 + $0x20] sm:$0xff]
    %v4337 = vld [vmem:[%s53 + $0x28] sm:$0xff]
    %v4338 = vld [vmem:[%s53 + $0x30] sm:$0xff]
    %v4339 = vld [vmem:[%s53 + $0x38] sm:$0xff]
    %v4340 = vld [vmem:[%s53 + $0x40] sm:$0xff]
    %v4341 = vld [vmem:[%s53 + $0x48] sm:$0xff]
    %v4342 = vld [vmem:[%s53 + $0x50] sm:$0xff]
    %v4343 = vld [vmem:[%s53 + $0x58] sm:$0xff]
    %v4344 = vld [vmem:[%s53 + $0x60] sm:$0xff]
    %v4345 = vld [vmem:[%s53 + $0x68] sm:$0xff]
    %v4346 = vld [vmem:[%s53 + $0x70] sm:$0xff]
    %v4347 = vld [vmem:[%s53 + $0x78] sm:$0xff]
    %v4348 = vld [vmem:[%s53 + $0x80] sm:$0xff]
    %v4349 = vld [vmem:[%s53 + $0x88] sm:$0xff]
    %v4350 = vld [vmem:[%s53 + $0x90] sm:$0xff]
    %v4351 = vld [vmem:[%s53 + $0x98] sm:$0xff]
    %v4352 = vld [vmem:[%s53 + $0xa0] sm:$0xff]
    %v4353 = vld [vmem:[%s53 + $0xa8] sm:$0xff]
    %v4354 = vld [vmem:[%s53 + $0xb0] sm:$0xff]
    %v4355 = vld [vmem:[%s53 + $0xb8] sm:$0xff]
    %v4356 = vld [vmem:[%s53 + $0xc0] sm:$0xff]
    %v4357 = vld [vmem:[%s53 + $0xc8] sm:$0xff]
    %v4358 = vld [vmem:[%s53 + $0xd0] sm:$0xff]
    %v4359 = vld [vmem:[%s53 + $0xd8] sm:$0xff]
    %v4360 = vld [vmem:[%s53 + $0xe0] sm:$0xff]
    %v4361 = vld [vmem:[%s53 + $0xe8] sm:$0xff]
    %v4362 = vld [vmem:[%s53 + $0xf0] sm:$0xff]
    %v4363 = vld [vmem:[%s53 + $0xf8] sm:$0xff]
    %v4364 = vld [vmem:[%s53 + $0x100] sm:$0xff]
    %v4365 = vld [vmem:[%s53 + $0x108] sm:$0xff]
    %v4366 = vld [vmem:[%s53 + $0x110] sm:$0xff]
    %v4367 = vld [vmem:[%s53 + $0x118] sm:$0xff]
    %v4368 = vld [vmem:[%s53 + $0x120] sm:$0xff]
    %v4369 = vld [vmem:[%s53 + $0x128] sm:$0xff]
    %v4370 = vld [vmem:[%s53 + $0x130] sm:$0xff]
    %v4371 = vld [vmem:[%s53 + $0x138] sm:$0xff]
    %v4372 = vld [vmem:[%s53 + $0x140] sm:$0xff]
    %v4373 = vld [vmem:[%s53 + $0x148] sm:$0xff]
    %v4374 = vld [vmem:[%s53 + $0x150] sm:$0xff]
    %v4375 = vld [vmem:[%s53 + $0x158] sm:$0xff]
    %v4376 = vld [vmem:[%s53 + $0x160] sm:$0xff]
    %v4377 = vld [vmem:[%s53 + $0x168] sm:$0xff]
    %v4378 = vld [vmem:[%s53 + $0x170] sm:$0xff]
    %v4379 = vld [vmem:[%s53 + $0x178] sm:$0xff]
    %v4380 = vld [vmem:[%s53 + $0x180] sm:$0xff]
    %v4381 = vld [vmem:[%s53 + $0x188] sm:$0xff]
    %v4382 = vld [vmem:[%s53 + $0x190] sm:$0xff]
    %v4383 = vld [vmem:[%s53 + $0x198] sm:$0xff]
    %v4384 = vld [vmem:[%s53 + $0x1a0] sm:$0xff]
    %v4385 = vld [vmem:[%s53 + $0x1a8] sm:$0xff]
    %v4386 = vld [vmem:[%s53 + $0x1b0] sm:$0xff]
    %v4387 = vld [vmem:[%s53 + $0x1b8] sm:$0xff]
    %v4388 = vld [vmem:[%s53 + $0x1c0] sm:$0xff]
    %v4389 = vld [vmem:[%s53 + $0x1c8] sm:$0xff]
    %v4390 = vld [vmem:[%s53 + $0x1d0] sm:$0xff]
    %v4391 = vld [vmem:[%s53 + $0x1d8] sm:$0xff]
    %v4392 = vld [vmem:[%s53 + $0x1e0] sm:$0xff]
    %v4393 = vld [vmem:[%s53 + $0x1e8] sm:$0xff]
    %v4394 = vld [vmem:[%s53 + $0x1f0] sm:$0xff]
    %v4395 = vld [vmem:[%s53 + $0x1f8] sm:$0xff]
    %v4396 = vld [vmem:[%s53 + $0x200] sm:$0xff]
    %v4397 = vld [vmem:[%s53 + $0x208] sm:$0xff]
    %v4398 = vld [vmem:[%s53 + $0x210] sm:$0xff]
    %v4399 = vld [vmem:[%s53 + $0x218] sm:$0xff]
    %v4400 = vld [vmem:[%s53 + $0x220] sm:$0xff]
    %v4401 = vld [vmem:[%s53 + $0x228] sm:$0xff]
    %v4402 = vld [vmem:[%s53 + $0x230] sm:$0xff]
    %v4403 = vld [vmem:[%s53 + $0x238] sm:$0xff]
    %v4404 = vld [vmem:[%s53 + $0x240] sm:$0xff]
    %v4405 = vld [vmem:[%s53 + $0x248] sm:$0xff]
    %v4406 = vld [vmem:[%s53 + $0x250] sm:$0xff]
    %v4407 = vld [vmem:[%s53 + $0x258] sm:$0xff]
    %v4408 = vld [vmem:[%s53 + $0x260] sm:$0xff]
    %v4409 = vld [vmem:[%s53 + $0x268] sm:$0xff]
    %v4410 = vld [vmem:[%s53 + $0x270] sm:$0xff]
    %v4411 = vld [vmem:[%s53 + $0x278] sm:$0xff]
    %v4412 = vld [vmem:[%s53 + $0x280] sm:$0xff]
    %v4413 = vld [vmem:[%s53 + $0x288] sm:$0xff]
    %v4414 = vld [vmem:[%s53 + $0x290] sm:$0xff]
    %v4415 = vld [vmem:[%s53 + $0x298] sm:$0xff]
    %v4416 = vld [vmem:[%s53 + $0x2a0] sm:$0xff]
    %v4417 = vld [vmem:[%s53 + $0x2a8] sm:$0xff]
    %v4418 = vld [vmem:[%s53 + $0x2b0] sm:$0xff]
    %v4419 = vld [vmem:[%s53 + $0x2b8] sm:$0xff]
    %v4420 = vld [vmem:[%s53 + $0x2c0] sm:$0xff]
    %v4421 = vld [vmem:[%s53 + $0x2c8] sm:$0xff]
    %v4422 = vld [vmem:[%s53 + $0x2d0] sm:$0xff]
    %v4423 = vld [vmem:[%s53 + $0x2d8] sm:$0xff]
    %v4424 = vld [vmem:[%s53 + $0x2e0] sm:$0xff]
    %v4425 = vld [vmem:[%s53 + $0x2e8] sm:$0xff]
    %v4426 = vld [vmem:[%s53 + $0x2f0] sm:$0xff]
    %v4427 = vld [vmem:[%s53 + $0x2f8] sm:$0xff]
    %v4428 = vld [vmem:[%s53 + $0x300] sm:$0xff]
    %v4429 = vld [vmem:[%s53 + $0x308] sm:$0xff]
    %v4430 = vld [vmem:[%s53 + $0x310] sm:$0xff]
    %v4431 = vld [vmem:[%s53 + $0x318] sm:$0xff]
    %v4432 = vld [vmem:[%s53 + $0x320] sm:$0xff]
    %v4433 = vld [vmem:[%s53 + $0x328] sm:$0xff]
    %v4434 = vld [vmem:[%s53 + $0x330] sm:$0xff]
    %v4435 = vld [vmem:[%s53 + $0x338] sm:$0xff]
    %v4436 = vld [vmem:[%s53 + $0x340] sm:$0xff]
    %v4437 = vld [vmem:[%s53 + $0x348] sm:$0xff]
    %v4438 = vld [vmem:[%s53 + $0x350] sm:$0xff]
    %v4439 = vld [vmem:[%s53 + $0x358] sm:$0xff]
    %v4440 = vld [vmem:[%s53 + $0x360] sm:$0xff]
    %v4441 = vld [vmem:[%s53 + $0x368] sm:$0xff]
    %v4442 = vld [vmem:[%s53 + $0x370] sm:$0xff]
    %v4443 = vld [vmem:[%s53 + $0x378] sm:$0xff]
    %v4444 = vld [vmem:[%s53 + $0x380] sm:$0xff]
    %v4445 = vld [vmem:[%s53 + $0x388] sm:$0xff]
    %v4446 = vld [vmem:[%s53 + $0x390] sm:$0xff]
    %v4447 = vld [vmem:[%s53 + $0x398] sm:$0xff]
    %v4448 = vld [vmem:[%s53 + $0x3a0] sm:$0xff]
    %v4449 = vld [vmem:[%s53 + $0x3a8] sm:$0xff]
    %v4450 = vld [vmem:[%s53 + $0x3b0] sm:$0xff]
    %v4451 = vld [vmem:[%s53 + $0x3b8] sm:$0xff]
    %v4452 = vld [vmem:[%s53 + $0x3c0] sm:$0xff]
    %v4453 = vld [vmem:[%s53 + $0x3c8] sm:$0xff]
    %v4454 = vld [vmem:[%s53 + $0x3d0] sm:$0xff]
    %v4455 = vld [vmem:[%s53 + $0x3d8] sm:$0xff]
    %v4456 = vld [vmem:[%s53 + $0x3e0] sm:$0xff]
    %v4457 = vld [vmem:[%s53 + $0x3e8] sm:$0xff]
    %v4458 = vld [vmem:[%s53 + $0x3f0] sm:$0xff]
    %v4459 = vld [vmem:[%s53 + $0x3f8] sm:$0xff]
    %v4460 = vld [vmem:[%s53 + $0x400] sm:$0xff]
    %v4461 = vld [vmem:[%s53 + $0x408] sm:$0xff]
    %v4462 = vld [vmem:[%s53 + $0x410] sm:$0xff]
    %v4463 = vld [vmem:[%s53 + $0x418] sm:$0xff]
    %v4464 = vld [vmem:[%s53 + $0x420] sm:$0xff]
    %v4465 = vld [vmem:[%s53 + $0x428] sm:$0xff]
    %v4466 = vld [vmem:[%s53 + $0x430] sm:$0xff]
    %v4467 = vld [vmem:[%s53 + $0x438] sm:$0xff]
    %v4468 = vld [vmem:[%s53 + $0x440] sm:$0xff]
    %v4469 = vld [vmem:[%s53 + $0x448] sm:$0xff]
    %v4470 = vld [vmem:[%s53 + $0x450] sm:$0xff]
    %v4471 = vld [vmem:[%s53 + $0x458] sm:$0xff]
    %v4472 = vld [vmem:[%s53 + $0x460] sm:$0xff]
    %v4473 = vld [vmem:[%s53 + $0x468] sm:$0xff]
    %v4474 = vld [vmem:[%s53 + $0x470] sm:$0xff]
    %v4475 = vld [vmem:[%s53 + $0x478] sm:$0xff]
    %v4476 = vld [vmem:[%s53 + $0x480] sm:$0xff]
    %v4477 = vld [vmem:[%s53 + $0x488] sm:$0xff]
    %v4478 = vld [vmem:[%s53 + $0x490] sm:$0xff]
    %v4479 = vld [vmem:[%s53 + $0x498] sm:$0xff]
    %v4480 = vld [vmem:[%s53 + $0x4a0] sm:$0xff]
    %v4481 = vld [vmem:[%s53 + $0x4a8] sm:$0xff]
    %v4482 = vld [vmem:[%s53 + $0x4b0] sm:$0xff]
    %v4483 = vld [vmem:[%s53 + $0x4b8] sm:$0xff]
    %v4484 = vld [vmem:[%s53 + $0x4c0] sm:$0xff]
    %v4485 = vld [vmem:[%s53 + $0x4c8] sm:$0xff]
    %v4486 = vld [vmem:[%s53 + $0x4d0] sm:$0xff]
    %v4487 = vld [vmem:[%s53 + $0x4d8] sm:$0xff]
    %v4488 = vld [vmem:[%s53 + $0x4e0] sm:$0xff]
    %v4489 = vld [vmem:[%s53 + $0x4e8] sm:$0xff]
    %v4490 = vld [vmem:[%s53 + $0x4f0] sm:$0xff]
    %v4491 = vld [vmem:[%s53 + $0x4f8] sm:$0xff]
    %v4492 = vld [vmem:[%s53 + $0x500] sm:$0xff]
    %v4493 = vld [vmem:[%s53 + $0x508] sm:$0xff]
    %v4494 = vld [vmem:[%s53 + $0x510] sm:$0xff]
    %v4495 = vld [vmem:[%s53 + $0x518] sm:$0xff]
    %v4496 = vld [vmem:[%s53 + $0x520] sm:$0xff]
    %v4497 = vld [vmem:[%s53 + $0x528] sm:$0xff]
    %v4498 = vld [vmem:[%s53 + $0x530] sm:$0xff]
    %v4499 = vld [vmem:[%s53 + $0x538] sm:$0xff]
    %v4500 = vld [vmem:[%s53 + $0x540] sm:$0xff]
    %v4501 = vld [vmem:[%s53 + $0x548] sm:$0xff]
    %v4502 = vld [vmem:[%s53 + $0x550] sm:$0xff]
    %v4503 = vld [vmem:[%s53 + $0x558] sm:$0xff]
    %v4504 = vld [vmem:[%s53 + $0x560] sm:$0xff]
    %v4505 = vld [vmem:[%s53 + $0x568] sm:$0xff]
    %v4506 = vld [vmem:[%s53 + $0x570] sm:$0xff]
    %v4507 = vld [vmem:[%s53 + $0x578] sm:$0xff]
    %v4508 = vld [vmem:[%s53 + $0x580] sm:$0xff]
    %v4509 = vld [vmem:[%s53 + $0x588] sm:$0xff]
    %v4510 = vld [vmem:[%s53 + $0x590] sm:$0xff]
    %v4511 = vld [vmem:[%s53 + $0x598] sm:$0xff]
    %v4512 = vld [vmem:[%s53 + $0x5a0] sm:$0xff]
    %v4513 = vld [vmem:[%s53 + $0x5a8] sm:$0xff]
    %v4514 = vld [vmem:[%s53 + $0x5b0] sm:$0xff]
    %v4515 = vld [vmem:[%s53 + $0x5b8] sm:$0xff]
    %v4516 = vld [vmem:[%s53 + $0x5c0] sm:$0xff]
    %v4517 = vld [vmem:[%s53 + $0x5c8] sm:$0xff]
    %v4518 = vld [vmem:[%s53 + $0x5d0] sm:$0xff]
    %v4519 = vld [vmem:[%s53 + $0x5d8] sm:$0xff]
    %v4520 = vld [vmem:[%s53 + $0x5e0] sm:$0xff]
    %v4521 = vld [vmem:[%s53 + $0x5e8] sm:$0xff]
    %v4522 = vld [vmem:[%s53 + $0x5f0] sm:$0xff]
    %v4523 = vld [vmem:[%s53 + $0x5f8] sm:$0xff]
    %v4524 = vld [vmem:[%s53 + $0x600] sm:$0xff]
    %v4525 = vld [vmem:[%s53 + $0x608] sm:$0xff]
    %v4526 = vld [vmem:[%s53 + $0x610] sm:$0xff]
    %v4527 = vld [vmem:[%s53 + $0x618] sm:$0xff]
    %v4528 = vld [vmem:[%s53 + $0x620] sm:$0xff]
    %v4529 = vld [vmem:[%s53 + $0x628] sm:$0xff]
    %v4530 = vld [vmem:[%s53 + $0x630] sm:$0xff]
    %v4531 = vld [vmem:[%s53 + $0x638] sm:$0xff]
    %v4532 = vld [vmem:[%s53 + $0x640] sm:$0xff]
    %v4533 = vld [vmem:[%s53 + $0x648] sm:$0xff]
    %v4534 = vld [vmem:[%s53 + $0x650] sm:$0xff]
    %v4535 = vld [vmem:[%s53 + $0x658] sm:$0xff]
    %v4536 = vld [vmem:[%s53 + $0x660] sm:$0xff]
    %v4537 = vld [vmem:[%s53 + $0x668] sm:$0xff]
    %v4538 = vld [vmem:[%s53 + $0x670] sm:$0xff]
    %v4539 = vld [vmem:[%s53 + $0x678] sm:$0xff]
    %v4540 = vld [vmem:[%s53 + $0x680] sm:$0xff]
    %v4541 = vld [vmem:[%s53 + $0x688] sm:$0xff]
    %v4542 = vld [vmem:[%s53 + $0x690] sm:$0xff]
    %v4543 = vld [vmem:[%s53 + $0x698] sm:$0xff]
    %v4544 = vld [vmem:[%s53 + $0x6a0] sm:$0xff]
    %v4545 = vld [vmem:[%s53 + $0x6a8] sm:$0xff]
    %v4546 = vld [vmem:[%s53 + $0x6b0] sm:$0xff]
    %v4547 = vld [vmem:[%s53 + $0x6b8] sm:$0xff]
    %v4548 = vld [vmem:[%s53 + $0x6c0] sm:$0xff]
    %v4549 = vld [vmem:[%s53 + $0x6c8] sm:$0xff]
    %v4550 = vld [vmem:[%s53 + $0x6d0] sm:$0xff]
    %v4551 = vld [vmem:[%s53 + $0x6d8] sm:$0xff]
    %v4552 = vld [vmem:[%s53 + $0x6e0] sm:$0xff]
    %v4553 = vld [vmem:[%s53 + $0x6e8] sm:$0xff]
    %v4554 = vld [vmem:[%s53 + $0x6f0] sm:$0xff]
    %v4555 = vld [vmem:[%s53 + $0x6f8] sm:$0xff]
    %v4556 = vld [vmem:[%s53 + $0x700] sm:$0xff]
    %v4557 = vld [vmem:[%s53 + $0x708] sm:$0xff]
    %v4558 = vld [vmem:[%s53 + $0x710] sm:$0xff]
    %v4559 = vld [vmem:[%s53 + $0x718] sm:$0xff]
    %v4560 = vld [vmem:[%s53 + $0x720] sm:$0xff]
    %v4561 = vld [vmem:[%s53 + $0x728] sm:$0xff]
    %v4562 = vld [vmem:[%s53 + $0x730] sm:$0xff]
    %v4563 = vld [vmem:[%s53 + $0x738] sm:$0xff]
    %v4564 = vld [vmem:[%s53 + $0x740] sm:$0xff]
    %v4565 = vld [vmem:[%s53 + $0x748] sm:$0xff]
    %v4566 = vld [vmem:[%s53 + $0x750] sm:$0xff]
    %v4567 = vld [vmem:[%s53 + $0x758] sm:$0xff]
    %v4568 = vld [vmem:[%s53 + $0x760] sm:$0xff]
    %v4569 = vld [vmem:[%s53 + $0x768] sm:$0xff]
    %v4570 = vld [vmem:[%s53 + $0x770] sm:$0xff]
    %v4571 = vld [vmem:[%s53 + $0x778] sm:$0xff]
    %v4572 = vld [vmem:[%s53 + $0x780] sm:$0xff]
    %v4573 = vld [vmem:[%s53 + $0x788] sm:$0xff]
    %v4574 = vld [vmem:[%s53 + $0x790] sm:$0xff]
    %v4575 = vld [vmem:[%s53 + $0x798] sm:$0xff]
    %v4576 = vld [vmem:[%s53 + $0x7a0] sm:$0xff]
    %v4577 = vld [vmem:[%s53 + $0x7a8] sm:$0xff]
    %v4578 = vld [vmem:[%s53 + $0x7b0] sm:$0xff]
    %v4579 = vld [vmem:[%s53 + $0x7b8] sm:$0xff]
    %v4580 = vld [vmem:[%s53 + $0x7c0] sm:$0xff]
    %v4581 = vld [vmem:[%s53 + $0x7c8] sm:$0xff]
    %v4582 = vld [vmem:[%s53 + $0x7d0] sm:$0xff]
    %v4583 = vld [vmem:[%s53 + $0x7d8] sm:$0xff]
    %v4584 = vld [vmem:[%s53 + $0x7e0] sm:$0xff]
    %v4585 = vld [vmem:[%s53 + $0x7e8] sm:$0xff]
    %v4586 = vld [vmem:[%s53 + $0x7f0] sm:$0xff]
    %v4587 = vld [vmem:[%s53 + $0x7f8] sm:$0xff]
    %v4588 = vld [vmem:[%s55] sm:$0x1]
    %v4590 = vlaneseq
    %v4591 = vshrl.u32 %v4590, 7
    %v4592 = vsub.s32 0, %v4591
    %v4593 = vrot.slane %v4588, %v4592
    %4595 = vmatprep.subr.mxu0 0.0
    %4596 = vmatpush1.msra.mxu0 %v4332
    %4597 = vmatprep.subr.mxu0 0.0
    %4598 = vmatpush1.msra.mxu0 %v4333
    %4599 = vmatprep.subr.mxu0 0.0
    %4600 = vmatpush1.msra.mxu0 %v4334
    %4601 = vmatprep.subr.mxu0 0.0
    %4602 = vmatpush1.msra.mxu0 %v4335
    %4603 = vmatprep.subr.mxu0 0.0
    %4604 = vmatpush1.msra.mxu0 %v4336
    %4605 = vmatprep.subr.mxu0 0.0
    %4606 = vmatpush1.msra.mxu0 %v4337
    %4607 = vmatprep.subr.mxu0 0.0
    %4608 = vmatpush1.msra.mxu0 %v4338
    %4609 = vmatprep.subr.mxu0 0.0
    %4610 = vmatpush1.msra.mxu0 %v4339
    %4611 = vmatprep.subr.mxu0 0.0
    %4612 = vmatpush1.msra.mxu0 %v4340
    %4613 = vmatprep.subr.mxu0 0.0
    %4614 = vmatpush1.msra.mxu0 %v4341
    %4615 = vmatprep.subr.mxu0 0.0
    %4616 = vmatpush1.msra.mxu0 %v4342
    %4617 = vmatprep.subr.mxu0 0.0
    %4618 = vmatpush1.msra.mxu0 %v4343
    %4619 = vmatprep.subr.mxu0 0.0
    %4620 = vmatpush1.msra.mxu0 %v4344
    %4621 = vmatprep.subr.mxu0 0.0
    %4622 = vmatpush1.msra.mxu0 %v4345
    %4623 = vmatprep.subr.mxu0 0.0
    %4624 = vmatpush1.msra.mxu0 %v4346
    %4625 = vmatprep.subr.mxu0 0.0
    %4626 = vmatpush1.msra.mxu0 %v4347
    %4627 = vmatprep.subr.mxu0 0.0
    %4628 = vmatpush1.msra.mxu0 %v4348
    %4629 = vmatprep.subr.mxu0 0.0
    %4630 = vmatpush1.msra.mxu0 %v4349
    %4631 = vmatprep.subr.mxu0 0.0
    %4632 = vmatpush1.msra.mxu0 %v4350
    %4633 = vmatprep.subr.mxu0 0.0
    %4634 = vmatpush1.msra.mxu0 %v4351
    %4635 = vmatprep.subr.mxu0 0.0
    %4636 = vmatpush1.msra.mxu0 %v4352
    %4637 = vmatprep.subr.mxu0 0.0
    %4638 = vmatpush1.msra.mxu0 %v4353
    %4639 = vmatprep.subr.mxu0 0.0
    %4640 = vmatpush1.msra.mxu0 %v4354
    %4641 = vmatprep.subr.mxu0 0.0
    %4642 = vmatpush1.msra.mxu0 %v4355
    %4643 = vmatprep.subr.mxu0 0.0
    %4644 = vmatpush1.msra.mxu0 %v4356
    %4645 = vmatprep.subr.mxu0 0.0
    %4646 = vmatpush1.msra.mxu0 %v4357
    %4647 = vmatprep.subr.mxu0 0.0
    %4648 = vmatpush1.msra.mxu0 %v4358
    %4649 = vmatprep.subr.mxu0 0.0
    %4650 = vmatpush1.msra.mxu0 %v4359
    %4651 = vmatprep.subr.mxu0 0.0
    %4652 = vmatpush1.msra.mxu0 %v4360
    %4653 = vmatprep.subr.mxu0 0.0
    %4654 = vmatpush1.msra.mxu0 %v4361
    %4655 = vmatprep.subr.mxu0 0.0
    %4656 = vmatpush1.msra.mxu0 %v4362
    %4657 = vmatprep.subr.mxu0 0.0
    %4658 = vmatpush1.msra.mxu0 %v4363
    %4659 = vmatprep.mubr.f32.mxu0 %v4317
    %4660 = vmatmul.mubr.f32.gmra.mrb[0].mxu0 %v4316
    %v4661 = vpop.f32.mrb[0].mxu0
    %v4662 = vadd.f32 %v4593, %v4661
    %v4663 = vpop.f32.mrb[0].mxu0
    %4664 = vdwg.mxu0
    %4665 = vmatprep.subr.mxu0 0.0
    %4666 = vmatpush1.msra.mxu0 %v4364
    %4667 = vmatprep.subr.mxu0 0.0
    %4668 = vmatpush1.msra.mxu0 %v4365
    %4669 = vmatprep.subr.mxu0 0.0
    %4670 = vmatpush1.msra.mxu0 %v4366
    %4671 = vmatprep.subr.mxu0 0.0
    %4672 = vmatpush1.msra.mxu0 %v4367
    %4673 = vmatprep.subr.mxu0 0.0
    %4674 = vmatpush1.msra.mxu0 %v4368
    %4675 = vmatprep.subr.mxu0 0.0
    %4676 = vmatpush1.msra.mxu0 %v4369
    %4677 = vmatprep.subr.mxu0 0.0
    %4678 = vmatpush1.msra.mxu0 %v4370
    %4679 = vmatprep.subr.mxu0 0.0
    %4680 = vmatpush1.msra.mxu0 %v4371
    %4681 = vmatprep.subr.mxu0 0.0
    %4682 = vmatpush1.msra.mxu0 %v4372
    %4683 = vmatprep.subr.mxu0 0.0
    %4684 = vmatpush1.msra.mxu0 %v4373
    %4685 = vmatprep.subr.mxu0 0.0
    %4686 = vmatpush1.msra.mxu0 %v4374
    %4687 = vmatprep.subr.mxu0 0.0
    %4688 = vmatpush1.msra.mxu0 %v4375
    %4689 = vmatprep.subr.mxu0 0.0
    %4690 = vmatpush1.msra.mxu0 %v4376
    %4691 = vmatprep.subr.mxu0 0.0
    %4692 = vmatpush1.msra.mxu0 %v4377
    %4693 = vmatprep.subr.mxu0 0.0
    %4694 = vmatpush1.msra.mxu0 %v4378
    %4695 = vmatprep.subr.mxu0 0.0
    %4696 = vmatpush1.msra.mxu0 %v4379
    %4697 = vmatprep.subr.mxu0 0.0
    %4698 = vmatpush1.msra.mxu0 %v4380
    %4699 = vmatprep.subr.mxu0 0.0
    %4700 = vmatpush1.msra.mxu0 %v4381
    %4701 = vmatprep.subr.mxu0 0.0
    %4702 = vmatpush1.msra.mxu0 %v4382
    %4703 = vmatprep.subr.mxu0 0.0
    %4704 = vmatpush1.msra.mxu0 %v4383
    %4705 = vmatprep.subr.mxu0 0.0
    %4706 = vmatpush1.msra.mxu0 %v4384
    %4707 = vmatprep.subr.mxu0 0.0
    %4708 = vmatpush1.msra.mxu0 %v4385
    %4709 = vmatprep.subr.mxu0 0.0
    %4710 = vmatpush1.msra.mxu0 %v4386
    %4711 = vmatprep.subr.mxu0 0.0
    %4712 = vmatpush1.msra.mxu0 %v4387
    %4713 = vmatprep.subr.mxu0 0.0
    %4714 = vmatpush1.msra.mxu0 %v4388
    %4715 = vmatprep.subr.mxu0 0.0
    %4716 = vmatpush1.msra.mxu0 %v4389
    %4717 = vmatprep.subr.mxu0 0.0
    %4718 = vmatpush1.msra.mxu0 %v4390
    %4719 = vmatprep.subr.mxu0 0.0
    %4720 = vmatpush1.msra.mxu0 %v4391
    %4721 = vmatprep.subr.mxu0 0.0
    %4722 = vmatpush1.msra.mxu0 %v4392
    %4723 = vmatprep.subr.mxu0 0.0
    %4724 = vmatpush1.msra.mxu0 %v4393
    %4725 = vmatprep.subr.mxu0 0.0
    %4726 = vmatpush1.msra.mxu0 %v4394
    %4727 = vmatprep.subr.mxu0 0.0
    %4728 = vmatpush1.msra.mxu0 %v4395
    %4729 = vmatprep.mubr.f32.mxu0 %v4319
    %4730 = vmatmul.mubr.f32.gmra.mrb[0].mxu0 %v4318
    %v4731 = vpop.f32.mrb[0].mxu0
    %v4732 = vadd.f32 %v4662, %v4731
    %v4733 = vpop.f32.mrb[0].mxu0
    %4734 = vdwg.mxu0
    %4735 = vmatprep.subr.mxu0 0.0
    %4736 = vmatpush1.msra.mxu0 %v4396
    %4737 = vmatprep.subr.mxu0 0.0
    %4738 = vmatpush1.msra.mxu0 %v4397
    %4739 = vmatprep.subr.mxu0 0.0
    %4740 = vmatpush1.msra.mxu0 %v4398
    %4741 = vmatprep.subr.mxu0 0.0
    %4742 = vmatpush1.msra.mxu0 %v4399
    %4743 = vmatprep.subr.mxu0 0.0
    %4744 = vmatpush1.msra.mxu0 %v4400
    %4745 = vmatprep.subr.mxu0 0.0
    %4746 = vmatpush1.msra.mxu0 %v4401
    %4747 = vmatprep.subr.mxu0 0.0
    %4748 = vmatpush1.msra.mxu0 %v4402
    %4749 = vmatprep.subr.mxu0 0.0
    %4750 = vmatpush1.msra.mxu0 %v4403
    %4751 = vmatprep.subr.mxu0 0.0
    %4752 = vmatpush1.msra.mxu0 %v4404
    %4753 = vmatprep.subr.mxu0 0.0
    %4754 = vmatpush1.msra.mxu0 %v4405
    %4755 = vmatprep.subr.mxu0 0.0
    %4756 = vmatpush1.msra.mxu0 %v4406
    %4757 = vmatprep.subr.mxu0 0.0
    %4758 = vmatpush1.msra.mxu0 %v4407
    %4759 = vmatprep.subr.mxu0 0.0
    %4760 = vmatpush1.msra.mxu0 %v4408
    %4761 = vmatprep.subr.mxu0 0.0
    %4762 = vmatpush1.msra.mxu0 %v4409
    %4763 = vmatprep.subr.mxu0 0.0
    %4764 = vmatpush1.msra.mxu0 %v4410
    %4765 = vmatprep.subr.mxu0 0.0
    %4766 = vmatpush1.msra.mxu0 %v4411
    %4767 = vmatprep.subr.mxu0 0.0
    %4768 = vmatpush1.msra.mxu0 %v4412
    %4769 = vmatprep.subr.mxu0 0.0
    %4770 = vmatpush1.msra.mxu0 %v4413
    %4771 = vmatprep.subr.mxu0 0.0
    %4772 = vmatpush1.msra.mxu0 %v4414
    %4773 = vmatprep.subr.mxu0 0.0
    %4774 = vmatpush1.msra.mxu0 %v4415
    %4775 = vmatprep.subr.mxu0 0.0
    %4776 = vmatpush1.msra.mxu0 %v4416
    %4777 = vmatprep.subr.mxu0 0.0
    %4778 = vmatpush1.msra.mxu0 %v4417
    %4779 = vmatprep.subr.mxu0 0.0
    %4780 = vmatpush1.msra.mxu0 %v4418
    %4781 = vmatprep.subr.mxu0 0.0
    %4782 = vmatpush1.msra.mxu0 %v4419
    %4783 = vmatprep.subr.mxu0 0.0
    %4784 = vmatpush1.msra.mxu0 %v4420
    %4785 = vmatprep.subr.mxu0 0.0
    %4786 = vmatpush1.msra.mxu0 %v4421
    %4787 = vmatprep.subr.mxu0 0.0
    %4788 = vmatpush1.msra.mxu0 %v4422
    %4789 = vmatprep.subr.mxu0 0.0
    %4790 = vmatpush1.msra.mxu0 %v4423
    %4791 = vmatprep.subr.mxu0 0.0
    %4792 = vmatpush1.msra.mxu0 %v4424
    %4793 = vmatprep.subr.mxu0 0.0
    %4794 = vmatpush1.msra.mxu0 %v4425
    %4795 = vmatprep.subr.mxu0 0.0
    %4796 = vmatpush1.msra.mxu0 %v4426
    %4797 = vmatprep.subr.mxu0 0.0
    %4798 = vmatpush1.msra.mxu0 %v4427
    %4799 = vmatprep.mubr.f32.mxu0 %v4321
    %4800 = vmatmul.mubr.f32.gmra.mrb[0].mxu0 %v4320
    %v4801 = vpop.f32.mrb[0].mxu0
    %v4802 = vadd.f32 %v4732, %v4801
    %v4803 = vpop.f32.mrb[0].mxu0
    %4804 = vdwg.mxu0
    %4805 = vmatprep.subr.mxu0 0.0
    %4806 = vmatpush1.msra.mxu0 %v4428
    %4807 = vmatprep.subr.mxu0 0.0
    %4808 = vmatpush1.msra.mxu0 %v4429
    %4809 = vmatprep.subr.mxu0 0.0
    %4810 = vmatpush1.msra.mxu0 %v4430
    %4811 = vmatprep.subr.mxu0 0.0
    %4812 = vmatpush1.msra.mxu0 %v4431
    %4813 = vmatprep.subr.mxu0 0.0
    %4814 = vmatpush1.msra.mxu0 %v4432
    %4815 = vmatprep.subr.mxu0 0.0
    %4816 = vmatpush1.msra.mxu0 %v4433
    %4817 = vmatprep.subr.mxu0 0.0
    %4818 = vmatpush1.msra.mxu0 %v4434
    %4819 = vmatprep.subr.mxu0 0.0
    %4820 = vmatpush1.msra.mxu0 %v4435
    %4821 = vmatprep.subr.mxu0 0.0
    %4822 = vmatpush1.msra.mxu0 %v4436
    %4823 = vmatprep.subr.mxu0 0.0
    %4824 = vmatpush1.msra.mxu0 %v4437
    %4825 = vmatprep.subr.mxu0 0.0
    %4826 = vmatpush1.msra.mxu0 %v4438
    %4827 = vmatprep.subr.mxu0 0.0
    %4828 = vmatpush1.msra.mxu0 %v4439
    %4829 = vmatprep.subr.mxu0 0.0
    %4830 = vmatpush1.msra.mxu0 %v4440
    %4831 = vmatprep.subr.mxu0 0.0
    %4832 = vmatpush1.msra.mxu0 %v4441
    %4833 = vmatprep.subr.mxu0 0.0
    %4834 = vmatpush1.msra.mxu0 %v4442
    %4835 = vmatprep.subr.mxu0 0.0
    %4836 = vmatpush1.msra.mxu0 %v4443
    %4837 = vmatprep.subr.mxu0 0.0
    %4838 = vmatpush1.msra.mxu0 %v4444
    %4839 = vmatprep.subr.mxu0 0.0
    %4840 = vmatpush1.msra.mxu0 %v4445
    %4841 = vmatprep.subr.mxu0 0.0
    %4842 = vmatpush1.msra.mxu0 %v4446
    %4843 = vmatprep.subr.mxu0 0.0
    %4844 = vmatpush1.msra.mxu0 %v4447
    %4845 = vmatprep.subr.mxu0 0.0
    %4846 = vmatpush1.msra.mxu0 %v4448
    %4847 = vmatprep.subr.mxu0 0.0
    %4848 = vmatpush1.msra.mxu0 %v4449
    %4849 = vmatprep.subr.mxu0 0.0
    %4850 = vmatpush1.msra.mxu0 %v4450
    %4851 = vmatprep.subr.mxu0 0.0
    %4852 = vmatpush1.msra.mxu0 %v4451
    %4853 = vmatprep.subr.mxu0 0.0
    %4854 = vmatpush1.msra.mxu0 %v4452
    %4855 = vmatprep.subr.mxu0 0.0
    %4856 = vmatpush1.msra.mxu0 %v4453
    %4857 = vmatprep.subr.mxu0 0.0
    %4858 = vmatpush1.msra.mxu0 %v4454
    %4859 = vmatprep.subr.mxu0 0.0
    %4860 = vmatpush1.msra.mxu0 %v4455
    %4861 = vmatprep.subr.mxu0 0.0
    %4862 = vmatpush1.msra.mxu0 %v4456
    %4863 = vmatprep.subr.mxu0 0.0
    %4864 = vmatpush1.msra.mxu0 %v4457
    %4865 = vmatprep.subr.mxu0 0.0
    %4866 = vmatpush1.msra.mxu0 %v4458
    %4867 = vmatprep.subr.mxu0 0.0
    %4868 = vmatpush1.msra.mxu0 %v4459
    %4869 = vmatprep.mubr.f32.mxu0 %v4323
    %4870 = vmatmul.mubr.f32.gmra.mrb[0].mxu0 %v4322
    %v4871 = vpop.f32.mrb[0].mxu0
    %v4872 = vadd.f32 %v4802, %v4871
    %v4873 = vpop.f32.mrb[0].mxu0
    %4874 = vdwg.mxu0
    %4875 = vmatprep.subr.mxu0 0.0
    %4876 = vmatpush1.msra.mxu0 %v4460
    %4877 = vmatprep.subr.mxu0 0.0
    %4878 = vmatpush1.msra.mxu0 %v4461
    %4879 = vmatprep.subr.mxu0 0.0
    %4880 = vmatpush1.msra.mxu0 %v4462
    %4881 = vmatprep.subr.mxu0 0.0
    %4882 = vmatpush1.msra.mxu0 %v4463
    %4883 = vmatprep.subr.mxu0 0.0
    %4884 = vmatpush1.msra.mxu0 %v4464
    %4885 = vmatprep.subr.mxu0 0.0
    %4886 = vmatpush1.msra.mxu0 %v4465
    %4887 = vmatprep.subr.mxu0 0.0
    %4888 = vmatpush1.msra.mxu0 %v4466
    %4889 = vmatprep.subr.mxu0 0.0
    %4890 = vmatpush1.msra.mxu0 %v4467
    %4891 = vmatprep.subr.mxu0 0.0
    %4892 = vmatpush1.msra.mxu0 %v4468
    %4893 = vmatprep.subr.mxu0 0.0
    %4894 = vmatpush1.msra.mxu0 %v4469
    %4895 = vmatprep.subr.mxu0 0.0
    %4896 = vmatpush1.msra.mxu0 %v4470
    %4897 = vmatprep.subr.mxu0 0.0
    %4898 = vmatpush1.msra.mxu0 %v4471
    %4899 = vmatprep.subr.mxu0 0.0
    %4900 = vmatpush1.msra.mxu0 %v4472
    %4901 = vmatprep.subr.mxu0 0.0
    %4902 = vmatpush1.msra.mxu0 %v4473
    %4903 = vmatprep.subr.mxu0 0.0
    %4904 = vmatpush1.msra.mxu0 %v4474
    %4905 = vmatprep.subr.mxu0 0.0
    %4906 = vmatpush1.msra.mxu0 %v4475
    %4907 = vmatprep.subr.mxu0 0.0
    %4908 = vmatpush1.msra.mxu0 %v4476
    %4909 = vmatprep.subr.mxu0 0.0
    %4910 = vmatpush1.msra.mxu0 %v4477
    %4911 = vmatprep.subr.mxu0 0.0
    %4912 = vmatpush1.msra.mxu0 %v4478
    %4913 = vmatprep.subr.mxu0 0.0
    %4914 = vmatpush1.msra.mxu0 %v4479
    %4915 = vmatprep.subr.mxu0 0.0
    %4916 = vmatpush1.msra.mxu0 %v4480
    %4917 = vmatprep.subr.mxu0 0.0
    %4918 = vmatpush1.msra.mxu0 %v4481
    %4919 = vmatprep.subr.mxu0 0.0
    %4920 = vmatpush1.msra.mxu0 %v4482
    %4921 = vmatprep.subr.mxu0 0.0
    %4922 = vmatpush1.msra.mxu0 %v4483
    %4923 = vmatprep.subr.mxu0 0.0
    %4924 = vmatpush1.msra.mxu0 %v4484
    %4925 = vmatprep.subr.mxu0 0.0
    %4926 = vmatpush1.msra.mxu0 %v4485
    %4927 = vmatprep.subr.mxu0 0.0
    %4928 = vmatpush1.msra.mxu0 %v4486
    %4929 = vmatprep.subr.mxu0 0.0
    %4930 = vmatpush1.msra.mxu0 %v4487
    %4931 = vmatprep.subr.mxu0 0.0
    %4932 = vmatpush1.msra.mxu0 %v4488
    %4933 = vmatprep.subr.mxu0 0.0
    %4934 = vmatpush1.msra.mxu0 %v4489
    %4935 = vmatprep.subr.mxu0 0.0
    %4936 = vmatpush1.msra.mxu0 %v4490
    %4937 = vmatprep.subr.mxu0 0.0
    %4938 = vmatpush1.msra.mxu0 %v4491
    %4939 = vmatprep.mubr.f32.mxu0 %v4325
    %4940 = vmatmul.mubr.f32.gmra.mrb[0].mxu0 %v4324
    %v4941 = vpop.f32.mrb[0].mxu0
    %v4942 = vadd.f32 %v4872, %v4941
    %v4943 = vpop.f32.mrb[0].mxu0
    %4944 = vdwg.mxu0
    %4945 = vmatprep.subr.mxu0 0.0
    %4946 = vmatpush1.msra.mxu0 %v4492
    %4947 = vmatprep.subr.mxu0 0.0
    %4948 = vmatpush1.msra.mxu0 %v4493
    %4949 = vmatprep.subr.mxu0 0.0
    %4950 = vmatpush1.msra.mxu0 %v4494
    %4951 = vmatprep.subr.mxu0 0.0
    %4952 = vmatpush1.msra.mxu0 %v4495
    %4953 = vmatprep.subr.mxu0 0.0
    %4954 = vmatpush1.msra.mxu0 %v4496
    %4955 = vmatprep.subr.mxu0 0.0
    %4956 = vmatpush1.msra.mxu0 %v4497
    %4957 = vmatprep.subr.mxu0 0.0
    %4958 = vmatpush1.msra.mxu0 %v4498
    %4959 = vmatprep.subr.mxu0 0.0
    %4960 = vmatpush1.msra.mxu0 %v4499
    %4961 = vmatprep.subr.mxu0 0.0
    %4962 = vmatpush1.msra.mxu0 %v4500
    %4963 = vmatprep.subr.mxu0 0.0
    %4964 = vmatpush1.msra.mxu0 %v4501
    %4965 = vmatprep.subr.mxu0 0.0
    %4966 = vmatpush1.msra.mxu0 %v4502
    %4967 = vmatprep.subr.mxu0 0.0
    %4968 = vmatpush1.msra.mxu0 %v4503
    %4969 = vmatprep.subr.mxu0 0.0
    %4970 = vmatpush1.msra.mxu0 %v4504
    %4971 = vmatprep.subr.mxu0 0.0
    %4972 = vmatpush1.msra.mxu0 %v4505
    %4973 = vmatprep.subr.mxu0 0.0
    %4974 = vmatpush1.msra.mxu0 %v4506
    %4975 = vmatprep.subr.mxu0 0.0
    %4976 = vmatpush1.msra.mxu0 %v4507
    %4977 = vmatprep.subr.mxu0 0.0
    %4978 = vmatpush1.msra.mxu0 %v4508
    %4979 = vmatprep.subr.mxu0 0.0
    %4980 = vmatpush1.msra.mxu0 %v4509
    %4981 = vmatprep.subr.mxu0 0.0
    %4982 = vmatpush1.msra.mxu0 %v4510
    %4983 = vmatprep.subr.mxu0 0.0
    %4984 = vmatpush1.msra.mxu0 %v4511
    %4985 = vmatprep.subr.mxu0 0.0
    %4986 = vmatpush1.msra.mxu0 %v4512
    %4987 = vmatprep.subr.mxu0 0.0
    %4988 = vmatpush1.msra.mxu0 %v4513
    %4989 = vmatprep.subr.mxu0 0.0
    %4990 = vmatpush1.msra.mxu0 %v4514
    %4991 = vmatprep.subr.mxu0 0.0
    %4992 = vmatpush1.msra.mxu0 %v4515
    %4993 = vmatprep.subr.mxu0 0.0
    %4994 = vmatpush1.msra.mxu0 %v4516
    %4995 = vmatprep.subr.mxu0 0.0
    %4996 = vmatpush1.msra.mxu0 %v4517
    %4997 = vmatprep.subr.mxu0 0.0
    %4998 = vmatpush1.msra.mxu0 %v4518
    %4999 = vmatprep.subr.mxu0 0.0
    %5000 = vmatpush1.msra.mxu0 %v4519
    %5001 = vmatprep.subr.mxu0 0.0
    %5002 = vmatpush1.msra.mxu0 %v4520
    %5003 = vmatprep.subr.mxu0 0.0
    %5004 = vmatpush1.msra.mxu0 %v4521
    %5005 = vmatprep.subr.mxu0 0.0
    %5006 = vmatpush1.msra.mxu0 %v4522
    %5007 = vmatprep.subr.mxu0 0.0
    %5008 = vmatpush1.msra.mxu0 %v4523
    %5009 = vmatprep.mubr.f32.mxu0 %v4327
    %5010 = vmatmul.mubr.f32.gmra.mrb[0].mxu0 %v4326
    %v5011 = vpop.f32.mrb[0].mxu0
    %v5012 = vadd.f32 %v4942, %v5011
    %v5013 = vpop.f32.mrb[0].mxu0
    %5014 = vdwg.mxu0
    %5015 = vmatprep.subr.mxu0 0.0
    %5016 = vmatpush1.msra.mxu0 %v4524
    %5017 = vmatprep.subr.mxu0 0.0
    %5018 = vmatpush1.msra.mxu0 %v4525
    %5019 = vmatprep.subr.mxu0 0.0
    %5020 = vmatpush1.msra.mxu0 %v4526
    %5021 = vmatprep.subr.mxu0 0.0
    %5022 = vmatpush1.msra.mxu0 %v4527
    %5023 = vmatprep.subr.mxu0 0.0
    %5024 = vmatpush1.msra.mxu0 %v4528
    %5025 = vmatprep.subr.mxu0 0.0
    %5026 = vmatpush1.msra.mxu0 %v4529
    %5027 = vmatprep.subr.mxu0 0.0
    %5028 = vmatpush1.msra.mxu0 %v4530
    %5029 = vmatprep.subr.mxu0 0.0
    %5030 = vmatpush1.msra.mxu0 %v4531
    %5031 = vmatprep.subr.mxu0 0.0
    %5032 = vmatpush1.msra.mxu0 %v4532
    %5033 = vmatprep.subr.mxu0 0.0
    %5034 = vmatpush1.msra.mxu0 %v4533
    %5035 = vmatprep.subr.mxu0 0.0
    %5036 = vmatpush1.msra.mxu0 %v4534
    %5037 = vmatprep.subr.mxu0 0.0
    %5038 = vmatpush1.msra.mxu0 %v4535
    %5039 = vmatprep.subr.mxu0 0.0
    %5040 = vmatpush1.msra.mxu0 %v4536
    %5041 = vmatprep.subr.mxu0 0.0
    %5042 = vmatpush1.msra.mxu0 %v4537
    %5043 = vmatprep.subr.mxu0 0.0
    %5044 = vmatpush1.msra.mxu0 %v4538
    %5045 = vmatprep.subr.mxu0 0.0
    %5046 = vmatpush1.msra.mxu0 %v4539
    %5047 = vmatprep.subr.mxu0 0.0
    %5048 = vmatpush1.msra.mxu0 %v4540
    %5049 = vmatprep.subr.mxu0 0.0
    %5050 = vmatpush1.msra.mxu0 %v4541
    %5051 = vmatprep.subr.mxu0 0.0
    %5052 = vmatpush1.msra.mxu0 %v4542
    %5053 = vmatprep.subr.mxu0 0.0
    %5054 = vmatpush1.msra.mxu0 %v4543
    %5055 = vmatprep.subr.mxu0 0.0
    %5056 = vmatpush1.msra.mxu0 %v4544
    %5057 = vmatprep.subr.mxu0 0.0
    %5058 = vmatpush1.msra.mxu0 %v4545
    %5059 = vmatprep.subr.mxu0 0.0
    %5060 = vmatpush1.msra.mxu0 %v4546
    %5061 = vmatprep.subr.mxu0 0.0
    %5062 = vmatpush1.msra.mxu0 %v4547
    %5063 = vmatprep.subr.mxu0 0.0
    %5064 = vmatpush1.msra.mxu0 %v4548
    %5065 = vmatprep.subr.mxu0 0.0
    %5066 = vmatpush1.msra.mxu0 %v4549
    %5067 = vmatprep.subr.mxu0 0.0
    %5068 = vmatpush1.msra.mxu0 %v4550
    %5069 = vmatprep.subr.mxu0 0.0
    %5070 = vmatpush1.msra.mxu0 %v4551
    %5071 = vmatprep.subr.mxu0 0.0
    %5072 = vmatpush1.msra.mxu0 %v4552
    %5073 = vmatprep.subr.mxu0 0.0
    %5074 = vmatpush1.msra.mxu0 %v4553
    %5075 = vmatprep.subr.mxu0 0.0
    %5076 = vmatpush1.msra.mxu0 %v4554
    %5077 = vmatprep.subr.mxu0 0.0
    %5078 = vmatpush1.msra.mxu0 %v4555
    %5079 = vmatprep.mubr.f32.mxu0 %v4329
    %5080 = vmatmul.mubr.f32.gmra.mrb[0].mxu0 %v4328
    %v5081 = vpop.f32.mrb[0].mxu0
    %v5082 = vadd.f32 %v5012, %v5081
    %v5083 = vpop.f32.mrb[0].mxu0
    %5084 = vdwg.mxu0
    %5085 = vmatprep.subr.mxu0 0.0
    %5086 = vmatpush1.msra.mxu0 %v4556
    %5087 = vmatprep.subr.mxu0 0.0
    %5088 = vmatpush1.msra.mxu0 %v4557
    %5089 = vmatprep.subr.mxu0 0.0
    %5090 = vmatpush1.msra.mxu0 %v4558
    %5091 = vmatprep.subr.mxu0 0.0
    %5092 = vmatpush1.msra.mxu0 %v4559
    %5093 = vmatprep.subr.mxu0 0.0
    %5094 = vmatpush1.msra.mxu0 %v4560
    %5095 = vmatprep.subr.mxu0 0.0
    %5096 = vmatpush1.msra.mxu0 %v4561
    %5097 = vmatprep.subr.mxu0 0.0
    %5098 = vmatpush1.msra.mxu0 %v4562
    %5099 = vmatprep.subr.mxu0 0.0
    %5100 = vmatpush1.msra.mxu0 %v4563
    %5101 = vmatprep.subr.mxu0 0.0
    %5102 = vmatpush1.msra.mxu0 %v4564
    %5103 = vmatprep.subr.mxu0 0.0
    %5104 = vmatpush1.msra.mxu0 %v4565
    %5105 = vmatprep.subr.mxu0 0.0
    %5106 = vmatpush1.msra.mxu0 %v4566
    %5107 = vmatprep.subr.mxu0 0.0
    %5108 = vmatpush1.msra.mxu0 %v4567
    %5109 = vmatprep.subr.mxu0 0.0
    %5110 = vmatpush1.msra.mxu0 %v4568
    %5111 = vmatprep.subr.mxu0 0.0
    %5112 = vmatpush1.msra.mxu0 %v4569
    %5113 = vmatprep.subr.mxu0 0.0
    %5114 = vmatpush1.msra.mxu0 %v4570
    %5115 = vmatprep.subr.mxu0 0.0
    %5116 = vmatpush1.msra.mxu0 %v4571
    %5117 = vmatprep.subr.mxu0 0.0
    %5118 = vmatpush1.msra.mxu0 %v4572
    %5119 = vmatprep.subr.mxu0 0.0
    %5120 = vmatpush1.msra.mxu0 %v4573
    %5121 = vmatprep.subr.mxu0 0.0
    %5122 = vmatpush1.msra.mxu0 %v4574
    %5123 = vmatprep.subr.mxu0 0.0
    %5124 = vmatpush1.msra.mxu0 %v4575
    %5125 = vmatprep.subr.mxu0 0.0
    %5126 = vmatpush1.msra.mxu0 %v4576
    %5127 = vmatprep.subr.mxu0 0.0
    %5128 = vmatpush1.msra.mxu0 %v4577
    %5129 = vmatprep.subr.mxu0 0.0
    %5130 = vmatpush1.msra.mxu0 %v4578
    %5131 = vmatprep.subr.mxu0 0.0
    %5132 = vmatpush1.msra.mxu0 %v4579
    %5133 = vmatprep.subr.mxu0 0.0
    %5134 = vmatpush1.msra.mxu0 %v4580
    %5135 = vmatprep.subr.mxu0 0.0
    %5136 = vmatpush1.msra.mxu0 %v4581
    %5137 = vmatprep.subr.mxu0 0.0
    %5138 = vmatpush1.msra.mxu0 %v4582
    %5139 = vmatprep.subr.mxu0 0.0
    %5140 = vmatpush1.msra.mxu0 %v4583
    %5141 = vmatprep.subr.mxu0 0.0
    %5142 = vmatpush1.msra.mxu0 %v4584
    %5143 = vmatprep.subr.mxu0 0.0
    %5144 = vmatpush1.msra.mxu0 %v4585
    %5145 = vmatprep.subr.mxu0 0.0
    %5146 = vmatpush1.msra.mxu0 %v4586
    %5147 = vmatprep.subr.mxu0 0.0
    %5148 = vmatpush1.msra.mxu0 %v4587
    %5149 = vmatprep.mubr.f32.mxu0 %v4331
    %5150 = vmatmul.mubr.f32.gmra.mrb[0].mxu0 %v4330
    %v5151 = vpop.f32.mrb[0].mxu0
    %v5152 = vadd.f32 %v5082, %v5151
    %v5153 = vpop.f32.mrb[0].mxu0
    %5154 = vdwg.mxu0
    %v5155 = vadd.f32 %v3628, %v5152
    %v5156 = vld [vmem:[%s57] sm:$0x1]
    %v5157 = vld [vmem:[%s59] sm:$0x1]
    %v5158 = vsel %vm1441, %v5155, 0.0
    %5159 = vadd.xlane.f32.xlu0 %v5158
    %v5160 = vpop.xlane.xlu0 %5159
    %v5161 = vmul.f32 %v5160, %v1445
    %v5162 = vsub.f32 %v5155, %v5161
    %v5163 = vmul.f32 %v5162, %v5162
    %v5164 = vsel %vm1441, %v5163, 0.0
    %5165 = vadd.xlane.f32.xlu0 %v5164
    %v5166 = vpop.xlane.xlu0 %5165
    %v5167 = vmul.f32 %v5166, %v1445
    %v5168 = vadd.f32 %v5167, 1e-05
    %v5169 = vrsqrt.pop %v5168
    %v5170 = vmul.f32 %v5162, %v5169
    %v5172 = vlaneseq
    %v5173 = vshrl.u32 %v5172, 7
    %v5174 = vsub.s32 0, %v5173
    %v5175 = vrot.slane %v5156, %v5174
    %v5177 = vmul.f32 %v5170, %v5175
    %v5179 = vlaneseq
    %v5180 = vshrl.u32 %v5179, 7
    %v5181 = vsub.s32 0, %v5180
    %v5182 = vrot.slane %v5157, %v5181
    %v5184 = vadd.f32 %v5177, %v5182
    %v5186 = vrot.slane %v5184, 2
    %5187 = vrot.lane.b32.xlu0 %v5186, 16
    %v5188 = vpop.permute.xlu0 %5187
    %v5190 = vsel %vm869, %v5184, %v5188
    %v5191 = vld [vmem:[%s61] sm:$0xff]
    %v5192 = vld [vmem:[%s61 + $0x8] sm:$0xff]
    %v5193 = vld [vmem:[%s61 + $0x10] sm:$0xff]
    %v5194 = vld [vmem:[%s61 + $0x18] sm:$0xff]
    %v5195 = vld [vmem:[%s63] sm:$0x1]
    %v5197 = vlaneseq
    %v5198 = vshrl.u32 %v5197, 7
    %v5199 = vsub.s32 0, %v5198
    %v5200 = vrot.slane %v5195, %v5199
    %vm5202 = vcmask 261120
    %v5204 = vsel %vm5202, %v5190, 0
    %5206 = vmatprep.subr.mxu0 0.0
    %5207 = vmatpush1.msra.mxu0 %v5191
    %5208 = vmatprep.subr.mxu0 0.0
    %5209 = vmatpush1.msra.mxu0 %v5192
    %5210 = vmatprep.subr.mxu0 0.0
    %5211 = vmatpush1.msra.mxu0 %v5193
    %5212 = vmatprep.subr.mxu0 0.0
    %5213 = vmatpush1.msra.mxu0 %v5194
    %5214 = vmatprep.subr.mxu0 0.0
    %5215 = vmatpush1.msra.mxu0 0.0
    %5216 = vmatprep.subr.mxu0 0.0
    %5217 = vmatpush1.msra.mxu0 0.0
    %5218 = vmatprep.subr.mxu0 0.0
    %5219 = vmatpush1.msra.mxu0 0.0
    %5220 = vmatprep.subr.mxu0 0.0
    %5221 = vmatpush1.msra.mxu0 0.0
    %5222 = vmatprep.subr.mxu0 0.0
    %5223 = vmatpush1.msra.mxu0 0.0
    %5224 = vmatprep.subr.mxu0 0.0
    %5225 = vmatpush1.msra.mxu0 0.0
    %5226 = vmatprep.subr.mxu0 0.0
    %5227 = vmatpush1.msra.mxu0 0.0
    %5228 = vmatprep.subr.mxu0 0.0
    %5229 = vmatpush1.msra.mxu0 0.0
    %5230 = vmatprep.subr.mxu0 0.0
    %5231 = vmatpush1.msra.mxu0 0.0
    %5232 = vmatprep.subr.mxu0 0.0
    %5233 = vmatpush1.msra.mxu0 0.0
    %5234 = vmatprep.subr.mxu0 0.0
    %5235 = vmatpush1.msra.mxu0 0.0
    %5236 = vmatprep.subr.mxu0 0.0
    %5237 = vmatpush1.msra.mxu0 0.0
    %5238 = vmatprep.subr.mxu0 0.0
    %5239 = vmatpush1.msra.mxu0 0.0
    %5240 = vmatprep.subr.mxu0 0.0
    %5241 = vmatpush1.msra.mxu0 0.0
    %5242 = vmatprep.subr.mxu0 0.0
    %5243 = vmatpush1.msra.mxu0 0.0
    %5244 = vmatprep.subr.mxu0 0.0
    %5245 = vmatpush1.msra.mxu0 0.0
    %5246 = vmatprep.subr.mxu0 0.0
    %5247 = vmatpush1.msra.mxu0 0.0
    %5248 = vmatprep.subr.mxu0 0.0
    %5249 = vmatpush1.msra.mxu0 0.0
    %5250 = vmatprep.subr.mxu0 0.0
    %5251 = vmatpush1.msra.mxu0 0.0
    %5252 = vmatprep.subr.mxu0 0.0
    %5253 = vmatpush1.msra.mxu0 0.0
    %5254 = vmatprep.subr.mxu0 0.0
    %5255 = vmatpush1.msra.mxu0 0.0
    %5256 = vmatprep.subr.mxu0 0.0
    %5257 = vmatpush1.msra.mxu0 0.0
    %5258 = vmatprep.subr.mxu0 0.0
    %5259 = vmatpush1.msra.mxu0 0.0
    %5260 = vmatprep.subr.mxu0 0.0
    %5261 = vmatpush1.msra.mxu0 0.0
    %5262 = vmatprep.subr.mxu0 0.0
    %5263 = vmatpush1.msra.mxu0 0.0
    %5264 = vmatprep.subr.mxu0 0.0
    %5265 = vmatpush1.msra.mxu0 0.0
    %5266 = vmatprep.subr.mxu0 0.0
    %5267 = vmatpush1.msra.mxu0 0.0
    %5268 = vmatprep.subr.mxu0 0.0
    %5269 = vmatpush1.msra.mxu0 0.0
    %5270 = vmatprep.mubr.f32.mxu0 0.0
    %5271 = vmatmul.mubr.f32.gmra.mrb[0].mxu0 %v5204
    %v5272 = vpop.f32.mrb[0].mxu0
    %v5273 = vadd.f32 %v5200, %v5272
    %v5274 = vpop.f32.mrb[0].mxu0
    %5275 = vdwg.mxu0
    %v5276 = vmax.f32 %v5273, 0.0
    %v5277 = vld [vmem:[%s65] sm:$0xff]
    %v5278 = vld [vmem:[%s65 + $0x8] sm:$0xff]
    %v5279 = vld [vmem:[%s65 + $0x10] sm:$0xff]
    %v5280 = vld [vmem:[%s65 + $0x18] sm:$0xff]
    %v5281 = vld [vmem:[%s67] sm:$0x1]
    %v5283 = vlaneseq
    %v5284 = vshrl.u32 %v5283, 7
    %v5285 = vsub.s32 0, %v5284
    %v5286 = vrot.slane %v5281, %v5285
    %v5289 = vsel %vm5202, %v5276, 0
    %5291 = vmatprep.subr.mxu0 0.0
    %5292 = vmatpush1.msra.mxu0 %v5277
    %5293 = vmatprep.subr.mxu0 0.0
    %5294 = vmatpush1.msra.mxu0 %v5278
    %5295 = vmatprep.subr.mxu0 0.0
    %5296 = vmatpush1.msra.mxu0 %v5279
    %5297 = vmatprep.subr.mxu0 0.0
    %5298 = vmatpush1.msra.mxu0 %v5280
    %5299 = vmatprep.subr.mxu0 0.0
    %5300 = vmatpush1.msra.mxu0 0.0
    %5301 = vmatprep.subr.mxu0 0.0
    %5302 = vmatpush1.msra.mxu0 0.0
    %5303 = vmatprep.subr.mxu0 0.0
    %5304 = vmatpush1.msra.mxu0 0.0
    %5305 = vmatprep.subr.mxu0 0.0
    %5306 = vmatpush1.msra.mxu0 0.0
    %5307 = vmatprep.subr.mxu0 0.0
    %5308 = vmatpush1.msra.mxu0 0.0
    %5309 = vmatprep.subr.mxu0 0.0
    %5310 = vmatpush1.msra.mxu0 0.0
    %5311 = vmatprep.subr.mxu0 0.0
    %5312 = vmatpush1.msra.mxu0 0.0
    %5313 = vmatprep.subr.mxu0 0.0
    %5314 = vmatpush1.msra.mxu0 0.0
    %5315 = vmatprep.subr.mxu0 0.0
    %5316 = vmatpush1.msra.mxu0 0.0
    %5317 = vmatprep.subr.mxu0 0.0
    %5318 = vmatpush1.msra.mxu0 0.0
    %5319 = vmatprep.subr.mxu0 0.0
    %5320 = vmatpush1.msra.mxu0 0.0
    %5321 = vmatprep.subr.mxu0 0.0
    %5322 = vmatpush1.msra.mxu0 0.0
    %5323 = vmatprep.subr.mxu0 0.0
    %5324 = vmatpush1.msra.mxu0 0.0
    %5325 = vmatprep.subr.mxu0 0.0
    %5326 = vmatpush1.msra.mxu0 0.0
    %5327 = vmatprep.subr.mxu0 0.0
    %5328 = vmatpush1.msra.mxu0 0.0
    %5329 = vmatprep.subr.mxu0 0.0
    %5330 = vmatpush1.msra.mxu0 0.0
    %5331 = vmatprep.subr.mxu0 0.0
    %5332 = vmatpush1.msra.mxu0 0.0
    %5333 = vmatprep.subr.mxu0 0.0
    %5334 = vmatpush1.msra.mxu0 0.0
    %5335 = vmatprep.subr.mxu0 0.0
    %5336 = vmatpush1.msra.mxu0 0.0
    %5337 = vmatprep.subr.mxu0 0.0
    %5338 = vmatpush1.msra.mxu0 0.0
    %5339 = vmatprep.subr.mxu0 0.0
    %5340 = vmatpush1.msra.mxu0 0.0
    %5341 = vmatprep.subr.mxu0 0.0
    %5342 = vmatpush1.msra.mxu0 0.0
    %5343 = vmatprep.subr.mxu0 0.0
    %5344 = vmatpush1.msra.mxu0 0.0
    %5345 = vmatprep.subr.mxu0 0.0
    %5346 = vmatpush1.msra.mxu0 0.0
    %5347 = vmatprep.subr.mxu0 0.0
    %5348 = vmatpush1.msra.mxu0 0.0
    %5349 = vmatprep.subr.mxu0 0.0
    %5350 = vmatpush1.msra.mxu0 0.0
    %5351 = vmatprep.subr.mxu0 0.0
    %5352 = vmatpush1.msra.mxu0 0.0
    %5353 = vmatprep.subr.mxu0 0.0
    %5354 = vmatpush1.msra.mxu0 0.0
    %5355 = vmatprep.mubr.f32.mxu0 0.0
    %5356 = vmatmul.mubr.f32.gmra.mrb[0].mxu0 %v5289
    %v5357 = vpop.f32.mrb[0].mxu0
    %v5358 = vadd.f32 %v5286, %v5357
    %v5359 = vpop.f32.mrb[0].mxu0
    %5360 = vdwg.mxu0
    %vm5361 = vcmask 123904
    %5362 = vst.msk [vmem:[#allocation2] sm:$0x3] %vm5361, %v5358
    // Predicated region
    $region138: #{deccatnet_forward.1} parent=1 // pred_check
      _
    $region139: #{deccatnet_forward.1} parent=1 // pred_check_branch
      %5364 = sbr.rel (0) target = $region141
    $region140: #{deccatnet_forward.1} parent=1 // pred_region
      %s5366 = ssub.s32 32, 32
      %5367 = vsyncadd [#allocation3], %s5366
      %s5369 = sshll.u32 [#allocation2], 4
      %s5370 = int_to_ptr.vmem [resolvable:$true] %s5369
      %5372 = dma.vmem_to_hbm [thread:$0]  %s5370, 32, %s69, [#allocation3]
    $region141: #{deccatnet_forward.1} parent=1 // pred_fallthru
      _
    // Predicated region
    $region142: #{deccatnet_forward.1} parent=1 // pred_check
      _
    $region143: #{deccatnet_forward.1} parent=1 // pred_check_branch
      %5374 = sbr.rel (0) target = $region145
    $region144: #{deccatnet_forward.1} parent=1 // pred_region
      %5375 = dma.done [#allocation3], 32
    $region145: #{deccatnet_forward.1} parent=1 // pred_fallthru
      _
    %5376 = vsyncpa [#allocation3], 1

</llo_original>
